<compile_context>
chip_gen: v5e
topology: v5e:2x2
jax: 0.10.0
libtpu: 0.0.40
codegen_flags: <defaults>
</compile_context>

<pallas_src>
import functools

import jax
import jax.numpy as jnp
from jax import lax
from jax.experimental import pallas as pl
from jax.experimental.pallas import tpu as pltpu

EPS = 1e-5            # torch.nn.LayerNorm default
LANE = 128
_BF16 = jnp.bfloat16

EDGE_TILE = 256       # edge rows per grid step (multiple of 128)
_VMEM_LIMIT = 32 * 1024 * 1024   # explicit scoped-VMEM budget (safe on v5e/v6e/v7x)


def _round_up(x, m):
    return ((x + m - 1) // m) * m


def _pad2d(x, rows, cols):
    r, c = x.shape
    return jnp.pad(x, ((0, rows - r), (0, cols - c)))


def _pad_row(x, cols):
    return _pad2d(x.reshape(1, -1), 1, cols)


def _masked_ln(y, inv_d, mask, gamma, beta):
    """LayerNorm over the real feature lanes; padded lanes (mask==0) stay 0."""
    mean = jnp.sum(y, axis=-1, keepdims=True) * inv_d
    yc = (y - mean) * mask
    var = jnp.sum(yc * yc, axis=-1, keepdims=True) * inv_d
    return yc * lax.rsqrt(var + EPS) * gamma + beta


# ---------------------------------------------------------------------------
# Fused per-layer kernel: edge update + scatter-add aggregation + node update
# ---------------------------------------------------------------------------
def _mgn_layer_kernel(src_ref, dstc_ref, dstr_ref, hn_ref, he_ref,
                      ew1s_ref, ew1d_ref, ew1e_ref, eb1_ref,
                      ew2_ref, eb2_ref, eg_ref, ebt_ref, emsk_ref,
                      nv1n_ref, nv1a_ref, nc1_ref,
                      nv2_ref, nc2_ref, ng_ref, nbt_ref, nmsk_ref,
                      he_out_ref, hn_out_ref,
                      agg_ref, *, edge_dim, node_dim):
    step = pl.program_id(0)
    te = he_ref.shape[0]
    n_pad = hn_ref.shape[0]

    @pl.when(step == 0)
    def _init():
        agg_ref[...] = jnp.zeros_like(agg_ref)

    # Node table stays VMEM-resident (constant index_map); cheap bf16 view.
    hn_b = hn_ref[...].astype(_BF16)                                        # (Np, Dn)

    # ---- in-kernel gather of h[src], h[dst]: one-hot tiles @ h_node (MXU) ----
    lane_ids = lax.broadcasted_iota(jnp.int32, (te, n_pad), 1)
    oh_src = jnp.where(lane_ids == src_ref[...], 1.0, 0.0).astype(_BF16)    # (TE, Np)
    oh_dst = jnp.where(lane_ids == dstc_ref[...], 1.0, 0.0).astype(_BF16)
    h_src = jnp.dot(oh_src, hn_b, preferred_element_type=jnp.float32)       # exact row select
    h_dst = jnp.dot(oh_dst, hn_b, preferred_element_type=jnp.float32)

    he = he_ref[...]                                                        # f32 (TE, De)

    # ---- edge MLP: split matmul == concat([h_src, h_dst, e]) @ W1 ----
    hid = (jnp.dot(h_src.astype(_BF16), ew1s_ref[...], preferred_element_type=jnp.float32)
           + jnp.dot(h_dst.astype(_BF16), ew1d_ref[...], preferred_element_type=jnp.float32)
           + jnp.dot(he.astype(_BF16), ew1e_ref[...], preferred_element_type=jnp.float32)
           + eb1_ref[...])
    hid = jnp.maximum(hid, 0.0)
    y = jnp.dot(hid.astype(_BF16), ew2_ref[...],
                preferred_element_type=jnp.float32) + eb2_ref[...]
    e_new = he + _masked_ln(y, 1.0 / edge_dim, emsk_ref[...], eg_ref[...], ebt_ref[...])
    he_out_ref[...] = e_new

    # ---- fused scatter-add into VMEM-resident (Np, De) aggregation scratch ----
    sub_ids = lax.broadcasted_iota(jnp.int32, (n_pad, te), 0)
    oh_scat = jnp.where(sub_ids == dstr_ref[...], 1.0, 0.0).astype(_BF16)   # (Np, TE)
    agg_ref[...] += jnp.dot(oh_scat, e_new.astype(_BF16),
                            preferred_element_type=jnp.float32)

    # ---- node MLP + LN + residual, once, after the last edge tile ----
    @pl.when(step == pl.num_programs(0) - 1)
    def _node_update():
        hn = hn_ref[...]                                                    # f32 (Np, Dn)
        hid2 = (jnp.dot(hn_b, nv1n_ref[...], preferred_element_type=jnp.float32)
                + jnp.dot(agg_ref[...].astype(_BF16), nv1a_ref[...],
                          preferred_element_type=jnp.float32)
                + nc1_ref[...])
        hid2 = jnp.maximum(hid2, 0.0)
        y2 = jnp.dot(hid2.astype(_BF16), nv2_ref[...],
                     preferred_element_type=jnp.float32) + nc2_ref[...]
        hn_out_ref[...] = hn + _masked_ln(y2, 1.0 / node_dim, nmsk_ref[...],
                                          ng_ref[...], nbt_ref[...])


# ---------------------------------------------------------------------------
# pallas_call wrapper (one call per conv layer)
# ---------------------------------------------------------------------------
def _mgn_layer_call(src_col, dst_col, dst_row, hn_pad, he_pad, pp,
                    *, node_dim, edge_dim):
    e_pad, de_pad = he_pad.shape
    n_pad, dn_pad = hn_pad.shape
    h_pad = pp["e_b1"].shape[1]
    te = EDGE_TILE
    grid = (e_pad // te,)

    row = lambda i: (i, 0)
    col = lambda i: (0, i)
    fixed = lambda i: (0, 0)
    full = lambda shape: pl.BlockSpec(shape, fixed)

    return pl.pallas_call(
        functools.partial(_mgn_layer_kernel, edge_dim=edge_dim, node_dim=node_dim),
        out_shape=(jax.ShapeDtypeStruct((e_pad, de_pad), jnp.float32),   # h_edge_new
                   jax.ShapeDtypeStruct((n_pad, dn_pad), jnp.float32)),  # h_node_new
        grid_spec=pltpu.PrefetchScalarGridSpec(
            num_scalar_prefetch=0,
            grid=grid,
            in_specs=[
                pl.BlockSpec((te, 1), row),          # src indices (column layout)
                pl.BlockSpec((te, 1), row),          # dst indices (column layout)
                pl.BlockSpec((1, te), col),          # dst indices (row layout)
                full((n_pad, dn_pad)),               # h_node (f32, VMEM resident)
                pl.BlockSpec((te, de_pad), row),     # h_edge tile
                full((dn_pad, h_pad)),               # edge W1_src
                full((dn_pad, h_pad)),               # edge W1_dst
                full((de_pad, h_pad)),               # edge W1_edge
                full((1, h_pad)),                    # edge b1
                full((h_pad, de_pad)),               # edge W2
                full((1, de_pad)),                   # edge b2
                full((1, de_pad)),                   # edge LN gamma
                full((1, de_pad)),                   # edge LN beta
                full((1, de_pad)),                   # edge lane mask
                full((dn_pad, h_pad)),               # node V1_node
                full((de_pad, h_pad)),               # node V1_agg
                full((1, h_pad)),                    # node c1
                full((h_pad, dn_pad)),               # node V2
                full((1, dn_pad)),                   # node c2
                full((1, dn_pad)),                   # node LN gamma
                full((1, dn_pad)),                   # node LN beta
                full((1, dn_pad)),                   # node lane mask
            ],
            out_specs=[pl.BlockSpec((te, de_pad), row),        # e_new tiles
                       pl.BlockSpec((n_pad, dn_pad), fixed)],  # h_node_new (resident)
            scratch_shapes=[pltpu.VMEM((n_pad, de_pad), jnp.float32)],  # agg accumulator
        ),
        compiler_params=pltpu.CompilerParams(
            dimension_semantics=("arbitrary",),      # agg accumulates across E tiles
            vmem_limit_bytes=_VMEM_LIMIT),
    )(src_col, dst_col, dst_row, hn_pad, he_pad,
      pp["e_w1_src"], pp["e_w1_dst"], pp["e_w1_edge"], pp["e_b1"],
      pp["e_w2"], pp["e_b2"], pp["e_gamma"], pp["e_beta"], pp["e_mask"],
      pp["n_w1_node"], pp["n_w1_agg"], pp["n_b1"],
      pp["n_w2"], pp["n_b2"], pp["n_gamma"], pp["n_beta"], pp["n_mask"])


# ---------------------------------------------------------------------------
# Padding of parameters to lane-dense (multiples of 128) layouts
# ---------------------------------------------------------------------------
def _pad_layer_params(p, dn_pad, de_pad, dh_pad):
    w = lambda x, r, c: _pad2d(x, r, c).astype(_BF16)   # matmul operands -> bf16
    v = lambda x, c: _pad_row(x, c)                     # biases / LN scales stay f32
    de = p["e_gamma"].shape[0]
    dn = p["n_gamma"].shape[0]
    e_mask = (jnp.arange(de_pad) < de).astype(jnp.float32).reshape(1, de_pad)
    n_mask = (jnp.arange(dn_pad) < dn).astype(jnp.float32).reshape(1, dn_pad)
    return {
        "e_w1_src": w(p["e_w1_src"], dn_pad, dh_pad),
        "e_w1_dst": w(p["e_w1_dst"], dn_pad, dh_pad),
        "e_w1_edge": w(p["e_w1_edge"], de_pad, dh_pad),
        "e_b1": v(p["e_b1"], dh_pad),
        "e_w2": w(p["e_w2"], dh_pad, de_pad),
        "e_b2": v(p["e_b2"], de_pad),
        "e_gamma": v(p["e_gamma"], de_pad),
        "e_beta": v(p["e_beta"], de_pad),
        "e_mask": e_mask,
        "n_w1_node": w(p["n_w1_node"], dn_pad, dh_pad),
        "n_w1_agg": w(p["n_w1_agg"], de_pad, dh_pad),
        "n_b1": v(p["n_b1"], dh_pad),
        "n_w2": w(p["n_w2"], dh_pad, dn_pad),
        "n_b2": v(p["n_b2"], dn_pad),
        "n_gamma": v(p["n_gamma"], dn_pad),
        "n_beta": v(p["n_beta"], dn_pad),
        "n_mask": n_mask,
    }


# ---------------------------------------------------------------------------
# Processor forward (the PyTorch module's forward)
# ---------------------------------------------------------------------------
def processor_forward(h_node, edge_index, h_edge, layer_params):
    n, dn = h_node.shape
    e, de = h_edge.shape
    dh = layer_params[0]["e_b1"].shape[0]

    dn_pad = _round_up(dn, LANE)
    de_pad = _round_up(de, LANE)
    dh_pad = _round_up(dh, LANE)
    n_pad = _round_up(n, LANE)
    e_pad = _round_up(e, EDGE_TILE)

    # TODO(synk): the in-kernel one-hot gather/scatter is O(E * N_pad) MXU work
    # per feature block and assumes the (N_pad, D) node state + aggregate fit
    # VMEM (v7x budget 64 MiB); very large meshes need a dst-sorted segment-sum
    # or an extra node-tile grid axis instead.
    hn = _pad2d(h_node, n_pad, dn_pad)
    he = _pad2d(h_edge, e_pad, de_pad)

    # Pad edge indices with an out-of-range id so padded edges gather zeros and
    # scatter into nothing.
    src = edge_index[0].astype(jnp.int32)
    dst = edge_index[1].astype(jnp.int32)
    fill = jnp.int32(n_pad)
    src_p = jnp.full((e_pad,), fill, jnp.int32).at[:e].set(src)
    dst_p = jnp.full((e_pad,), fill, jnp.int32).at[:e].set(dst)
    src_col = src_p.reshape(e_pad, 1)
    dst_col = dst_p.reshape(e_pad, 1)
    dst_row = dst_p.reshape(1, e_pad)

    for p in layer_params:
        pp = _pad_layer_params(p, dn_pad, de_pad, dh_pad)
        he, hn = _mgn_layer_call(src_col, dst_col, dst_row, hn, he, pp,
                                 node_dim=dn, edge_dim=de)

    return hn[:n, :dn], he[:e, :de]


# ---------------------------------------------------------------------------
# Deterministic synthetic parameters (shapes implied by MeshGraphNetsConv)
# ---------------------------------------------------------------------------
def init_layer_params(key, node_dim, edge_dim, hidden_dim):
    ks = jax.random.split(key, 13)
    lin = lambda k, fi, fo: jax.random.normal(k, (fi, fo), jnp.float32) / jnp.sqrt(fi)
    vec = lambda k, d, s=0.1: s * jax.random.normal(k, (d,), jnp.float32)
    return {
        "e_w1_src": lin(ks[0], node_dim, hidden_dim),
        "e_w1_dst": lin(ks[1], node_dim, hidden_dim),
        "e_w1_edge": lin(ks[2], edge_dim, hidden_dim),
        "e_b1": vec(ks[3], hidden_dim),
        "e_w2": lin(ks[4], hidden_dim, edge_dim),
        "e_b2": vec(ks[5], edge_dim),
        "e_gamma": 1.0 + vec(ks[6], edge_dim),
        "e_beta": vec(ks[7], edge_dim),
        "n_w1_node": lin(ks[8], node_dim, hidden_dim),
        "n_w1_agg": lin(ks[9], edge_dim, hidden_dim),
        "n_b1": vec(ks[10], hidden_dim),
        "n_w2": lin(ks[11], hidden_dim, node_dim),
        "n_b2": vec(ks[12], node_dim),
        "n_gamma": jnp.ones((node_dim,), jnp.float32),
        "n_beta": jnp.zeros((node_dim,), jnp.float32),
    }


# ---------------------------------------------------------------------------
# Pure-JAX reference (mirrors the kernel's bf16 matmul inputs / f32 accum,
# i.e. the PyTorch forward up to matmul-input precision)
# ---------------------------------------------------------------------------
def _ref_mm(a, b):
    return jnp.dot(a.astype(_BF16), b.astype(_BF16),
                   preferred_element_type=jnp.float32)


def _ref_ln(y, gamma, beta):
    mean = jnp.mean(y, axis=-1, keepdims=True)
    yc = y - mean
    var = jnp.mean(yc * yc, axis=-1, keepdims=True)
    return yc * lax.rsqrt(var + EPS) * gamma + beta


def mgn_conv_ref(h_node, edge_index, h_edge, p):
    src, dst = edge_index[0], edge_index[1]
    hid = jax.nn.relu(_ref_mm(h_node[src], p["e_w1_src"])
                      + _ref_mm(h_node[dst], p["e_w1_dst"])
                      + _ref_mm(h_edge, p["e_w1_edge"]) + p["e_b1"])
    e_new = h_edge + _ref_ln(_ref_mm(hid, p["e_w2"]) + p["e_b2"],
                             p["e_gamma"], p["e_beta"])
    agg = jnp.zeros((h_node.shape[0], e_new.shape[1]), jnp.float32)
    agg = agg.at[dst].add(e_new.astype(_BF16).astype(jnp.float32))
    hid2 = jax.nn.relu(_ref_mm(h_node, p["n_w1_node"])
                       + _ref_mm(agg, p["n_w1_agg"]) + p["n_b1"])
    n_new = h_node + _ref_ln(_ref_mm(hid2, p["n_w2"]) + p["n_b2"],
                             p["n_gamma"], p["n_beta"])
    return n_new, e_new


def processor_ref(h_node, edge_index, h_edge, layer_params):
    for p in layer_params:
        h_node, h_edge = mgn_conv_ref(h_node, edge_index, h_edge, p)
    return h_node, h_edge


# ---------------------------------------------------------------------------
if __name__ == "__main__":
    NUM_CONVS = 2
    NODE_DIM = 32
    EDGE_DIM = 32
    HIDDEN_DIM = 64
    N_NODES = 300
    N_EDGES = 900

    key = jax.random.PRNGKey(0)
    k_n, k_e, k_idx, k_p = jax.random.split(key, 4)

    h_node = jax.random.normal(k_n, (N_NODES, NODE_DIM), jnp.float32)
    h_edge = jax.random.normal(k_e, (N_EDGES, EDGE_DIM), jnp.float32)
    edge_index = jax.random.randint(k_idx, (2, N_EDGES), 0, N_NODES,
                                    dtype=jnp.int32)

    layer_params = [init_layer_params(k, NODE_DIM, EDGE_DIM, HIDDEN_DIM)
                    for k in jax.random.split(k_p, NUM_CONVS)]

    fwd = jax.jit(functools.partial(processor_forward, layer_params=layer_params))
    out_node, out_edge = fwd(h_node, edge_index, h_edge)
    jax.block_until_ready((out_node, out_edge))

    ref_node, ref_edge = processor_ref(h_node, edge_index, h_edge, layer_params)
    assert out_node.shape == (N_NODES, NODE_DIM)
    assert out_edge.shape == (N_EDGES, EDGE_DIM)
    err_n = jnp.max(jnp.abs(out_node - ref_node))
    err_e = jnp.max(jnp.abs(out_edge - ref_edge))
    assert jnp.allclose(out_node, ref_node, atol=3e-2, rtol=3e-2), err_n
    assert jnp.allclose(out_edge, ref_edge, atol=3e-2, rtol=3e-2), err_e

    print("KERNEL_OK")
</pallas_src>

<mosaic_0001>
module attributes {stable_mosaic.version = 11 : i64} {
  func.func @_mgn_layer_kernel(%arg0: i32, %arg1: memref<256x1xi32, #tpu.memory_space<vmem>>, %arg2: memref<256x1xi32, #tpu.memory_space<vmem>>, %arg3: memref<1x256xi32, #tpu.memory_space<vmem>>, %arg4: memref<384x128xf32, #tpu.memory_space<vmem>>, %arg5: memref<256x128xf32, #tpu.memory_space<vmem>>, %arg6: memref<128x128xbf16, #tpu.memory_space<vmem>>, %arg7: memref<128x128xbf16, #tpu.memory_space<vmem>>, %arg8: memref<128x128xbf16, #tpu.memory_space<vmem>>, %arg9: memref<1x128xf32, #tpu.memory_space<vmem>>, %arg10: memref<128x128xbf16, #tpu.memory_space<vmem>>, %arg11: memref<1x128xf32, #tpu.memory_space<vmem>>, %arg12: memref<1x128xf32, #tpu.memory_space<vmem>>, %arg13: memref<1x128xf32, #tpu.memory_space<vmem>>, %arg14: memref<1x128xf32, #tpu.memory_space<vmem>>, %arg15: memref<128x128xbf16, #tpu.memory_space<vmem>>, %arg16: memref<128x128xbf16, #tpu.memory_space<vmem>>, %arg17: memref<1x128xf32, #tpu.memory_space<vmem>>, %arg18: memref<128x128xbf16, #tpu.memory_space<vmem>>, %arg19: memref<1x128xf32, #tpu.memory_space<vmem>>, %arg20: memref<1x128xf32, #tpu.memory_space<vmem>>, %arg21: memref<1x128xf32, #tpu.memory_space<vmem>>, %arg22: memref<1x128xf32, #tpu.memory_space<vmem>>, %arg23: memref<256x128xf32, #tpu.memory_space<vmem>>, %arg24: memref<384x128xf32, #tpu.memory_space<vmem>>, %arg25: memref<384x128xf32, #tpu.memory_space<vmem>>) attributes {dimension_semantics = [#tpu.dimension_semantics<arbitrary>], iteration_bounds = array<i64: 4>, scalar_prefetch = 0 : i64, scratch_operands = 1 : i64, tpu.core_type = #tpu.core_type<tc>, window_params = [{transform_indices = @transform_0, window_bounds = array<i64: 256, 1>}, {transform_indices = @transform_1, window_bounds = array<i64: 256, 1>}, {transform_indices = @transform_2, window_bounds = array<i64: 1, 256>}, {pipeline_mode = #tpu.pipeline_mode<synchronous>, transform_indices = @transform_3, window_bounds = array<i64: 384, 128>}, {transform_indices = @transform_4, window_bounds = array<i64: 256, 128>}, {pipeline_mode = #tpu.pipeline_mode<synchronous>, transform_indices = @transform_5, window_bounds = array<i64: 128, 128>}, {pipeline_mode = #tpu.pipeline_mode<synchronous>, transform_indices = @transform_6, window_bounds = array<i64: 128, 128>}, {pipeline_mode = #tpu.pipeline_mode<synchronous>, transform_indices = @transform_7, window_bounds = array<i64: 128, 128>}, {pipeline_mode = #tpu.pipeline_mode<synchronous>, transform_indices = @transform_8, window_bounds = array<i64: 1, 128>}, {pipeline_mode = #tpu.pipeline_mode<synchronous>, transform_indices = @transform_9, window_bounds = array<i64: 128, 128>}, {pipeline_mode = #tpu.pipeline_mode<synchronous>, transform_indices = @transform_10, window_bounds = array<i64: 1, 128>}, {pipeline_mode = #tpu.pipeline_mode<synchronous>, transform_indices = @transform_11, window_bounds = array<i64: 1, 128>}, {pipeline_mode = #tpu.pipeline_mode<synchronous>, transform_indices = @transform_12, window_bounds = array<i64: 1, 128>}, {pipeline_mode = #tpu.pipeline_mode<synchronous>, transform_indices = @transform_13, window_bounds = array<i64: 1, 128>}, {pipeline_mode = #tpu.pipeline_mode<synchronous>, transform_indices = @transform_14, window_bounds = array<i64: 128, 128>}, {pipeline_mode = #tpu.pipeline_mode<synchronous>, transform_indices = @transform_15, window_bounds = array<i64: 128, 128>}, {pipeline_mode = #tpu.pipeline_mode<synchronous>, transform_indices = @transform_16, window_bounds = array<i64: 1, 128>}, {pipeline_mode = #tpu.pipeline_mode<synchronous>, transform_indices = @transform_17, window_bounds = array<i64: 128, 128>}, {pipeline_mode = #tpu.pipeline_mode<synchronous>, transform_indices = @transform_18, window_bounds = array<i64: 1, 128>}, {pipeline_mode = #tpu.pipeline_mode<synchronous>, transform_indices = @transform_19, window_bounds = array<i64: 1, 128>}, {pipeline_mode = #tpu.pipeline_mode<synchronous>, transform_indices = @transform_20, window_bounds = array<i64: 1, 128>}, {pipeline_mode = #tpu.pipeline_mode<synchronous>, transform_indices = @transform_21, window_bounds = array<i64: 1, 128>}, {transform_indices = @transform_22, window_bounds = array<i64: 256, 128>}, {pipeline_mode = #tpu.pipeline_mode<synchronous>, transform_indices = @transform_23, window_bounds = array<i64: 384, 128>}]} {
    %c0_i32 = arith.constant 0 : i32
    %0 = arith.cmpi eq, %arg0, %c0_i32 : i32
    %1 = arith.extui %0 : i1 to i32
    %c0_i32_0 = arith.constant 0 : i32
    %2 = arith.cmpi ne, %1, %c0_i32_0 : i32
    scf.if %2 {
      %cst_53 = arith.constant 0.000000e+00 : f32
      %88 = vector.broadcast %cst_53 : f32 to vector<384x128xf32>
      %c0_54 = arith.constant 0 : index
      %c0_55 = arith.constant 0 : index
      %89 = vector.load %arg25[%c0_54, %c0_55] : memref<384x128xf32, #tpu.memory_space<vmem>>, vector<384x128xf32>
      tpu.vector_store %arg25[%c0_54, %c0_55], %88 {strides = array<i32>} : memref<384x128xf32, #tpu.memory_space<vmem>>, vector<384x128xf32>,
    } else {
    }
    %c0 = arith.constant 0 : index
    %c0_1 = arith.constant 0 : index
    %3 = vector.load %arg4[%c0, %c0_1] : memref<384x128xf32, #tpu.memory_space<vmem>>, vector<384x128xf32>
    %4 = arith.truncf %3 : vector<384x128xf32> to vector<384x128xbf16>
    %5 = tpu.iota {dimensions = array<i32: 1>} : vector<256x384xi32>
    %c0_2 = arith.constant 0 : index
    %c0_3 = arith.constant 0 : index
    %6 = vector.load %arg1[%c0_2, %c0_3] : memref<256x1xi32, #tpu.memory_space<vmem>>, vector<256x1xi32>
    %7 = vector.broadcast %6 : vector<256x1xi32> to vector<256x384xi32>
    %8 = arith.cmpi eq, %5, %7 : vector<256x384xi32>
    %cst = arith.constant 1.000000e+00 : f32
    %cst_4 = arith.constant 0.000000e+00 : f32
    %9 = vector.broadcast %cst : f32 to vector<256x384xf32>
    %10 = vector.broadcast %cst_4 : f32 to vector<256x384xf32>
    %11 = arith.select %8, %9, %10 : vector<256x384xi1>, vector<256x384xf32>
    %12 = arith.truncf %11 : vector<256x384xf32> to vector<256x384xbf16>
    %c0_5 = arith.constant 0 : index
    %c0_6 = arith.constant 0 : index
    %13 = vector.load %arg2[%c0_5, %c0_6] : memref<256x1xi32, #tpu.memory_space<vmem>>, vector<256x1xi32>
    %14 = vector.broadcast %13 : vector<256x1xi32> to vector<256x384xi32>
    %15 = arith.cmpi eq, %5, %14 : vector<256x384xi32>
    %cst_7 = arith.constant 1.000000e+00 : f32
    %cst_8 = arith.constant 0.000000e+00 : f32
    %16 = vector.broadcast %cst_7 : f32 to vector<256x384xf32>
    %17 = vector.broadcast %cst_8 : f32 to vector<256x384xf32>
    %18 = arith.select %15, %16, %17 : vector<256x384xi1>, vector<256x384xf32>
    %19 = arith.truncf %18 : vector<256x384xf32> to vector<256x384xbf16>
    %cst_9 = arith.constant dense<0.000000e+00> : vector<256x128xf32>
    %20 = tpu.matmul %12, %4, %cst_9 {dimension_numbers = #tpu.dot_dimension_numbers<[1], [0], [0], [1], [0, 0, 1, 1], [], []>} : vector<256x384xbf16>, vector<384x128xbf16>, vector<256x128xf32> -> vector<256x128xf32>
    %cst_10 = arith.constant dense<0.000000e+00> : vector<256x128xf32>
    %21 = tpu.matmul %19, %4, %cst_10 {dimension_numbers = #tpu.dot_dimension_numbers<[1], [0], [0], [1], [0, 0, 1, 1], [], []>} : vector<256x384xbf16>, vector<384x128xbf16>, vector<256x128xf32> -> vector<256x128xf32>
    %c0_11 = arith.constant 0 : index
    %c0_12 = arith.constant 0 : index
    %22 = vector.load %arg5[%c0_11, %c0_12] : memref<256x128xf32, #tpu.memory_space<vmem>>, vector<256x128xf32>
    %23 = arith.truncf %20 : vector<256x128xf32> to vector<256x128xbf16>
    %c0_13 = arith.constant 0 : index
    %c0_14 = arith.constant 0 : index
    %24 = vector.load %arg6[%c0_13, %c0_14] : memref<128x128xbf16, #tpu.memory_space<vmem>>, vector<128x128xbf16>
    %cst_15 = arith.constant dense<0.000000e+00> : vector<256x128xf32>
    %25 = tpu.matmul %23, %24, %cst_15 {dimension_numbers = #tpu.dot_dimension_numbers<[1], [0], [0], [1], [0, 0, 1, 1], [], []>} : vector<256x128xbf16>, vector<128x128xbf16>, vector<256x128xf32> -> vector<256x128xf32>
    %26 = arith.truncf %21 : vector<256x128xf32> to vector<256x128xbf16>
    %c0_16 = arith.constant 0 : index
    %c0_17 = arith.constant 0 : index
    %27 = vector.load %arg7[%c0_16, %c0_17] : memref<128x128xbf16, #tpu.memory_space<vmem>>, vector<128x128xbf16>
    %cst_18 = arith.constant dense<0.000000e+00> : vector<256x128xf32>
    %28 = tpu.matmul %26, %27, %cst_18 {dimension_numbers = #tpu.dot_dimension_numbers<[1], [0], [0], [1], [0, 0, 1, 1], [], []>} : vector<256x128xbf16>, vector<128x128xbf16>, vector<256x128xf32> -> vector<256x128xf32>
    %29 = arith.addf %25, %28 : vector<256x128xf32>
    %30 = arith.truncf %22 : vector<256x128xf32> to vector<256x128xbf16>
    %c0_19 = arith.constant 0 : index
    %c0_20 = arith.constant 0 : index
    %31 = vector.load %arg8[%c0_19, %c0_20] : memref<128x128xbf16, #tpu.memory_space<vmem>>, vector<128x128xbf16>
    %cst_21 = arith.constant dense<0.000000e+00> : vector<256x128xf32>
    %32 = tpu.matmul %30, %31, %cst_21 {dimension_numbers = #tpu.dot_dimension_numbers<[1], [0], [0], [1], [0, 0, 1, 1], [], []>} : vector<256x128xbf16>, vector<128x128xbf16>, vector<256x128xf32> -> vector<256x128xf32>
    %33 = arith.addf %29, %32 : vector<256x128xf32>
    %c0_22 = arith.constant 0 : index
    %c0_23 = arith.constant 0 : index
    %34 = vector.load %arg9[%c0_22, %c0_23] : memref<1x128xf32, #tpu.memory_space<vmem>>, vector<1x128xf32>
    %35 = vector.broadcast %34 : vector<1x128xf32> to vector<256x128xf32>
    %36 = arith.addf %33, %35 : vector<256x128xf32>
    %cst_24 = arith.constant 0.000000e+00 : f32
    %37 = vector.broadcast %cst_24 : f32 to vector<256x128xf32>
    %38 = arith.maximumf %36, %37 : vector<256x128xf32>
    %39 = arith.truncf %38 : vector<256x128xf32> to vector<256x128xbf16>
    %c0_25 = arith.constant 0 : index
    %c0_26 = arith.constant 0 : index
    %40 = vector.load %arg10[%c0_25, %c0_26] : memref<128x128xbf16, #tpu.memory_space<vmem>>, vector<128x128xbf16>
    %cst_27 = arith.constant dense<0.000000e+00> : vector<256x128xf32>
    %41 = tpu.matmul %39, %40, %cst_27 {dimension_numbers = #tpu.dot_dimension_numbers<[1], [0], [0], [1], [0, 0, 1, 1], [], []>} : vector<256x128xbf16>, vector<128x128xbf16>, vector<256x128xf32> -> vector<256x128xf32>
    %c0_28 = arith.constant 0 : index
    %c0_29 = arith.constant 0 : index
    %42 = vector.load %arg11[%c0_28, %c0_29] : memref<1x128xf32, #tpu.memory_space<vmem>>, vector<1x128xf32>
    %43 = vector.broadcast %42 : vector<1x128xf32> to vector<256x128xf32>
    %44 = arith.addf %41, %43 : vector<256x128xf32>
    %c0_30 = arith.constant 0 : index
    %c0_31 = arith.constant 0 : index
    %45 = vector.load %arg14[%c0_30, %c0_31] : memref<1x128xf32, #tpu.memory_space<vmem>>, vector<1x128xf32>
    %c0_32 = arith.constant 0 : index
    %c0_33 = arith.constant 0 : index
    %46 = vector.load %arg12[%c0_32, %c0_33] : memref<1x128xf32, #tpu.memory_space<vmem>>, vector<1x128xf32>
    %c0_34 = arith.constant 0 : index
    %c0_35 = arith.constant 0 : index
    %47 = vector.load %arg13[%c0_34, %c0_35] : memref<1x128xf32, #tpu.memory_space<vmem>>, vector<1x128xf32>
    %cst_36 = arith.constant dense<0.000000e+00> : vector<256xf32>
    %48 = vector.multi_reduction <add>, %44, %cst_36 [1] : vector<256x128xf32> to vector<256xf32>
    %49 = vector.shape_cast %48 : vector<256xf32> to vector<256x1xf32>
    %cst_37 = arith.constant 3.125000e-02 : f32
    %50 = vector.broadcast %cst_37 : f32 to vector<256x1xf32>
    %51 = arith.mulf %49, %50 : vector<256x1xf32>
    %52 = vector.broadcast %51 : vector<256x1xf32> to vector<256x128xf32>
    %53 = arith.subf %44, %52 : vector<256x128xf32>
    %54 = vector.broadcast %45 : vector<1x128xf32> to vector<256x128xf32>
    %55 = arith.mulf %53, %54 : vector<256x128xf32>
    %56 = arith.mulf %55, %55 : vector<256x128xf32>
    %cst_38 = arith.constant dense<0.000000e+00> : vector<256xf32>
    %57 = vector.multi_reduction <add>, %56, %cst_38 [1] : vector<256x128xf32> to vector<256xf32>
    %58 = vector.shape_cast %57 : vector<256xf32> to vector<256x1xf32>
    %cst_39 = arith.constant 3.125000e-02 : f32
    %59 = vector.broadcast %cst_39 : f32 to vector<256x1xf32>
    %60 = arith.mulf %58, %59 : vector<256x1xf32>
    %cst_40 = arith.constant 9.99999974E-6 : f32
    %61 = vector.broadcast %cst_40 : f32 to vector<256x1xf32>
    %62 = arith.addf %60, %61 : vector<256x1xf32>
    %63 = math.rsqrt %62 : vector<256x1xf32>
    %64 = vector.broadcast %63 : vector<256x1xf32> to vector<256x128xf32>
    %65 = arith.mulf %55, %64 : vector<256x128xf32>
    %66 = vector.broadcast %46 : vector<1x128xf32> to vector<256x128xf32>
    %67 = arith.mulf %65, %66 : vector<256x128xf32>
    %68 = vector.broadcast %47 : vector<1x128xf32> to vector<256x128xf32>
    %69 = arith.addf %67, %68 : vector<256x128xf32>
    %70 = arith.addf %22, %69 : vector<256x128xf32>
    %c0_41 = arith.constant 0 : index
    %c0_42 = arith.constant 0 : index
    %71 = vector.load %arg23[%c0_41, %c0_42] : memref<256x128xf32, #tpu.memory_space<vmem>>, vector<256x128xf32>
    tpu.vector_store %arg23[%c0_41, %c0_42], %70 {strides = array<i32>} : memref<256x128xf32, #tpu.memory_space<vmem>>, vector<256x128xf32>,
    %72 = tpu.iota {dimensions = array<i32: 0>} : vector<384x256xi32>
    %c0_43 = arith.constant 0 : index
    %c0_44 = arith.constant 0 : index
    %73 = vector.load %arg3[%c0_43, %c0_44] : memref<1x256xi32, #tpu.memory_space<vmem>>, vector<1x256xi32>
    %74 = vector.broadcast %73 : vector<1x256xi32> to vector<384x256xi32>
    %75 = arith.cmpi eq, %72, %74 : vector<384x256xi32>
    %cst_45 = arith.constant 1.000000e+00 : f32
    %cst_46 = arith.constant 0.000000e+00 : f32
    %76 = vector.broadcast %cst_45 : f32 to vector<384x256xf32>
    %77 = vector.broadcast %cst_46 : f32 to vector<384x256xf32>
    %78 = arith.select %75, %76, %77 : vector<384x256xi1>, vector<384x256xf32>
    %79 = arith.truncf %78 : vector<384x256xf32> to vector<384x256xbf16>
    %c0_47 = arith.constant 0 : index
    %c0_48 = arith.constant 0 : index
    %80 = vector.load %arg25[%c0_47, %c0_48] : memref<384x128xf32, #tpu.memory_space<vmem>>, vector<384x128xf32>
    %81 = arith.truncf %70 : vector<256x128xf32> to vector<256x128xbf16>
    %cst_49 = arith.constant dense<0.000000e+00> : vector<384x128xf32>
    %82 = tpu.matmul %79, %81, %cst_49 {dimension_numbers = #tpu.dot_dimension_numbers<[1], [0], [0], [1], [0, 0, 1, 1], [], []>} : vector<384x256xbf16>, vector<256x128xbf16>, vector<384x128xf32> -> vector<384x128xf32>
    %83 = arith.addf %80, %82 : vector<384x128xf32>
    %c0_50 = arith.constant 0 : index
    %c0_51 = arith.constant 0 : index
    %84 = vector.load %arg25[%c0_50, %c0_51] : memref<384x128xf32, #tpu.memory_space<vmem>>, vector<384x128xf32>
    tpu.vector_store %arg25[%c0_50, %c0_51], %83 {strides = array<i32>} : memref<384x128xf32, #tpu.memory_space<vmem>>, vector<384x128xf32>,
    %c3_i32 = arith.constant 3 : i32
    %85 = arith.cmpi eq, %arg0, %c3_i32 : i32
    %86 = arith.extui %85 : i1 to i32
    %c0_i32_52 = arith.constant 0 : i32
    %87 = arith.cmpi ne, %86, %c0_i32_52 : i32
    scf.if %87 {
      %c0_53 = arith.constant 0 : index
      %c0_54 = arith.constant 0 : index
      %88 = vector.load %arg4[%c0_53, %c0_54] : memref<384x128xf32, #tpu.memory_space<vmem>>, vector<384x128xf32>
      %c0_55 = arith.constant 0 : index
      %c0_56 = arith.constant 0 : index
      %89 = vector.load %arg15[%c0_55, %c0_56] : memref<128x128xbf16, #tpu.memory_space<vmem>>, vector<128x128xbf16>
      %cst_57 = arith.constant dense<0.000000e+00> : vector<384x128xf32>
      %90 = tpu.matmul %4, %89, %cst_57 {dimension_numbers = #tpu.dot_dimension_numbers<[1], [0], [0], [1], [0, 0, 1, 1], [], []>} : vector<384x128xbf16>, vector<128x128xbf16>, vector<384x128xf32> -> vector<384x128xf32>
      %c0_58 = arith.constant 0 : index
      %c0_59 = arith.constant 0 : index
      %91 = vector.load %arg25[%c0_58, %c0_59] : memref<384x128xf32, #tpu.memory_space<vmem>>, vector<384x128xf32>
      %92 = arith.truncf %91 : vector<384x128xf32> to vector<384x128xbf16>
      %c0_60 = arith.constant 0 : index
      %c0_61 = arith.constant 0 : index
      %93 = vector.load %arg16[%c0_60, %c0_61] : memref<128x128xbf16, #tpu.memory_space<vmem>>, vector<128x128xbf16>
      %cst_62 = arith.constant dense<0.000000e+00> : vector<384x128xf32>
      %94 = tpu.matmul %92, %93, %cst_62 {dimension_numbers = #tpu.dot_dimension_numbers<[1], [0], [0], [1], [0, 0, 1, 1], [], []>} : vector<384x128xbf16>, vector<128x128xbf16>, vector<384x128xf32> -> vector<384x128xf32>
      %95 = arith.addf %90, %94 : vector<384x128xf32>
      %c0_63 = arith.constant 0 : index
      %c0_64 = arith.constant 0 : index
      %96 = vector.load %arg17[%c0_63, %c0_64] : memref<1x128xf32, #tpu.memory_space<vmem>>, vector<1x128xf32>
      %97 = vector.broadcast %96 : vector<1x128xf32> to vector<384x128xf32>
      %98 = arith.addf %95, %97 : vector<384x128xf32>
      %cst_65 = arith.constant 0.000000e+00 : f32
      %99 = vector.broadcast %cst_65 : f32 to vector<384x128xf32>
      %100 = arith.maximumf %98, %99 : vector<384x128xf32>
      %101 = arith.truncf %100 : vector<384x128xf32> to vector<384x128xbf16>
      %c0_66 = arith.constant 0 : index
      %c0_67 = arith.constant 0 : index
      %102 = vector.load %arg18[%c0_66, %c0_67] : memref<128x128xbf16, #tpu.memory_space<vmem>>, vector<128x128xbf16>
      %cst_68 = arith.constant dense<0.000000e+00> : vector<384x128xf32>
      %103 = tpu.matmul %101, %102, %cst_68 {dimension_numbers = #tpu.dot_dimension_numbers<[1], [0], [0], [1], [0, 0, 1, 1], [], []>} : vector<384x128xbf16>, vector<128x128xbf16>, vector<384x128xf32> -> vector<384x128xf32>
      %c0_69 = arith.constant 0 : index
      %c0_70 = arith.constant 0 : index
      %104 = vector.load %arg19[%c0_69, %c0_70] : memref<1x128xf32, #tpu.memory_space<vmem>>, vector<1x128xf32>
      %105 = vector.broadcast %104 : vector<1x128xf32> to vector<384x128xf32>
      %106 = arith.addf %103, %105 : vector<384x128xf32>
      %c0_71 = arith.constant 0 : index
      %c0_72 = arith.constant 0 : index
      %107 = vector.load %arg22[%c0_71, %c0_72] : memref<1x128xf32, #tpu.memory_space<vmem>>, vector<1x128xf32>
      %c0_73 = arith.constant 0 : index
      %c0_74 = arith.constant 0 : index
      %108 = vector.load %arg20[%c0_73, %c0_74] : memref<1x128xf32, #tpu.memory_space<vmem>>, vector<1x128xf32>
      %c0_75 = arith.constant 0 : index
      %c0_76 = arith.constant 0 : index
      %109 = vector.load %arg21[%c0_75, %c0_76] : memref<1x128xf32, #tpu.memory_space<vmem>>, vector<1x128xf32>
      %cst_77 = arith.constant dense<0.000000e+00> : vector<384xf32>
      %110 = vector.multi_reduction <add>, %106, %cst_77 [1] : vector<384x128xf32> to vector<384xf32>
      %111 = vector.shape_cast %110 : vector<384xf32> to vector<384x1xf32>
      %cst_78 = arith.constant 3.125000e-02 : f32
      %112 = vector.broadcast %cst_78 : f32 to vector<384x1xf32>
      %113 = arith.mulf %111, %112 : vector<384x1xf32>
      %114 = vector.broadcast %113 : vector<384x1xf32> to vector<384x128xf32>
      %115 = arith.subf %106, %114 : vector<384x128xf32>
      %116 = vector.broadcast %107 : vector<1x128xf32> to vector<384x128xf32>
      %117 = arith.mulf %115, %116 : vector<384x128xf32>
      %118 = arith.mulf %117, %117 : vector<384x128xf32>
      %cst_79 = arith.constant dense<0.000000e+00> : vector<384xf32>
      %119 = vector.multi_reduction <add>, %118, %cst_79 [1] : vector<384x128xf32> to vector<384xf32>
      %120 = vector.shape_cast %119 : vector<384xf32> to vector<384x1xf32>
      %cst_80 = arith.constant 3.125000e-02 : f32
      %121 = vector.broadcast %cst_80 : f32 to vector<384x1xf32>
      %122 = arith.mulf %120, %121 : vector<384x1xf32>
      %cst_81 = arith.constant 9.99999974E-6 : f32
      %123 = vector.broadcast %cst_81 : f32 to vector<384x1xf32>
      %124 = arith.addf %122, %123 : vector<384x1xf32>
      %125 = math.rsqrt %124 : vector<384x1xf32>
      %126 = vector.broadcast %125 : vector<384x1xf32> to vector<384x128xf32>
      %127 = arith.mulf %117, %126 : vector<384x128xf32>
      %128 = vector.broadcast %108 : vector<1x128xf32> to vector<384x128xf32>
      %129 = arith.mulf %127, %128 : vector<384x128xf32>
      %130 = vector.broadcast %109 : vector<1x128xf32> to vector<384x128xf32>
      %131 = arith.addf %129, %130 : vector<384x128xf32>
      %132 = arith.addf %88, %131 : vector<384x128xf32>
      %c0_82 = arith.constant 0 : index
      %c0_83 = arith.constant 0 : index
      %133 = vector.load %arg24[%c0_82, %c0_83] : memref<384x128xf32, #tpu.memory_space<vmem>>, vector<384x128xf32>
      tpu.vector_store %arg24[%c0_82, %c0_83], %132 {strides = array<i32>} : memref<384x128xf32, #tpu.memory_space<vmem>>, vector<384x128xf32>,
    } else {
    }
    return
  }
  func.func @transform_0(%arg0: i32) -> (i32, i32) {
    %c0_i32 = arith.constant 0 : i32
    %c0_i32_0 = arith.constant 0 : i32
    return %arg0, %c0_i32 : i32, i32
  }
  func.func @transform_1(%arg0: i32) -> (i32, i32) {
    %c0_i32 = arith.constant 0 : i32
    %c0_i32_0 = arith.constant 0 : i32
    return %arg0, %c0_i32 : i32, i32
  }
  func.func @transform_2(%arg0: i32) -> (i32, i32) {
    %c0_i32 = arith.constant 0 : i32
    %c0_i32_0 = arith.constant 0 : i32
    return %c0_i32, %arg0 : i32, i32
  }
  func.func @transform_3(%arg0: i32) -> (i32, i32) {
    %c0_i32 = arith.constant 0 : i32
    %c0_i32_0 = arith.constant 0 : i32
    %c0_i32_1 = arith.constant 0 : i32
    return %c0_i32, %c0_i32_0 : i32, i32
  }
  func.func @transform_4(%arg0: i32) -> (i32, i32) {
    %c0_i32 = arith.constant 0 : i32
    %c0_i32_0 = arith.constant 0 : i32
    return %arg0, %c0_i32 : i32, i32
  }
  func.func @transform_5(%arg0: i32) -> (i32, i32) {
    %c0_i32 = arith.constant 0 : i32
    %c0_i32_0 = arith.constant 0 : i32
    %c0_i32_1 = arith.constant 0 : i32
    return %c0_i32, %c0_i32_0 : i32, i32
  }
  func.func @transform_6(%arg0: i32) -> (i32, i32) {
    %c0_i32 = arith.constant 0 : i32
    %c0_i32_0 = arith.constant 0 : i32
    %c0_i32_1 = arith.constant 0 : i32
    return %c0_i32, %c0_i32_0 : i32, i32
  }
  func.func @transform_7(%arg0: i32) -> (i32, i32) {
    %c0_i32 = arith.constant 0 : i32
    %c0_i32_0 = arith.constant 0 : i32
    %c0_i32_1 = arith.constant 0 : i32
    return %c0_i32, %c0_i32_0 : i32, i32
  }
  func.func @transform_8(%arg0: i32) -> (i32, i32) {
    %c0_i32 = arith.constant 0 : i32
    %c0_i32_0 = arith.constant 0 : i32
    %c0_i32_1 = arith.constant 0 : i32
    return %c0_i32, %c0_i32_0 : i32, i32
  }
  func.func @transform_9(%arg0: i32) -> (i32, i32) {
    %c0_i32 = arith.constant 0 : i32
    %c0_i32_0 = arith.constant 0 : i32
    %c0_i32_1 = arith.constant 0 : i32
    return %c0_i32, %c0_i32_0 : i32, i32
  }
  func.func @transform_10(%arg0: i32) -> (i32, i32) {
    %c0_i32 = arith.constant 0 : i32
    %c0_i32_0 = arith.constant 0 : i32
    %c0_i32_1 = arith.constant 0 : i32
    return %c0_i32, %c0_i32_0 : i32, i32
  }
  func.func @transform_11(%arg0: i32) -> (i32, i32) {
    %c0_i32 = arith.constant 0 : i32
    %c0_i32_0 = arith.constant 0 : i32
    %c0_i32_1 = arith.constant 0 : i32
    return %c0_i32, %c0_i32_0 : i32, i32
  }
  func.func @transform_12(%arg0: i32) -> (i32, i32) {
    %c0_i32 = arith.constant 0 : i32
    %c0_i32_0 = arith.constant 0 : i32
    %c0_i32_1 = arith.constant 0 : i32
    return %c0_i32, %c0_i32_0 : i32, i32
  }
  func.func @transform_13(%arg0: i32) -> (i32, i32) {
    %c0_i32 = arith.constant 0 : i32
    %c0_i32_0 = arith.constant 0 : i32
    %c0_i32_1 = arith.constant 0 : i32
    return %c0_i32, %c0_i32_0 : i32, i32
  }
  func.func @transform_14(%arg0: i32) -> (i32, i32) {
    %c0_i32 = arith.constant 0 : i32
    %c0_i32_0 = arith.constant 0 : i32
    %c0_i32_1 = arith.constant 0 : i32
    return %c0_i32, %c0_i32_0 : i32, i32
  }
  func.func @transform_15(%arg0: i32) -> (i32, i32) {
    %c0_i32 = arith.constant 0 : i32
    %c0_i32_0 = arith.constant 0 : i32
    %c0_i32_1 = arith.constant 0 : i32
    return %c0_i32, %c0_i32_0 : i32, i32
  }
  func.func @transform_16(%arg0: i32) -> (i32, i32) {
    %c0_i32 = arith.constant 0 : i32
    %c0_i32_0 = arith.constant 0 : i32
    %c0_i32_1 = arith.constant 0 : i32
    return %c0_i32, %c0_i32_0 : i32, i32
  }
  func.func @transform_17(%arg0: i32) -> (i32, i32) {
    %c0_i32 = arith.constant 0 : i32
    %c0_i32_0 = arith.constant 0 : i32
    %c0_i32_1 = arith.constant 0 : i32
    return %c0_i32, %c0_i32_0 : i32, i32
  }
  func.func @transform_18(%arg0: i32) -> (i32, i32) {
    %c0_i32 = arith.constant 0 : i32
    %c0_i32_0 = arith.constant 0 : i32
    %c0_i32_1 = arith.constant 0 : i32
    return %c0_i32, %c0_i32_0 : i32, i32
  }
  func.func @transform_19(%arg0: i32) -> (i32, i32) {
    %c0_i32 = arith.constant 0 : i32
    %c0_i32_0 = arith.constant 0 : i32
    %c0_i32_1 = arith.constant 0 : i32
    return %c0_i32, %c0_i32_0 : i32, i32
  }
  func.func @transform_20(%arg0: i32) -> (i32, i32) {
    %c0_i32 = arith.constant 0 : i32
    %c0_i32_0 = arith.constant 0 : i32
    %c0_i32_1 = arith.constant 0 : i32
    return %c0_i32, %c0_i32_0 : i32, i32
  }
  func.func @transform_21(%arg0: i32) -> (i32, i32) {
    %c0_i32 = arith.constant 0 : i32
    %c0_i32_0 = arith.constant 0 : i32
    %c0_i32_1 = arith.constant 0 : i32
    return %c0_i32, %c0_i32_0 : i32, i32
  }
  func.func @transform_22(%arg0: i32) -> (i32, i32) {
    %c0_i32 = arith.constant 0 : i32
    %c0_i32_0 = arith.constant 0 : i32
    return %arg0, %c0_i32 : i32, i32
  }
  func.func @transform_23(%arg0: i32) -> (i32, i32) {
    %c0_i32 = arith.constant 0 : i32
    %c0_i32_0 = arith.constant 0 : i32
    %c0_i32_1 = arith.constant 0 : i32
    return %c0_i32, %c0_i32_0 : i32, i32
  }
}

</mosaic_0001>

<llo_original>
// kernel: processor_forward.2
$region0: #{processor_forward.2}
  #allocation0 [shape = 'u32[]', space=smem, size = 0x4, offset = 0x4, fixed_abs, tag = 'smem constant byte address 0x4 - core index']
  #allocation1 [shape = 'u32[72,128]{1,0:T(1,128)}', space=vmem, size = 0x9000, scoped, tag = 'internal scratch']
  #allocation2 [shape = 'f32[384,128]{1,0:T(8,128)}', space=vmem, size = 0x30000, scoped, tag = 'scratch operand']
  %s0 = inlined_call_operand.vmem [shape: s32[1024,1], index: 0, kind: input, shape index: {}]
  %s1 = inlined_call_operand.vmem [shape: s32[1024,1], index: 1, kind: input, shape index: {}]
  %s2 = inlined_call_operand.vmem [shape: s32[1,1024], index: 2, kind: input, shape index: {}]
  %s3 = inlined_call_operand.vmem [shape: f32[384,128], index: 3, kind: input, shape index: {}]
  %s4 = inlined_call_operand.vmem [shape: f32[1024,128], index: 4, kind: input, shape index: {}]
  %s5 = inlined_call_operand.vmem [shape: bf16[128,128], index: 5, kind: input, shape index: {}]
  %s6 = inlined_call_operand.vmem [shape: bf16[128,128], index: 6, kind: input, shape index: {}]
  %s7 = inlined_call_operand.vmem [shape: bf16[128,128], index: 7, kind: input, shape index: {}]
  %s8 = inlined_call_operand.vmem [shape: f32[1,128], index: 8, kind: input, shape index: {}]
  %s9 = inlined_call_operand.vmem [shape: bf16[128,128], index: 9, kind: input, shape index: {}]
  %s10 = inlined_call_operand.vmem [shape: f32[1,128], index: 10, kind: input, shape index: {}]
  %s11 = inlined_call_operand.vmem [shape: f32[1,128], index: 11, kind: input, shape index: {}]
  %s12 = inlined_call_operand.vmem [shape: f32[1,128], index: 12, kind: input, shape index: {}]
  %s13 = inlined_call_operand.vmem [shape: f32[1,128], index: 13, kind: input, shape index: {}, may-alias: {13,21}]
  %s14 = inlined_call_operand.vmem [shape: bf16[128,128], index: 14, kind: input, shape index: {}]
  %s15 = inlined_call_operand.vmem [shape: bf16[128,128], index: 15, kind: input, shape index: {}]
  %s16 = inlined_call_operand.vmem [shape: f32[1,128], index: 16, kind: input, shape index: {}]
  %s17 = inlined_call_operand.vmem [shape: bf16[128,128], index: 17, kind: input, shape index: {}]
  %s18 = inlined_call_operand.vmem [shape: f32[1,128], index: 18, kind: input, shape index: {}]
  %s19 = inlined_call_operand.vmem [shape: f32[1,128], index: 19, kind: input, shape index: {}]
  %s20 = inlined_call_operand.vmem [shape: f32[1,128], index: 20, kind: input, shape index: {}]
  %s21 = inlined_call_operand.vmem [shape: f32[1,128], index: 21, kind: input, shape index: {}, may-alias: {13,21}]
  %s22 = inlined_call_operand.vmem [shape: f32[1024,128], index: 22, kind: output, shape index: {0}]
  %s23 = inlined_call_operand.vmem [shape: f32[384,128], index: 23, kind: output, shape index: {1}]
  %24 = xla_tuple %s22, %s23
  %s25 = sld [smem:[#allocation0]]
  $region137: #{processor_forward.2} parent=0
    _
  %s27 = ssub.s32 1, %s25
  %s28 = scalar_select 0, %s27, %s25
  loop: start=0, step=1, limit=6
  $region2: #{processor_forward.2} parent=0 // loop_pre_header
    _
  $region3: #{processor_forward.2} parent=0 // loop_header
    %s30 = sphi 0, %s34
    %p31 = scmp.ge.s32.totalorder %s30, 6
    %s40 = sphi 0, %s42
    %s43 = sphi 0, %s40
    %s44 = sphi 0, %s43
    %s60 = sphi 0, %s44
    %s66 = sphi 0, %s68
    %s69 = sphi 0, %s66
    %s70 = sphi 0, %s69
    %s86 = sphi 0, %s70
    %s92 = sphi 0, %s94
    %s95 = sphi 0, %s92
    %s96 = sphi 0, %s95
    %s112 = sphi 0, %s96
    %s116 = sphi 0, %s116
    %s118 = sphi 0, %s116
    %s119 = sphi 0, %s118
    %s133 = sphi 0, %s119
    %s139 = sphi 0, %s141
    %s142 = sphi 0, %s139
    %s143 = sphi 0, %s142
    %s159 = sphi 0, %s143
    %s163 = sphi 0, %s163
    %s165 = sphi 0, %s163
    %s166 = sphi 0, %s165
    %s180 = sphi 0, %s166
    %s184 = sphi 0, %s184
    %s186 = sphi 0, %s184
    %s187 = sphi 0, %s186
    %s201 = sphi 0, %s187
    %s205 = sphi 0, %s205
    %s207 = sphi 0, %s205
    %s208 = sphi 0, %s207
    %s222 = sphi 0, %s208
    %s226 = sphi 0, %s226
    %s228 = sphi 0, %s226
    %s229 = sphi 0, %s228
    %s243 = sphi 0, %s229
    %s247 = sphi 0, %s247
    %s249 = sphi 0, %s247
    %s250 = sphi 0, %s249
    %s264 = sphi 0, %s250
    %s268 = sphi 0, %s268
    %s270 = sphi 0, %s268
    %s271 = sphi 0, %s270
    %s285 = sphi 0, %s271
    %s289 = sphi 0, %s289
    %s291 = sphi 0, %s289
    %s292 = sphi 0, %s291
    %s306 = sphi 0, %s292
    %s310 = sphi 0, %s310
    %s312 = sphi 0, %s310
    %s313 = sphi 0, %s312
    %s327 = sphi 0, %s313
    %s331 = sphi 0, %s331
    %s333 = sphi 0, %s331
    %s334 = sphi 0, %s333
    %s348 = sphi 0, %s334
    %s352 = sphi 0, %s352
    %s354 = sphi 0, %s352
    %s355 = sphi 0, %s354
    %s369 = sphi 0, %s355
    %s373 = sphi 0, %s373
    %s375 = sphi 0, %s373
    %s376 = sphi 0, %s375
    %s390 = sphi 0, %s376
    %s394 = sphi 0, %s394
    %s396 = sphi 0, %s394
    %s397 = sphi 0, %s396
    %s411 = sphi 0, %s397
    %s415 = sphi 0, %s415
    %s417 = sphi 0, %s415
    %s418 = sphi 0, %s417
    %s432 = sphi 0, %s418
    %s436 = sphi 0, %s436
    %s438 = sphi 0, %s436
    %s439 = sphi 0, %s438
    %s453 = sphi 0, %s439
    %s457 = sphi 0, %s457
    %s459 = sphi 0, %s457
    %s460 = sphi 0, %s459
    %s474 = sphi 0, %s460
    %s478 = sphi 0, %s478
    %s480 = sphi 0, %s478
    %s481 = sphi 0, %s480
    %s495 = sphi 0, %s481
    %s499 = sphi 0, %s499
    %s501 = sphi 0, %s499
    %s502 = sphi 0, %s501
    %s516 = sphi 0, %s502
    %s522 = sphi 0, %s524
    %s525 = sphi 0, %s522
    %s526 = sphi 0, %s525
    %s542 = sphi 0, %s526
    %s546 = sphi 0, %s546
    %s548 = sphi 0, %s546
    %s549 = sphi 0, %s548
    %s563 = sphi 0, %s549
  $region4: #{processor_forward.2} parent=0 // loop_header_branch
    %33 = sbr.rel (%p31) target = $region8
  $region5: #{processor_forward.2} parent=0 // loop_body
    %s35 = ssub.s32 %s30, 1
    %s36 = ssub.s32 %s30, 2
    %s37 = sadd.s32 %s30, 1
    %s38 = ssub.s32 %s30, %s37
    %p39 = scmp.eq.s32.totalorder %s38, 0
    %s41 = sadd.s32 %s40, 1
    %s42 = scalar_select %p39, %s40, %s41
    %p45 = pneg %p39
    %p46 = scmp.eq.s32.totalorder %s30, 3
    %p47 = por %p45, %p46
    %p48 = scmp.ne.s32.totalorder %s40, %s43
    %p49 = scmp.eq.s32.totalorder %s30, 0
    %p50 = por %p48, %p49
    %p51 = scmp.ne.s32.totalorder %s40, %s43
    %p52 = scmp.eq.s32.totalorder %s35, 3
    %p53 = por %p51, %p52
    %p54 = scmp.ne.s32.totalorder %s43, %s44
    %p55 = scmp.eq.s32.totalorder %s35, 0
    %p56 = por %p54, %p55
    %p57 = scmp.ne.s32.totalorder %s43, %s44
    %p58 = scmp.eq.s32.totalorder %s36, 3
    %p59 = por %p57, %p58
    %p61 = scmp.ne.s32.totalorder %s44, %s60
    %p62 = scmp.eq.s32.totalorder %s36, 0
    %p63 = por %p61, %p62
    %s64 = ssub.s32 %s30, %s37
    %p65 = scmp.eq.s32.totalorder %s64, 0
    %s67 = sadd.s32 %s66, 1
    %s68 = scalar_select %p65, %s66, %s67
    %p71 = pneg %p65
    %p72 = scmp.eq.s32.totalorder %s30, 3
    %p73 = por %p71, %p72
    %p74 = scmp.ne.s32.totalorder %s66, %s69
    %p75 = scmp.eq.s32.totalorder %s30, 0
    %p76 = por %p74, %p75
    %p77 = scmp.ne.s32.totalorder %s66, %s69
    %p78 = scmp.eq.s32.totalorder %s35, 3
    %p79 = por %p77, %p78
    %p80 = scmp.ne.s32.totalorder %s69, %s70
    %p81 = scmp.eq.s32.totalorder %s35, 0
    %p82 = por %p80, %p81
    %p83 = scmp.ne.s32.totalorder %s69, %s70
    %p84 = scmp.eq.s32.totalorder %s36, 3
    %p85 = por %p83, %p84
    %p87 = scmp.ne.s32.totalorder %s70, %s86
    %p88 = scmp.eq.s32.totalorder %s36, 0
    %p89 = por %p87, %p88
    %s90 = ssub.s32 %s30, %s37
    %p91 = scmp.eq.s32.totalorder %s90, 0
    %s93 = sadd.s32 %s92, 1
    %s94 = scalar_select %p91, %s92, %s93
    %p97 = pneg %p91
    %p98 = scmp.eq.s32.totalorder %s30, 3
    %p99 = por %p97, %p98
    %p100 = scmp.ne.s32.totalorder %s92, %s95
    %p101 = scmp.eq.s32.totalorder %s30, 0
    %p102 = por %p100, %p101
    %p103 = scmp.ne.s32.totalorder %s92, %s95
    %p104 = scmp.eq.s32.totalorder %s35, 3
    %p105 = por %p103, %p104
    %p106 = scmp.ne.s32.totalorder %s95, %s96
    %p107 = scmp.eq.s32.totalorder %s35, 0
    %p108 = por %p106, %p107
    %p109 = scmp.ne.s32.totalorder %s95, %s96
    %p110 = scmp.eq.s32.totalorder %s36, 3
    %p111 = por %p109, %p110
    %p113 = scmp.ne.s32.totalorder %s96, %s112
    %p114 = scmp.eq.s32.totalorder %s36, 0
    %p115 = por %p113, %p114
    %s117 = sadd.s32 %s116, 1
    %p120 = scmp.eq.s32.totalorder %s30, 3
    %p121 = scmp.ne.s32.totalorder %s116, %s118
    %p122 = scmp.eq.s32.totalorder %s30, 0
    %p123 = por %p121, %p122
    %p124 = scmp.ne.s32.totalorder %s116, %s118
    %p125 = scmp.eq.s32.totalorder %s35, 3
    %p126 = por %p124, %p125
    %p127 = scmp.ne.s32.totalorder %s118, %s119
    %p128 = scmp.eq.s32.totalorder %s35, 0
    %p129 = por %p127, %p128
    %p130 = scmp.ne.s32.totalorder %s118, %s119
    %p131 = scmp.eq.s32.totalorder %s36, 3
    %p132 = por %p130, %p131
    %p134 = scmp.ne.s32.totalorder %s119, %s133
    %p135 = scmp.eq.s32.totalorder %s36, 0
    %p136 = por %p134, %p135
    %s137 = ssub.s32 %s30, %s37
    %p138 = scmp.eq.s32.totalorder %s137, 0
    %s140 = sadd.s32 %s139, 1
    %s141 = scalar_select %p138, %s139, %s140
    %p144 = pneg %p138
    %p145 = scmp.eq.s32.totalorder %s30, 3
    %p146 = por %p144, %p145
    %p147 = scmp.ne.s32.totalorder %s139, %s142
    %p148 = scmp.eq.s32.totalorder %s30, 0
    %p149 = por %p147, %p148
    %p150 = scmp.ne.s32.totalorder %s139, %s142
    %p151 = scmp.eq.s32.totalorder %s35, 3
    %p152 = por %p150, %p151
    %p153 = scmp.ne.s32.totalorder %s142, %s143
    %p154 = scmp.eq.s32.totalorder %s35, 0
    %p155 = por %p153, %p154
    %p156 = scmp.ne.s32.totalorder %s142, %s143
    %p157 = scmp.eq.s32.totalorder %s36, 3
    %p158 = por %p156, %p157
    %p160 = scmp.ne.s32.totalorder %s143, %s159
    %p161 = scmp.eq.s32.totalorder %s36, 0
    %p162 = por %p160, %p161
    %s164 = sadd.s32 %s163, 1
    %p167 = scmp.eq.s32.totalorder %s30, 3
    %p168 = scmp.ne.s32.totalorder %s163, %s165
    %p169 = scmp.eq.s32.totalorder %s30, 0
    %p170 = por %p168, %p169
    %p171 = scmp.ne.s32.totalorder %s163, %s165
    %p172 = scmp.eq.s32.totalorder %s35, 3
    %p173 = por %p171, %p172
    %p174 = scmp.ne.s32.totalorder %s165, %s166
    %p175 = scmp.eq.s32.totalorder %s35, 0
    %p176 = por %p174, %p175
    %p177 = scmp.ne.s32.totalorder %s165, %s166
    %p178 = scmp.eq.s32.totalorder %s36, 3
    %p179 = por %p177, %p178
    %p181 = scmp.ne.s32.totalorder %s166, %s180
    %p182 = scmp.eq.s32.totalorder %s36, 0
    %p183 = por %p181, %p182
    %s185 = sadd.s32 %s184, 1
    %p188 = scmp.eq.s32.totalorder %s30, 3
    %p189 = scmp.ne.s32.totalorder %s184, %s186
    %p190 = scmp.eq.s32.totalorder %s30, 0
    %p191 = por %p189, %p190
    %p192 = scmp.ne.s32.totalorder %s184, %s186
    %p193 = scmp.eq.s32.totalorder %s35, 3
    %p194 = por %p192, %p193
    %p195 = scmp.ne.s32.totalorder %s186, %s187
    %p196 = scmp.eq.s32.totalorder %s35, 0
    %p197 = por %p195, %p196
    %p198 = scmp.ne.s32.totalorder %s186, %s187
    %p199 = scmp.eq.s32.totalorder %s36, 3
    %p200 = por %p198, %p199
    %p202 = scmp.ne.s32.totalorder %s187, %s201
    %p203 = scmp.eq.s32.totalorder %s36, 0
    %p204 = por %p202, %p203
    %s206 = sadd.s32 %s205, 1
    %p209 = scmp.eq.s32.totalorder %s30, 3
    %p210 = scmp.ne.s32.totalorder %s205, %s207
    %p211 = scmp.eq.s32.totalorder %s30, 0
    %p212 = por %p210, %p211
    %p213 = scmp.ne.s32.totalorder %s205, %s207
    %p214 = scmp.eq.s32.totalorder %s35, 3
    %p215 = por %p213, %p214
    %p216 = scmp.ne.s32.totalorder %s207, %s208
    %p217 = scmp.eq.s32.totalorder %s35, 0
    %p218 = por %p216, %p217
    %p219 = scmp.ne.s32.totalorder %s207, %s208
    %p220 = scmp.eq.s32.totalorder %s36, 3
    %p221 = por %p219, %p220
    %p223 = scmp.ne.s32.totalorder %s208, %s222
    %p224 = scmp.eq.s32.totalorder %s36, 0
    %p225 = por %p223, %p224
    %s227 = sadd.s32 %s226, 1
    %p230 = scmp.eq.s32.totalorder %s30, 3
    %p231 = scmp.ne.s32.totalorder %s226, %s228
    %p232 = scmp.eq.s32.totalorder %s30, 0
    %p233 = por %p231, %p232
    %p234 = scmp.ne.s32.totalorder %s226, %s228
    %p235 = scmp.eq.s32.totalorder %s35, 3
    %p236 = por %p234, %p235
    %p237 = scmp.ne.s32.totalorder %s228, %s229
    %p238 = scmp.eq.s32.totalorder %s35, 0
    %p239 = por %p237, %p238
    %p240 = scmp.ne.s32.totalorder %s228, %s229
    %p241 = scmp.eq.s32.totalorder %s36, 3
    %p242 = por %p240, %p241
    %p244 = scmp.ne.s32.totalorder %s229, %s243
    %p245 = scmp.eq.s32.totalorder %s36, 0
    %p246 = por %p244, %p245
    %s248 = sadd.s32 %s247, 1
    %p251 = scmp.eq.s32.totalorder %s30, 3
    %p252 = scmp.ne.s32.totalorder %s247, %s249
    %p253 = scmp.eq.s32.totalorder %s30, 0
    %p254 = por %p252, %p253
    %p255 = scmp.ne.s32.totalorder %s247, %s249
    %p256 = scmp.eq.s32.totalorder %s35, 3
    %p257 = por %p255, %p256
    %p258 = scmp.ne.s32.totalorder %s249, %s250
    %p259 = scmp.eq.s32.totalorder %s35, 0
    %p260 = por %p258, %p259
    %p261 = scmp.ne.s32.totalorder %s249, %s250
    %p262 = scmp.eq.s32.totalorder %s36, 3
    %p263 = por %p261, %p262
    %p265 = scmp.ne.s32.totalorder %s250, %s264
    %p266 = scmp.eq.s32.totalorder %s36, 0
    %p267 = por %p265, %p266
    %s269 = sadd.s32 %s268, 1
    %p272 = scmp.eq.s32.totalorder %s30, 3
    %p273 = scmp.ne.s32.totalorder %s268, %s270
    %p274 = scmp.eq.s32.totalorder %s30, 0
    %p275 = por %p273, %p274
    %p276 = scmp.ne.s32.totalorder %s268, %s270
    %p277 = scmp.eq.s32.totalorder %s35, 3
    %p278 = por %p276, %p277
    %p279 = scmp.ne.s32.totalorder %s270, %s271
    %p280 = scmp.eq.s32.totalorder %s35, 0
    %p281 = por %p279, %p280
    %p282 = scmp.ne.s32.totalorder %s270, %s271
    %p283 = scmp.eq.s32.totalorder %s36, 3
    %p284 = por %p282, %p283
    %p286 = scmp.ne.s32.totalorder %s271, %s285
    %p287 = scmp.eq.s32.totalorder %s36, 0
    %p288 = por %p286, %p287
    %s290 = sadd.s32 %s289, 1
    %p293 = scmp.eq.s32.totalorder %s30, 3
    %p294 = scmp.ne.s32.totalorder %s289, %s291
    %p295 = scmp.eq.s32.totalorder %s30, 0
    %p296 = por %p294, %p295
    %p297 = scmp.ne.s32.totalorder %s289, %s291
    %p298 = scmp.eq.s32.totalorder %s35, 3
    %p299 = por %p297, %p298
    %p300 = scmp.ne.s32.totalorder %s291, %s292
    %p301 = scmp.eq.s32.totalorder %s35, 0
    %p302 = por %p300, %p301
    %p303 = scmp.ne.s32.totalorder %s291, %s292
    %p304 = scmp.eq.s32.totalorder %s36, 3
    %p305 = por %p303, %p304
    %p307 = scmp.ne.s32.totalorder %s292, %s306
    %p308 = scmp.eq.s32.totalorder %s36, 0
    %p309 = por %p307, %p308
    %s311 = sadd.s32 %s310, 1
    %p314 = scmp.eq.s32.totalorder %s30, 3
    %p315 = scmp.ne.s32.totalorder %s310, %s312
    %p316 = scmp.eq.s32.totalorder %s30, 0
    %p317 = por %p315, %p316
    %p318 = scmp.ne.s32.totalorder %s310, %s312
    %p319 = scmp.eq.s32.totalorder %s35, 3
    %p320 = por %p318, %p319
    %p321 = scmp.ne.s32.totalorder %s312, %s313
    %p322 = scmp.eq.s32.totalorder %s35, 0
    %p323 = por %p321, %p322
    %p324 = scmp.ne.s32.totalorder %s312, %s313
    %p325 = scmp.eq.s32.totalorder %s36, 3
    %p326 = por %p324, %p325
    %p328 = scmp.ne.s32.totalorder %s313, %s327
    %p329 = scmp.eq.s32.totalorder %s36, 0
    %p330 = por %p328, %p329
    %s332 = sadd.s32 %s331, 1
    %p335 = scmp.eq.s32.totalorder %s30, 3
    %p336 = scmp.ne.s32.totalorder %s331, %s333
    %p337 = scmp.eq.s32.totalorder %s30, 0
    %p338 = por %p336, %p337
    %p339 = scmp.ne.s32.totalorder %s331, %s333
    %p340 = scmp.eq.s32.totalorder %s35, 3
    %p341 = por %p339, %p340
    %p342 = scmp.ne.s32.totalorder %s333, %s334
    %p343 = scmp.eq.s32.totalorder %s35, 0
    %p344 = por %p342, %p343
    %p345 = scmp.ne.s32.totalorder %s333, %s334
    %p346 = scmp.eq.s32.totalorder %s36, 3
    %p347 = por %p345, %p346
    %p349 = scmp.ne.s32.totalorder %s334, %s348
    %p350 = scmp.eq.s32.totalorder %s36, 0
    %p351 = por %p349, %p350
    %s353 = sadd.s32 %s352, 1
    %p356 = scmp.eq.s32.totalorder %s30, 3
    %p357 = scmp.ne.s32.totalorder %s352, %s354
    %p358 = scmp.eq.s32.totalorder %s30, 0
    %p359 = por %p357, %p358
    %p360 = scmp.ne.s32.totalorder %s352, %s354
    %p361 = scmp.eq.s32.totalorder %s35, 3
    %p362 = por %p360, %p361
    %p363 = scmp.ne.s32.totalorder %s354, %s355
    %p364 = scmp.eq.s32.totalorder %s35, 0
    %p365 = por %p363, %p364
    %p366 = scmp.ne.s32.totalorder %s354, %s355
    %p367 = scmp.eq.s32.totalorder %s36, 3
    %p368 = por %p366, %p367
    %p370 = scmp.ne.s32.totalorder %s355, %s369
    %p371 = scmp.eq.s32.totalorder %s36, 0
    %p372 = por %p370, %p371
    %s374 = sadd.s32 %s373, 1
    %p377 = scmp.eq.s32.totalorder %s30, 3
    %p378 = scmp.ne.s32.totalorder %s373, %s375
    %p379 = scmp.eq.s32.totalorder %s30, 0
    %p380 = por %p378, %p379
    %p381 = scmp.ne.s32.totalorder %s373, %s375
    %p382 = scmp.eq.s32.totalorder %s35, 3
    %p383 = por %p381, %p382
    %p384 = scmp.ne.s32.totalorder %s375, %s376
    %p385 = scmp.eq.s32.totalorder %s35, 0
    %p386 = por %p384, %p385
    %p387 = scmp.ne.s32.totalorder %s375, %s376
    %p388 = scmp.eq.s32.totalorder %s36, 3
    %p389 = por %p387, %p388
    %p391 = scmp.ne.s32.totalorder %s376, %s390
    %p392 = scmp.eq.s32.totalorder %s36, 0
    %p393 = por %p391, %p392
    %s395 = sadd.s32 %s394, 1
    %p398 = scmp.eq.s32.totalorder %s30, 3
    %p399 = scmp.ne.s32.totalorder %s394, %s396
    %p400 = scmp.eq.s32.totalorder %s30, 0
    %p401 = por %p399, %p400
    %p402 = scmp.ne.s32.totalorder %s394, %s396
    %p403 = scmp.eq.s32.totalorder %s35, 3
    %p404 = por %p402, %p403
    %p405 = scmp.ne.s32.totalorder %s396, %s397
    %p406 = scmp.eq.s32.totalorder %s35, 0
    %p407 = por %p405, %p406
    %p408 = scmp.ne.s32.totalorder %s396, %s397
    %p409 = scmp.eq.s32.totalorder %s36, 3
    %p410 = por %p408, %p409
    %p412 = scmp.ne.s32.totalorder %s397, %s411
    %p413 = scmp.eq.s32.totalorder %s36, 0
    %p414 = por %p412, %p413
    %s416 = sadd.s32 %s415, 1
    %p419 = scmp.eq.s32.totalorder %s30, 3
    %p420 = scmp.ne.s32.totalorder %s415, %s417
    %p421 = scmp.eq.s32.totalorder %s30, 0
    %p422 = por %p420, %p421
    %p423 = scmp.ne.s32.totalorder %s415, %s417
    %p424 = scmp.eq.s32.totalorder %s35, 3
    %p425 = por %p423, %p424
    %p426 = scmp.ne.s32.totalorder %s417, %s418
    %p427 = scmp.eq.s32.totalorder %s35, 0
    %p428 = por %p426, %p427
    %p429 = scmp.ne.s32.totalorder %s417, %s418
    %p430 = scmp.eq.s32.totalorder %s36, 3
    %p431 = por %p429, %p430
    %p433 = scmp.ne.s32.totalorder %s418, %s432
    %p434 = scmp.eq.s32.totalorder %s36, 0
    %p435 = por %p433, %p434
    %s437 = sadd.s32 %s436, 1
    %p440 = scmp.eq.s32.totalorder %s30, 3
    %p441 = scmp.ne.s32.totalorder %s436, %s438
    %p442 = scmp.eq.s32.totalorder %s30, 0
    %p443 = por %p441, %p442
    %p444 = scmp.ne.s32.totalorder %s436, %s438
    %p445 = scmp.eq.s32.totalorder %s35, 3
    %p446 = por %p444, %p445
    %p447 = scmp.ne.s32.totalorder %s438, %s439
    %p448 = scmp.eq.s32.totalorder %s35, 0
    %p449 = por %p447, %p448
    %p450 = scmp.ne.s32.totalorder %s438, %s439
    %p451 = scmp.eq.s32.totalorder %s36, 3
    %p452 = por %p450, %p451
    %p454 = scmp.ne.s32.totalorder %s439, %s453
    %p455 = scmp.eq.s32.totalorder %s36, 0
    %p456 = por %p454, %p455
    %s458 = sadd.s32 %s457, 1
    %p461 = scmp.eq.s32.totalorder %s30, 3
    %p462 = scmp.ne.s32.totalorder %s457, %s459
    %p463 = scmp.eq.s32.totalorder %s30, 0
    %p464 = por %p462, %p463
    %p465 = scmp.ne.s32.totalorder %s457, %s459
    %p466 = scmp.eq.s32.totalorder %s35, 3
    %p467 = por %p465, %p466
    %p468 = scmp.ne.s32.totalorder %s459, %s460
    %p469 = scmp.eq.s32.totalorder %s35, 0
    %p470 = por %p468, %p469
    %p471 = scmp.ne.s32.totalorder %s459, %s460
    %p472 = scmp.eq.s32.totalorder %s36, 3
    %p473 = por %p471, %p472
    %p475 = scmp.ne.s32.totalorder %s460, %s474
    %p476 = scmp.eq.s32.totalorder %s36, 0
    %p477 = por %p475, %p476
    %s479 = sadd.s32 %s478, 1
    %p482 = scmp.eq.s32.totalorder %s30, 3
    %p483 = scmp.ne.s32.totalorder %s478, %s480
    %p484 = scmp.eq.s32.totalorder %s30, 0
    %p485 = por %p483, %p484
    %p486 = scmp.ne.s32.totalorder %s478, %s480
    %p487 = scmp.eq.s32.totalorder %s35, 3
    %p488 = por %p486, %p487
    %p489 = scmp.ne.s32.totalorder %s480, %s481
    %p490 = scmp.eq.s32.totalorder %s35, 0
    %p491 = por %p489, %p490
    %p492 = scmp.ne.s32.totalorder %s480, %s481
    %p493 = scmp.eq.s32.totalorder %s36, 3
    %p494 = por %p492, %p493
    %p496 = scmp.ne.s32.totalorder %s481, %s495
    %p497 = scmp.eq.s32.totalorder %s36, 0
    %p498 = por %p496, %p497
    %s500 = sadd.s32 %s499, 1
    %p503 = scmp.eq.s32.totalorder %s30, 3
    %p504 = scmp.ne.s32.totalorder %s499, %s501
    %p505 = scmp.eq.s32.totalorder %s30, 0
    %p506 = por %p504, %p505
    %p507 = scmp.ne.s32.totalorder %s499, %s501
    %p508 = scmp.eq.s32.totalorder %s35, 3
    %p509 = por %p507, %p508
    %p510 = scmp.ne.s32.totalorder %s501, %s502
    %p511 = scmp.eq.s32.totalorder %s35, 0
    %p512 = por %p510, %p511
    %p513 = scmp.ne.s32.totalorder %s501, %s502
    %p514 = scmp.eq.s32.totalorder %s36, 3
    %p515 = por %p513, %p514
    %p517 = scmp.ne.s32.totalorder %s502, %s516
    %p518 = scmp.eq.s32.totalorder %s36, 0
    %p519 = por %p517, %p518
    %s520 = ssub.s32 %s30, %s37
    %p521 = scmp.eq.s32.totalorder %s520, 0
    %s523 = sadd.s32 %s522, 1
    %s524 = scalar_select %p521, %s522, %s523
    %p527 = pneg %p521
    %p528 = scmp.eq.s32.totalorder %s30, 3
    %p529 = por %p527, %p528
    %p530 = scmp.ne.s32.totalorder %s522, %s525
    %p531 = scmp.eq.s32.totalorder %s30, 0
    %p532 = por %p530, %p531
    %p533 = scmp.ne.s32.totalorder %s522, %s525
    %p534 = scmp.eq.s32.totalorder %s35, 3
    %p535 = por %p533, %p534
    %p536 = scmp.ne.s32.totalorder %s525, %s526
    %p537 = scmp.eq.s32.totalorder %s35, 0
    %p538 = por %p536, %p537
    %p539 = scmp.ne.s32.totalorder %s525, %s526
    %p540 = scmp.eq.s32.totalorder %s36, 3
    %p541 = por %p539, %p540
    %p543 = scmp.ne.s32.totalorder %s526, %s542
    %p544 = scmp.eq.s32.totalorder %s36, 0
    %p545 = por %p543, %p544
    %s547 = sadd.s32 %s546, 1
    %p550 = scmp.eq.s32.totalorder %s30, 3
    %p551 = scmp.ne.s32.totalorder %s546, %s548
    %p552 = scmp.eq.s32.totalorder %s30, 0
    %p553 = por %p551, %p552
    %p554 = scmp.ne.s32.totalorder %s546, %s548
    %p555 = scmp.eq.s32.totalorder %s35, 3
    %p556 = por %p554, %p555
    %p557 = scmp.ne.s32.totalorder %s548, %s549
    %p558 = scmp.eq.s32.totalorder %s35, 0
    %p559 = por %p557, %p558
    %p560 = scmp.ne.s32.totalorder %s548, %s549
    %p561 = scmp.eq.s32.totalorder %s36, 3
    %p562 = por %p560, %p561
    %p564 = scmp.ne.s32.totalorder %s549, %s563
    %p565 = scmp.eq.s32.totalorder %s36, 0
    %p566 = por %p564, %p565
    %p567 = scmp.le.s32.totalorder 1, %s30
    %p568 = scmp.lt.s32.totalorder %s30, 5
    %p569 = pnand %p567, %p568
    %p570 = pneg %p569
    // Predicated region
    $region9: #{processor_forward.2} parent=5 // pred_check
      _
    $region10: #{processor_forward.2} parent=5 // pred_check_branch
      %572 = sbr.rel (%p569) target = $region12
    $region11: #{processor_forward.2} parent=5 // pred_region
      %s573 = ssub.s32 %s30, 1
      // Predicated region
      $region13: #{processor_forward.2} parent=11 // pred_check
        %p574 = pneg %p129
      $region14: #{processor_forward.2} parent=11 // pred_check_branch
        %576 = sbr.rel (%p574) target = $region16
      $region15: #{processor_forward.2} parent=11 // pred_region
        _
      $region16: #{processor_forward.2} parent=11 // pred_fallthru
        _
      // Predicated region
      $region17: #{processor_forward.2} parent=11 // pred_check
        %p577 = pneg %p176
      $region18: #{processor_forward.2} parent=11 // pred_check_branch
        %579 = sbr.rel (%p577) target = $region20
      $region19: #{processor_forward.2} parent=11 // pred_region
        _
      $region20: #{processor_forward.2} parent=11 // pred_fallthru
        _
      // Predicated region
      $region21: #{processor_forward.2} parent=11 // pred_check
        %p580 = pneg %p197
      $region22: #{processor_forward.2} parent=11 // pred_check_branch
        %582 = sbr.rel (%p580) target = $region24
      $region23: #{processor_forward.2} parent=11 // pred_region
        _
      $region24: #{processor_forward.2} parent=11 // pred_fallthru
        _
      // Predicated region
      $region25: #{processor_forward.2} parent=11 // pred_check
        %p583 = pneg %p218
      $region26: #{processor_forward.2} parent=11 // pred_check_branch
        %585 = sbr.rel (%p583) target = $region28
      $region27: #{processor_forward.2} parent=11 // pred_region
        _
      $region28: #{processor_forward.2} parent=11 // pred_fallthru
        _
      // Predicated region
      $region29: #{processor_forward.2} parent=11 // pred_check
        %p586 = pneg %p239
      $region30: #{processor_forward.2} parent=11 // pred_check_branch
        %588 = sbr.rel (%p586) target = $region32
      $region31: #{processor_forward.2} parent=11 // pred_region
        _
      $region32: #{processor_forward.2} parent=11 // pred_fallthru
        _
      // Predicated region
      $region33: #{processor_forward.2} parent=11 // pred_check
        %p589 = pneg %p260
      $region34: #{processor_forward.2} parent=11 // pred_check_branch
        %591 = sbr.rel (%p589) target = $region36
      $region35: #{processor_forward.2} parent=11 // pred_region
        _
      $region36: #{processor_forward.2} parent=11 // pred_fallthru
        _
      // Predicated region
      $region37: #{processor_forward.2} parent=11 // pred_check
        %p592 = pneg %p281
      $region38: #{processor_forward.2} parent=11 // pred_check_branch
        %594 = sbr.rel (%p592) target = $region40
      $region39: #{processor_forward.2} parent=11 // pred_region
        _
      $region40: #{processor_forward.2} parent=11 // pred_fallthru
        _
      // Predicated region
      $region41: #{processor_forward.2} parent=11 // pred_check
        %p595 = pneg %p302
      $region42: #{processor_forward.2} parent=11 // pred_check_branch
        %597 = sbr.rel (%p595) target = $region44
      $region43: #{processor_forward.2} parent=11 // pred_region
        _
      $region44: #{processor_forward.2} parent=11 // pred_fallthru
        _
      // Predicated region
      $region45: #{processor_forward.2} parent=11 // pred_check
        %p598 = pneg %p323
      $region46: #{processor_forward.2} parent=11 // pred_check_branch
        %600 = sbr.rel (%p598) target = $region48
      $region47: #{processor_forward.2} parent=11 // pred_region
        _
      $region48: #{processor_forward.2} parent=11 // pred_fallthru
        _
      // Predicated region
      $region49: #{processor_forward.2} parent=11 // pred_check
        %p601 = pneg %p344
      $region50: #{processor_forward.2} parent=11 // pred_check_branch
        %603 = sbr.rel (%p601) target = $region52
      $region51: #{processor_forward.2} parent=11 // pred_region
        _
      $region52: #{processor_forward.2} parent=11 // pred_fallthru
        _
      // Predicated region
      $region53: #{processor_forward.2} parent=11 // pred_check
        %p604 = pneg %p365
      $region54: #{processor_forward.2} parent=11 // pred_check_branch
        %606 = sbr.rel (%p604) target = $region56
      $region55: #{processor_forward.2} parent=11 // pred_region
        _
      $region56: #{processor_forward.2} parent=11 // pred_fallthru
        _
      // Predicated region
      $region57: #{processor_forward.2} parent=11 // pred_check
        %p607 = pneg %p386
      $region58: #{processor_forward.2} parent=11 // pred_check_branch
        %609 = sbr.rel (%p607) target = $region60
      $region59: #{processor_forward.2} parent=11 // pred_region
        _
      $region60: #{processor_forward.2} parent=11 // pred_fallthru
        _
      // Predicated region
      $region61: #{processor_forward.2} parent=11 // pred_check
        %p610 = pneg %p407
      $region62: #{processor_forward.2} parent=11 // pred_check_branch
        %612 = sbr.rel (%p610) target = $region64
      $region63: #{processor_forward.2} parent=11 // pred_region
        _
      $region64: #{processor_forward.2} parent=11 // pred_fallthru
        _
      // Predicated region
      $region65: #{processor_forward.2} parent=11 // pred_check
        %p613 = pneg %p428
      $region66: #{processor_forward.2} parent=11 // pred_check_branch
        %615 = sbr.rel (%p613) target = $region68
      $region67: #{processor_forward.2} parent=11 // pred_region
        _
      $region68: #{processor_forward.2} parent=11 // pred_fallthru
        _
      // Predicated region
      $region69: #{processor_forward.2} parent=11 // pred_check
        %p616 = pneg %p449
      $region70: #{processor_forward.2} parent=11 // pred_check_branch
        %618 = sbr.rel (%p616) target = $region72
      $region71: #{processor_forward.2} parent=11 // pred_region
        _
      $region72: #{processor_forward.2} parent=11 // pred_fallthru
        _
      // Predicated region
      $region73: #{processor_forward.2} parent=11 // pred_check
        %p619 = pneg %p470
      $region74: #{processor_forward.2} parent=11 // pred_check_branch
        %621 = sbr.rel (%p619) target = $region76
      $region75: #{processor_forward.2} parent=11 // pred_region
        _
      $region76: #{processor_forward.2} parent=11 // pred_fallthru
        _
      // Predicated region
      $region77: #{processor_forward.2} parent=11 // pred_check
        %p622 = pneg %p491
      $region78: #{processor_forward.2} parent=11 // pred_check_branch
        %624 = sbr.rel (%p622) target = $region80
      $region79: #{processor_forward.2} parent=11 // pred_region
        _
      $region80: #{processor_forward.2} parent=11 // pred_fallthru
        _
      // Predicated region
      $region81: #{processor_forward.2} parent=11 // pred_check
        %p625 = pneg %p512
      $region82: #{processor_forward.2} parent=11 // pred_check_branch
        %627 = sbr.rel (%p625) target = $region84
      $region83: #{processor_forward.2} parent=11 // pred_region
        _
      $region84: #{processor_forward.2} parent=11 // pred_fallthru
        _
    $region12: #{processor_forward.2} parent=5 // pred_fallthru
      _
    %p628 = scmp.lt.s32.totalorder %s30, 4
    // Predicated region
    $region85: #{processor_forward.2} parent=5 // pred_check
      %p629 = pneg %p628
    $region86: #{processor_forward.2} parent=5 // pred_check_branch
      %631 = sbr.rel (%p629) target = $region88
    $region87: #{processor_forward.2} parent=5 // pred_region
      // Predicated region
      $region89: #{processor_forward.2} parent=87 // pred_check
        %p632 = pneg %p50
      $region90: #{processor_forward.2} parent=87 // pred_check_branch
        %634 = sbr.rel (%p632) target = $region92
      $region91: #{processor_forward.2} parent=87 // pred_region
        %s635 = smul.u32 32, %s30
        %p636 = scmp.lt.s32.totalorder %s635, 127
        %s637 = scalar_select %p636, %s635, 127
        %s638 = smul.addr %s637, 8
        %s639 = scalar_lea.vmem %s0, %s638
        %s640 = smul.u32 32, %s30
      $region92: #{processor_forward.2} parent=87 // pred_fallthru
        _
      // Predicated region
      $region93: #{processor_forward.2} parent=87 // pred_check
        %p641 = pneg %p76
      $region94: #{processor_forward.2} parent=87 // pred_check_branch
        %643 = sbr.rel (%p641) target = $region96
      $region95: #{processor_forward.2} parent=87 // pred_region
        %s644 = smul.u32 32, %s30
        %p645 = scmp.lt.s32.totalorder %s644, 127
        %s646 = scalar_select %p645, %s644, 127
        %s647 = smul.addr %s646, 8
        %s648 = scalar_lea.vmem %s1, %s647
        %s649 = smul.u32 32, %s30
      $region96: #{processor_forward.2} parent=87 // pred_fallthru
        _
      // Predicated region
      $region97: #{processor_forward.2} parent=87 // pred_check
        %p650 = pneg %p102
      $region98: #{processor_forward.2} parent=87 // pred_check_branch
        %652 = sbr.rel (%p650) target = $region100
      $region99: #{processor_forward.2} parent=87 // pred_region
        %s653 = smul.u32 2, %s30
        %p654 = scmp.lt.s32.totalorder %s653, 7
        %s655 = scalar_select %p654, %s653, 7
        %s656 = scalar_lea.vmem %s2, %s655
        %s657 = smul.u32 2, %s30
      $region100: #{processor_forward.2} parent=87 // pred_fallthru
        _
      // Predicated region
      $region101: #{processor_forward.2} parent=87 // pred_check
        %p658 = pneg %p149
      $region102: #{processor_forward.2} parent=87 // pred_check_branch
        %660 = sbr.rel (%p658) target = $region104
      $region103: #{processor_forward.2} parent=87 // pred_region
        %s661 = smul.u32 32, %s30
        %p662 = scmp.lt.s32.totalorder %s661, 127
        %s663 = scalar_select %p662, %s661, 127
        %s664 = smul.addr %s663, 8
        %s665 = scalar_lea.vmem %s4, %s664
        %s666 = smul.u32 32, %s30
      $region104: #{processor_forward.2} parent=87 // pred_fallthru
        _
    $region88: #{processor_forward.2} parent=5 // pred_fallthru
      _
    %p667 = scmp.le.s32.totalorder 1, %s30
    %p668 = scmp.lt.s32.totalorder %s30, 5
    %p669 = pnand %p667, %p668
    %p670 = pneg %p669
    // Predicated region
    $region105: #{processor_forward.2} parent=5 // pred_check
      _
    $region106: #{processor_forward.2} parent=5 // pred_check_branch
      %672 = sbr.rel (%p669) target = $region108
    $region107: #{processor_forward.2} parent=5 // pred_region
      %s673 = ssub.s32 %s30, 1
      %s674 = smul.u32 32, %s35
      %p675 = scmp.lt.s32.totalorder %s674, 127
      %s676 = scalar_select %p675, %s674, 127
      %s677 = smul.addr %s676, 8
      %s678 = scalar_lea.vmem %s0, %s677
      %p679 = pneg %p56
      %p680 = pneg %p53
      %s681 = smul.u32 32, %s35
      %p682 = scmp.lt.s32.totalorder %s681, 127
      %s683 = scalar_select %p682, %s681, 127
      %s684 = smul.addr %s683, 8
      %s685 = scalar_lea.vmem %s1, %s684
      %p686 = pneg %p82
      %p687 = pneg %p79
      %s688 = smul.u32 2, %s35
      %p689 = scmp.lt.s32.totalorder %s688, 7
      %s690 = scalar_select %p689, %s688, 7
      %s691 = scalar_lea.vmem %s2, %s690
      %p692 = pneg %p108
      %p693 = pneg %p105
      %p694 = pneg %p129
      %p695 = pneg %p126
      %s696 = smul.u32 32, %s35
      %p697 = scmp.lt.s32.totalorder %s696, 127
      %s698 = scalar_select %p697, %s696, 127
      %s699 = smul.addr %s698, 8
      %s700 = scalar_lea.vmem %s4, %s699
      %p701 = pneg %p155
      %p702 = pneg %p152
      %p703 = pneg %p176
      %p704 = pneg %p173
      %p705 = pneg %p197
      %p706 = pneg %p194
      %p707 = pneg %p218
      %p708 = pneg %p215
      %p709 = pneg %p239
      %p710 = pneg %p236
      %p711 = pneg %p260
      %p712 = pneg %p257
      %p713 = pneg %p281
      %p714 = pneg %p278
      %p715 = pneg %p302
      %p716 = pneg %p299
      %p717 = pneg %p323
      %p718 = pneg %p320
      %p719 = pneg %p344
      %p720 = pneg %p341
      %p721 = pneg %p365
      %p722 = pneg %p362
      %p723 = pneg %p386
      %p724 = pneg %p383
      %p725 = pneg %p407
      %p726 = pneg %p404
      %p727 = pneg %p428
      %p728 = pneg %p425
      %p729 = pneg %p449
      %p730 = pneg %p446
      %p731 = pneg %p470
      %p732 = pneg %p467
      %p733 = pneg %p491
      %p734 = pneg %p488
      %p735 = pneg %p512
      %p736 = pneg %p509
      %p737 = pneg %p538
      %p738 = pneg %p535
      %s739 = smul.u32 32, %s35
      %p740 = scmp.lt.s32.totalorder %s739, 127
      %s741 = scalar_select %p740, %s739, 127
      %s742 = smul.addr %s741, 8
      %s743 = scalar_lea.vmem %s22, %s742
      %p744 = pneg %p559
      %p745 = pneg %p556
      %s746 = smul.u32 32, %s35
      %p747 = scmp.lt.s32.totalorder %s746, 127
      %s748 = scalar_select %p747, %s746, 127
      %s749 = smul.addr %s748, 8
      %s750 = scalar_lea.vmem %s0, %s749
      %s751 = smul.u32 32, %s35
      %s752 = smul.u32 32, %s35
      %p753 = scmp.lt.s32.totalorder %s752, 127
      %s754 = scalar_select %p753, %s752, 127
      %s755 = smul.addr %s754, 8
      %s756 = scalar_lea.vmem %s1, %s755
      %s757 = smul.u32 32, %s35
      %s758 = smul.u32 2, %s35
      %p759 = scmp.lt.s32.totalorder %s758, 7
      %s760 = scalar_select %p759, %s758, 7
      %s761 = scalar_lea.vmem %s2, %s760
      %s762 = smul.u32 2, %s35
      %s763 = smul.u32 32, %s35
      %p764 = scmp.lt.s32.totalorder %s763, 127
      %s765 = scalar_select %p764, %s763, 127
      %s766 = smul.addr %s765, 8
      %s767 = scalar_lea.vmem %s4, %s766
      %s768 = smul.u32 32, %s35
      %s769 = smul.u32 32, %s35
      %p770 = scmp.lt.s32.totalorder %s769, 127
      %s771 = scalar_select %p770, %s769, 127
      %s772 = smul.addr %s771, 8
      %s773 = scalar_lea.vmem %s22, %s772
      %s774 = smul.u32 32, %s35
      %p775 = scmp.eq.s32.totalorder %s35, 0
      // Predicated region
      $region109: #{processor_forward.2} parent=107 // pred_check
        %p776 = pneg %p775
      $region110: #{processor_forward.2} parent=107 // pred_check_branch
        %778 = sbr.rel (%p776) target = $region112
      $region111: #{processor_forward.2} parent=107 // pred_region
        %779 = vst [vmem:[#allocation2] sm:$0xff] 0.0
        %780 = vst [vmem:[#allocation2 + $0x8] sm:$0xff] 0.0
        %781 = vst [vmem:[#allocation2 + $0x10] sm:$0xff] 0.0
        %782 = vst [vmem:[#allocation2 + $0x18] sm:$0xff] 0.0
        %783 = vst [vmem:[#allocation2 + $0x20] sm:$0xff] 0.0
        %784 = vst [vmem:[#allocation2 + $0x28] sm:$0xff] 0.0
        %785 = vst [vmem:[#allocation2 + $0x30] sm:$0xff] 0.0
        %786 = vst [vmem:[#allocation2 + $0x38] sm:$0xff] 0.0
        %787 = vst [vmem:[#allocation2 + $0x40] sm:$0xff] 0.0
        %788 = vst [vmem:[#allocation2 + $0x48] sm:$0xff] 0.0
        %789 = vst [vmem:[#allocation2 + $0x50] sm:$0xff] 0.0
        %790 = vst [vmem:[#allocation2 + $0x58] sm:$0xff] 0.0
        %791 = vst [vmem:[#allocation2 + $0x60] sm:$0xff] 0.0
        %792 = vst [vmem:[#allocation2 + $0x68] sm:$0xff] 0.0
        %793 = vst [vmem:[#allocation2 + $0x70] sm:$0xff] 0.0
        %794 = vst [vmem:[#allocation2 + $0x78] sm:$0xff] 0.0
        %795 = vst [vmem:[#allocation2 + $0x80] sm:$0xff] 0.0
        %796 = vst [vmem:[#allocation2 + $0x88] sm:$0xff] 0.0
        %797 = vst [vmem:[#allocation2 + $0x90] sm:$0xff] 0.0
        %798 = vst [vmem:[#allocation2 + $0x98] sm:$0xff] 0.0
        %799 = vst [vmem:[#allocation2 + $0xa0] sm:$0xff] 0.0
        %800 = vst [vmem:[#allocation2 + $0xa8] sm:$0xff] 0.0
        %801 = vst [vmem:[#allocation2 + $0xb0] sm:$0xff] 0.0
        %802 = vst [vmem:[#allocation2 + $0xb8] sm:$0xff] 0.0
        %803 = vst [vmem:[#allocation2 + $0xc0] sm:$0xff] 0.0
        %804 = vst [vmem:[#allocation2 + $0xc8] sm:$0xff] 0.0
        %805 = vst [vmem:[#allocation2 + $0xd0] sm:$0xff] 0.0
        %806 = vst [vmem:[#allocation2 + $0xd8] sm:$0xff] 0.0
        %807 = vst [vmem:[#allocation2 + $0xe0] sm:$0xff] 0.0
        %808 = vst [vmem:[#allocation2 + $0xe8] sm:$0xff] 0.0
        %809 = vst [vmem:[#allocation2 + $0xf0] sm:$0xff] 0.0
        %810 = vst [vmem:[#allocation2 + $0xf8] sm:$0xff] 0.0
        %811 = vst [vmem:[#allocation2 + $0x100] sm:$0xff] 0.0
        %812 = vst [vmem:[#allocation2 + $0x108] sm:$0xff] 0.0
        %813 = vst [vmem:[#allocation2 + $0x110] sm:$0xff] 0.0
        %814 = vst [vmem:[#allocation2 + $0x118] sm:$0xff] 0.0
        %815 = vst [vmem:[#allocation2 + $0x120] sm:$0xff] 0.0
        %816 = vst [vmem:[#allocation2 + $0x128] sm:$0xff] 0.0
        %817 = vst [vmem:[#allocation2 + $0x130] sm:$0xff] 0.0
        %818 = vst [vmem:[#allocation2 + $0x138] sm:$0xff] 0.0
        %819 = vst [vmem:[#allocation2 + $0x140] sm:$0xff] 0.0
        %820 = vst [vmem:[#allocation2 + $0x148] sm:$0xff] 0.0
        %821 = vst [vmem:[#allocation2 + $0x150] sm:$0xff] 0.0
        %822 = vst [vmem:[#allocation2 + $0x158] sm:$0xff] 0.0
        %823 = vst [vmem:[#allocation2 + $0x160] sm:$0xff] 0.0
        %824 = vst [vmem:[#allocation2 + $0x168] sm:$0xff] 0.0
        %825 = vst [vmem:[#allocation2 + $0x170] sm:$0xff] 0.0
        %826 = vst [vmem:[#allocation2 + $0x178] sm:$0xff] 0.0
      $region112: #{processor_forward.2} parent=107 // pred_fallthru
        _
      %v827 = vld [vmem:[%s3] sm:$0xff]
      %v828 = vld [vmem:[%s3 + $0x8] sm:$0xff]
      %v829 = vld [vmem:[%s3 + $0x10] sm:$0xff]
      %v830 = vld [vmem:[%s3 + $0x18] sm:$0xff]
      %v831 = vld [vmem:[%s3 + $0x20] sm:$0xff]
      %v832 = vld [vmem:[%s3 + $0x28] sm:$0xff]
      %v833 = vld [vmem:[%s3 + $0x30] sm:$0xff]
      %v834 = vld [vmem:[%s3 + $0x38] sm:$0xff]
      %v835 = vld [vmem:[%s3 + $0x40] sm:$0xff]
      %v836 = vld [vmem:[%s3 + $0x48] sm:$0xff]
      %v837 = vld [vmem:[%s3 + $0x50] sm:$0xff]
      %v838 = vld [vmem:[%s3 + $0x58] sm:$0xff]
      %v839 = vld [vmem:[%s3 + $0x60] sm:$0xff]
      %v840 = vld [vmem:[%s3 + $0x68] sm:$0xff]
      %v841 = vld [vmem:[%s3 + $0x70] sm:$0xff]
      %v842 = vld [vmem:[%s3 + $0x78] sm:$0xff]
      %v843 = vld [vmem:[%s3 + $0x80] sm:$0xff]
      %v844 = vld [vmem:[%s3 + $0x88] sm:$0xff]
      %v845 = vld [vmem:[%s3 + $0x90] sm:$0xff]
      %v846 = vld [vmem:[%s3 + $0x98] sm:$0xff]
      %v847 = vld [vmem:[%s3 + $0xa0] sm:$0xff]
      %v848 = vld [vmem:[%s3 + $0xa8] sm:$0xff]
      %v849 = vld [vmem:[%s3 + $0xb0] sm:$0xff]
      %v850 = vld [vmem:[%s3 + $0xb8] sm:$0xff]
      %v851 = vld [vmem:[%s3 + $0xc0] sm:$0xff]
      %v852 = vld [vmem:[%s3 + $0xc8] sm:$0xff]
      %v853 = vld [vmem:[%s3 + $0xd0] sm:$0xff]
      %v854 = vld [vmem:[%s3 + $0xd8] sm:$0xff]
      %v855 = vld [vmem:[%s3 + $0xe0] sm:$0xff]
      %v856 = vld [vmem:[%s3 + $0xe8] sm:$0xff]
      %v857 = vld [vmem:[%s3 + $0xf0] sm:$0xff]
      %v858 = vld [vmem:[%s3 + $0xf8] sm:$0xff]
      %v859 = vld [vmem:[%s3 + $0x100] sm:$0xff]
      %v860 = vld [vmem:[%s3 + $0x108] sm:$0xff]
      %v861 = vld [vmem:[%s3 + $0x110] sm:$0xff]
      %v862 = vld [vmem:[%s3 + $0x118] sm:$0xff]
      %v863 = vld [vmem:[%s3 + $0x120] sm:$0xff]
      %v864 = vld [vmem:[%s3 + $0x128] sm:$0xff]
      %v865 = vld [vmem:[%s3 + $0x130] sm:$0xff]
      %v866 = vld [vmem:[%s3 + $0x138] sm:$0xff]
      %v867 = vld [vmem:[%s3 + $0x140] sm:$0xff]
      %v868 = vld [vmem:[%s3 + $0x148] sm:$0xff]
      %v869 = vld [vmem:[%s3 + $0x150] sm:$0xff]
      %v870 = vld [vmem:[%s3 + $0x158] sm:$0xff]
      %v871 = vld [vmem:[%s3 + $0x160] sm:$0xff]
      %v872 = vld [vmem:[%s3 + $0x168] sm:$0xff]
      %v873 = vld [vmem:[%s3 + $0x170] sm:$0xff]
      %v874 = vld [vmem:[%s3 + $0x178] sm:$0xff]
      %v875 = vpack.c.bf16 %v828, %v827
      %v876 = vpack.c.bf16 %v830, %v829
      %v877 = vpack.c.bf16 %v832, %v831
      %v878 = vpack.c.bf16 %v834, %v833
      %v879 = vpack.c.bf16 %v836, %v835
      %v880 = vpack.c.bf16 %v838, %v837
      %v881 = vpack.c.bf16 %v840, %v839
      %v882 = vpack.c.bf16 %v842, %v841
      %v883 = vpack.c.bf16 %v844, %v843
      %v884 = vpack.c.bf16 %v846, %v845
      %v885 = vpack.c.bf16 %v848, %v847
      %v886 = vpack.c.bf16 %v850, %v849
      %v887 = vpack.c.bf16 %v852, %v851
      %v888 = vpack.c.bf16 %v854, %v853
      %v889 = vpack.c.bf16 %v856, %v855
      %v890 = vpack.c.bf16 %v858, %v857
      %v891 = vpack.c.bf16 %v860, %v859
      %v892 = vpack.c.bf16 %v862, %v861
      %v893 = vpack.c.bf16 %v864, %v863
      %v894 = vpack.c.bf16 %v866, %v865
      %v895 = vpack.c.bf16 %v868, %v867
      %v896 = vpack.c.bf16 %v870, %v869
      %v897 = vpack.c.bf16 %v872, %v871
      %v898 = vpack.c.bf16 %v874, %v873
      %v899 = vlaneseq
      %v900 = vand.u32 %v899, 127
      %v901 = vadd.s32 %v900, 128
      %v902 = vadd.s32 %v900, 256
      %v903 = vld [vmem:[%s750] sm:$0xff]
      %v904 = vld [vmem:[%s750 + $0x8] sm:$0xff]
      %v905 = vld [vmem:[%s750 + $0x10] sm:$0xff]
      %v906 = vld [vmem:[%s750 + $0x18] sm:$0xff]
      %v907 = vld [vmem:[%s750 + $0x20] sm:$0xff]
      %v908 = vld [vmem:[%s750 + $0x28] sm:$0xff]
      %v909 = vld [vmem:[%s750 + $0x30] sm:$0xff]
      %v910 = vld [vmem:[%s750 + $0x38] sm:$0xff]
      %v911 = vld [vmem:[%s750 + $0x40] sm:$0xff]
      %v912 = vld [vmem:[%s750 + $0x48] sm:$0xff]
      %v913 = vld [vmem:[%s750 + $0x50] sm:$0xff]
      %v914 = vld [vmem:[%s750 + $0x58] sm:$0xff]
      %v915 = vld [vmem:[%s750 + $0x60] sm:$0xff]
      %v916 = vld [vmem:[%s750 + $0x68] sm:$0xff]
      %v917 = vld [vmem:[%s750 + $0x70] sm:$0xff]
      %v918 = vld [vmem:[%s750 + $0x78] sm:$0xff]
      %v919 = vld [vmem:[%s750 + $0x80] sm:$0xff]
      %v920 = vld [vmem:[%s750 + $0x88] sm:$0xff]
      %v921 = vld [vmem:[%s750 + $0x90] sm:$0xff]
      %v922 = vld [vmem:[%s750 + $0x98] sm:$0xff]
      %v923 = vld [vmem:[%s750 + $0xa0] sm:$0xff]
      %v924 = vld [vmem:[%s750 + $0xa8] sm:$0xff]
      %v925 = vld [vmem:[%s750 + $0xb0] sm:$0xff]
      %v926 = vld [vmem:[%s750 + $0xb8] sm:$0xff]
      %v927 = vld [vmem:[%s750 + $0xc0] sm:$0xff]
      %v928 = vld [vmem:[%s750 + $0xc8] sm:$0xff]
      %v929 = vld [vmem:[%s750 + $0xd0] sm:$0xff]
      %v930 = vld [vmem:[%s750 + $0xd8] sm:$0xff]
      %v931 = vld [vmem:[%s750 + $0xe0] sm:$0xff]
      %v932 = vld [vmem:[%s750 + $0xe8] sm:$0xff]
      %v933 = vld [vmem:[%s750 + $0xf0] sm:$0xff]
      %v934 = vld [vmem:[%s750 + $0xf8] sm:$0xff]
      %935 = vset.pattern.permute.xlu0 0
      %936 = vperm.xlu0 %935, %v903
      %v937 = vpop.permute.xlu0 %936
      %938 = vset.pattern.permute.xlu0 0
      %939 = vperm.xlu0 %938, %v904
      %v940 = vpop.permute.xlu0 %939
      %941 = vset.pattern.permute.xlu0 0
      %942 = vperm.xlu0 %941, %v905
      %v943 = vpop.permute.xlu0 %942
      %944 = vset.pattern.permute.xlu0 0
      %945 = vperm.xlu0 %944, %v906
      %v946 = vpop.permute.xlu0 %945
      %947 = vset.pattern.permute.xlu0 0
      %948 = vperm.xlu0 %947, %v907
      %v949 = vpop.permute.xlu0 %948
      %950 = vset.pattern.permute.xlu0 0
      %951 = vperm.xlu0 %950, %v908
      %v952 = vpop.permute.xlu0 %951
      %953 = vset.pattern.permute.xlu0 0
      %954 = vperm.xlu0 %953, %v909
      %v955 = vpop.permute.xlu0 %954
      %956 = vset.pattern.permute.xlu0 0
      %957 = vperm.xlu0 %956, %v910
      %v958 = vpop.permute.xlu0 %957
      %959 = vset.pattern.permute.xlu0 0
      %960 = vperm.xlu0 %959, %v911
      %v961 = vpop.permute.xlu0 %960
      %962 = vset.pattern.permute.xlu0 0
      %963 = vperm.xlu0 %962, %v912
      %v964 = vpop.permute.xlu0 %963
      %965 = vset.pattern.permute.xlu0 0
      %966 = vperm.xlu0 %965, %v913
      %v967 = vpop.permute.xlu0 %966
      %968 = vset.pattern.permute.xlu0 0
      %969 = vperm.xlu0 %968, %v914
      %v970 = vpop.permute.xlu0 %969
      %971 = vset.pattern.permute.xlu0 0
      %972 = vperm.xlu0 %971, %v915
      %v973 = vpop.permute.xlu0 %972
      %974 = vset.pattern.permute.xlu0 0
      %975 = vperm.xlu0 %974, %v916
      %v976 = vpop.permute.xlu0 %975
      %977 = vset.pattern.permute.xlu0 0
      %978 = vperm.xlu0 %977, %v917
      %v979 = vpop.permute.xlu0 %978
      %980 = vset.pattern.permute.xlu0 0
      %981 = vperm.xlu0 %980, %v918
      %v982 = vpop.permute.xlu0 %981
      %983 = vset.pattern.permute.xlu0 0
      %984 = vperm.xlu0 %983, %v919
      %v985 = vpop.permute.xlu0 %984
      %986 = vset.pattern.permute.xlu0 0
      %987 = vperm.xlu0 %986, %v920
      %v988 = vpop.permute.xlu0 %987
      %989 = vset.pattern.permute.xlu0 0
      %990 = vperm.xlu0 %989, %v921
      %v991 = vpop.permute.xlu0 %990
      %992 = vset.pattern.permute.xlu0 0
      %993 = vperm.xlu0 %992, %v922
      %v994 = vpop.permute.xlu0 %993
      %995 = vset.pattern.permute.xlu0 0
      %996 = vperm.xlu0 %995, %v923
      %v997 = vpop.permute.xlu0 %996
      %998 = vset.pattern.permute.xlu0 0
      %999 = vperm.xlu0 %998, %v924
      %v1000 = vpop.permute.xlu0 %999
      %1001 = vset.pattern.permute.xlu0 0
      %1002 = vperm.xlu0 %1001, %v925
      %v1003 = vpop.permute.xlu0 %1002
      %1004 = vset.pattern.permute.xlu0 0
      %1005 = vperm.xlu0 %1004, %v926
      %v1006 = vpop.permute.xlu0 %1005
      %1007 = vset.pattern.permute.xlu0 0
      %1008 = vperm.xlu0 %1007, %v927
      %v1009 = vpop.permute.xlu0 %1008
      %1010 = vset.pattern.permute.xlu0 0
      %1011 = vperm.xlu0 %1010, %v928
      %v1012 = vpop.permute.xlu0 %1011
      %1013 = vset.pattern.permute.xlu0 0
      %1014 = vperm.xlu0 %1013, %v929
      %v1015 = vpop.permute.xlu0 %1014
      %1016 = vset.pattern.permute.xlu0 0
      %1017 = vperm.xlu0 %1016, %v930
      %v1018 = vpop.permute.xlu0 %1017
      %1019 = vset.pattern.permute.xlu0 0
      %1020 = vperm.xlu0 %1019, %v931
      %v1021 = vpop.permute.xlu0 %1020
      %1022 = vset.pattern.permute.xlu0 0
      %1023 = vperm.xlu0 %1022, %v932
      %v1024 = vpop.permute.xlu0 %1023
      %1025 = vset.pattern.permute.xlu0 0
      %1026 = vperm.xlu0 %1025, %v933
      %v1027 = vpop.permute.xlu0 %1026
      %1028 = vset.pattern.permute.xlu0 0
      %1029 = vperm.xlu0 %1028, %v934
      %v1030 = vpop.permute.xlu0 %1029
      %vm1031 = vcmp.eq.s32.totalorder %v900, %v937
      %vm1032 = vcmp.eq.s32.totalorder %v901, %v937
      %vm1033 = vcmp.eq.s32.totalorder %v902, %v937
      %vm1034 = vcmp.eq.s32.totalorder %v900, %v940
      %vm1035 = vcmp.eq.s32.totalorder %v901, %v940
      %vm1036 = vcmp.eq.s32.totalorder %v902, %v940
      %vm1037 = vcmp.eq.s32.totalorder %v900, %v943
      %vm1038 = vcmp.eq.s32.totalorder %v901, %v943
      %vm1039 = vcmp.eq.s32.totalorder %v902, %v943
      %vm1040 = vcmp.eq.s32.totalorder %v900, %v946
      %vm1041 = vcmp.eq.s32.totalorder %v901, %v946
      %vm1042 = vcmp.eq.s32.totalorder %v902, %v946
      %vm1043 = vcmp.eq.s32.totalorder %v900, %v949
      %vm1044 = vcmp.eq.s32.totalorder %v901, %v949
      %vm1045 = vcmp.eq.s32.totalorder %v902, %v949
      %vm1046 = vcmp.eq.s32.totalorder %v900, %v952
      %vm1047 = vcmp.eq.s32.totalorder %v901, %v952
      %vm1048 = vcmp.eq.s32.totalorder %v902, %v952
      %vm1049 = vcmp.eq.s32.totalorder %v900, %v955
      %vm1050 = vcmp.eq.s32.totalorder %v901, %v955
      %vm1051 = vcmp.eq.s32.totalorder %v902, %v955
      %vm1052 = vcmp.eq.s32.totalorder %v900, %v958
      %vm1053 = vcmp.eq.s32.totalorder %v901, %v958
      %vm1054 = vcmp.eq.s32.totalorder %v902, %v958
      %vm1055 = vcmp.eq.s32.totalorder %v900, %v961
      %vm1056 = vcmp.eq.s32.totalorder %v901, %v961
      %vm1057 = vcmp.eq.s32.totalorder %v902, %v961
      %vm1058 = vcmp.eq.s32.totalorder %v900, %v964
      %vm1059 = vcmp.eq.s32.totalorder %v901, %v964
      %vm1060 = vcmp.eq.s32.totalorder %v902, %v964
      %vm1061 = vcmp.eq.s32.totalorder %v900, %v967
      %vm1062 = vcmp.eq.s32.totalorder %v901, %v967
      %vm1063 = vcmp.eq.s32.totalorder %v902, %v967
      %vm1064 = vcmp.eq.s32.totalorder %v900, %v970
      %vm1065 = vcmp.eq.s32.totalorder %v901, %v970
      %vm1066 = vcmp.eq.s32.totalorder %v902, %v970
      %vm1067 = vcmp.eq.s32.totalorder %v900, %v973
      %vm1068 = vcmp.eq.s32.totalorder %v901, %v973
      %vm1069 = vcmp.eq.s32.totalorder %v902, %v973
      %vm1070 = vcmp.eq.s32.totalorder %v900, %v976
      %vm1071 = vcmp.eq.s32.totalorder %v901, %v976
      %vm1072 = vcmp.eq.s32.totalorder %v902, %v976
      %vm1073 = vcmp.eq.s32.totalorder %v900, %v979
      %vm1074 = vcmp.eq.s32.totalorder %v901, %v979
      %vm1075 = vcmp.eq.s32.totalorder %v902, %v979
      %vm1076 = vcmp.eq.s32.totalorder %v900, %v982
      %vm1077 = vcmp.eq.s32.totalorder %v901, %v982
      %vm1078 = vcmp.eq.s32.totalorder %v902, %v982
      %vm1079 = vcmp.eq.s32.totalorder %v900, %v985
      %vm1080 = vcmp.eq.s32.totalorder %v901, %v985
      %vm1081 = vcmp.eq.s32.totalorder %v902, %v985
      %vm1082 = vcmp.eq.s32.totalorder %v900, %v988
      %vm1083 = vcmp.eq.s32.totalorder %v901, %v988
      %vm1084 = vcmp.eq.s32.totalorder %v902, %v988
      %vm1085 = vcmp.eq.s32.totalorder %v900, %v991
      %vm1086 = vcmp.eq.s32.totalorder %v901, %v991
      %vm1087 = vcmp.eq.s32.totalorder %v902, %v991
      %vm1088 = vcmp.eq.s32.totalorder %v900, %v994
      %vm1089 = vcmp.eq.s32.totalorder %v901, %v994
      %vm1090 = vcmp.eq.s32.totalorder %v902, %v994
      %vm1091 = vcmp.eq.s32.totalorder %v900, %v997
      %vm1092 = vcmp.eq.s32.totalorder %v901, %v997
      %vm1093 = vcmp.eq.s32.totalorder %v902, %v997
      %vm1094 = vcmp.eq.s32.totalorder %v900, %v1000
      %vm1095 = vcmp.eq.s32.totalorder %v901, %v1000
      %vm1096 = vcmp.eq.s32.totalorder %v902, %v1000
      %vm1097 = vcmp.eq.s32.totalorder %v900, %v1003
      %vm1098 = vcmp.eq.s32.totalorder %v901, %v1003
      %vm1099 = vcmp.eq.s32.totalorder %v902, %v1003
      %vm1100 = vcmp.eq.s32.totalorder %v900, %v1006
      %vm1101 = vcmp.eq.s32.totalorder %v901, %v1006
      %vm1102 = vcmp.eq.s32.totalorder %v902, %v1006
      %vm1103 = vcmp.eq.s32.totalorder %v900, %v1009
      %vm1104 = vcmp.eq.s32.totalorder %v901, %v1009
      %vm1105 = vcmp.eq.s32.totalorder %v902, %v1009
      %vm1106 = vcmp.eq.s32.totalorder %v900, %v1012
      %vm1107 = vcmp.eq.s32.totalorder %v901, %v1012
      %vm1108 = vcmp.eq.s32.totalorder %v902, %v1012
      %vm1109 = vcmp.eq.s32.totalorder %v900, %v1015
      %vm1110 = vcmp.eq.s32.totalorder %v901, %v1015
      %vm1111 = vcmp.eq.s32.totalorder %v902, %v1015
      %vm1112 = vcmp.eq.s32.totalorder %v900, %v1018
      %vm1113 = vcmp.eq.s32.totalorder %v901, %v1018
      %vm1114 = vcmp.eq.s32.totalorder %v902, %v1018
      %vm1115 = vcmp.eq.s32.totalorder %v900, %v1021
      %vm1116 = vcmp.eq.s32.totalorder %v901, %v1021
      %vm1117 = vcmp.eq.s32.totalorder %v902, %v1021
      %vm1118 = vcmp.eq.s32.totalorder %v900, %v1024
      %vm1119 = vcmp.eq.s32.totalorder %v901, %v1024
      %vm1120 = vcmp.eq.s32.totalorder %v902, %v1024
      %vm1121 = vcmp.eq.s32.totalorder %v900, %v1027
      %vm1122 = vcmp.eq.s32.totalorder %v901, %v1027
      %vm1123 = vcmp.eq.s32.totalorder %v902, %v1027
      %vm1124 = vcmp.eq.s32.totalorder %v900, %v1030
      %vm1125 = vcmp.eq.s32.totalorder %v901, %v1030
      %vm1126 = vcmp.eq.s32.totalorder %v902, %v1030
      %v1127 = vsel %vm1031, 1.0, 0.0
      %v1128 = vsel %vm1032, 1.0, 0.0
      %v1129 = vsel %vm1033, 1.0, 0.0
      %v1130 = vsel %vm1034, 1.0, 0.0
      %v1131 = vsel %vm1035, 1.0, 0.0
      %v1132 = vsel %vm1036, 1.0, 0.0
      %v1133 = vsel %vm1037, 1.0, 0.0
      %v1134 = vsel %vm1038, 1.0, 0.0
      %v1135 = vsel %vm1039, 1.0, 0.0
      %v1136 = vsel %vm1040, 1.0, 0.0
      %v1137 = vsel %vm1041, 1.0, 0.0
      %v1138 = vsel %vm1042, 1.0, 0.0
      %v1139 = vsel %vm1043, 1.0, 0.0
      %v1140 = vsel %vm1044, 1.0, 0.0
      %v1141 = vsel %vm1045, 1.0, 0.0
      %v1142 = vsel %vm1046, 1.0, 0.0
      %v1143 = vsel %vm1047, 1.0, 0.0
      %v1144 = vsel %vm1048, 1.0, 0.0
      %v1145 = vsel %vm1049, 1.0, 0.0
      %v1146 = vsel %vm1050, 1.0, 0.0
      %v1147 = vsel %vm1051, 1.0, 0.0
      %v1148 = vsel %vm1052, 1.0, 0.0
      %v1149 = vsel %vm1053, 1.0, 0.0
      %v1150 = vsel %vm1054, 1.0, 0.0
      %v1151 = vsel %vm1055, 1.0, 0.0
      %v1152 = vsel %vm1056, 1.0, 0.0
      %v1153 = vsel %vm1057, 1.0, 0.0
      %v1154 = vsel %vm1058, 1.0, 0.0
      %v1155 = vsel %vm1059, 1.0, 0.0
      %v1156 = vsel %vm1060, 1.0, 0.0
      %v1157 = vsel %vm1061, 1.0, 0.0
      %v1158 = vsel %vm1062, 1.0, 0.0
      %v1159 = vsel %vm1063, 1.0, 0.0
      %v1160 = vsel %vm1064, 1.0, 0.0
      %v1161 = vsel %vm1065, 1.0, 0.0
      %v1162 = vsel %vm1066, 1.0, 0.0
      %v1163 = vsel %vm1067, 1.0, 0.0
      %v1164 = vsel %vm1068, 1.0, 0.0
      %v1165 = vsel %vm1069, 1.0, 0.0
      %v1166 = vsel %vm1070, 1.0, 0.0
      %v1167 = vsel %vm1071, 1.0, 0.0
      %v1168 = vsel %vm1072, 1.0, 0.0
      %v1169 = vsel %vm1073, 1.0, 0.0
      %v1170 = vsel %vm1074, 1.0, 0.0
      %v1171 = vsel %vm1075, 1.0, 0.0
      %v1172 = vsel %vm1076, 1.0, 0.0
      %v1173 = vsel %vm1077, 1.0, 0.0
      %v1174 = vsel %vm1078, 1.0, 0.0
      %v1175 = vsel %vm1079, 1.0, 0.0
      %v1176 = vsel %vm1080, 1.0, 0.0
      %v1177 = vsel %vm1081, 1.0, 0.0
      %v1178 = vsel %vm1082, 1.0, 0.0
      %v1179 = vsel %vm1083, 1.0, 0.0
      %v1180 = vsel %vm1084, 1.0, 0.0
      %v1181 = vsel %vm1085, 1.0, 0.0
      %v1182 = vsel %vm1086, 1.0, 0.0
      %v1183 = vsel %vm1087, 1.0, 0.0
      %v1184 = vsel %vm1088, 1.0, 0.0
      %v1185 = vsel %vm1089, 1.0, 0.0
      %v1186 = vsel %vm1090, 1.0, 0.0
      %v1187 = vsel %vm1091, 1.0, 0.0
      %v1188 = vsel %vm1092, 1.0, 0.0
      %v1189 = vsel %vm1093, 1.0, 0.0
      %v1190 = vsel %vm1094, 1.0, 0.0
      %v1191 = vsel %vm1095, 1.0, 0.0
      %v1192 = vsel %vm1096, 1.0, 0.0
      %v1193 = vsel %vm1097, 1.0, 0.0
      %v1194 = vsel %vm1098, 1.0, 0.0
      %v1195 = vsel %vm1099, 1.0, 0.0
      %v1196 = vsel %vm1100, 1.0, 0.0
      %v1197 = vsel %vm1101, 1.0, 0.0
      %v1198 = vsel %vm1102, 1.0, 0.0
      %v1199 = vsel %vm1103, 1.0, 0.0
      %v1200 = vsel %vm1104, 1.0, 0.0
      %v1201 = vsel %vm1105, 1.0, 0.0
      %v1202 = vsel %vm1106, 1.0, 0.0
      %v1203 = vsel %vm1107, 1.0, 0.0
      %v1204 = vsel %vm1108, 1.0, 0.0
      %v1205 = vsel %vm1109, 1.0, 0.0
      %v1206 = vsel %vm1110, 1.0, 0.0
      %v1207 = vsel %vm1111, 1.0, 0.0
      %v1208 = vsel %vm1112, 1.0, 0.0
      %v1209 = vsel %vm1113, 1.0, 0.0
      %v1210 = vsel %vm1114, 1.0, 0.0
      %v1211 = vsel %vm1115, 1.0, 0.0
      %v1212 = vsel %vm1116, 1.0, 0.0
      %v1213 = vsel %vm1117, 1.0, 0.0
      %v1214 = vsel %vm1118, 1.0, 0.0
      %v1215 = vsel %vm1119, 1.0, 0.0
      %v1216 = vsel %vm1120, 1.0, 0.0
      %v1217 = vsel %vm1121, 1.0, 0.0
      %v1218 = vsel %vm1122, 1.0, 0.0
      %v1219 = vsel %vm1123, 1.0, 0.0
      %v1220 = vsel %vm1124, 1.0, 0.0
      %v1221 = vsel %vm1125, 1.0, 0.0
      %v1222 = vsel %vm1126, 1.0, 0.0
      %v1223 = vpack.c.bf16 %v1130, %v1127
      %v1224 = vpack.c.bf16 %v1131, %v1128
      %v1225 = vpack.c.bf16 %v1132, %v1129
      %v1226 = vpack.c.bf16 %v1136, %v1133
      %v1227 = vpack.c.bf16 %v1137, %v1134
      %v1228 = vpack.c.bf16 %v1138, %v1135
      %v1229 = vpack.c.bf16 %v1142, %v1139
      %v1230 = vpack.c.bf16 %v1143, %v1140
      %v1231 = vpack.c.bf16 %v1144, %v1141
      %v1232 = vpack.c.bf16 %v1148, %v1145
      %v1233 = vpack.c.bf16 %v1149, %v1146
      %v1234 = vpack.c.bf16 %v1150, %v1147
      %v1235 = vpack.c.bf16 %v1154, %v1151
      %v1236 = vpack.c.bf16 %v1155, %v1152
      %v1237 = vpack.c.bf16 %v1156, %v1153
      %v1238 = vpack.c.bf16 %v1160, %v1157
      %v1239 = vpack.c.bf16 %v1161, %v1158
      %v1240 = vpack.c.bf16 %v1162, %v1159
      %v1241 = vpack.c.bf16 %v1166, %v1163
      %v1242 = vpack.c.bf16 %v1167, %v1164
      %v1243 = vpack.c.bf16 %v1168, %v1165
      %v1244 = vpack.c.bf16 %v1172, %v1169
      %v1245 = vpack.c.bf16 %v1173, %v1170
      %v1246 = vpack.c.bf16 %v1174, %v1171
      %v1247 = vpack.c.bf16 %v1178, %v1175
      %v1248 = vpack.c.bf16 %v1179, %v1176
      %v1249 = vpack.c.bf16 %v1180, %v1177
      %v1250 = vpack.c.bf16 %v1184, %v1181
      %v1251 = vpack.c.bf16 %v1185, %v1182
      %v1252 = vpack.c.bf16 %v1186, %v1183
      %v1253 = vpack.c.bf16 %v1190, %v1187
      %v1254 = vpack.c.bf16 %v1191, %v1188
      %v1255 = vpack.c.bf16 %v1192, %v1189
      %v1256 = vpack.c.bf16 %v1196, %v1193
      %v1257 = vpack.c.bf16 %v1197, %v1194
      %v1258 = vpack.c.bf16 %v1198, %v1195
      %v1259 = vpack.c.bf16 %v1202, %v1199
      %v1260 = vpack.c.bf16 %v1203, %v1200
      %v1261 = vpack.c.bf16 %v1204, %v1201
      %v1262 = vpack.c.bf16 %v1208, %v1205
      %v1263 = vpack.c.bf16 %v1209, %v1206
      %v1264 = vpack.c.bf16 %v1210, %v1207
      %v1265 = vpack.c.bf16 %v1214, %v1211
      %v1266 = vpack.c.bf16 %v1215, %v1212
      %v1267 = vpack.c.bf16 %v1216, %v1213
      %v1268 = vpack.c.bf16 %v1220, %v1217
      %v1269 = vpack.c.bf16 %v1221, %v1218
      %v1270 = vpack.c.bf16 %v1222, %v1219
      %v1271 = vld [vmem:[%s756] sm:$0xff]
      %v1272 = vld [vmem:[%s756 + $0x8] sm:$0xff]
      %v1273 = vld [vmem:[%s756 + $0x10] sm:$0xff]
      %v1274 = vld [vmem:[%s756 + $0x18] sm:$0xff]
      %v1275 = vld [vmem:[%s756 + $0x20] sm:$0xff]
      %v1276 = vld [vmem:[%s756 + $0x28] sm:$0xff]
      %v1277 = vld [vmem:[%s756 + $0x30] sm:$0xff]
      %v1278 = vld [vmem:[%s756 + $0x38] sm:$0xff]
      %v1279 = vld [vmem:[%s756 + $0x40] sm:$0xff]
      %v1280 = vld [vmem:[%s756 + $0x48] sm:$0xff]
      %v1281 = vld [vmem:[%s756 + $0x50] sm:$0xff]
      %v1282 = vld [vmem:[%s756 + $0x58] sm:$0xff]
      %v1283 = vld [vmem:[%s756 + $0x60] sm:$0xff]
      %v1284 = vld [vmem:[%s756 + $0x68] sm:$0xff]
      %v1285 = vld [vmem:[%s756 + $0x70] sm:$0xff]
      %v1286 = vld [vmem:[%s756 + $0x78] sm:$0xff]
      %v1287 = vld [vmem:[%s756 + $0x80] sm:$0xff]
      %v1288 = vld [vmem:[%s756 + $0x88] sm:$0xff]
      %v1289 = vld [vmem:[%s756 + $0x90] sm:$0xff]
      %v1290 = vld [vmem:[%s756 + $0x98] sm:$0xff]
      %v1291 = vld [vmem:[%s756 + $0xa0] sm:$0xff]
      %v1292 = vld [vmem:[%s756 + $0xa8] sm:$0xff]
      %v1293 = vld [vmem:[%s756 + $0xb0] sm:$0xff]
      %v1294 = vld [vmem:[%s756 + $0xb8] sm:$0xff]
      %v1295 = vld [vmem:[%s756 + $0xc0] sm:$0xff]
      %v1296 = vld [vmem:[%s756 + $0xc8] sm:$0xff]
      %v1297 = vld [vmem:[%s756 + $0xd0] sm:$0xff]
      %v1298 = vld [vmem:[%s756 + $0xd8] sm:$0xff]
      %v1299 = vld [vmem:[%s756 + $0xe0] sm:$0xff]
      %v1300 = vld [vmem:[%s756 + $0xe8] sm:$0xff]
      %v1301 = vld [vmem:[%s756 + $0xf0] sm:$0xff]
      %v1302 = vld [vmem:[%s756 + $0xf8] sm:$0xff]
      %1303 = vset.pattern.permute.xlu0 0
      %1304 = vperm.xlu0 %1303, %v1271
      %v1305 = vpop.permute.xlu0 %1304
      %1306 = vset.pattern.permute.xlu0 0
      %1307 = vperm.xlu0 %1306, %v1272
      %v1308 = vpop.permute.xlu0 %1307
      %1309 = vset.pattern.permute.xlu0 0
      %1310 = vperm.xlu0 %1309, %v1273
      %v1311 = vpop.permute.xlu0 %1310
      %1312 = vset.pattern.permute.xlu0 0
      %1313 = vperm.xlu0 %1312, %v1274
      %v1314 = vpop.permute.xlu0 %1313
      %1315 = vset.pattern.permute.xlu0 0
      %1316 = vperm.xlu0 %1315, %v1275
      %v1317 = vpop.permute.xlu0 %1316
      %1318 = vset.pattern.permute.xlu0 0
      %1319 = vperm.xlu0 %1318, %v1276
      %v1320 = vpop.permute.xlu0 %1319
      %1321 = vset.pattern.permute.xlu0 0
      %1322 = vperm.xlu0 %1321, %v1277
      %v1323 = vpop.permute.xlu0 %1322
      %1324 = vset.pattern.permute.xlu0 0
      %1325 = vperm.xlu0 %1324, %v1278
      %v1326 = vpop.permute.xlu0 %1325
      %1327 = vset.pattern.permute.xlu0 0
      %1328 = vperm.xlu0 %1327, %v1279
      %v1329 = vpop.permute.xlu0 %1328
      %1330 = vset.pattern.permute.xlu0 0
      %1331 = vperm.xlu0 %1330, %v1280
      %v1332 = vpop.permute.xlu0 %1331
      %1333 = vset.pattern.permute.xlu0 0
      %1334 = vperm.xlu0 %1333, %v1281
      %v1335 = vpop.permute.xlu0 %1334
      %1336 = vset.pattern.permute.xlu0 0
      %1337 = vperm.xlu0 %1336, %v1282
      %v1338 = vpop.permute.xlu0 %1337
      %1339 = vset.pattern.permute.xlu0 0
      %1340 = vperm.xlu0 %1339, %v1283
      %v1341 = vpop.permute.xlu0 %1340
      %1342 = vset.pattern.permute.xlu0 0
      %1343 = vperm.xlu0 %1342, %v1284
      %v1344 = vpop.permute.xlu0 %1343
      %1345 = vset.pattern.permute.xlu0 0
      %1346 = vperm.xlu0 %1345, %v1285
      %v1347 = vpop.permute.xlu0 %1346
      %1348 = vset.pattern.permute.xlu0 0
      %1349 = vperm.xlu0 %1348, %v1286
      %v1350 = vpop.permute.xlu0 %1349
      %1351 = vset.pattern.permute.xlu0 0
      %1352 = vperm.xlu0 %1351, %v1287
      %v1353 = vpop.permute.xlu0 %1352
      %1354 = vset.pattern.permute.xlu0 0
      %1355 = vperm.xlu0 %1354, %v1288
      %v1356 = vpop.permute.xlu0 %1355
      %1357 = vset.pattern.permute.xlu0 0
      %1358 = vperm.xlu0 %1357, %v1289
      %v1359 = vpop.permute.xlu0 %1358
      %1360 = vset.pattern.permute.xlu0 0
      %1361 = vperm.xlu0 %1360, %v1290
      %v1362 = vpop.permute.xlu0 %1361
      %1363 = vset.pattern.permute.xlu0 0
      %1364 = vperm.xlu0 %1363, %v1291
      %v1365 = vpop.permute.xlu0 %1364
      %1366 = vset.pattern.permute.xlu0 0
      %1367 = vperm.xlu0 %1366, %v1292
      %v1368 = vpop.permute.xlu0 %1367
      %1369 = vset.pattern.permute.xlu0 0
      %1370 = vperm.xlu0 %1369, %v1293
      %v1371 = vpop.permute.xlu0 %1370
      %1372 = vset.pattern.permute.xlu0 0
      %1373 = vperm.xlu0 %1372, %v1294
      %v1374 = vpop.permute.xlu0 %1373
      %1375 = vset.pattern.permute.xlu0 0
      %1376 = vperm.xlu0 %1375, %v1295
      %v1377 = vpop.permute.xlu0 %1376
      %1378 = vset.pattern.permute.xlu0 0
      %1379 = vperm.xlu0 %1378, %v1296
      %v1380 = vpop.permute.xlu0 %1379
      %1381 = vset.pattern.permute.xlu0 0
      %1382 = vperm.xlu0 %1381, %v1297
      %v1383 = vpop.permute.xlu0 %1382
      %1384 = vset.pattern.permute.xlu0 0
      %1385 = vperm.xlu0 %1384, %v1298
      %v1386 = vpop.permute.xlu0 %1385
      %1387 = vset.pattern.permute.xlu0 0
      %1388 = vperm.xlu0 %1387, %v1299
      %v1389 = vpop.permute.xlu0 %1388
      %1390 = vset.pattern.permute.xlu0 0
      %1391 = vperm.xlu0 %1390, %v1300
      %v1392 = vpop.permute.xlu0 %1391
      %1393 = vset.pattern.permute.xlu0 0
      %1394 = vperm.xlu0 %1393, %v1301
      %v1395 = vpop.permute.xlu0 %1394
      %1396 = vset.pattern.permute.xlu0 0
      %1397 = vperm.xlu0 %1396, %v1302
      %v1398 = vpop.permute.xlu0 %1397
      %vm1399 = vcmp.eq.s32.totalorder %v900, %v1305
      %vm1400 = vcmp.eq.s32.totalorder %v901, %v1305
      %vm1401 = vcmp.eq.s32.totalorder %v902, %v1305
      %vm1402 = vcmp.eq.s32.totalorder %v900, %v1308
      %vm1403 = vcmp.eq.s32.totalorder %v901, %v1308
      %vm1404 = vcmp.eq.s32.totalorder %v902, %v1308
      %vm1405 = vcmp.eq.s32.totalorder %v900, %v1311
      %vm1406 = vcmp.eq.s32.totalorder %v901, %v1311
      %vm1407 = vcmp.eq.s32.totalorder %v902, %v1311
      %vm1408 = vcmp.eq.s32.totalorder %v900, %v1314
      %vm1409 = vcmp.eq.s32.totalorder %v901, %v1314
      %vm1410 = vcmp.eq.s32.totalorder %v902, %v1314
      %vm1411 = vcmp.eq.s32.totalorder %v900, %v1317
      %vm1412 = vcmp.eq.s32.totalorder %v901, %v1317
      %vm1413 = vcmp.eq.s32.totalorder %v902, %v1317
      %vm1414 = vcmp.eq.s32.totalorder %v900, %v1320
      %vm1415 = vcmp.eq.s32.totalorder %v901, %v1320
      %vm1416 = vcmp.eq.s32.totalorder %v902, %v1320
      %vm1417 = vcmp.eq.s32.totalorder %v900, %v1323
      %vm1418 = vcmp.eq.s32.totalorder %v901, %v1323
      %vm1419 = vcmp.eq.s32.totalorder %v902, %v1323
      %vm1420 = vcmp.eq.s32.totalorder %v900, %v1326
      %vm1421 = vcmp.eq.s32.totalorder %v901, %v1326
      %vm1422 = vcmp.eq.s32.totalorder %v902, %v1326
      %vm1423 = vcmp.eq.s32.totalorder %v900, %v1329
      %vm1424 = vcmp.eq.s32.totalorder %v901, %v1329
      %vm1425 = vcmp.eq.s32.totalorder %v902, %v1329
      %vm1426 = vcmp.eq.s32.totalorder %v900, %v1332
      %vm1427 = vcmp.eq.s32.totalorder %v901, %v1332
      %vm1428 = vcmp.eq.s32.totalorder %v902, %v1332
      %vm1429 = vcmp.eq.s32.totalorder %v900, %v1335
      %vm1430 = vcmp.eq.s32.totalorder %v901, %v1335
      %vm1431 = vcmp.eq.s32.totalorder %v902, %v1335
      %vm1432 = vcmp.eq.s32.totalorder %v900, %v1338
      %vm1433 = vcmp.eq.s32.totalorder %v901, %v1338
      %vm1434 = vcmp.eq.s32.totalorder %v902, %v1338
      %vm1435 = vcmp.eq.s32.totalorder %v900, %v1341
      %vm1436 = vcmp.eq.s32.totalorder %v901, %v1341
      %vm1437 = vcmp.eq.s32.totalorder %v902, %v1341
      %vm1438 = vcmp.eq.s32.totalorder %v900, %v1344
      %vm1439 = vcmp.eq.s32.totalorder %v901, %v1344
      %vm1440 = vcmp.eq.s32.totalorder %v902, %v1344
      %vm1441 = vcmp.eq.s32.totalorder %v900, %v1347
      %vm1442 = vcmp.eq.s32.totalorder %v901, %v1347
      %vm1443 = vcmp.eq.s32.totalorder %v902, %v1347
      %vm1444 = vcmp.eq.s32.totalorder %v900, %v1350
      %vm1445 = vcmp.eq.s32.totalorder %v901, %v1350
      %vm1446 = vcmp.eq.s32.totalorder %v902, %v1350
      %vm1447 = vcmp.eq.s32.totalorder %v900, %v1353
      %vm1448 = vcmp.eq.s32.totalorder %v901, %v1353
      %vm1449 = vcmp.eq.s32.totalorder %v902, %v1353
      %vm1450 = vcmp.eq.s32.totalorder %v900, %v1356
      %vm1451 = vcmp.eq.s32.totalorder %v901, %v1356
      %vm1452 = vcmp.eq.s32.totalorder %v902, %v1356
      %vm1453 = vcmp.eq.s32.totalorder %v900, %v1359
      %vm1454 = vcmp.eq.s32.totalorder %v901, %v1359
      %vm1455 = vcmp.eq.s32.totalorder %v902, %v1359
      %vm1456 = vcmp.eq.s32.totalorder %v900, %v1362
      %vm1457 = vcmp.eq.s32.totalorder %v901, %v1362
      %vm1458 = vcmp.eq.s32.totalorder %v902, %v1362
      %vm1459 = vcmp.eq.s32.totalorder %v900, %v1365
      %vm1460 = vcmp.eq.s32.totalorder %v901, %v1365
      %vm1461 = vcmp.eq.s32.totalorder %v902, %v1365
      %vm1462 = vcmp.eq.s32.totalorder %v900, %v1368
      %vm1463 = vcmp.eq.s32.totalorder %v901, %v1368
      %vm1464 = vcmp.eq.s32.totalorder %v902, %v1368
      %vm1465 = vcmp.eq.s32.totalorder %v900, %v1371
      %vm1466 = vcmp.eq.s32.totalorder %v901, %v1371
      %vm1467 = vcmp.eq.s32.totalorder %v902, %v1371
      %vm1468 = vcmp.eq.s32.totalorder %v900, %v1374
      %vm1469 = vcmp.eq.s32.totalorder %v901, %v1374
      %vm1470 = vcmp.eq.s32.totalorder %v902, %v1374
      %vm1471 = vcmp.eq.s32.totalorder %v900, %v1377
      %vm1472 = vcmp.eq.s32.totalorder %v901, %v1377
      %vm1473 = vcmp.eq.s32.totalorder %v902, %v1377
      %vm1474 = vcmp.eq.s32.totalorder %v900, %v1380
      %vm1475 = vcmp.eq.s32.totalorder %v901, %v1380
      %vm1476 = vcmp.eq.s32.totalorder %v902, %v1380
      %vm1477 = vcmp.eq.s32.totalorder %v900, %v1383
      %vm1478 = vcmp.eq.s32.totalorder %v901, %v1383
      %vm1479 = vcmp.eq.s32.totalorder %v902, %v1383
      %vm1480 = vcmp.eq.s32.totalorder %v900, %v1386
      %vm1481 = vcmp.eq.s32.totalorder %v901, %v1386
      %vm1482 = vcmp.eq.s32.totalorder %v902, %v1386
      %vm1483 = vcmp.eq.s32.totalorder %v900, %v1389
      %vm1484 = vcmp.eq.s32.totalorder %v901, %v1389
      %vm1485 = vcmp.eq.s32.totalorder %v902, %v1389
      %vm1486 = vcmp.eq.s32.totalorder %v900, %v1392
      %vm1487 = vcmp.eq.s32.totalorder %v901, %v1392
      %vm1488 = vcmp.eq.s32.totalorder %v902, %v1392
      %vm1489 = vcmp.eq.s32.totalorder %v900, %v1395
      %vm1490 = vcmp.eq.s32.totalorder %v901, %v1395
      %vm1491 = vcmp.eq.s32.totalorder %v902, %v1395
      %vm1492 = vcmp.eq.s32.totalorder %v900, %v1398
      %vm1493 = vcmp.eq.s32.totalorder %v901, %v1398
      %vm1494 = vcmp.eq.s32.totalorder %v902, %v1398
      %v1495 = vsel %vm1399, 1.0, 0.0
      %v1496 = vsel %vm1400, 1.0, 0.0
      %v1497 = vsel %vm1401, 1.0, 0.0
      %v1498 = vsel %vm1402, 1.0, 0.0
      %v1499 = vsel %vm1403, 1.0, 0.0
      %v1500 = vsel %vm1404, 1.0, 0.0
      %v1501 = vsel %vm1405, 1.0, 0.0
      %v1502 = vsel %vm1406, 1.0, 0.0
      %v1503 = vsel %vm1407, 1.0, 0.0
      %v1504 = vsel %vm1408, 1.0, 0.0
      %v1505 = vsel %vm1409, 1.0, 0.0
      %v1506 = vsel %vm1410, 1.0, 0.0
      %v1507 = vsel %vm1411, 1.0, 0.0
      %v1508 = vsel %vm1412, 1.0, 0.0
      %v1509 = vsel %vm1413, 1.0, 0.0
      %v1510 = vsel %vm1414, 1.0, 0.0
      %v1511 = vsel %vm1415, 1.0, 0.0
      %v1512 = vsel %vm1416, 1.0, 0.0
      %v1513 = vsel %vm1417, 1.0, 0.0
      %v1514 = vsel %vm1418, 1.0, 0.0
      %v1515 = vsel %vm1419, 1.0, 0.0
      %v1516 = vsel %vm1420, 1.0, 0.0
      %v1517 = vsel %vm1421, 1.0, 0.0
      %v1518 = vsel %vm1422, 1.0, 0.0
      %v1519 = vsel %vm1423, 1.0, 0.0
      %v1520 = vsel %vm1424, 1.0, 0.0
      %v1521 = vsel %vm1425, 1.0, 0.0
      %v1522 = vsel %vm1426, 1.0, 0.0
      %v1523 = vsel %vm1427, 1.0, 0.0
      %v1524 = vsel %vm1428, 1.0, 0.0
      %v1525 = vsel %vm1429, 1.0, 0.0
      %v1526 = vsel %vm1430, 1.0, 0.0
      %v1527 = vsel %vm1431, 1.0, 0.0
      %v1528 = vsel %vm1432, 1.0, 0.0
      %v1529 = vsel %vm1433, 1.0, 0.0
      %v1530 = vsel %vm1434, 1.0, 0.0
      %v1531 = vsel %vm1435, 1.0, 0.0
      %v1532 = vsel %vm1436, 1.0, 0.0
      %v1533 = vsel %vm1437, 1.0, 0.0
      %v1534 = vsel %vm1438, 1.0, 0.0
      %v1535 = vsel %vm1439, 1.0, 0.0
      %v1536 = vsel %vm1440, 1.0, 0.0
      %v1537 = vsel %vm1441, 1.0, 0.0
      %v1538 = vsel %vm1442, 1.0, 0.0
      %v1539 = vsel %vm1443, 1.0, 0.0
      %v1540 = vsel %vm1444, 1.0, 0.0
      %v1541 = vsel %vm1445, 1.0, 0.0
      %v1542 = vsel %vm1446, 1.0, 0.0
      %v1543 = vsel %vm1447, 1.0, 0.0
      %v1544 = vsel %vm1448, 1.0, 0.0
      %v1545 = vsel %vm1449, 1.0, 0.0
      %v1546 = vsel %vm1450, 1.0, 0.0
      %v1547 = vsel %vm1451, 1.0, 0.0
      %v1548 = vsel %vm1452, 1.0, 0.0
      %v1549 = vsel %vm1453, 1.0, 0.0
      %v1550 = vsel %vm1454, 1.0, 0.0
      %v1551 = vsel %vm1455, 1.0, 0.0
      %v1552 = vsel %vm1456, 1.0, 0.0
      %v1553 = vsel %vm1457, 1.0, 0.0
      %v1554 = vsel %vm1458, 1.0, 0.0
      %v1555 = vsel %vm1459, 1.0, 0.0
      %v1556 = vsel %vm1460, 1.0, 0.0
      %v1557 = vsel %vm1461, 1.0, 0.0
      %v1558 = vsel %vm1462, 1.0, 0.0
      %v1559 = vsel %vm1463, 1.0, 0.0
      %v1560 = vsel %vm1464, 1.0, 0.0
      %v1561 = vsel %vm1465, 1.0, 0.0
      %v1562 = vsel %vm1466, 1.0, 0.0
      %v1563 = vsel %vm1467, 1.0, 0.0
      %v1564 = vsel %vm1468, 1.0, 0.0
      %v1565 = vsel %vm1469, 1.0, 0.0
      %v1566 = vsel %vm1470, 1.0, 0.0
      %v1567 = vsel %vm1471, 1.0, 0.0
      %v1568 = vsel %vm1472, 1.0, 0.0
      %v1569 = vsel %vm1473, 1.0, 0.0
      %v1570 = vsel %vm1474, 1.0, 0.0
      %v1571 = vsel %vm1475, 1.0, 0.0
      %v1572 = vsel %vm1476, 1.0, 0.0
      %v1573 = vsel %vm1477, 1.0, 0.0
      %v1574 = vsel %vm1478, 1.0, 0.0
      %v1575 = vsel %vm1479, 1.0, 0.0
      %v1576 = vsel %vm1480, 1.0, 0.0
      %v1577 = vsel %vm1481, 1.0, 0.0
      %v1578 = vsel %vm1482, 1.0, 0.0
      %v1579 = vsel %vm1483, 1.0, 0.0
      %v1580 = vsel %vm1484, 1.0, 0.0
      %v1581 = vsel %vm1485, 1.0, 0.0
      %v1582 = vsel %vm1486, 1.0, 0.0
      %v1583 = vsel %vm1487, 1.0, 0.0
      %v1584 = vsel %vm1488, 1.0, 0.0
      %v1585 = vsel %vm1489, 1.0, 0.0
      %v1586 = vsel %vm1490, 1.0, 0.0
      %v1587 = vsel %vm1491, 1.0, 0.0
      %v1588 = vsel %vm1492, 1.0, 0.0
      %v1589 = vsel %vm1493, 1.0, 0.0
      %v1590 = vsel %vm1494, 1.0, 0.0
      %v1591 = vpack.c.bf16 %v1498, %v1495
      %v1592 = vpack.c.bf16 %v1499, %v1496
      %v1593 = vpack.c.bf16 %v1500, %v1497
      %v1594 = vpack.c.bf16 %v1504, %v1501
      %v1595 = vpack.c.bf16 %v1505, %v1502
      %v1596 = vpack.c.bf16 %v1506, %v1503
      %v1597 = vpack.c.bf16 %v1510, %v1507
      %v1598 = vpack.c.bf16 %v1511, %v1508
      %v1599 = vpack.c.bf16 %v1512, %v1509
      %v1600 = vpack.c.bf16 %v1516, %v1513
      %v1601 = vpack.c.bf16 %v1517, %v1514
      %v1602 = vpack.c.bf16 %v1518, %v1515
      %v1603 = vpack.c.bf16 %v1522, %v1519
      %v1604 = vpack.c.bf16 %v1523, %v1520
      %v1605 = vpack.c.bf16 %v1524, %v1521
      %v1606 = vpack.c.bf16 %v1528, %v1525
      %v1607 = vpack.c.bf16 %v1529, %v1526
      %v1608 = vpack.c.bf16 %v1530, %v1527
      %v1609 = vpack.c.bf16 %v1534, %v1531
      %v1610 = vpack.c.bf16 %v1535, %v1532
      %v1611 = vpack.c.bf16 %v1536, %v1533
      %v1612 = vpack.c.bf16 %v1540, %v1537
      %v1613 = vpack.c.bf16 %v1541, %v1538
      %v1614 = vpack.c.bf16 %v1542, %v1539
      %v1615 = vpack.c.bf16 %v1546, %v1543
      %v1616 = vpack.c.bf16 %v1547, %v1544
      %v1617 = vpack.c.bf16 %v1548, %v1545
      %v1618 = vpack.c.bf16 %v1552, %v1549
      %v1619 = vpack.c.bf16 %v1553, %v1550
      %v1620 = vpack.c.bf16 %v1554, %v1551
      %v1621 = vpack.c.bf16 %v1558, %v1555
      %v1622 = vpack.c.bf16 %v1559, %v1556
      %v1623 = vpack.c.bf16 %v1560, %v1557
      %v1624 = vpack.c.bf16 %v1564, %v1561
      %v1625 = vpack.c.bf16 %v1565, %v1562
      %v1626 = vpack.c.bf16 %v1566, %v1563
      %v1627 = vpack.c.bf16 %v1570, %v1567
      %v1628 = vpack.c.bf16 %v1571, %v1568
      %v1629 = vpack.c.bf16 %v1572, %v1569
      %v1630 = vpack.c.bf16 %v1576, %v1573
      %v1631 = vpack.c.bf16 %v1577, %v1574
      %v1632 = vpack.c.bf16 %v1578, %v1575
      %v1633 = vpack.c.bf16 %v1582, %v1579
      %v1634 = vpack.c.bf16 %v1583, %v1580
      %v1635 = vpack.c.bf16 %v1584, %v1581
      %v1636 = vpack.c.bf16 %v1588, %v1585
      %v1637 = vpack.c.bf16 %v1589, %v1586
      %v1638 = vpack.c.bf16 %v1590, %v1587
      %1639 = vmatpush.bf16.msra.mxu0 %v882
      %1640 = vmatpush.bf16.msra.mxu0 %v881
      %1641 = vmatpush.bf16.msra.mxu0 %v880
      %1642 = vmatpush.bf16.msra.mxu0 %v879
      %1643 = vmatpush.bf16.msra.mxu0 %v878
      %1644 = vmatpush.bf16.msra.mxu0 %v877
      %1645 = vmatpush.bf16.msra.mxu0 %v876
      %1646 = vmatpush.bf16.msra.mxu0 %v875
      %1647 = vmatmul.bf16.gmra.mxu0 %v1223
      %v1648 = vpop.f32.mrf.mxu0
      %v1649 = vadd.f32 0.0, %v1648
      %v1650 = vpop.f32.mrf.mxu0
      %v1651 = vadd.f32 0.0, %v1650
      %1652 = vmatmul.bf16.gmra.mxu0 %v1226
      %v1653 = vpop.f32.mrf.mxu0
      %v1654 = vadd.f32 0.0, %v1653
      %v1655 = vpop.f32.mrf.mxu0
      %v1656 = vadd.f32 0.0, %v1655
      %1657 = vmatmul.bf16.gmra.mxu0 %v1229
      %v1658 = vpop.f32.mrf.mxu0
      %v1659 = vadd.f32 0.0, %v1658
      %v1660 = vpop.f32.mrf.mxu0
      %v1661 = vadd.f32 0.0, %v1660
      %1662 = vmatmul.bf16.gmra.mxu0 %v1232
      %v1663 = vpop.f32.mrf.mxu0
      %v1664 = vadd.f32 0.0, %v1663
      %v1665 = vpop.f32.mrf.mxu0
      %v1666 = vadd.f32 0.0, %v1665
      %1667 = vmatmul.bf16.gmra.mxu0 %v1235
      %v1668 = vpop.f32.mrf.mxu0
      %v1669 = vadd.f32 0.0, %v1668
      %v1670 = vpop.f32.mrf.mxu0
      %v1671 = vadd.f32 0.0, %v1670
      %1672 = vmatmul.bf16.gmra.mxu0 %v1238
      %v1673 = vpop.f32.mrf.mxu0
      %v1674 = vadd.f32 0.0, %v1673
      %v1675 = vpop.f32.mrf.mxu0
      %v1676 = vadd.f32 0.0, %v1675
      %1677 = vmatmul.bf16.gmra.mxu0 %v1241
      %v1678 = vpop.f32.mrf.mxu0
      %v1679 = vadd.f32 0.0, %v1678
      %v1680 = vpop.f32.mrf.mxu0
      %v1681 = vadd.f32 0.0, %v1680
      %1682 = vmatmul.bf16.gmra.mxu0 %v1244
      %v1683 = vpop.f32.mrf.mxu0
      %v1684 = vadd.f32 0.0, %v1683
      %v1685 = vpop.f32.mrf.mxu0
      %v1686 = vadd.f32 0.0, %v1685
      %1687 = vmatmul.bf16.gmra.mxu0 %v1247
      %v1688 = vpop.f32.mrf.mxu0
      %v1689 = vadd.f32 0.0, %v1688
      %v1690 = vpop.f32.mrf.mxu0
      %v1691 = vadd.f32 0.0, %v1690
      %1692 = vmatmul.bf16.gmra.mxu0 %v1250
      %v1693 = vpop.f32.mrf.mxu0
      %v1694 = vadd.f32 0.0, %v1693
      %v1695 = vpop.f32.mrf.mxu0
      %v1696 = vadd.f32 0.0, %v1695
      %1697 = vmatmul.bf16.gmra.mxu0 %v1253
      %v1698 = vpop.f32.mrf.mxu0
      %v1699 = vadd.f32 0.0, %v1698
      %v1700 = vpop.f32.mrf.mxu0
      %v1701 = vadd.f32 0.0, %v1700
      %1702 = vmatmul.bf16.gmra.mxu0 %v1256
      %v1703 = vpop.f32.mrf.mxu0
      %v1704 = vadd.f32 0.0, %v1703
      %v1705 = vpop.f32.mrf.mxu0
      %v1706 = vadd.f32 0.0, %v1705
      %1707 = vmatmul.bf16.gmra.mxu0 %v1259
      %v1708 = vpop.f32.mrf.mxu0
      %v1709 = vadd.f32 0.0, %v1708
      %v1710 = vpop.f32.mrf.mxu0
      %v1711 = vadd.f32 0.0, %v1710
      %1712 = vmatmul.bf16.gmra.mxu0 %v1262
      %v1713 = vpop.f32.mrf.mxu0
      %v1714 = vadd.f32 0.0, %v1713
      %v1715 = vpop.f32.mrf.mxu0
      %v1716 = vadd.f32 0.0, %v1715
      %1717 = vmatmul.bf16.gmra.mxu0 %v1265
      %v1718 = vpop.f32.mrf.mxu0
      %v1719 = vadd.f32 0.0, %v1718
      %v1720 = vpop.f32.mrf.mxu0
      %v1721 = vadd.f32 0.0, %v1720
      %1722 = vmatmul.bf16.gmra.mxu0 %v1268
      %v1723 = vpop.f32.mrf.mxu0
      %v1724 = vadd.f32 0.0, %v1723
      %v1725 = vpop.f32.mrf.mxu0
      %v1726 = vadd.f32 0.0, %v1725
      %1727 = vdwg.mxu0
      %1728 = vmatpush.bf16.msra.mxu0 %v890
      %1729 = vmatpush.bf16.msra.mxu0 %v889
      %1730 = vmatpush.bf16.msra.mxu0 %v888
      %1731 = vmatpush.bf16.msra.mxu0 %v887
      %1732 = vmatpush.bf16.msra.mxu0 %v886
      %1733 = vmatpush.bf16.msra.mxu0 %v885
      %1734 = vmatpush.bf16.msra.mxu0 %v884
      %1735 = vmatpush.bf16.msra.mxu0 %v883
      %1736 = vmatmul.bf16.gmra.mxu0 %v1224
      %v1737 = vpop.f32.mrf.mxu0
      %v1738 = vadd.f32 %v1649, %v1737
      %v1739 = vpop.f32.mrf.mxu0
      %v1740 = vadd.f32 %v1651, %v1739
      %1741 = vmatmul.bf16.gmra.mxu0 %v1227
      %v1742 = vpop.f32.mrf.mxu0
      %v1743 = vadd.f32 %v1654, %v1742
      %v1744 = vpop.f32.mrf.mxu0
      %v1745 = vadd.f32 %v1656, %v1744
      %1746 = vmatmul.bf16.gmra.mxu0 %v1230
      %v1747 = vpop.f32.mrf.mxu0
      %v1748 = vadd.f32 %v1659, %v1747
      %v1749 = vpop.f32.mrf.mxu0
      %v1750 = vadd.f32 %v1661, %v1749
      %1751 = vmatmul.bf16.gmra.mxu0 %v1233
      %v1752 = vpop.f32.mrf.mxu0
      %v1753 = vadd.f32 %v1664, %v1752
      %v1754 = vpop.f32.mrf.mxu0
      %v1755 = vadd.f32 %v1666, %v1754
      %1756 = vmatmul.bf16.gmra.mxu0 %v1236
      %v1757 = vpop.f32.mrf.mxu0
      %v1758 = vadd.f32 %v1669, %v1757
      %v1759 = vpop.f32.mrf.mxu0
      %v1760 = vadd.f32 %v1671, %v1759
      %1761 = vmatmul.bf16.gmra.mxu0 %v1239
      %v1762 = vpop.f32.mrf.mxu0
      %v1763 = vadd.f32 %v1674, %v1762
      %v1764 = vpop.f32.mrf.mxu0
      %v1765 = vadd.f32 %v1676, %v1764
      %1766 = vmatmul.bf16.gmra.mxu0 %v1242
      %v1767 = vpop.f32.mrf.mxu0
      %v1768 = vadd.f32 %v1679, %v1767
      %v1769 = vpop.f32.mrf.mxu0
      %v1770 = vadd.f32 %v1681, %v1769
      %1771 = vmatmul.bf16.gmra.mxu0 %v1245
      %v1772 = vpop.f32.mrf.mxu0
      %v1773 = vadd.f32 %v1684, %v1772
      %v1774 = vpop.f32.mrf.mxu0
      %v1775 = vadd.f32 %v1686, %v1774
      %1776 = vmatmul.bf16.gmra.mxu0 %v1248
      %v1777 = vpop.f32.mrf.mxu0
      %v1778 = vadd.f32 %v1689, %v1777
      %v1779 = vpop.f32.mrf.mxu0
      %v1780 = vadd.f32 %v1691, %v1779
      %1781 = vmatmul.bf16.gmra.mxu0 %v1251
      %v1782 = vpop.f32.mrf.mxu0
      %v1783 = vadd.f32 %v1694, %v1782
      %v1784 = vpop.f32.mrf.mxu0
      %v1785 = vadd.f32 %v1696, %v1784
      %1786 = vmatmul.bf16.gmra.mxu0 %v1254
      %v1787 = vpop.f32.mrf.mxu0
      %v1788 = vadd.f32 %v1699, %v1787
      %v1789 = vpop.f32.mrf.mxu0
      %v1790 = vadd.f32 %v1701, %v1789
      %1791 = vmatmul.bf16.gmra.mxu0 %v1257
      %v1792 = vpop.f32.mrf.mxu0
      %v1793 = vadd.f32 %v1704, %v1792
      %v1794 = vpop.f32.mrf.mxu0
      %v1795 = vadd.f32 %v1706, %v1794
      %1796 = vmatmul.bf16.gmra.mxu0 %v1260
      %v1797 = vpop.f32.mrf.mxu0
      %v1798 = vadd.f32 %v1709, %v1797
      %v1799 = vpop.f32.mrf.mxu0
      %v1800 = vadd.f32 %v1711, %v1799
      %1801 = vmatmul.bf16.gmra.mxu0 %v1263
      %v1802 = vpop.f32.mrf.mxu0
      %v1803 = vadd.f32 %v1714, %v1802
      %v1804 = vpop.f32.mrf.mxu0
      %v1805 = vadd.f32 %v1716, %v1804
      %1806 = vmatmul.bf16.gmra.mxu0 %v1266
      %v1807 = vpop.f32.mrf.mxu0
      %v1808 = vadd.f32 %v1719, %v1807
      %v1809 = vpop.f32.mrf.mxu0
      %v1810 = vadd.f32 %v1721, %v1809
      %1811 = vmatmul.bf16.gmra.mxu0 %v1269
      %v1812 = vpop.f32.mrf.mxu0
      %v1813 = vadd.f32 %v1724, %v1812
      %v1814 = vpop.f32.mrf.mxu0
      %v1815 = vadd.f32 %v1726, %v1814
      %1816 = vdwg.mxu0
      %1817 = vmatpush.bf16.msra.mxu0 %v898
      %1818 = vmatpush.bf16.msra.mxu0 %v897
      %1819 = vmatpush.bf16.msra.mxu0 %v896
      %1820 = vmatpush.bf16.msra.mxu0 %v895
      %1821 = vmatpush.bf16.msra.mxu0 %v894
      %1822 = vmatpush.bf16.msra.mxu0 %v893
      %1823 = vmatpush.bf16.msra.mxu0 %v892
      %1824 = vmatpush.bf16.msra.mxu0 %v891
      %1825 = vmatmul.bf16.gmra.mxu0 %v1225
      %v1826 = vpop.f32.mrf.mxu0
      %v1827 = vadd.f32 %v1738, %v1826
      %v1828 = vpop.f32.mrf.mxu0
      %v1829 = vadd.f32 %v1740, %v1828
      %1830 = vmatmul.bf16.gmra.mxu0 %v1228
      %v1831 = vpop.f32.mrf.mxu0
      %v1832 = vadd.f32 %v1743, %v1831
      %v1833 = vpop.f32.mrf.mxu0
      %v1834 = vadd.f32 %v1745, %v1833
      %1835 = vmatmul.bf16.gmra.mxu0 %v1231
      %v1836 = vpop.f32.mrf.mxu0
      %v1837 = vadd.f32 %v1748, %v1836
      %v1838 = vpop.f32.mrf.mxu0
      %v1839 = vadd.f32 %v1750, %v1838
      %1840 = vmatmul.bf16.gmra.mxu0 %v1234
      %v1841 = vpop.f32.mrf.mxu0
      %v1842 = vadd.f32 %v1753, %v1841
      %v1843 = vpop.f32.mrf.mxu0
      %v1844 = vadd.f32 %v1755, %v1843
      %1845 = vmatmul.bf16.gmra.mxu0 %v1237
      %v1846 = vpop.f32.mrf.mxu0
      %v1847 = vadd.f32 %v1758, %v1846
      %v1848 = vpop.f32.mrf.mxu0
      %v1849 = vadd.f32 %v1760, %v1848
      %1850 = vmatmul.bf16.gmra.mxu0 %v1240
      %v1851 = vpop.f32.mrf.mxu0
      %v1852 = vadd.f32 %v1763, %v1851
      %v1853 = vpop.f32.mrf.mxu0
      %v1854 = vadd.f32 %v1765, %v1853
      %1855 = vmatmul.bf16.gmra.mxu0 %v1243
      %v1856 = vpop.f32.mrf.mxu0
      %v1857 = vadd.f32 %v1768, %v1856
      %v1858 = vpop.f32.mrf.mxu0
      %v1859 = vadd.f32 %v1770, %v1858
      %1860 = vmatmul.bf16.gmra.mxu0 %v1246
      %v1861 = vpop.f32.mrf.mxu0
      %v1862 = vadd.f32 %v1773, %v1861
      %v1863 = vpop.f32.mrf.mxu0
      %v1864 = vadd.f32 %v1775, %v1863
      %1865 = vmatmul.bf16.gmra.mxu0 %v1249
      %v1866 = vpop.f32.mrf.mxu0
      %v1867 = vadd.f32 %v1778, %v1866
      %v1868 = vpop.f32.mrf.mxu0
      %v1869 = vadd.f32 %v1780, %v1868
      %1870 = vmatmul.bf16.gmra.mxu0 %v1252
      %v1871 = vpop.f32.mrf.mxu0
      %v1872 = vadd.f32 %v1783, %v1871
      %v1873 = vpop.f32.mrf.mxu0
      %v1874 = vadd.f32 %v1785, %v1873
      %1875 = vmatmul.bf16.gmra.mxu0 %v1255
      %v1876 = vpop.f32.mrf.mxu0
      %v1877 = vadd.f32 %v1788, %v1876
      %v1878 = vpop.f32.mrf.mxu0
      %v1879 = vadd.f32 %v1790, %v1878
      %1880 = vmatmul.bf16.gmra.mxu0 %v1258
      %v1881 = vpop.f32.mrf.mxu0
      %v1882 = vadd.f32 %v1793, %v1881
      %v1883 = vpop.f32.mrf.mxu0
      %v1884 = vadd.f32 %v1795, %v1883
      %1885 = vmatmul.bf16.gmra.mxu0 %v1261
      %v1886 = vpop.f32.mrf.mxu0
      %v1887 = vadd.f32 %v1798, %v1886
      %v1888 = vpop.f32.mrf.mxu0
      %v1889 = vadd.f32 %v1800, %v1888
      %1890 = vmatmul.bf16.gmra.mxu0 %v1264
      %v1891 = vpop.f32.mrf.mxu0
      %v1892 = vadd.f32 %v1803, %v1891
      %v1893 = vpop.f32.mrf.mxu0
      %v1894 = vadd.f32 %v1805, %v1893
      %1895 = vmatmul.bf16.gmra.mxu0 %v1267
      %v1896 = vpop.f32.mrf.mxu0
      %v1897 = vadd.f32 %v1808, %v1896
      %v1898 = vpop.f32.mrf.mxu0
      %v1899 = vadd.f32 %v1810, %v1898
      %1900 = vmatmul.bf16.gmra.mxu0 %v1270
      %v1901 = vpop.f32.mrf.mxu0
      %v1902 = vadd.f32 %v1813, %v1901
      %v1903 = vpop.f32.mrf.mxu0
      %v1904 = vadd.f32 %v1815, %v1903
      %1905 = vdwg.mxu0
      %1906 = vmatpush.bf16.msra.mxu0 %v882
      %1907 = vmatpush.bf16.msra.mxu0 %v881
      %1908 = vmatpush.bf16.msra.mxu0 %v880
      %1909 = vmatpush.bf16.msra.mxu0 %v879
      %1910 = vmatpush.bf16.msra.mxu0 %v878
      %1911 = vmatpush.bf16.msra.mxu0 %v877
      %1912 = vmatpush.bf16.msra.mxu0 %v876
      %1913 = vmatpush.bf16.msra.mxu0 %v875
      %1914 = vmatmul.bf16.gmra.mxu0 %v1591
      %v1915 = vpop.f32.mrf.mxu0
      %v1916 = vadd.f32 0.0, %v1915
      %v1917 = vpop.f32.mrf.mxu0
      %v1918 = vadd.f32 0.0, %v1917
      %1919 = vmatmul.bf16.gmra.mxu0 %v1594
      %v1920 = vpop.f32.mrf.mxu0
      %v1921 = vadd.f32 0.0, %v1920
      %v1922 = vpop.f32.mrf.mxu0
      %v1923 = vadd.f32 0.0, %v1922
      %1924 = vmatmul.bf16.gmra.mxu0 %v1597
      %v1925 = vpop.f32.mrf.mxu0
      %v1926 = vadd.f32 0.0, %v1925
      %v1927 = vpop.f32.mrf.mxu0
      %v1928 = vadd.f32 0.0, %v1927
      %1929 = vmatmul.bf16.gmra.mxu0 %v1600
      %v1930 = vpop.f32.mrf.mxu0
      %v1931 = vadd.f32 0.0, %v1930
      %v1932 = vpop.f32.mrf.mxu0
      %v1933 = vadd.f32 0.0, %v1932
      %1934 = vmatmul.bf16.gmra.mxu0 %v1603
      %v1935 = vpop.f32.mrf.mxu0
      %v1936 = vadd.f32 0.0, %v1935
      %v1937 = vpop.f32.mrf.mxu0
      %v1938 = vadd.f32 0.0, %v1937
      %1939 = vmatmul.bf16.gmra.mxu0 %v1606
      %v1940 = vpop.f32.mrf.mxu0
      %v1941 = vadd.f32 0.0, %v1940
      %v1942 = vpop.f32.mrf.mxu0
      %v1943 = vadd.f32 0.0, %v1942
      %1944 = vmatmul.bf16.gmra.mxu0 %v1609
      %v1945 = vpop.f32.mrf.mxu0
      %v1946 = vadd.f32 0.0, %v1945
      %v1947 = vpop.f32.mrf.mxu0
      %v1948 = vadd.f32 0.0, %v1947
      %1949 = vmatmul.bf16.gmra.mxu0 %v1612
      %v1950 = vpop.f32.mrf.mxu0
      %v1951 = vadd.f32 0.0, %v1950
      %v1952 = vpop.f32.mrf.mxu0
      %v1953 = vadd.f32 0.0, %v1952
      %1954 = vmatmul.bf16.gmra.mxu0 %v1615
      %v1955 = vpop.f32.mrf.mxu0
      %v1956 = vadd.f32 0.0, %v1955
      %v1957 = vpop.f32.mrf.mxu0
      %v1958 = vadd.f32 0.0, %v1957
      %1959 = vmatmul.bf16.gmra.mxu0 %v1618
      %v1960 = vpop.f32.mrf.mxu0
      %v1961 = vadd.f32 0.0, %v1960
      %v1962 = vpop.f32.mrf.mxu0
      %v1963 = vadd.f32 0.0, %v1962
      %1964 = vmatmul.bf16.gmra.mxu0 %v1621
      %v1965 = vpop.f32.mrf.mxu0
      %v1966 = vadd.f32 0.0, %v1965
      %v1967 = vpop.f32.mrf.mxu0
      %v1968 = vadd.f32 0.0, %v1967
      %1969 = vmatmul.bf16.gmra.mxu0 %v1624
      %v1970 = vpop.f32.mrf.mxu0
      %v1971 = vadd.f32 0.0, %v1970
      %v1972 = vpop.f32.mrf.mxu0
      %v1973 = vadd.f32 0.0, %v1972
      %1974 = vmatmul.bf16.gmra.mxu0 %v1627
      %v1975 = vpop.f32.mrf.mxu0
      %v1976 = vadd.f32 0.0, %v1975
      %v1977 = vpop.f32.mrf.mxu0
      %v1978 = vadd.f32 0.0, %v1977
      %1979 = vmatmul.bf16.gmra.mxu0 %v1630
      %v1980 = vpop.f32.mrf.mxu0
      %v1981 = vadd.f32 0.0, %v1980
      %v1982 = vpop.f32.mrf.mxu0
      %v1983 = vadd.f32 0.0, %v1982
      %1984 = vmatmul.bf16.gmra.mxu0 %v1633
      %v1985 = vpop.f32.mrf.mxu0
      %v1986 = vadd.f32 0.0, %v1985
      %v1987 = vpop.f32.mrf.mxu0
      %v1988 = vadd.f32 0.0, %v1987
      %1989 = vmatmul.bf16.gmra.mxu0 %v1636
      %v1990 = vpop.f32.mrf.mxu0
      %v1991 = vadd.f32 0.0, %v1990
      %v1992 = vpop.f32.mrf.mxu0
      %v1993 = vadd.f32 0.0, %v1992
      %1994 = vdwg.mxu0
      %1995 = vmatpush.bf16.msra.mxu0 %v890
      %1996 = vmatpush.bf16.msra.mxu0 %v889
      %1997 = vmatpush.bf16.msra.mxu0 %v888
      %1998 = vmatpush.bf16.msra.mxu0 %v887
      %1999 = vmatpush.bf16.msra.mxu0 %v886
      %2000 = vmatpush.bf16.msra.mxu0 %v885
      %2001 = vmatpush.bf16.msra.mxu0 %v884
      %2002 = vmatpush.bf16.msra.mxu0 %v883
      %2003 = vmatmul.bf16.gmra.mxu0 %v1592
      %v2004 = vpop.f32.mrf.mxu0
      %v2005 = vadd.f32 %v1916, %v2004
      %v2006 = vpop.f32.mrf.mxu0
      %v2007 = vadd.f32 %v1918, %v2006
      %2008 = vmatmul.bf16.gmra.mxu0 %v1595
      %v2009 = vpop.f32.mrf.mxu0
      %v2010 = vadd.f32 %v1921, %v2009
      %v2011 = vpop.f32.mrf.mxu0
      %v2012 = vadd.f32 %v1923, %v2011
      %2013 = vmatmul.bf16.gmra.mxu0 %v1598
      %v2014 = vpop.f32.mrf.mxu0
      %v2015 = vadd.f32 %v1926, %v2014
      %v2016 = vpop.f32.mrf.mxu0
      %v2017 = vadd.f32 %v1928, %v2016
      %2018 = vmatmul.bf16.gmra.mxu0 %v1601
      %v2019 = vpop.f32.mrf.mxu0
      %v2020 = vadd.f32 %v1931, %v2019
      %v2021 = vpop.f32.mrf.mxu0
      %v2022 = vadd.f32 %v1933, %v2021
      %2023 = vmatmul.bf16.gmra.mxu0 %v1604
      %v2024 = vpop.f32.mrf.mxu0
      %v2025 = vadd.f32 %v1936, %v2024
      %v2026 = vpop.f32.mrf.mxu0
      %v2027 = vadd.f32 %v1938, %v2026
      %2028 = vmatmul.bf16.gmra.mxu0 %v1607
      %v2029 = vpop.f32.mrf.mxu0
      %v2030 = vadd.f32 %v1941, %v2029
      %v2031 = vpop.f32.mrf.mxu0
      %v2032 = vadd.f32 %v1943, %v2031
      %2033 = vmatmul.bf16.gmra.mxu0 %v1610
      %v2034 = vpop.f32.mrf.mxu0
      %v2035 = vadd.f32 %v1946, %v2034
      %v2036 = vpop.f32.mrf.mxu0
      %v2037 = vadd.f32 %v1948, %v2036
      %2038 = vmatmul.bf16.gmra.mxu0 %v1613
      %v2039 = vpop.f32.mrf.mxu0
      %v2040 = vadd.f32 %v1951, %v2039
      %v2041 = vpop.f32.mrf.mxu0
      %v2042 = vadd.f32 %v1953, %v2041
      %2043 = vmatmul.bf16.gmra.mxu0 %v1616
      %v2044 = vpop.f32.mrf.mxu0
      %v2045 = vadd.f32 %v1956, %v2044
      %v2046 = vpop.f32.mrf.mxu0
      %v2047 = vadd.f32 %v1958, %v2046
      %2048 = vmatmul.bf16.gmra.mxu0 %v1619
      %v2049 = vpop.f32.mrf.mxu0
      %v2050 = vadd.f32 %v1961, %v2049
      %v2051 = vpop.f32.mrf.mxu0
      %v2052 = vadd.f32 %v1963, %v2051
      %2053 = vmatmul.bf16.gmra.mxu0 %v1622
      %v2054 = vpop.f32.mrf.mxu0
      %v2055 = vadd.f32 %v1966, %v2054
      %v2056 = vpop.f32.mrf.mxu0
      %v2057 = vadd.f32 %v1968, %v2056
      %2058 = vmatmul.bf16.gmra.mxu0 %v1625
      %v2059 = vpop.f32.mrf.mxu0
      %v2060 = vadd.f32 %v1971, %v2059
      %v2061 = vpop.f32.mrf.mxu0
      %v2062 = vadd.f32 %v1973, %v2061
      %2063 = vmatmul.bf16.gmra.mxu0 %v1628
      %v2064 = vpop.f32.mrf.mxu0
      %v2065 = vadd.f32 %v1976, %v2064
      %v2066 = vpop.f32.mrf.mxu0
      %v2067 = vadd.f32 %v1978, %v2066
      %2068 = vmatmul.bf16.gmra.mxu0 %v1631
      %v2069 = vpop.f32.mrf.mxu0
      %v2070 = vadd.f32 %v1981, %v2069
      %v2071 = vpop.f32.mrf.mxu0
      %v2072 = vadd.f32 %v1983, %v2071
      %2073 = vmatmul.bf16.gmra.mxu0 %v1634
      %v2074 = vpop.f32.mrf.mxu0
      %v2075 = vadd.f32 %v1986, %v2074
      %v2076 = vpop.f32.mrf.mxu0
      %v2077 = vadd.f32 %v1988, %v2076
      %2078 = vmatmul.bf16.gmra.mxu0 %v1637
      %v2079 = vpop.f32.mrf.mxu0
      %v2080 = vadd.f32 %v1991, %v2079
      %v2081 = vpop.f32.mrf.mxu0
      %v2082 = vadd.f32 %v1993, %v2081
      %2083 = vdwg.mxu0
      %2084 = vmatpush.bf16.msra.mxu0 %v898
      %2085 = vmatpush.bf16.msra.mxu0 %v897
      %2086 = vmatpush.bf16.msra.mxu0 %v896
      %2087 = vmatpush.bf16.msra.mxu0 %v895
      %2088 = vmatpush.bf16.msra.mxu0 %v894
      %2089 = vmatpush.bf16.msra.mxu0 %v893
      %2090 = vmatpush.bf16.msra.mxu0 %v892
      %2091 = vmatpush.bf16.msra.mxu0 %v891
      %2092 = vmatmul.bf16.gmra.mxu0 %v1593
      %v2093 = vpop.f32.mrf.mxu0
      %v2094 = vadd.f32 %v2005, %v2093
      %v2095 = vpop.f32.mrf.mxu0
      %v2096 = vadd.f32 %v2007, %v2095
      %2097 = vmatmul.bf16.gmra.mxu0 %v1596
      %v2098 = vpop.f32.mrf.mxu0
      %v2099 = vadd.f32 %v2010, %v2098
      %v2100 = vpop.f32.mrf.mxu0
      %v2101 = vadd.f32 %v2012, %v2100
      %2102 = vmatmul.bf16.gmra.mxu0 %v1599
      %v2103 = vpop.f32.mrf.mxu0
      %v2104 = vadd.f32 %v2015, %v2103
      %v2105 = vpop.f32.mrf.mxu0
      %v2106 = vadd.f32 %v2017, %v2105
      %2107 = vmatmul.bf16.gmra.mxu0 %v1602
      %v2108 = vpop.f32.mrf.mxu0
      %v2109 = vadd.f32 %v2020, %v2108
      %v2110 = vpop.f32.mrf.mxu0
      %v2111 = vadd.f32 %v2022, %v2110
      %2112 = vmatmul.bf16.gmra.mxu0 %v1605
      %v2113 = vpop.f32.mrf.mxu0
      %v2114 = vadd.f32 %v2025, %v2113
      %v2115 = vpop.f32.mrf.mxu0
      %v2116 = vadd.f32 %v2027, %v2115
      %2117 = vmatmul.bf16.gmra.mxu0 %v1608
      %v2118 = vpop.f32.mrf.mxu0
      %v2119 = vadd.f32 %v2030, %v2118
      %v2120 = vpop.f32.mrf.mxu0
      %v2121 = vadd.f32 %v2032, %v2120
      %2122 = vmatmul.bf16.gmra.mxu0 %v1611
      %v2123 = vpop.f32.mrf.mxu0
      %v2124 = vadd.f32 %v2035, %v2123
      %v2125 = vpop.f32.mrf.mxu0
      %v2126 = vadd.f32 %v2037, %v2125
      %2127 = vmatmul.bf16.gmra.mxu0 %v1614
      %v2128 = vpop.f32.mrf.mxu0
      %v2129 = vadd.f32 %v2040, %v2128
      %v2130 = vpop.f32.mrf.mxu0
      %v2131 = vadd.f32 %v2042, %v2130
      %2132 = vmatmul.bf16.gmra.mxu0 %v1617
      %v2133 = vpop.f32.mrf.mxu0
      %v2134 = vadd.f32 %v2045, %v2133
      %v2135 = vpop.f32.mrf.mxu0
      %v2136 = vadd.f32 %v2047, %v2135
      %2137 = vmatmul.bf16.gmra.mxu0 %v1620
      %v2138 = vpop.f32.mrf.mxu0
      %v2139 = vadd.f32 %v2050, %v2138
      %v2140 = vpop.f32.mrf.mxu0
      %v2141 = vadd.f32 %v2052, %v2140
      %2142 = vmatmul.bf16.gmra.mxu0 %v1623
      %v2143 = vpop.f32.mrf.mxu0
      %v2144 = vadd.f32 %v2055, %v2143
      %v2145 = vpop.f32.mrf.mxu0
      %v2146 = vadd.f32 %v2057, %v2145
      %2147 = vmatmul.bf16.gmra.mxu0 %v1626
      %v2148 = vpop.f32.mrf.mxu0
      %v2149 = vadd.f32 %v2060, %v2148
      %v2150 = vpop.f32.mrf.mxu0
      %v2151 = vadd.f32 %v2062, %v2150
      %2152 = vmatmul.bf16.gmra.mxu0 %v1629
      %v2153 = vpop.f32.mrf.mxu0
      %v2154 = vadd.f32 %v2065, %v2153
      %v2155 = vpop.f32.mrf.mxu0
      %v2156 = vadd.f32 %v2067, %v2155
      %2157 = vmatmul.bf16.gmra.mxu0 %v1632
      %v2158 = vpop.f32.mrf.mxu0
      %v2159 = vadd.f32 %v2070, %v2158
      %v2160 = vpop.f32.mrf.mxu0
      %v2161 = vadd.f32 %v2072, %v2160
      %2162 = vmatmul.bf16.gmra.mxu0 %v1635
      %v2163 = vpop.f32.mrf.mxu0
      %v2164 = vadd.f32 %v2075, %v2163
      %v2165 = vpop.f32.mrf.mxu0
      %v2166 = vadd.f32 %v2077, %v2165
      %2167 = vmatmul.bf16.gmra.mxu0 %v1638
      %v2168 = vpop.f32.mrf.mxu0
      %v2169 = vadd.f32 %v2080, %v2168
      %v2170 = vpop.f32.mrf.mxu0
      %v2171 = vadd.f32 %v2082, %v2170
      %2172 = vdwg.mxu0
      %v2173 = vld [vmem:[%s767] sm:$0xff]
      %v2174 = vld [vmem:[%s767 + $0x8] sm:$0xff]
      %v2175 = vld [vmem:[%s767 + $0x10] sm:$0xff]
      %v2176 = vld [vmem:[%s767 + $0x18] sm:$0xff]
      %v2177 = vld [vmem:[%s767 + $0x20] sm:$0xff]
      %v2178 = vld [vmem:[%s767 + $0x28] sm:$0xff]
      %v2179 = vld [vmem:[%s767 + $0x30] sm:$0xff]
      %v2180 = vld [vmem:[%s767 + $0x38] sm:$0xff]
      %v2181 = vld [vmem:[%s767 + $0x40] sm:$0xff]
      %v2182 = vld [vmem:[%s767 + $0x48] sm:$0xff]
      %v2183 = vld [vmem:[%s767 + $0x50] sm:$0xff]
      %v2184 = vld [vmem:[%s767 + $0x58] sm:$0xff]
      %v2185 = vld [vmem:[%s767 + $0x60] sm:$0xff]
      %v2186 = vld [vmem:[%s767 + $0x68] sm:$0xff]
      %v2187 = vld [vmem:[%s767 + $0x70] sm:$0xff]
      %v2188 = vld [vmem:[%s767 + $0x78] sm:$0xff]
      %v2189 = vld [vmem:[%s767 + $0x80] sm:$0xff]
      %v2190 = vld [vmem:[%s767 + $0x88] sm:$0xff]
      %v2191 = vld [vmem:[%s767 + $0x90] sm:$0xff]
      %v2192 = vld [vmem:[%s767 + $0x98] sm:$0xff]
      %v2193 = vld [vmem:[%s767 + $0xa0] sm:$0xff]
      %v2194 = vld [vmem:[%s767 + $0xa8] sm:$0xff]
      %v2195 = vld [vmem:[%s767 + $0xb0] sm:$0xff]
      %v2196 = vld [vmem:[%s767 + $0xb8] sm:$0xff]
      %v2197 = vld [vmem:[%s767 + $0xc0] sm:$0xff]
      %v2198 = vld [vmem:[%s767 + $0xc8] sm:$0xff]
      %v2199 = vld [vmem:[%s767 + $0xd0] sm:$0xff]
      %v2200 = vld [vmem:[%s767 + $0xd8] sm:$0xff]
      %v2201 = vld [vmem:[%s767 + $0xe0] sm:$0xff]
      %v2202 = vld [vmem:[%s767 + $0xe8] sm:$0xff]
      %v2203 = vld [vmem:[%s767 + $0xf0] sm:$0xff]
      %v2204 = vld [vmem:[%s767 + $0xf8] sm:$0xff]
      %v2205 = vpack.c.bf16 %v1829, %v1827
      %v2206 = vpack.c.bf16 %v1834, %v1832
      %v2207 = vpack.c.bf16 %v1839, %v1837
      %v2208 = vpack.c.bf16 %v1844, %v1842
      %v2209 = vpack.c.bf16 %v1849, %v1847
      %v2210 = vpack.c.bf16 %v1854, %v1852
      %v2211 = vpack.c.bf16 %v1859, %v1857
      %v2212 = vpack.c.bf16 %v1864, %v1862
      %v2213 = vpack.c.bf16 %v1869, %v1867
      %v2214 = vpack.c.bf16 %v1874, %v1872
      %v2215 = vpack.c.bf16 %v1879, %v1877
      %v2216 = vpack.c.bf16 %v1884, %v1882
      %v2217 = vpack.c.bf16 %v1889, %v1887
      %v2218 = vpack.c.bf16 %v1894, %v1892
      %v2219 = vpack.c.bf16 %v1899, %v1897
      %v2220 = vpack.c.bf16 %v1904, %v1902
      %v2221 = vld [vmem:[%s5] sm:$0xf]
      %v2222 = vld [vmem:[%s5 + $0x4] sm:$0xf]
      %v2223 = vld [vmem:[%s5 + $0x8] sm:$0xf]
      %v2224 = vld [vmem:[%s5 + $0xc] sm:$0xf]
      %v2225 = vld [vmem:[%s5 + $0x10] sm:$0xf]
      %v2226 = vld [vmem:[%s5 + $0x14] sm:$0xf]
      %v2227 = vld [vmem:[%s5 + $0x18] sm:$0xf]
      %v2228 = vld [vmem:[%s5 + $0x1c] sm:$0xf]
      %v2229 = vld [vmem:[%s5 + $0x20] sm:$0xf]
      %v2230 = vld [vmem:[%s5 + $0x24] sm:$0xf]
      %v2231 = vld [vmem:[%s5 + $0x28] sm:$0xf]
      %v2232 = vld [vmem:[%s5 + $0x2c] sm:$0xf]
      %v2233 = vld [vmem:[%s5 + $0x30] sm:$0xf]
      %v2234 = vld [vmem:[%s5 + $0x34] sm:$0xf]
      %v2235 = vld [vmem:[%s5 + $0x38] sm:$0xf]
      %v2236 = vld [vmem:[%s5 + $0x3c] sm:$0xf]
      %v2237 = vpack.c.bf16 %v2096, %v2094
      %v2238 = vpack.c.bf16 %v2101, %v2099
      %v2239 = vpack.c.bf16 %v2106, %v2104
      %v2240 = vpack.c.bf16 %v2111, %v2109
      %v2241 = vpack.c.bf16 %v2116, %v2114
      %v2242 = vpack.c.bf16 %v2121, %v2119
      %v2243 = vpack.c.bf16 %v2126, %v2124
      %v2244 = vpack.c.bf16 %v2131, %v2129
      %v2245 = vpack.c.bf16 %v2136, %v2134
      %v2246 = vpack.c.bf16 %v2141, %v2139
      %v2247 = vpack.c.bf16 %v2146, %v2144
      %v2248 = vpack.c.bf16 %v2151, %v2149
      %v2249 = vpack.c.bf16 %v2156, %v2154
      %v2250 = vpack.c.bf16 %v2161, %v2159
      %v2251 = vpack.c.bf16 %v2166, %v2164
      %v2252 = vpack.c.bf16 %v2171, %v2169
      %v2253 = vld [vmem:[%s6] sm:$0xf]
      %v2254 = vld [vmem:[%s6 + $0x4] sm:$0xf]
      %v2255 = vld [vmem:[%s6 + $0x8] sm:$0xf]
      %v2256 = vld [vmem:[%s6 + $0xc] sm:$0xf]
      %v2257 = vld [vmem:[%s6 + $0x10] sm:$0xf]
      %v2258 = vld [vmem:[%s6 + $0x14] sm:$0xf]
      %v2259 = vld [vmem:[%s6 + $0x18] sm:$0xf]
      %v2260 = vld [vmem:[%s6 + $0x1c] sm:$0xf]
      %v2261 = vld [vmem:[%s6 + $0x20] sm:$0xf]
      %v2262 = vld [vmem:[%s6 + $0x24] sm:$0xf]
      %v2263 = vld [vmem:[%s6 + $0x28] sm:$0xf]
      %v2264 = vld [vmem:[%s6 + $0x2c] sm:$0xf]
      %v2265 = vld [vmem:[%s6 + $0x30] sm:$0xf]
      %v2266 = vld [vmem:[%s6 + $0x34] sm:$0xf]
      %v2267 = vld [vmem:[%s6 + $0x38] sm:$0xf]
      %v2268 = vld [vmem:[%s6 + $0x3c] sm:$0xf]
      %v2285 = vunpack.c.l.b16 %v2253
      %v2286 = vunpack.c.l.b16 %v2254
      %v2287 = vunpack.c.l.b16 %v2255
      %v2288 = vunpack.c.l.b16 %v2256
      %v2289 = vunpack.c.l.b16 %v2257
      %v2290 = vunpack.c.l.b16 %v2258
      %v2291 = vunpack.c.l.b16 %v2259
      %v2292 = vunpack.c.l.b16 %v2260
      %v2293 = vunpack.c.l.b16 %v2261
      %v2294 = vunpack.c.l.b16 %v2262
      %v2295 = vunpack.c.l.b16 %v2263
      %v2296 = vunpack.c.l.b16 %v2264
      %v2297 = vunpack.c.l.b16 %v2265
      %v2298 = vunpack.c.l.b16 %v2266
      %v2299 = vunpack.c.l.b16 %v2267
      %v2300 = vunpack.c.l.b16 %v2268
      %v2301 = vpack.c.b16 %v2286, %v2285
      %v2302 = vpack.c.b16 %v2288, %v2287
      %v2303 = vpack.c.b16 %v2290, %v2289
      %v2304 = vpack.c.b16 %v2292, %v2291
      %v2305 = vpack.c.b16 %v2294, %v2293
      %v2306 = vpack.c.b16 %v2296, %v2295
      %v2307 = vpack.c.b16 %v2298, %v2297
      %v2308 = vpack.c.b16 %v2300, %v2299
      %2317 = vmatpush.bf16.msra.mxu0 %v2308
      %2318 = vmatpush.bf16.msra.mxu0 %v2307
      %2319 = vmatpush.bf16.msra.mxu0 %v2306
      %2320 = vmatpush.bf16.msra.mxu0 %v2305
      %2321 = vmatpush.bf16.msra.mxu0 %v2304
      %2322 = vmatpush.bf16.msra.mxu0 %v2303
      %2323 = vmatpush.bf16.msra.mxu0 %v2302
      %2324 = vmatpush.bf16.msra.mxu0 %v2301
      %2325 = vmatmul.bf16.gmra.mxu0 %v2237
      %v2326 = vpop.f32.mrf.mxu0
      %v2327 = vadd.f32 0.0, %v2326
      %v2328 = vpop.f32.mrf.mxu0
      %v2329 = vadd.f32 0.0, %v2328
      %2330 = vmatmul.bf16.gmra.mxu0 %v2238
      %v2331 = vpop.f32.mrf.mxu0
      %v2332 = vadd.f32 0.0, %v2331
      %v2333 = vpop.f32.mrf.mxu0
      %v2334 = vadd.f32 0.0, %v2333
      %2335 = vmatmul.bf16.gmra.mxu0 %v2239
      %v2336 = vpop.f32.mrf.mxu0
      %v2337 = vadd.f32 0.0, %v2336
      %v2338 = vpop.f32.mrf.mxu0
      %v2339 = vadd.f32 0.0, %v2338
      %2340 = vmatmul.bf16.gmra.mxu0 %v2240
      %v2341 = vpop.f32.mrf.mxu0
      %v2342 = vadd.f32 0.0, %v2341
      %v2343 = vpop.f32.mrf.mxu0
      %v2344 = vadd.f32 0.0, %v2343
      %2345 = vmatmul.bf16.gmra.mxu0 %v2241
      %v2346 = vpop.f32.mrf.mxu0
      %v2347 = vadd.f32 0.0, %v2346
      %v2348 = vpop.f32.mrf.mxu0
      %v2349 = vadd.f32 0.0, %v2348
      %2350 = vmatmul.bf16.gmra.mxu0 %v2242
      %v2351 = vpop.f32.mrf.mxu0
      %v2352 = vadd.f32 0.0, %v2351
      %v2353 = vpop.f32.mrf.mxu0
      %v2354 = vadd.f32 0.0, %v2353
      %2355 = vmatmul.bf16.gmra.mxu0 %v2243
      %v2356 = vpop.f32.mrf.mxu0
      %v2357 = vadd.f32 0.0, %v2356
      %v2358 = vpop.f32.mrf.mxu0
      %v2359 = vadd.f32 0.0, %v2358
      %2360 = vmatmul.bf16.gmra.mxu0 %v2244
      %v2361 = vpop.f32.mrf.mxu0
      %v2362 = vadd.f32 0.0, %v2361
      %v2363 = vpop.f32.mrf.mxu0
      %v2364 = vadd.f32 0.0, %v2363
      %2365 = vmatmul.bf16.gmra.mxu0 %v2245
      %v2366 = vpop.f32.mrf.mxu0
      %v2367 = vadd.f32 0.0, %v2366
      %v2368 = vpop.f32.mrf.mxu0
      %v2369 = vadd.f32 0.0, %v2368
      %2370 = vmatmul.bf16.gmra.mxu0 %v2246
      %v2371 = vpop.f32.mrf.mxu0
      %v2372 = vadd.f32 0.0, %v2371
      %v2373 = vpop.f32.mrf.mxu0
      %v2374 = vadd.f32 0.0, %v2373
      %2375 = vmatmul.bf16.gmra.mxu0 %v2247
      %v2376 = vpop.f32.mrf.mxu0
      %v2377 = vadd.f32 0.0, %v2376
      %v2378 = vpop.f32.mrf.mxu0
      %v2379 = vadd.f32 0.0, %v2378
      %2380 = vmatmul.bf16.gmra.mxu0 %v2248
      %v2381 = vpop.f32.mrf.mxu0
      %v2382 = vadd.f32 0.0, %v2381
      %v2383 = vpop.f32.mrf.mxu0
      %v2384 = vadd.f32 0.0, %v2383
      %2385 = vmatmul.bf16.gmra.mxu0 %v2249
      %v2386 = vpop.f32.mrf.mxu0
      %v2387 = vadd.f32 0.0, %v2386
      %v2388 = vpop.f32.mrf.mxu0
      %v2389 = vadd.f32 0.0, %v2388
      %2390 = vmatmul.bf16.gmra.mxu0 %v2250
      %v2391 = vpop.f32.mrf.mxu0
      %v2392 = vadd.f32 0.0, %v2391
      %v2393 = vpop.f32.mrf.mxu0
      %v2394 = vadd.f32 0.0, %v2393
      %2395 = vmatmul.bf16.gmra.mxu0 %v2251
      %v2396 = vpop.f32.mrf.mxu0
      %v2397 = vadd.f32 0.0, %v2396
      %v2398 = vpop.f32.mrf.mxu0
      %v2399 = vadd.f32 0.0, %v2398
      %2400 = vmatmul.bf16.gmra.mxu0 %v2252
      %v2401 = vpop.f32.mrf.mxu0
      %v2402 = vadd.f32 0.0, %v2401
      %v2403 = vpop.f32.mrf.mxu0
      %v2404 = vadd.f32 0.0, %v2403
      %2405 = vdwg.mxu0
      %v2422 = vunpack.c.l.b16 %v2221
      %v2423 = vunpack.c.l.b16 %v2222
      %v2424 = vunpack.c.l.b16 %v2223
      %v2425 = vunpack.c.l.b16 %v2224
      %v2426 = vunpack.c.l.b16 %v2225
      %v2427 = vunpack.c.l.b16 %v2226
      %v2428 = vunpack.c.l.b16 %v2227
      %v2429 = vunpack.c.l.b16 %v2228
      %v2430 = vunpack.c.l.b16 %v2229
      %v2431 = vunpack.c.l.b16 %v2230
      %v2432 = vunpack.c.l.b16 %v2231
      %v2433 = vunpack.c.l.b16 %v2232
      %v2434 = vunpack.c.l.b16 %v2233
      %v2435 = vunpack.c.l.b16 %v2234
      %v2436 = vunpack.c.l.b16 %v2235
      %v2437 = vunpack.c.l.b16 %v2236
      %v2438 = vpack.c.b16 %v2423, %v2422
      %v2439 = vpack.c.b16 %v2425, %v2424
      %v2440 = vpack.c.b16 %v2427, %v2426
      %v2441 = vpack.c.b16 %v2429, %v2428
      %v2442 = vpack.c.b16 %v2431, %v2430
      %v2443 = vpack.c.b16 %v2433, %v2432
      %v2444 = vpack.c.b16 %v2435, %v2434
      %v2445 = vpack.c.b16 %v2437, %v2436
      %2454 = vmatpush.bf16.msra.mxu0 %v2445
      %2455 = vmatpush.bf16.msra.mxu0 %v2444
      %2456 = vmatpush.bf16.msra.mxu0 %v2443
      %2457 = vmatpush.bf16.msra.mxu0 %v2442
      %2458 = vmatpush.bf16.msra.mxu0 %v2441
      %2459 = vmatpush.bf16.msra.mxu0 %v2440
      %2460 = vmatpush.bf16.msra.mxu0 %v2439
      %2461 = vmatpush.bf16.msra.mxu0 %v2438
      %2462 = vmatmul.bf16.gmra.mxu0 %v2205
      %v2463 = vpop.f32.mrf.mxu0
      %v2464 = vadd.f32 %v2327, %v2463
      %v2465 = vpop.f32.mrf.mxu0
      %v2466 = vadd.f32 %v2329, %v2465
      %2467 = vmatmul.bf16.gmra.mxu0 %v2206
      %v2468 = vpop.f32.mrf.mxu0
      %v2469 = vadd.f32 %v2332, %v2468
      %v2470 = vpop.f32.mrf.mxu0
      %v2471 = vadd.f32 %v2334, %v2470
      %2472 = vmatmul.bf16.gmra.mxu0 %v2207
      %v2473 = vpop.f32.mrf.mxu0
      %v2474 = vadd.f32 %v2337, %v2473
      %v2475 = vpop.f32.mrf.mxu0
      %v2476 = vadd.f32 %v2339, %v2475
      %2477 = vmatmul.bf16.gmra.mxu0 %v2208
      %v2478 = vpop.f32.mrf.mxu0
      %v2479 = vadd.f32 %v2342, %v2478
      %v2480 = vpop.f32.mrf.mxu0
      %v2481 = vadd.f32 %v2344, %v2480
      %2482 = vmatmul.bf16.gmra.mxu0 %v2209
      %v2483 = vpop.f32.mrf.mxu0
      %v2484 = vadd.f32 %v2347, %v2483
      %v2485 = vpop.f32.mrf.mxu0
      %v2486 = vadd.f32 %v2349, %v2485
      %2487 = vmatmul.bf16.gmra.mxu0 %v2210
      %v2488 = vpop.f32.mrf.mxu0
      %v2489 = vadd.f32 %v2352, %v2488
      %v2490 = vpop.f32.mrf.mxu0
      %v2491 = vadd.f32 %v2354, %v2490
      %2492 = vmatmul.bf16.gmra.mxu0 %v2211
      %v2493 = vpop.f32.mrf.mxu0
      %v2494 = vadd.f32 %v2357, %v2493
      %v2495 = vpop.f32.mrf.mxu0
      %v2496 = vadd.f32 %v2359, %v2495
      %2497 = vmatmul.bf16.gmra.mxu0 %v2212
      %v2498 = vpop.f32.mrf.mxu0
      %v2499 = vadd.f32 %v2362, %v2498
      %v2500 = vpop.f32.mrf.mxu0
      %v2501 = vadd.f32 %v2364, %v2500
      %2502 = vmatmul.bf16.gmra.mxu0 %v2213
      %v2503 = vpop.f32.mrf.mxu0
      %v2504 = vadd.f32 %v2367, %v2503
      %v2505 = vpop.f32.mrf.mxu0
      %v2506 = vadd.f32 %v2369, %v2505
      %2507 = vmatmul.bf16.gmra.mxu0 %v2214
      %v2508 = vpop.f32.mrf.mxu0
      %v2509 = vadd.f32 %v2372, %v2508
      %v2510 = vpop.f32.mrf.mxu0
      %v2511 = vadd.f32 %v2374, %v2510
      %2512 = vmatmul.bf16.gmra.mxu0 %v2215
      %v2513 = vpop.f32.mrf.mxu0
      %v2514 = vadd.f32 %v2377, %v2513
      %v2515 = vpop.f32.mrf.mxu0
      %v2516 = vadd.f32 %v2379, %v2515
      %2517 = vmatmul.bf16.gmra.mxu0 %v2216
      %v2518 = vpop.f32.mrf.mxu0
      %v2519 = vadd.f32 %v2382, %v2518
      %v2520 = vpop.f32.mrf.mxu0
      %v2521 = vadd.f32 %v2384, %v2520
      %2522 = vmatmul.bf16.gmra.mxu0 %v2217
      %v2523 = vpop.f32.mrf.mxu0
      %v2524 = vadd.f32 %v2387, %v2523
      %v2525 = vpop.f32.mrf.mxu0
      %v2526 = vadd.f32 %v2389, %v2525
      %2527 = vmatmul.bf16.gmra.mxu0 %v2218
      %v2528 = vpop.f32.mrf.mxu0
      %v2529 = vadd.f32 %v2392, %v2528
      %v2530 = vpop.f32.mrf.mxu0
      %v2531 = vadd.f32 %v2394, %v2530
      %2532 = vmatmul.bf16.gmra.mxu0 %v2219
      %v2533 = vpop.f32.mrf.mxu0
      %v2534 = vadd.f32 %v2397, %v2533
      %v2535 = vpop.f32.mrf.mxu0
      %v2536 = vadd.f32 %v2399, %v2535
      %2537 = vmatmul.bf16.gmra.mxu0 %v2220
      %v2538 = vpop.f32.mrf.mxu0
      %v2539 = vadd.f32 %v2402, %v2538
      %v2540 = vpop.f32.mrf.mxu0
      %v2541 = vadd.f32 %v2404, %v2540
      %2542 = vdwg.mxu0
      %v2543 = vpack.c.bf16 %v2174, %v2173
      %v2544 = vpack.c.bf16 %v2176, %v2175
      %v2545 = vpack.c.bf16 %v2178, %v2177
      %v2546 = vpack.c.bf16 %v2180, %v2179
      %v2547 = vpack.c.bf16 %v2182, %v2181
      %v2548 = vpack.c.bf16 %v2184, %v2183
      %v2549 = vpack.c.bf16 %v2186, %v2185
      %v2550 = vpack.c.bf16 %v2188, %v2187
      %v2551 = vpack.c.bf16 %v2190, %v2189
      %v2552 = vpack.c.bf16 %v2192, %v2191
      %v2553 = vpack.c.bf16 %v2194, %v2193
      %v2554 = vpack.c.bf16 %v2196, %v2195
      %v2555 = vpack.c.bf16 %v2198, %v2197
      %v2556 = vpack.c.bf16 %v2200, %v2199
      %v2557 = vpack.c.bf16 %v2202, %v2201
      %v2558 = vpack.c.bf16 %v2204, %v2203
      %v2559 = vld [vmem:[%s7] sm:$0xf]
      %v2560 = vld [vmem:[%s7 + $0x4] sm:$0xf]
      %v2561 = vld [vmem:[%s7 + $0x8] sm:$0xf]
      %v2562 = vld [vmem:[%s7 + $0xc] sm:$0xf]
      %v2563 = vld [vmem:[%s7 + $0x10] sm:$0xf]
      %v2564 = vld [vmem:[%s7 + $0x14] sm:$0xf]
      %v2565 = vld [vmem:[%s7 + $0x18] sm:$0xf]
      %v2566 = vld [vmem:[%s7 + $0x1c] sm:$0xf]
      %v2567 = vld [vmem:[%s7 + $0x20] sm:$0xf]
      %v2568 = vld [vmem:[%s7 + $0x24] sm:$0xf]
      %v2569 = vld [vmem:[%s7 + $0x28] sm:$0xf]
      %v2570 = vld [vmem:[%s7 + $0x2c] sm:$0xf]
      %v2571 = vld [vmem:[%s7 + $0x30] sm:$0xf]
      %v2572 = vld [vmem:[%s7 + $0x34] sm:$0xf]
      %v2573 = vld [vmem:[%s7 + $0x38] sm:$0xf]
      %v2574 = vld [vmem:[%s7 + $0x3c] sm:$0xf]
      %v2591 = vunpack.c.l.b16 %v2559
      %v2592 = vunpack.c.l.b16 %v2560
      %v2593 = vunpack.c.l.b16 %v2561
      %v2594 = vunpack.c.l.b16 %v2562
      %v2595 = vunpack.c.l.b16 %v2563
      %v2596 = vunpack.c.l.b16 %v2564
      %v2597 = vunpack.c.l.b16 %v2565
      %v2598 = vunpack.c.l.b16 %v2566
      %v2599 = vunpack.c.l.b16 %v2567
      %v2600 = vunpack.c.l.b16 %v2568
      %v2601 = vunpack.c.l.b16 %v2569
      %v2602 = vunpack.c.l.b16 %v2570
      %v2603 = vunpack.c.l.b16 %v2571
      %v2604 = vunpack.c.l.b16 %v2572
      %v2605 = vunpack.c.l.b16 %v2573
      %v2606 = vunpack.c.l.b16 %v2574
      %v2607 = vpack.c.b16 %v2592, %v2591
      %v2608 = vpack.c.b16 %v2594, %v2593
      %v2609 = vpack.c.b16 %v2596, %v2595
      %v2610 = vpack.c.b16 %v2598, %v2597
      %v2611 = vpack.c.b16 %v2600, %v2599
      %v2612 = vpack.c.b16 %v2602, %v2601
      %v2613 = vpack.c.b16 %v2604, %v2603
      %v2614 = vpack.c.b16 %v2606, %v2605
      %2623 = vmatpush.bf16.msra.mxu0 %v2614
      %2624 = vmatpush.bf16.msra.mxu0 %v2613
      %2625 = vmatpush.bf16.msra.mxu0 %v2612
      %2626 = vmatpush.bf16.msra.mxu0 %v2611
      %2627 = vmatpush.bf16.msra.mxu0 %v2610
      %2628 = vmatpush.bf16.msra.mxu0 %v2609
      %2629 = vmatpush.bf16.msra.mxu0 %v2608
      %2630 = vmatpush.bf16.msra.mxu0 %v2607
      %2631 = vmatmul.bf16.gmra.mxu0 %v2543
      %v2632 = vpop.f32.mrf.mxu0
      %v2633 = vadd.f32 0.0, %v2632
      %v2634 = vpop.f32.mrf.mxu0
      %v2635 = vadd.f32 0.0, %v2634
      %2636 = vmatmul.bf16.gmra.mxu0 %v2544
      %v2637 = vpop.f32.mrf.mxu0
      %v2638 = vadd.f32 0.0, %v2637
      %v2639 = vpop.f32.mrf.mxu0
      %v2640 = vadd.f32 0.0, %v2639
      %2641 = vmatmul.bf16.gmra.mxu0 %v2545
      %v2642 = vpop.f32.mrf.mxu0
      %v2643 = vadd.f32 0.0, %v2642
      %v2644 = vpop.f32.mrf.mxu0
      %v2645 = vadd.f32 0.0, %v2644
      %2646 = vmatmul.bf16.gmra.mxu0 %v2546
      %v2647 = vpop.f32.mrf.mxu0
      %v2648 = vadd.f32 0.0, %v2647
      %v2649 = vpop.f32.mrf.mxu0
      %v2650 = vadd.f32 0.0, %v2649
      %2651 = vmatmul.bf16.gmra.mxu0 %v2547
      %v2652 = vpop.f32.mrf.mxu0
      %v2653 = vadd.f32 0.0, %v2652
      %v2654 = vpop.f32.mrf.mxu0
      %v2655 = vadd.f32 0.0, %v2654
      %2656 = vmatmul.bf16.gmra.mxu0 %v2548
      %v2657 = vpop.f32.mrf.mxu0
      %v2658 = vadd.f32 0.0, %v2657
      %v2659 = vpop.f32.mrf.mxu0
      %v2660 = vadd.f32 0.0, %v2659
      %2661 = vmatmul.bf16.gmra.mxu0 %v2549
      %v2662 = vpop.f32.mrf.mxu0
      %v2663 = vadd.f32 0.0, %v2662
      %v2664 = vpop.f32.mrf.mxu0
      %v2665 = vadd.f32 0.0, %v2664
      %2666 = vmatmul.bf16.gmra.mxu0 %v2550
      %v2667 = vpop.f32.mrf.mxu0
      %v2668 = vadd.f32 0.0, %v2667
      %v2669 = vpop.f32.mrf.mxu0
      %v2670 = vadd.f32 0.0, %v2669
      %2671 = vmatmul.bf16.gmra.mxu0 %v2551
      %v2672 = vpop.f32.mrf.mxu0
      %v2673 = vadd.f32 0.0, %v2672
      %v2674 = vpop.f32.mrf.mxu0
      %v2675 = vadd.f32 0.0, %v2674
      %2676 = vmatmul.bf16.gmra.mxu0 %v2552
      %v2677 = vpop.f32.mrf.mxu0
      %v2678 = vadd.f32 0.0, %v2677
      %v2679 = vpop.f32.mrf.mxu0
      %v2680 = vadd.f32 0.0, %v2679
      %2681 = vmatmul.bf16.gmra.mxu0 %v2553
      %v2682 = vpop.f32.mrf.mxu0
      %v2683 = vadd.f32 0.0, %v2682
      %v2684 = vpop.f32.mrf.mxu0
      %v2685 = vadd.f32 0.0, %v2684
      %2686 = vmatmul.bf16.gmra.mxu0 %v2554
      %v2687 = vpop.f32.mrf.mxu0
      %v2688 = vadd.f32 0.0, %v2687
      %v2689 = vpop.f32.mrf.mxu0
      %v2690 = vadd.f32 0.0, %v2689
      %2691 = vmatmul.bf16.gmra.mxu0 %v2555
      %v2692 = vpop.f32.mrf.mxu0
      %v2693 = vadd.f32 0.0, %v2692
      %v2694 = vpop.f32.mrf.mxu0
      %v2695 = vadd.f32 0.0, %v2694
      %2696 = vmatmul.bf16.gmra.mxu0 %v2556
      %v2697 = vpop.f32.mrf.mxu0
      %v2698 = vadd.f32 0.0, %v2697
      %v2699 = vpop.f32.mrf.mxu0
      %v2700 = vadd.f32 0.0, %v2699
      %2701 = vmatmul.bf16.gmra.mxu0 %v2557
      %v2702 = vpop.f32.mrf.mxu0
      %v2703 = vadd.f32 0.0, %v2702
      %v2704 = vpop.f32.mrf.mxu0
      %v2705 = vadd.f32 0.0, %v2704
      %2706 = vmatmul.bf16.gmra.mxu0 %v2558
      %v2707 = vpop.f32.mrf.mxu0
      %v2708 = vadd.f32 0.0, %v2707
      %v2709 = vpop.f32.mrf.mxu0
      %v2710 = vadd.f32 0.0, %v2709
      %2711 = vdwg.mxu0
      %v2712 = vadd.f32 %v2464, %v2633
      %v2713 = vadd.f32 %v2466, %v2635
      %v2714 = vadd.f32 %v2469, %v2638
      %v2715 = vadd.f32 %v2471, %v2640
      %v2716 = vadd.f32 %v2474, %v2643
      %v2717 = vadd.f32 %v2476, %v2645
      %v2718 = vadd.f32 %v2479, %v2648
      %v2719 = vadd.f32 %v2481, %v2650
      %v2720 = vadd.f32 %v2484, %v2653
      %v2721 = vadd.f32 %v2486, %v2655
      %v2722 = vadd.f32 %v2489, %v2658
      %v2723 = vadd.f32 %v2491, %v2660
      %v2724 = vadd.f32 %v2494, %v2663
      %v2725 = vadd.f32 %v2496, %v2665
      %v2726 = vadd.f32 %v2499, %v2668
      %v2727 = vadd.f32 %v2501, %v2670
      %v2728 = vadd.f32 %v2504, %v2673
      %v2729 = vadd.f32 %v2506, %v2675
      %v2730 = vadd.f32 %v2509, %v2678
      %v2731 = vadd.f32 %v2511, %v2680
      %v2732 = vadd.f32 %v2514, %v2683
      %v2733 = vadd.f32 %v2516, %v2685
      %v2734 = vadd.f32 %v2519, %v2688
      %v2735 = vadd.f32 %v2521, %v2690
      %v2736 = vadd.f32 %v2524, %v2693
      %v2737 = vadd.f32 %v2526, %v2695
      %v2738 = vadd.f32 %v2529, %v2698
      %v2739 = vadd.f32 %v2531, %v2700
      %v2740 = vadd.f32 %v2534, %v2703
      %v2741 = vadd.f32 %v2536, %v2705
      %v2742 = vadd.f32 %v2539, %v2708
      %v2743 = vadd.f32 %v2541, %v2710
      %v2744 = vld [vmem:[%s8] sm:$0x1]
      %v2746 = vperm.slane %v2744, 0
      %v2748 = vadd.f32 %v2712, %v2746
      %v2749 = vadd.f32 %v2713, %v2746
      %v2750 = vadd.f32 %v2714, %v2746
      %v2751 = vadd.f32 %v2715, %v2746
      %v2752 = vadd.f32 %v2716, %v2746
      %v2753 = vadd.f32 %v2717, %v2746
      %v2754 = vadd.f32 %v2718, %v2746
      %v2755 = vadd.f32 %v2719, %v2746
      %v2756 = vadd.f32 %v2720, %v2746
      %v2757 = vadd.f32 %v2721, %v2746
      %v2758 = vadd.f32 %v2722, %v2746
      %v2759 = vadd.f32 %v2723, %v2746
      %v2760 = vadd.f32 %v2724, %v2746
      %v2761 = vadd.f32 %v2725, %v2746
      %v2762 = vadd.f32 %v2726, %v2746
      %v2763 = vadd.f32 %v2727, %v2746
      %v2764 = vadd.f32 %v2728, %v2746
      %v2765 = vadd.f32 %v2729, %v2746
      %v2766 = vadd.f32 %v2730, %v2746
      %v2767 = vadd.f32 %v2731, %v2746
      %v2768 = vadd.f32 %v2732, %v2746
      %v2769 = vadd.f32 %v2733, %v2746
      %v2770 = vadd.f32 %v2734, %v2746
      %v2771 = vadd.f32 %v2735, %v2746
      %v2772 = vadd.f32 %v2736, %v2746
      %v2773 = vadd.f32 %v2737, %v2746
      %v2774 = vadd.f32 %v2738, %v2746
      %v2775 = vadd.f32 %v2739, %v2746
      %v2776 = vadd.f32 %v2740, %v2746
      %v2777 = vadd.f32 %v2741, %v2746
      %v2778 = vadd.f32 %v2742, %v2746
      %v2779 = vadd.f32 %v2743, %v2746
      %v2780 = vmax.f32 %v2748, 0.0
      %v2781 = vmax.f32 %v2749, 0.0
      %v2782 = vmax.f32 %v2750, 0.0
      %v2783 = vmax.f32 %v2751, 0.0
      %v2784 = vmax.f32 %v2752, 0.0
      %v2785 = vmax.f32 %v2753, 0.0
      %v2786 = vmax.f32 %v2754, 0.0
      %v2787 = vmax.f32 %v2755, 0.0
      %v2788 = vmax.f32 %v2756, 0.0
      %v2789 = vmax.f32 %v2757, 0.0
      %v2790 = vmax.f32 %v2758, 0.0
      %v2791 = vmax.f32 %v2759, 0.0
      %v2792 = vmax.f32 %v2760, 0.0
      %v2793 = vmax.f32 %v2761, 0.0
      %v2794 = vmax.f32 %v2762, 0.0
      %v2795 = vmax.f32 %v2763, 0.0
      %v2796 = vmax.f32 %v2764, 0.0
      %v2797 = vmax.f32 %v2765, 0.0
      %v2798 = vmax.f32 %v2766, 0.0
      %v2799 = vmax.f32 %v2767, 0.0
      %v2800 = vmax.f32 %v2768, 0.0
      %v2801 = vmax.f32 %v2769, 0.0
      %v2802 = vmax.f32 %v2770, 0.0
      %v2803 = vmax.f32 %v2771, 0.0
      %v2804 = vmax.f32 %v2772, 0.0
      %v2805 = vmax.f32 %v2773, 0.0
      %v2806 = vmax.f32 %v2774, 0.0
      %v2807 = vmax.f32 %v2775, 0.0
      %v2808 = vmax.f32 %v2776, 0.0
      %v2809 = vmax.f32 %v2777, 0.0
      %v2810 = vmax.f32 %v2778, 0.0
      %v2811 = vmax.f32 %v2779, 0.0
      %v2812 = vpack.c.bf16 %v2781, %v2780
      %v2813 = vpack.c.bf16 %v2783, %v2782
      %v2814 = vpack.c.bf16 %v2785, %v2784
      %v2815 = vpack.c.bf16 %v2787, %v2786
      %v2816 = vpack.c.bf16 %v2789, %v2788
      %v2817 = vpack.c.bf16 %v2791, %v2790
      %v2818 = vpack.c.bf16 %v2793, %v2792
      %v2819 = vpack.c.bf16 %v2795, %v2794
      %v2820 = vpack.c.bf16 %v2797, %v2796
      %v2821 = vpack.c.bf16 %v2799, %v2798
      %v2822 = vpack.c.bf16 %v2801, %v2800
      %v2823 = vpack.c.bf16 %v2803, %v2802
      %v2824 = vpack.c.bf16 %v2805, %v2804
      %v2825 = vpack.c.bf16 %v2807, %v2806
      %v2826 = vpack.c.bf16 %v2809, %v2808
      %v2827 = vpack.c.bf16 %v2811, %v2810
      %v2828 = vld [vmem:[%s9] sm:$0xf]
      %v2829 = vld [vmem:[%s9 + $0x4] sm:$0xf]
      %v2830 = vld [vmem:[%s9 + $0x8] sm:$0xf]
      %v2831 = vld [vmem:[%s9 + $0xc] sm:$0xf]
      %v2832 = vld [vmem:[%s9 + $0x10] sm:$0xf]
      %v2833 = vld [vmem:[%s9 + $0x14] sm:$0xf]
      %v2834 = vld [vmem:[%s9 + $0x18] sm:$0xf]
      %v2835 = vld [vmem:[%s9 + $0x1c] sm:$0xf]
      %v2836 = vld [vmem:[%s9 + $0x20] sm:$0xf]
      %v2837 = vld [vmem:[%s9 + $0x24] sm:$0xf]
      %v2838 = vld [vmem:[%s9 + $0x28] sm:$0xf]
      %v2839 = vld [vmem:[%s9 + $0x2c] sm:$0xf]
      %v2840 = vld [vmem:[%s9 + $0x30] sm:$0xf]
      %v2841 = vld [vmem:[%s9 + $0x34] sm:$0xf]
      %v2842 = vld [vmem:[%s9 + $0x38] sm:$0xf]
      %v2843 = vld [vmem:[%s9 + $0x3c] sm:$0xf]
      %v2844 = vld [vmem:[%s10] sm:$0x1]
      %v2846 = vperm.slane %v2844, 0
      %v2864 = vunpack.c.l.b16 %v2828
      %v2865 = vunpack.c.l.b16 %v2829
      %v2866 = vunpack.c.l.b16 %v2830
      %v2867 = vunpack.c.l.b16 %v2831
      %v2868 = vunpack.c.l.b16 %v2832
      %v2869 = vunpack.c.l.b16 %v2833
      %v2870 = vunpack.c.l.b16 %v2834
      %v2871 = vunpack.c.l.b16 %v2835
      %v2872 = vunpack.c.l.b16 %v2836
      %v2873 = vunpack.c.l.b16 %v2837
      %v2874 = vunpack.c.l.b16 %v2838
      %v2875 = vunpack.c.l.b16 %v2839
      %v2876 = vunpack.c.l.b16 %v2840
      %v2877 = vunpack.c.l.b16 %v2841
      %v2878 = vunpack.c.l.b16 %v2842
      %v2879 = vunpack.c.l.b16 %v2843
      %v2880 = vpack.c.b16 %v2865, %v2864
      %v2881 = vpack.c.b16 %v2867, %v2866
      %v2882 = vpack.c.b16 %v2869, %v2868
      %v2883 = vpack.c.b16 %v2871, %v2870
      %v2884 = vpack.c.b16 %v2873, %v2872
      %v2885 = vpack.c.b16 %v2875, %v2874
      %v2886 = vpack.c.b16 %v2877, %v2876
      %v2887 = vpack.c.b16 %v2879, %v2878
      %2896 = vmatpush.bf16.msra.mxu0 %v2887
      %2897 = vmatpush.bf16.msra.mxu0 %v2886
      %2898 = vmatpush.bf16.msra.mxu0 %v2885
      %2899 = vmatpush.bf16.msra.mxu0 %v2884
      %2900 = vmatpush.bf16.msra.mxu0 %v2883
      %2901 = vmatpush.bf16.msra.mxu0 %v2882
      %2902 = vmatpush.bf16.msra.mxu0 %v2881
      %2903 = vmatpush.bf16.msra.mxu0 %v2880
      %2904 = vmatmul.bf16.gmra.mxu0 %v2812
      %v2905 = vpop.f32.mrf.mxu0
      %v2906 = vadd.f32 %v2846, %v2905
      %v2907 = vpop.f32.mrf.mxu0
      %v2908 = vadd.f32 %v2846, %v2907
      %2909 = vmatmul.bf16.gmra.mxu0 %v2813
      %v2910 = vpop.f32.mrf.mxu0
      %v2911 = vadd.f32 %v2846, %v2910
      %v2912 = vpop.f32.mrf.mxu0
      %v2913 = vadd.f32 %v2846, %v2912
      %2914 = vmatmul.bf16.gmra.mxu0 %v2814
      %v2915 = vpop.f32.mrf.mxu0
      %v2916 = vadd.f32 %v2846, %v2915
      %v2917 = vpop.f32.mrf.mxu0
      %v2918 = vadd.f32 %v2846, %v2917
      %2919 = vmatmul.bf16.gmra.mxu0 %v2815
      %v2920 = vpop.f32.mrf.mxu0
      %v2921 = vadd.f32 %v2846, %v2920
      %v2922 = vpop.f32.mrf.mxu0
      %v2923 = vadd.f32 %v2846, %v2922
      %2924 = vmatmul.bf16.gmra.mxu0 %v2816
      %v2925 = vpop.f32.mrf.mxu0
      %v2926 = vadd.f32 %v2846, %v2925
      %v2927 = vpop.f32.mrf.mxu0
      %v2928 = vadd.f32 %v2846, %v2927
      %2929 = vmatmul.bf16.gmra.mxu0 %v2817
      %v2930 = vpop.f32.mrf.mxu0
      %v2931 = vadd.f32 %v2846, %v2930
      %v2932 = vpop.f32.mrf.mxu0
      %v2933 = vadd.f32 %v2846, %v2932
      %2934 = vmatmul.bf16.gmra.mxu0 %v2818
      %v2935 = vpop.f32.mrf.mxu0
      %v2936 = vadd.f32 %v2846, %v2935
      %v2937 = vpop.f32.mrf.mxu0
      %v2938 = vadd.f32 %v2846, %v2937
      %2939 = vmatmul.bf16.gmra.mxu0 %v2819
      %v2940 = vpop.f32.mrf.mxu0
      %v2941 = vadd.f32 %v2846, %v2940
      %v2942 = vpop.f32.mrf.mxu0
      %v2943 = vadd.f32 %v2846, %v2942
      %2944 = vmatmul.bf16.gmra.mxu0 %v2820
      %v2945 = vpop.f32.mrf.mxu0
      %v2946 = vadd.f32 %v2846, %v2945
      %v2947 = vpop.f32.mrf.mxu0
      %v2948 = vadd.f32 %v2846, %v2947
      %2949 = vmatmul.bf16.gmra.mxu0 %v2821
      %v2950 = vpop.f32.mrf.mxu0
      %v2951 = vadd.f32 %v2846, %v2950
      %v2952 = vpop.f32.mrf.mxu0
      %v2953 = vadd.f32 %v2846, %v2952
      %2954 = vmatmul.bf16.gmra.mxu0 %v2822
      %v2955 = vpop.f32.mrf.mxu0
      %v2956 = vadd.f32 %v2846, %v2955
      %v2957 = vpop.f32.mrf.mxu0
      %v2958 = vadd.f32 %v2846, %v2957
      %2959 = vmatmul.bf16.gmra.mxu0 %v2823
      %v2960 = vpop.f32.mrf.mxu0
      %v2961 = vadd.f32 %v2846, %v2960
      %v2962 = vpop.f32.mrf.mxu0
      %v2963 = vadd.f32 %v2846, %v2962
      %2964 = vmatmul.bf16.gmra.mxu0 %v2824
      %v2965 = vpop.f32.mrf.mxu0
      %v2966 = vadd.f32 %v2846, %v2965
      %v2967 = vpop.f32.mrf.mxu0
      %v2968 = vadd.f32 %v2846, %v2967
      %2969 = vmatmul.bf16.gmra.mxu0 %v2825
      %v2970 = vpop.f32.mrf.mxu0
      %v2971 = vadd.f32 %v2846, %v2970
      %v2972 = vpop.f32.mrf.mxu0
      %v2973 = vadd.f32 %v2846, %v2972
      %2974 = vmatmul.bf16.gmra.mxu0 %v2826
      %v2975 = vpop.f32.mrf.mxu0
      %v2976 = vadd.f32 %v2846, %v2975
      %v2977 = vpop.f32.mrf.mxu0
      %v2978 = vadd.f32 %v2846, %v2977
      %2979 = vmatmul.bf16.gmra.mxu0 %v2827
      %v2980 = vpop.f32.mrf.mxu0
      %v2981 = vadd.f32 %v2846, %v2980
      %v2982 = vpop.f32.mrf.mxu0
      %v2983 = vadd.f32 %v2846, %v2982
      %2984 = vdwg.mxu0
      %v2985 = vld [vmem:[%s13] sm:$0x1]
      %v2986 = vld [vmem:[%s11] sm:$0x1]
      %v2987 = vld [vmem:[%s12] sm:$0x1]
      %2988 = vadd.xlane.f32.xlu0 %v2906
      %v2989 = vpop.xlane.xlu0 %2988
      %2990 = vadd.xlane.f32.xlu0 %v2908
      %v2991 = vpop.xlane.xlu0 %2990
      %2992 = vadd.xlane.f32.xlu0 %v2911
      %v2993 = vpop.xlane.xlu0 %2992
      %2994 = vadd.xlane.f32.xlu0 %v2913
      %v2995 = vpop.xlane.xlu0 %2994
      %2996 = vadd.xlane.f32.xlu0 %v2916
      %v2997 = vpop.xlane.xlu0 %2996
      %2998 = vadd.xlane.f32.xlu0 %v2918
      %v2999 = vpop.xlane.xlu0 %2998
      %3000 = vadd.xlane.f32.xlu0 %v2921
      %v3001 = vpop.xlane.xlu0 %3000
      %3002 = vadd.xlane.f32.xlu0 %v2923
      %v3003 = vpop.xlane.xlu0 %3002
      %3004 = vadd.xlane.f32.xlu0 %v2926
      %v3005 = vpop.xlane.xlu0 %3004
      %3006 = vadd.xlane.f32.xlu0 %v2928
      %v3007 = vpop.xlane.xlu0 %3006
      %3008 = vadd.xlane.f32.xlu0 %v2931
      %v3009 = vpop.xlane.xlu0 %3008
      %3010 = vadd.xlane.f32.xlu0 %v2933
      %v3011 = vpop.xlane.xlu0 %3010
      %3012 = vadd.xlane.f32.xlu0 %v2936
      %v3013 = vpop.xlane.xlu0 %3012
      %3014 = vadd.xlane.f32.xlu0 %v2938
      %v3015 = vpop.xlane.xlu0 %3014
      %3016 = vadd.xlane.f32.xlu0 %v2941
      %v3017 = vpop.xlane.xlu0 %3016
      %3018 = vadd.xlane.f32.xlu0 %v2943
      %v3019 = vpop.xlane.xlu0 %3018
      %3020 = vadd.xlane.f32.xlu0 %v2946
      %v3021 = vpop.xlane.xlu0 %3020
      %3022 = vadd.xlane.f32.xlu0 %v2948
      %v3023 = vpop.xlane.xlu0 %3022
      %3024 = vadd.xlane.f32.xlu0 %v2951
      %v3025 = vpop.xlane.xlu0 %3024
      %3026 = vadd.xlane.f32.xlu0 %v2953
      %v3027 = vpop.xlane.xlu0 %3026
      %3028 = vadd.xlane.f32.xlu0 %v2956
      %v3029 = vpop.xlane.xlu0 %3028
      %3030 = vadd.xlane.f32.xlu0 %v2958
      %v3031 = vpop.xlane.xlu0 %3030
      %3032 = vadd.xlane.f32.xlu0 %v2961
      %v3033 = vpop.xlane.xlu0 %3032
      %3034 = vadd.xlane.f32.xlu0 %v2963
      %v3035 = vpop.xlane.xlu0 %3034
      %3036 = vadd.xlane.f32.xlu0 %v2966
      %v3037 = vpop.xlane.xlu0 %3036
      %3038 = vadd.xlane.f32.xlu0 %v2968
      %v3039 = vpop.xlane.xlu0 %3038
      %3040 = vadd.xlane.f32.xlu0 %v2971
      %v3041 = vpop.xlane.xlu0 %3040
      %3042 = vadd.xlane.f32.xlu0 %v2973
      %v3043 = vpop.xlane.xlu0 %3042
      %3044 = vadd.xlane.f32.xlu0 %v2976
      %v3045 = vpop.xlane.xlu0 %3044
      %3046 = vadd.xlane.f32.xlu0 %v2978
      %v3047 = vpop.xlane.xlu0 %3046
      %3048 = vadd.xlane.f32.xlu0 %v2981
      %v3049 = vpop.xlane.xlu0 %3048
      %3050 = vadd.xlane.f32.xlu0 %v2983
      %v3051 = vpop.xlane.xlu0 %3050
      %v3052 = vmul.f32 %v2989, 0.03125
      %v3053 = vmul.f32 %v2991, 0.03125
      %v3054 = vmul.f32 %v2993, 0.03125
      %v3055 = vmul.f32 %v2995, 0.03125
      %v3056 = vmul.f32 %v2997, 0.03125
      %v3057 = vmul.f32 %v2999, 0.03125
      %v3058 = vmul.f32 %v3001, 0.03125
      %v3059 = vmul.f32 %v3003, 0.03125
      %v3060 = vmul.f32 %v3005, 0.03125
      %v3061 = vmul.f32 %v3007, 0.03125
      %v3062 = vmul.f32 %v3009, 0.03125
      %v3063 = vmul.f32 %v3011, 0.03125
      %v3064 = vmul.f32 %v3013, 0.03125
      %v3065 = vmul.f32 %v3015, 0.03125
      %v3066 = vmul.f32 %v3017, 0.03125
      %v3067 = vmul.f32 %v3019, 0.03125
      %v3068 = vmul.f32 %v3021, 0.03125
      %v3069 = vmul.f32 %v3023, 0.03125
      %v3070 = vmul.f32 %v3025, 0.03125
      %v3071 = vmul.f32 %v3027, 0.03125
      %v3072 = vmul.f32 %v3029, 0.03125
      %v3073 = vmul.f32 %v3031, 0.03125
      %v3074 = vmul.f32 %v3033, 0.03125
      %v3075 = vmul.f32 %v3035, 0.03125
      %v3076 = vmul.f32 %v3037, 0.03125
      %v3077 = vmul.f32 %v3039, 0.03125
      %v3078 = vmul.f32 %v3041, 0.03125
      %v3079 = vmul.f32 %v3043, 0.03125
      %v3080 = vmul.f32 %v3045, 0.03125
      %v3081 = vmul.f32 %v3047, 0.03125
      %v3082 = vmul.f32 %v3049, 0.03125
      %v3083 = vmul.f32 %v3051, 0.03125
      %v3084 = vsub.f32 %v2906, %v3052
      %v3085 = vsub.f32 %v2908, %v3053
      %v3086 = vsub.f32 %v2911, %v3054
      %v3087 = vsub.f32 %v2913, %v3055
      %v3088 = vsub.f32 %v2916, %v3056
      %v3089 = vsub.f32 %v2918, %v3057
      %v3090 = vsub.f32 %v2921, %v3058
      %v3091 = vsub.f32 %v2923, %v3059
      %v3092 = vsub.f32 %v2926, %v3060
      %v3093 = vsub.f32 %v2928, %v3061
      %v3094 = vsub.f32 %v2931, %v3062
      %v3095 = vsub.f32 %v2933, %v3063
      %v3096 = vsub.f32 %v2936, %v3064
      %v3097 = vsub.f32 %v2938, %v3065
      %v3098 = vsub.f32 %v2941, %v3066
      %v3099 = vsub.f32 %v2943, %v3067
      %v3100 = vsub.f32 %v2946, %v3068
      %v3101 = vsub.f32 %v2948, %v3069
      %v3102 = vsub.f32 %v2951, %v3070
      %v3103 = vsub.f32 %v2953, %v3071
      %v3104 = vsub.f32 %v2956, %v3072
      %v3105 = vsub.f32 %v2958, %v3073
      %v3106 = vsub.f32 %v2961, %v3074
      %v3107 = vsub.f32 %v2963, %v3075
      %v3108 = vsub.f32 %v2966, %v3076
      %v3109 = vsub.f32 %v2968, %v3077
      %v3110 = vsub.f32 %v2971, %v3078
      %v3111 = vsub.f32 %v2973, %v3079
      %v3112 = vsub.f32 %v2976, %v3080
      %v3113 = vsub.f32 %v2978, %v3081
      %v3114 = vsub.f32 %v2981, %v3082
      %v3115 = vsub.f32 %v2983, %v3083
      %v3117 = vperm.slane %v2985, 0
      %v3119 = vmul.f32 %v3084, %v3117
      %v3120 = vmul.f32 %v3085, %v3117
      %v3121 = vmul.f32 %v3086, %v3117
      %v3122 = vmul.f32 %v3087, %v3117
      %v3123 = vmul.f32 %v3088, %v3117
      %v3124 = vmul.f32 %v3089, %v3117
      %v3125 = vmul.f32 %v3090, %v3117
      %v3126 = vmul.f32 %v3091, %v3117
      %v3127 = vmul.f32 %v3092, %v3117
      %v3128 = vmul.f32 %v3093, %v3117
      %v3129 = vmul.f32 %v3094, %v3117
      %v3130 = vmul.f32 %v3095, %v3117
      %v3131 = vmul.f32 %v3096, %v3117
      %v3132 = vmul.f32 %v3097, %v3117
      %v3133 = vmul.f32 %v3098, %v3117
      %v3134 = vmul.f32 %v3099, %v3117
      %v3135 = vmul.f32 %v3100, %v3117
      %v3136 = vmul.f32 %v3101, %v3117
      %v3137 = vmul.f32 %v3102, %v3117
      %v3138 = vmul.f32 %v3103, %v3117
      %v3139 = vmul.f32 %v3104, %v3117
      %v3140 = vmul.f32 %v3105, %v3117
      %v3141 = vmul.f32 %v3106, %v3117
      %v3142 = vmul.f32 %v3107, %v3117
      %v3143 = vmul.f32 %v3108, %v3117
      %v3144 = vmul.f32 %v3109, %v3117
      %v3145 = vmul.f32 %v3110, %v3117
      %v3146 = vmul.f32 %v3111, %v3117
      %v3147 = vmul.f32 %v3112, %v3117
      %v3148 = vmul.f32 %v3113, %v3117
      %v3149 = vmul.f32 %v3114, %v3117
      %v3150 = vmul.f32 %v3115, %v3117
      %v3151 = vmul.f32 %v3119, %v3119
      %v3152 = vmul.f32 %v3120, %v3120
      %v3153 = vmul.f32 %v3121, %v3121
      %v3154 = vmul.f32 %v3122, %v3122
      %v3155 = vmul.f32 %v3123, %v3123
      %v3156 = vmul.f32 %v3124, %v3124
      %v3157 = vmul.f32 %v3125, %v3125
      %v3158 = vmul.f32 %v3126, %v3126
      %v3159 = vmul.f32 %v3127, %v3127
      %v3160 = vmul.f32 %v3128, %v3128
      %v3161 = vmul.f32 %v3129, %v3129
      %v3162 = vmul.f32 %v3130, %v3130
      %v3163 = vmul.f32 %v3131, %v3131
      %v3164 = vmul.f32 %v3132, %v3132
      %v3165 = vmul.f32 %v3133, %v3133
      %v3166 = vmul.f32 %v3134, %v3134
      %v3167 = vmul.f32 %v3135, %v3135
      %v3168 = vmul.f32 %v3136, %v3136
      %v3169 = vmul.f32 %v3137, %v3137
      %v3170 = vmul.f32 %v3138, %v3138
      %v3171 = vmul.f32 %v3139, %v3139
      %v3172 = vmul.f32 %v3140, %v3140
      %v3173 = vmul.f32 %v3141, %v3141
      %v3174 = vmul.f32 %v3142, %v3142
      %v3175 = vmul.f32 %v3143, %v3143
      %v3176 = vmul.f32 %v3144, %v3144
      %v3177 = vmul.f32 %v3145, %v3145
      %v3178 = vmul.f32 %v3146, %v3146
      %v3179 = vmul.f32 %v3147, %v3147
      %v3180 = vmul.f32 %v3148, %v3148
      %v3181 = vmul.f32 %v3149, %v3149
      %v3182 = vmul.f32 %v3150, %v3150
      %3183 = vadd.xlane.f32.xlu0 %v3151
      %v3184 = vpop.xlane.xlu0 %3183
      %3185 = vadd.xlane.f32.xlu0 %v3152
      %v3186 = vpop.xlane.xlu0 %3185
      %3187 = vadd.xlane.f32.xlu0 %v3153
      %v3188 = vpop.xlane.xlu0 %3187
      %3189 = vadd.xlane.f32.xlu0 %v3154
      %v3190 = vpop.xlane.xlu0 %3189
      %3191 = vadd.xlane.f32.xlu0 %v3155
      %v3192 = vpop.xlane.xlu0 %3191
      %3193 = vadd.xlane.f32.xlu0 %v3156
      %v3194 = vpop.xlane.xlu0 %3193
      %3195 = vadd.xlane.f32.xlu0 %v3157
      %v3196 = vpop.xlane.xlu0 %3195
      %3197 = vadd.xlane.f32.xlu0 %v3158
      %v3198 = vpop.xlane.xlu0 %3197
      %3199 = vadd.xlane.f32.xlu0 %v3159
      %v3200 = vpop.xlane.xlu0 %3199
      %3201 = vadd.xlane.f32.xlu0 %v3160
      %v3202 = vpop.xlane.xlu0 %3201
      %3203 = vadd.xlane.f32.xlu0 %v3161
      %v3204 = vpop.xlane.xlu0 %3203
      %3205 = vadd.xlane.f32.xlu0 %v3162
      %v3206 = vpop.xlane.xlu0 %3205
      %3207 = vadd.xlane.f32.xlu0 %v3163
      %v3208 = vpop.xlane.xlu0 %3207
      %3209 = vadd.xlane.f32.xlu0 %v3164
      %v3210 = vpop.xlane.xlu0 %3209
      %3211 = vadd.xlane.f32.xlu0 %v3165
      %v3212 = vpop.xlane.xlu0 %3211
      %3213 = vadd.xlane.f32.xlu0 %v3166
      %v3214 = vpop.xlane.xlu0 %3213
      %3215 = vadd.xlane.f32.xlu0 %v3167
      %v3216 = vpop.xlane.xlu0 %3215
      %3217 = vadd.xlane.f32.xlu0 %v3168
      %v3218 = vpop.xlane.xlu0 %3217
      %3219 = vadd.xlane.f32.xlu0 %v3169
      %v3220 = vpop.xlane.xlu0 %3219
      %3221 = vadd.xlane.f32.xlu0 %v3170
      %v3222 = vpop.xlane.xlu0 %3221
      %3223 = vadd.xlane.f32.xlu0 %v3171
      %v3224 = vpop.xlane.xlu0 %3223
      %3225 = vadd.xlane.f32.xlu0 %v3172
      %v3226 = vpop.xlane.xlu0 %3225
      %3227 = vadd.xlane.f32.xlu0 %v3173
      %v3228 = vpop.xlane.xlu0 %3227
      %3229 = vadd.xlane.f32.xlu0 %v3174
      %v3230 = vpop.xlane.xlu0 %3229
      %3231 = vadd.xlane.f32.xlu0 %v3175
      %v3232 = vpop.xlane.xlu0 %3231
      %3233 = vadd.xlane.f32.xlu0 %v3176
      %v3234 = vpop.xlane.xlu0 %3233
      %3235 = vadd.xlane.f32.xlu0 %v3177
      %v3236 = vpop.xlane.xlu0 %3235
      %3237 = vadd.xlane.f32.xlu0 %v3178
      %v3238 = vpop.xlane.xlu0 %3237
      %3239 = vadd.xlane.f32.xlu0 %v3179
      %v3240 = vpop.xlane.xlu0 %3239
      %3241 = vadd.xlane.f32.xlu0 %v3180
      %v3242 = vpop.xlane.xlu0 %3241
      %3243 = vadd.xlane.f32.xlu0 %v3181
      %v3244 = vpop.xlane.xlu0 %3243
      %3245 = vadd.xlane.f32.xlu0 %v3182
      %v3246 = vpop.xlane.xlu0 %3245
      %v3247 = vmul.f32 %v3184, 0.03125
      %v3248 = vmul.f32 %v3186, 0.03125
      %v3249 = vmul.f32 %v3188, 0.03125
      %v3250 = vmul.f32 %v3190, 0.03125
      %v3251 = vmul.f32 %v3192, 0.03125
      %v3252 = vmul.f32 %v3194, 0.03125
      %v3253 = vmul.f32 %v3196, 0.03125
      %v3254 = vmul.f32 %v3198, 0.03125
      %v3255 = vmul.f32 %v3200, 0.03125
      %v3256 = vmul.f32 %v3202, 0.03125
      %v3257 = vmul.f32 %v3204, 0.03125
      %v3258 = vmul.f32 %v3206, 0.03125
      %v3259 = vmul.f32 %v3208, 0.03125
      %v3260 = vmul.f32 %v3210, 0.03125
      %v3261 = vmul.f32 %v3212, 0.03125
      %v3262 = vmul.f32 %v3214, 0.03125
      %v3263 = vmul.f32 %v3216, 0.03125
      %v3264 = vmul.f32 %v3218, 0.03125
      %v3265 = vmul.f32 %v3220, 0.03125
      %v3266 = vmul.f32 %v3222, 0.03125
      %v3267 = vmul.f32 %v3224, 0.03125
      %v3268 = vmul.f32 %v3226, 0.03125
      %v3269 = vmul.f32 %v3228, 0.03125
      %v3270 = vmul.f32 %v3230, 0.03125
      %v3271 = vmul.f32 %v3232, 0.03125
      %v3272 = vmul.f32 %v3234, 0.03125
      %v3273 = vmul.f32 %v3236, 0.03125
      %v3274 = vmul.f32 %v3238, 0.03125
      %v3275 = vmul.f32 %v3240, 0.03125
      %v3276 = vmul.f32 %v3242, 0.03125
      %v3277 = vmul.f32 %v3244, 0.03125
      %v3278 = vmul.f32 %v3246, 0.03125
      %v3279 = vadd.f32 %v3247, 1e-05
      %v3280 = vadd.f32 %v3248, 1e-05
      %v3281 = vadd.f32 %v3249, 1e-05
      %v3282 = vadd.f32 %v3250, 1e-05
      %v3283 = vadd.f32 %v3251, 1e-05
      %v3284 = vadd.f32 %v3252, 1e-05
      %v3285 = vadd.f32 %v3253, 1e-05
      %v3286 = vadd.f32 %v3254, 1e-05
      %v3287 = vadd.f32 %v3255, 1e-05
      %v3288 = vadd.f32 %v3256, 1e-05
      %v3289 = vadd.f32 %v3257, 1e-05
      %v3290 = vadd.f32 %v3258, 1e-05
      %v3291 = vadd.f32 %v3259, 1e-05
      %v3292 = vadd.f32 %v3260, 1e-05
      %v3293 = vadd.f32 %v3261, 1e-05
      %v3294 = vadd.f32 %v3262, 1e-05
      %v3295 = vadd.f32 %v3263, 1e-05
      %v3296 = vadd.f32 %v3264, 1e-05
      %v3297 = vadd.f32 %v3265, 1e-05
      %v3298 = vadd.f32 %v3266, 1e-05
      %v3299 = vadd.f32 %v3267, 1e-05
      %v3300 = vadd.f32 %v3268, 1e-05
      %v3301 = vadd.f32 %v3269, 1e-05
      %v3302 = vadd.f32 %v3270, 1e-05
      %v3303 = vadd.f32 %v3271, 1e-05
      %v3304 = vadd.f32 %v3272, 1e-05
      %v3305 = vadd.f32 %v3273, 1e-05
      %v3306 = vadd.f32 %v3274, 1e-05
      %v3307 = vadd.f32 %v3275, 1e-05
      %v3308 = vadd.f32 %v3276, 1e-05
      %v3309 = vadd.f32 %v3277, 1e-05
      %v3310 = vadd.f32 %v3278, 1e-05
      %v3311 = vrsqrt.pop %v3279
      %v3312 = vmul.f32 %v3311, %v3279
      %v3313 = vmul.f32 %v3312, %v3311
      %v3314 = vmul.f32 0.5, %v3313
      %v3315 = vsub.f32 1.5, %v3314
      %v3316 = vmul.f32 %v3311, %v3315
      %vm3317 = vweird.f32 %v3279
      %vm3318 = vweird.f32 %v3311
      %vm3319 = vmor %vm3317, %vm3318
      %v3320 = vsel %vm3319, %v3311, %v3316
      %v3321 = vrsqrt.pop %v3280
      %v3322 = vmul.f32 %v3321, %v3280
      %v3323 = vmul.f32 %v3322, %v3321
      %v3324 = vmul.f32 0.5, %v3323
      %v3325 = vsub.f32 1.5, %v3324
      %v3326 = vmul.f32 %v3321, %v3325
      %vm3327 = vweird.f32 %v3280
      %vm3328 = vweird.f32 %v3321
      %vm3329 = vmor %vm3327, %vm3328
      %v3330 = vsel %vm3329, %v3321, %v3326
      %v3331 = vrsqrt.pop %v3281
      %v3332 = vmul.f32 %v3331, %v3281
      %v3333 = vmul.f32 %v3332, %v3331
      %v3334 = vmul.f32 0.5, %v3333
      %v3335 = vsub.f32 1.5, %v3334
      %v3336 = vmul.f32 %v3331, %v3335
      %vm3337 = vweird.f32 %v3281
      %vm3338 = vweird.f32 %v3331
      %vm3339 = vmor %vm3337, %vm3338
      %v3340 = vsel %vm3339, %v3331, %v3336
      %v3341 = vrsqrt.pop %v3282
      %v3342 = vmul.f32 %v3341, %v3282
      %v3343 = vmul.f32 %v3342, %v3341
      %v3344 = vmul.f32 0.5, %v3343
      %v3345 = vsub.f32 1.5, %v3344
      %v3346 = vmul.f32 %v3341, %v3345
      %vm3347 = vweird.f32 %v3282
      %vm3348 = vweird.f32 %v3341
      %vm3349 = vmor %vm3347, %vm3348
      %v3350 = vsel %vm3349, %v3341, %v3346
      %v3351 = vrsqrt.pop %v3283
      %v3352 = vmul.f32 %v3351, %v3283
      %v3353 = vmul.f32 %v3352, %v3351
      %v3354 = vmul.f32 0.5, %v3353
      %v3355 = vsub.f32 1.5, %v3354
      %v3356 = vmul.f32 %v3351, %v3355
      %vm3357 = vweird.f32 %v3283
      %vm3358 = vweird.f32 %v3351
      %vm3359 = vmor %vm3357, %vm3358
      %v3360 = vsel %vm3359, %v3351, %v3356
      %v3361 = vrsqrt.pop %v3284
      %v3362 = vmul.f32 %v3361, %v3284
      %v3363 = vmul.f32 %v3362, %v3361
      %v3364 = vmul.f32 0.5, %v3363
      %v3365 = vsub.f32 1.5, %v3364
      %v3366 = vmul.f32 %v3361, %v3365
      %vm3367 = vweird.f32 %v3284
      %vm3368 = vweird.f32 %v3361
      %vm3369 = vmor %vm3367, %vm3368
      %v3370 = vsel %vm3369, %v3361, %v3366
      %v3371 = vrsqrt.pop %v3285
      %v3372 = vmul.f32 %v3371, %v3285
      %v3373 = vmul.f32 %v3372, %v3371
      %v3374 = vmul.f32 0.5, %v3373
      %v3375 = vsub.f32 1.5, %v3374
      %v3376 = vmul.f32 %v3371, %v3375
      %vm3377 = vweird.f32 %v3285
      %vm3378 = vweird.f32 %v3371
      %vm3379 = vmor %vm3377, %vm3378
      %v3380 = vsel %vm3379, %v3371, %v3376
      %v3381 = vrsqrt.pop %v3286
      %v3382 = vmul.f32 %v3381, %v3286
      %v3383 = vmul.f32 %v3382, %v3381
      %v3384 = vmul.f32 0.5, %v3383
      %v3385 = vsub.f32 1.5, %v3384
      %v3386 = vmul.f32 %v3381, %v3385
      %vm3387 = vweird.f32 %v3286
      %vm3388 = vweird.f32 %v3381
      %vm3389 = vmor %vm3387, %vm3388
      %v3390 = vsel %vm3389, %v3381, %v3386
      %v3391 = vrsqrt.pop %v3287
      %v3392 = vmul.f32 %v3391, %v3287
      %v3393 = vmul.f32 %v3392, %v3391
      %v3394 = vmul.f32 0.5, %v3393
      %v3395 = vsub.f32 1.5, %v3394
      %v3396 = vmul.f32 %v3391, %v3395
      %vm3397 = vweird.f32 %v3287
      %vm3398 = vweird.f32 %v3391
      %vm3399 = vmor %vm3397, %vm3398
      %v3400 = vsel %vm3399, %v3391, %v3396
      %v3401 = vrsqrt.pop %v3288
      %v3402 = vmul.f32 %v3401, %v3288
      %v3403 = vmul.f32 %v3402, %v3401
      %v3404 = vmul.f32 0.5, %v3403
      %v3405 = vsub.f32 1.5, %v3404
      %v3406 = vmul.f32 %v3401, %v3405
      %vm3407 = vweird.f32 %v3288
      %vm3408 = vweird.f32 %v3401
      %vm3409 = vmor %vm3407, %vm3408
      %v3410 = vsel %vm3409, %v3401, %v3406
      %v3411 = vrsqrt.pop %v3289
      %v3412 = vmul.f32 %v3411, %v3289
      %v3413 = vmul.f32 %v3412, %v3411
      %v3414 = vmul.f32 0.5, %v3413
      %v3415 = vsub.f32 1.5, %v3414
      %v3416 = vmul.f32 %v3411, %v3415
      %vm3417 = vweird.f32 %v3289
      %vm3418 = vweird.f32 %v3411
      %vm3419 = vmor %vm3417, %vm3418
      %v3420 = vsel %vm3419, %v3411, %v3416
      %v3421 = vrsqrt.pop %v3290
      %v3422 = vmul.f32 %v3421, %v3290
      %v3423 = vmul.f32 %v3422, %v3421
      %v3424 = vmul.f32 0.5, %v3423
      %v3425 = vsub.f32 1.5, %v3424
      %v3426 = vmul.f32 %v3421, %v3425
      %vm3427 = vweird.f32 %v3290
      %vm3428 = vweird.f32 %v3421
      %vm3429 = vmor %vm3427, %vm3428
      %v3430 = vsel %vm3429, %v3421, %v3426
      %v3431 = vrsqrt.pop %v3291
      %v3432 = vmul.f32 %v3431, %v3291
      %v3433 = vmul.f32 %v3432, %v3431
      %v3434 = vmul.f32 0.5, %v3433
      %v3435 = vsub.f32 1.5, %v3434
      %v3436 = vmul.f32 %v3431, %v3435
      %vm3437 = vweird.f32 %v3291
      %vm3438 = vweird.f32 %v3431
      %vm3439 = vmor %vm3437, %vm3438
      %v3440 = vsel %vm3439, %v3431, %v3436
      %v3441 = vrsqrt.pop %v3292
      %v3442 = vmul.f32 %v3441, %v3292
      %v3443 = vmul.f32 %v3442, %v3441
      %v3444 = vmul.f32 0.5, %v3443
      %v3445 = vsub.f32 1.5, %v3444
      %v3446 = vmul.f32 %v3441, %v3445
      %vm3447 = vweird.f32 %v3292
      %vm3448 = vweird.f32 %v3441
      %vm3449 = vmor %vm3447, %vm3448
      %v3450 = vsel %vm3449, %v3441, %v3446
      %v3451 = vrsqrt.pop %v3293
      %v3452 = vmul.f32 %v3451, %v3293
      %v3453 = vmul.f32 %v3452, %v3451
      %v3454 = vmul.f32 0.5, %v3453
      %v3455 = vsub.f32 1.5, %v3454
      %v3456 = vmul.f32 %v3451, %v3455
      %vm3457 = vweird.f32 %v3293
      %vm3458 = vweird.f32 %v3451
      %vm3459 = vmor %vm3457, %vm3458
      %v3460 = vsel %vm3459, %v3451, %v3456
      %v3461 = vrsqrt.pop %v3294
      %v3462 = vmul.f32 %v3461, %v3294
      %v3463 = vmul.f32 %v3462, %v3461
      %v3464 = vmul.f32 0.5, %v3463
      %v3465 = vsub.f32 1.5, %v3464
      %v3466 = vmul.f32 %v3461, %v3465
      %vm3467 = vweird.f32 %v3294
      %vm3468 = vweird.f32 %v3461
      %vm3469 = vmor %vm3467, %vm3468
      %v3470 = vsel %vm3469, %v3461, %v3466
      %v3471 = vrsqrt.pop %v3295
      %v3472 = vmul.f32 %v3471, %v3295
      %v3473 = vmul.f32 %v3472, %v3471
      %v3474 = vmul.f32 0.5, %v3473
      %v3475 = vsub.f32 1.5, %v3474
      %v3476 = vmul.f32 %v3471, %v3475
      %vm3477 = vweird.f32 %v3295
      %vm3478 = vweird.f32 %v3471
      %vm3479 = vmor %vm3477, %vm3478
      %v3480 = vsel %vm3479, %v3471, %v3476
      %v3481 = vrsqrt.pop %v3296
      %v3482 = vmul.f32 %v3481, %v3296
      %v3483 = vmul.f32 %v3482, %v3481
      %v3484 = vmul.f32 0.5, %v3483
      %v3485 = vsub.f32 1.5, %v3484
      %v3486 = vmul.f32 %v3481, %v3485
      %vm3487 = vweird.f32 %v3296
      %vm3488 = vweird.f32 %v3481
      %vm3489 = vmor %vm3487, %vm3488
      %v3490 = vsel %vm3489, %v3481, %v3486
      %v3491 = vrsqrt.pop %v3297
      %v3492 = vmul.f32 %v3491, %v3297
      %v3493 = vmul.f32 %v3492, %v3491
      %v3494 = vmul.f32 0.5, %v3493
      %v3495 = vsub.f32 1.5, %v3494
      %v3496 = vmul.f32 %v3491, %v3495
      %vm3497 = vweird.f32 %v3297
      %vm3498 = vweird.f32 %v3491
      %vm3499 = vmor %vm3497, %vm3498
      %v3500 = vsel %vm3499, %v3491, %v3496
      %v3501 = vrsqrt.pop %v3298
      %v3502 = vmul.f32 %v3501, %v3298
      %v3503 = vmul.f32 %v3502, %v3501
      %v3504 = vmul.f32 0.5, %v3503
      %v3505 = vsub.f32 1.5, %v3504
      %v3506 = vmul.f32 %v3501, %v3505
      %vm3507 = vweird.f32 %v3298
      %vm3508 = vweird.f32 %v3501
      %vm3509 = vmor %vm3507, %vm3508
      %v3510 = vsel %vm3509, %v3501, %v3506
      %v3511 = vrsqrt.pop %v3299
      %v3512 = vmul.f32 %v3511, %v3299
      %v3513 = vmul.f32 %v3512, %v3511
      %v3514 = vmul.f32 0.5, %v3513
      %v3515 = vsub.f32 1.5, %v3514
      %v3516 = vmul.f32 %v3511, %v3515
      %vm3517 = vweird.f32 %v3299
      %vm3518 = vweird.f32 %v3511
      %vm3519 = vmor %vm3517, %vm3518
      %v3520 = vsel %vm3519, %v3511, %v3516
      %v3521 = vrsqrt.pop %v3300
      %v3522 = vmul.f32 %v3521, %v3300
      %v3523 = vmul.f32 %v3522, %v3521
      %v3524 = vmul.f32 0.5, %v3523
      %v3525 = vsub.f32 1.5, %v3524
      %v3526 = vmul.f32 %v3521, %v3525
      %vm3527 = vweird.f32 %v3300
      %vm3528 = vweird.f32 %v3521
      %vm3529 = vmor %vm3527, %vm3528
      %v3530 = vsel %vm3529, %v3521, %v3526
      %v3531 = vrsqrt.pop %v3301
      %v3532 = vmul.f32 %v3531, %v3301
      %v3533 = vmul.f32 %v3532, %v3531
      %v3534 = vmul.f32 0.5, %v3533
      %v3535 = vsub.f32 1.5, %v3534
      %v3536 = vmul.f32 %v3531, %v3535
      %vm3537 = vweird.f32 %v3301
      %vm3538 = vweird.f32 %v3531
      %vm3539 = vmor %vm3537, %vm3538
      %v3540 = vsel %vm3539, %v3531, %v3536
      %v3541 = vrsqrt.pop %v3302
      %v3542 = vmul.f32 %v3541, %v3302
      %v3543 = vmul.f32 %v3542, %v3541
      %v3544 = vmul.f32 0.5, %v3543
      %v3545 = vsub.f32 1.5, %v3544
      %v3546 = vmul.f32 %v3541, %v3545
      %vm3547 = vweird.f32 %v3302
      %vm3548 = vweird.f32 %v3541
      %vm3549 = vmor %vm3547, %vm3548
      %v3550 = vsel %vm3549, %v3541, %v3546
      %v3551 = vrsqrt.pop %v3303
      %v3552 = vmul.f32 %v3551, %v3303
      %v3553 = vmul.f32 %v3552, %v3551
      %v3554 = vmul.f32 0.5, %v3553
      %v3555 = vsub.f32 1.5, %v3554
      %v3556 = vmul.f32 %v3551, %v3555
      %vm3557 = vweird.f32 %v3303
      %vm3558 = vweird.f32 %v3551
      %vm3559 = vmor %vm3557, %vm3558
      %v3560 = vsel %vm3559, %v3551, %v3556
      %v3561 = vrsqrt.pop %v3304
      %v3562 = vmul.f32 %v3561, %v3304
      %v3563 = vmul.f32 %v3562, %v3561
      %v3564 = vmul.f32 0.5, %v3563
      %v3565 = vsub.f32 1.5, %v3564
      %v3566 = vmul.f32 %v3561, %v3565
      %vm3567 = vweird.f32 %v3304
      %vm3568 = vweird.f32 %v3561
      %vm3569 = vmor %vm3567, %vm3568
      %v3570 = vsel %vm3569, %v3561, %v3566
      %v3571 = vrsqrt.pop %v3305
      %v3572 = vmul.f32 %v3571, %v3305
      %v3573 = vmul.f32 %v3572, %v3571
      %v3574 = vmul.f32 0.5, %v3573
      %v3575 = vsub.f32 1.5, %v3574
      %v3576 = vmul.f32 %v3571, %v3575
      %vm3577 = vweird.f32 %v3305
      %vm3578 = vweird.f32 %v3571
      %vm3579 = vmor %vm3577, %vm3578
      %v3580 = vsel %vm3579, %v3571, %v3576
      %v3581 = vrsqrt.pop %v3306
      %v3582 = vmul.f32 %v3581, %v3306
      %v3583 = vmul.f32 %v3582, %v3581
      %v3584 = vmul.f32 0.5, %v3583
      %v3585 = vsub.f32 1.5, %v3584
      %v3586 = vmul.f32 %v3581, %v3585
      %vm3587 = vweird.f32 %v3306
      %vm3588 = vweird.f32 %v3581
      %vm3589 = vmor %vm3587, %vm3588
      %v3590 = vsel %vm3589, %v3581, %v3586
      %v3591 = vrsqrt.pop %v3307
      %v3592 = vmul.f32 %v3591, %v3307
      %v3593 = vmul.f32 %v3592, %v3591
      %v3594 = vmul.f32 0.5, %v3593
      %v3595 = vsub.f32 1.5, %v3594
      %v3596 = vmul.f32 %v3591, %v3595
      %vm3597 = vweird.f32 %v3307
      %vm3598 = vweird.f32 %v3591
      %vm3599 = vmor %vm3597, %vm3598
      %v3600 = vsel %vm3599, %v3591, %v3596
      %v3601 = vrsqrt.pop %v3308
      %v3602 = vmul.f32 %v3601, %v3308
      %v3603 = vmul.f32 %v3602, %v3601
      %v3604 = vmul.f32 0.5, %v3603
      %v3605 = vsub.f32 1.5, %v3604
      %v3606 = vmul.f32 %v3601, %v3605
      %vm3607 = vweird.f32 %v3308
      %vm3608 = vweird.f32 %v3601
      %vm3609 = vmor %vm3607, %vm3608
      %v3610 = vsel %vm3609, %v3601, %v3606
      %v3611 = vrsqrt.pop %v3309
      %v3612 = vmul.f32 %v3611, %v3309
      %v3613 = vmul.f32 %v3612, %v3611
      %v3614 = vmul.f32 0.5, %v3613
      %v3615 = vsub.f32 1.5, %v3614
      %v3616 = vmul.f32 %v3611, %v3615
      %vm3617 = vweird.f32 %v3309
      %vm3618 = vweird.f32 %v3611
      %vm3619 = vmor %vm3617, %vm3618
      %v3620 = vsel %vm3619, %v3611, %v3616
      %v3621 = vrsqrt.pop %v3310
      %v3622 = vmul.f32 %v3621, %v3310
      %v3623 = vmul.f32 %v3622, %v3621
      %v3624 = vmul.f32 0.5, %v3623
      %v3625 = vsub.f32 1.5, %v3624
      %v3626 = vmul.f32 %v3621, %v3625
      %vm3627 = vweird.f32 %v3310
      %vm3628 = vweird.f32 %v3621
      %vm3629 = vmor %vm3627, %vm3628
      %v3630 = vsel %vm3629, %v3621, %v3626
      %v3631 = vmul.f32 %v3119, %v3320
      %v3632 = vmul.f32 %v3120, %v3330
      %v3633 = vmul.f32 %v3121, %v3340
      %v3634 = vmul.f32 %v3122, %v3350
      %v3635 = vmul.f32 %v3123, %v3360
      %v3636 = vmul.f32 %v3124, %v3370
      %v3637 = vmul.f32 %v3125, %v3380
      %v3638 = vmul.f32 %v3126, %v3390
      %v3639 = vmul.f32 %v3127, %v3400
      %v3640 = vmul.f32 %v3128, %v3410
      %v3641 = vmul.f32 %v3129, %v3420
      %v3642 = vmul.f32 %v3130, %v3430
      %v3643 = vmul.f32 %v3131, %v3440
      %v3644 = vmul.f32 %v3132, %v3450
      %v3645 = vmul.f32 %v3133, %v3460
      %v3646 = vmul.f32 %v3134, %v3470
      %v3647 = vmul.f32 %v3135, %v3480
      %v3648 = vmul.f32 %v3136, %v3490
      %v3649 = vmul.f32 %v3137, %v3500
      %v3650 = vmul.f32 %v3138, %v3510
      %v3651 = vmul.f32 %v3139, %v3520
      %v3652 = vmul.f32 %v3140, %v3530
      %v3653 = vmul.f32 %v3141, %v3540
      %v3654 = vmul.f32 %v3142, %v3550
      %v3655 = vmul.f32 %v3143, %v3560
      %v3656 = vmul.f32 %v3144, %v3570
      %v3657 = vmul.f32 %v3145, %v3580
      %v3658 = vmul.f32 %v3146, %v3590
      %v3659 = vmul.f32 %v3147, %v3600
      %v3660 = vmul.f32 %v3148, %v3610
      %v3661 = vmul.f32 %v3149, %v3620
      %v3662 = vmul.f32 %v3150, %v3630
      %v3664 = vperm.slane %v2986, 0
      %v3666 = vmul.f32 %v3631, %v3664
      %v3667 = vmul.f32 %v3632, %v3664
      %v3668 = vmul.f32 %v3633, %v3664
      %v3669 = vmul.f32 %v3634, %v3664
      %v3670 = vmul.f32 %v3635, %v3664
      %v3671 = vmul.f32 %v3636, %v3664
      %v3672 = vmul.f32 %v3637, %v3664
      %v3673 = vmul.f32 %v3638, %v3664
      %v3674 = vmul.f32 %v3639, %v3664
      %v3675 = vmul.f32 %v3640, %v3664
      %v3676 = vmul.f32 %v3641, %v3664
      %v3677 = vmul.f32 %v3642, %v3664
      %v3678 = vmul.f32 %v3643, %v3664
      %v3679 = vmul.f32 %v3644, %v3664
      %v3680 = vmul.f32 %v3645, %v3664
      %v3681 = vmul.f32 %v3646, %v3664
      %v3682 = vmul.f32 %v3647, %v3664
      %v3683 = vmul.f32 %v3648, %v3664
      %v3684 = vmul.f32 %v3649, %v3664
      %v3685 = vmul.f32 %v3650, %v3664
      %v3686 = vmul.f32 %v3651, %v3664
      %v3687 = vmul.f32 %v3652, %v3664
      %v3688 = vmul.f32 %v3653, %v3664
      %v3689 = vmul.f32 %v3654, %v3664
      %v3690 = vmul.f32 %v3655, %v3664
      %v3691 = vmul.f32 %v3656, %v3664
      %v3692 = vmul.f32 %v3657, %v3664
      %v3693 = vmul.f32 %v3658, %v3664
      %v3694 = vmul.f32 %v3659, %v3664
      %v3695 = vmul.f32 %v3660, %v3664
      %v3696 = vmul.f32 %v3661, %v3664
      %v3697 = vmul.f32 %v3662, %v3664
      %v3699 = vperm.slane %v2987, 0
      %v3701 = vadd.f32 %v3666, %v3699
      %v3702 = vadd.f32 %v3667, %v3699
      %v3703 = vadd.f32 %v3668, %v3699
      %v3704 = vadd.f32 %v3669, %v3699
      %v3705 = vadd.f32 %v3670, %v3699
      %v3706 = vadd.f32 %v3671, %v3699
      %v3707 = vadd.f32 %v3672, %v3699
      %v3708 = vadd.f32 %v3673, %v3699
      %v3709 = vadd.f32 %v3674, %v3699
      %v3710 = vadd.f32 %v3675, %v3699
      %v3711 = vadd.f32 %v3676, %v3699
      %v3712 = vadd.f32 %v3677, %v3699
      %v3713 = vadd.f32 %v3678, %v3699
      %v3714 = vadd.f32 %v3679, %v3699
      %v3715 = vadd.f32 %v3680, %v3699
      %v3716 = vadd.f32 %v3681, %v3699
      %v3717 = vadd.f32 %v3682, %v3699
      %v3718 = vadd.f32 %v3683, %v3699
      %v3719 = vadd.f32 %v3684, %v3699
      %v3720 = vadd.f32 %v3685, %v3699
      %v3721 = vadd.f32 %v3686, %v3699
      %v3722 = vadd.f32 %v3687, %v3699
      %v3723 = vadd.f32 %v3688, %v3699
      %v3724 = vadd.f32 %v3689, %v3699
      %v3725 = vadd.f32 %v3690, %v3699
      %v3726 = vadd.f32 %v3691, %v3699
      %v3727 = vadd.f32 %v3692, %v3699
      %v3728 = vadd.f32 %v3693, %v3699
      %v3729 = vadd.f32 %v3694, %v3699
      %v3730 = vadd.f32 %v3695, %v3699
      %v3731 = vadd.f32 %v3696, %v3699
      %v3732 = vadd.f32 %v3697, %v3699
      %v3733 = vadd.f32 %v2173, %v3701
      %v3734 = vadd.f32 %v2174, %v3702
      %v3735 = vadd.f32 %v2175, %v3703
      %v3736 = vadd.f32 %v2176, %v3704
      %v3737 = vadd.f32 %v2177, %v3705
      %v3738 = vadd.f32 %v2178, %v3706
      %v3739 = vadd.f32 %v2179, %v3707
      %v3740 = vadd.f32 %v2180, %v3708
      %v3741 = vadd.f32 %v2181, %v3709
      %v3742 = vadd.f32 %v2182, %v3710
      %v3743 = vadd.f32 %v2183, %v3711
      %v3744 = vadd.f32 %v2184, %v3712
      %v3745 = vadd.f32 %v2185, %v3713
      %v3746 = vadd.f32 %v2186, %v3714
      %v3747 = vadd.f32 %v2187, %v3715
      %v3748 = vadd.f32 %v2188, %v3716
      %v3749 = vadd.f32 %v2189, %v3717
      %v3750 = vadd.f32 %v2190, %v3718
      %v3751 = vadd.f32 %v2191, %v3719
      %v3752 = vadd.f32 %v2192, %v3720
      %v3753 = vadd.f32 %v2193, %v3721
      %v3754 = vadd.f32 %v2194, %v3722
      %v3755 = vadd.f32 %v2195, %v3723
      %v3756 = vadd.f32 %v2196, %v3724
      %v3757 = vadd.f32 %v2197, %v3725
      %v3758 = vadd.f32 %v2198, %v3726
      %v3759 = vadd.f32 %v2199, %v3727
      %v3760 = vadd.f32 %v2200, %v3728
      %v3761 = vadd.f32 %v2201, %v3729
      %v3762 = vadd.f32 %v2202, %v3730
      %v3763 = vadd.f32 %v2203, %v3731
      %v3764 = vadd.f32 %v2204, %v3732
      %3765 = vst [vmem:[%s773] sm:$0xff] %v3733
      %3766 = vst [vmem:[%s773 + $0x8] sm:$0xff] %v3734
      %3767 = vst [vmem:[%s773 + $0x10] sm:$0xff] %v3735
      %3768 = vst [vmem:[%s773 + $0x18] sm:$0xff] %v3736
      %3769 = vst [vmem:[%s773 + $0x20] sm:$0xff] %v3737
      %3770 = vst [vmem:[%s773 + $0x28] sm:$0xff] %v3738
      %3771 = vst [vmem:[%s773 + $0x30] sm:$0xff] %v3739
      %3772 = vst [vmem:[%s773 + $0x38] sm:$0xff] %v3740
      %3773 = vst [vmem:[%s773 + $0x40] sm:$0xff] %v3741
      %3774 = vst [vmem:[%s773 + $0x48] sm:$0xff] %v3742
      %3775 = vst [vmem:[%s773 + $0x50] sm:$0xff] %v3743
      %3776 = vst [vmem:[%s773 + $0x58] sm:$0xff] %v3744
      %3777 = vst [vmem:[%s773 + $0x60] sm:$0xff] %v3745
      %3778 = vst [vmem:[%s773 + $0x68] sm:$0xff] %v3746
      %3779 = vst [vmem:[%s773 + $0x70] sm:$0xff] %v3747
      %3780 = vst [vmem:[%s773 + $0x78] sm:$0xff] %v3748
      %3781 = vst [vmem:[%s773 + $0x80] sm:$0xff] %v3749
      %3782 = vst [vmem:[%s773 + $0x88] sm:$0xff] %v3750
      %3783 = vst [vmem:[%s773 + $0x90] sm:$0xff] %v3751
      %3784 = vst [vmem:[%s773 + $0x98] sm:$0xff] %v3752
      %3785 = vst [vmem:[%s773 + $0xa0] sm:$0xff] %v3753
      %3786 = vst [vmem:[%s773 + $0xa8] sm:$0xff] %v3754
      %3787 = vst [vmem:[%s773 + $0xb0] sm:$0xff] %v3755
      %3788 = vst [vmem:[%s773 + $0xb8] sm:$0xff] %v3756
      %3789 = vst [vmem:[%s773 + $0xc0] sm:$0xff] %v3757
      %3790 = vst [vmem:[%s773 + $0xc8] sm:$0xff] %v3758
      %3791 = vst [vmem:[%s773 + $0xd0] sm:$0xff] %v3759
      %3792 = vst [vmem:[%s773 + $0xd8] sm:$0xff] %v3760
      %3793 = vst [vmem:[%s773 + $0xe0] sm:$0xff] %v3761
      %3794 = vst [vmem:[%s773 + $0xe8] sm:$0xff] %v3762
      %3795 = vst [vmem:[%s773 + $0xf0] sm:$0xff] %v3763
      %3796 = vst [vmem:[%s773 + $0xf8] sm:$0xff] %v3764
      %v3797 = vlaneseq
      %v3798 = vshrl.u32 %v3797, 7
      %v3799 = vadd.s32 %v3798, 8
      %v3800 = vadd.s32 %v3798, 16
      %v3801 = vadd.s32 %v3798, 24
      %v3802 = vadd.s32 %v3798, 32
      %v3803 = vadd.s32 %v3798, 40
      %v3804 = vadd.s32 %v3798, 48
      %v3805 = vadd.s32 %v3798, 56
      %v3806 = vadd.s32 %v3798, 64
      %v3807 = vadd.s32 %v3798, 72
      %v3808 = vadd.s32 %v3798, 80
      %v3809 = vadd.s32 %v3798, 88
      %v3810 = vadd.s32 %v3798, 96
      %v3811 = vadd.s32 %v3798, 104
      %v3812 = vadd.s32 %v3798, 112
      %v3813 = vadd.s32 %v3798, 120
      %v3814 = vadd.s32 %v3798, 128
      %v3815 = vadd.s32 %v3798, 136
      %v3816 = vadd.s32 %v3798, 144
      %v3817 = vadd.s32 %v3798, 152
      %v3818 = vadd.s32 %v3798, 160
      %v3819 = vadd.s32 %v3798, 168
      %v3820 = vadd.s32 %v3798, 176
      %v3821 = vadd.s32 %v3798, 184
      %v3822 = vadd.s32 %v3798, 192
      %v3823 = vadd.s32 %v3798, 200
      %v3824 = vadd.s32 %v3798, 208
      %v3825 = vadd.s32 %v3798, 216
      %v3826 = vadd.s32 %v3798, 224
      %v3827 = vadd.s32 %v3798, 232
      %v3828 = vadd.s32 %v3798, 240
      %v3829 = vadd.s32 %v3798, 248
      %v3830 = vadd.s32 %v3798, 256
      %v3831 = vadd.s32 %v3798, 264
      %v3832 = vadd.s32 %v3798, 272
      %v3833 = vadd.s32 %v3798, 280
      %v3834 = vadd.s32 %v3798, 288
      %v3835 = vadd.s32 %v3798, 296
      %v3836 = vadd.s32 %v3798, 304
      %v3837 = vadd.s32 %v3798, 312
      %v3838 = vadd.s32 %v3798, 320
      %v3839 = vadd.s32 %v3798, 328
      %v3840 = vadd.s32 %v3798, 336
      %v3841 = vadd.s32 %v3798, 344
      %v3842 = vadd.s32 %v3798, 352
      %v3843 = vadd.s32 %v3798, 360
      %v3844 = vadd.s32 %v3798, 368
      %v3845 = vadd.s32 %v3798, 376
      %v3846 = vld [vmem:[%s761] sm:$0x3]
      %v3847 = vperm.slane %v3846, 0
      %v3848 = vperm.slane %v3846, 1
      %vm3849 = vcmp.eq.s32.totalorder %v3798, %v3847
      %vm3850 = vcmp.eq.s32.totalorder %v3798, %v3848
      %vm3851 = vcmp.eq.s32.totalorder %v3799, %v3847
      %vm3852 = vcmp.eq.s32.totalorder %v3799, %v3848
      %vm3853 = vcmp.eq.s32.totalorder %v3800, %v3847
      %vm3854 = vcmp.eq.s32.totalorder %v3800, %v3848
      %vm3855 = vcmp.eq.s32.totalorder %v3801, %v3847
      %vm3856 = vcmp.eq.s32.totalorder %v3801, %v3848
      %vm3857 = vcmp.eq.s32.totalorder %v3802, %v3847
      %vm3858 = vcmp.eq.s32.totalorder %v3802, %v3848
      %vm3859 = vcmp.eq.s32.totalorder %v3803, %v3847
      %vm3860 = vcmp.eq.s32.totalorder %v3803, %v3848
      %vm3861 = vcmp.eq.s32.totalorder %v3804, %v3847
      %vm3862 = vcmp.eq.s32.totalorder %v3804, %v3848
      %vm3863 = vcmp.eq.s32.totalorder %v3805, %v3847
      %vm3864 = vcmp.eq.s32.totalorder %v3805, %v3848
      %vm3865 = vcmp.eq.s32.totalorder %v3806, %v3847
      %vm3866 = vcmp.eq.s32.totalorder %v3806, %v3848
      %vm3867 = vcmp.eq.s32.totalorder %v3807, %v3847
      %vm3868 = vcmp.eq.s32.totalorder %v3807, %v3848
      %vm3869 = vcmp.eq.s32.totalorder %v3808, %v3847
      %vm3870 = vcmp.eq.s32.totalorder %v3808, %v3848
      %vm3871 = vcmp.eq.s32.totalorder %v3809, %v3847
      %vm3872 = vcmp.eq.s32.totalorder %v3809, %v3848
      %vm3873 = vcmp.eq.s32.totalorder %v3810, %v3847
      %vm3874 = vcmp.eq.s32.totalorder %v3810, %v3848
      %vm3875 = vcmp.eq.s32.totalorder %v3811, %v3847
      %vm3876 = vcmp.eq.s32.totalorder %v3811, %v3848
      %vm3877 = vcmp.eq.s32.totalorder %v3812, %v3847
      %vm3878 = vcmp.eq.s32.totalorder %v3812, %v3848
      %vm3879 = vcmp.eq.s32.totalorder %v3813, %v3847
      %vm3880 = vcmp.eq.s32.totalorder %v3813, %v3848
      %vm3881 = vcmp.eq.s32.totalorder %v3814, %v3847
      %vm3882 = vcmp.eq.s32.totalorder %v3814, %v3848
      %vm3883 = vcmp.eq.s32.totalorder %v3815, %v3847
      %vm3884 = vcmp.eq.s32.totalorder %v3815, %v3848
      %vm3885 = vcmp.eq.s32.totalorder %v3816, %v3847
      %vm3886 = vcmp.eq.s32.totalorder %v3816, %v3848
      %vm3887 = vcmp.eq.s32.totalorder %v3817, %v3847
      %vm3888 = vcmp.eq.s32.totalorder %v3817, %v3848
      %vm3889 = vcmp.eq.s32.totalorder %v3818, %v3847
      %vm3890 = vcmp.eq.s32.totalorder %v3818, %v3848
      %vm3891 = vcmp.eq.s32.totalorder %v3819, %v3847
      %vm3892 = vcmp.eq.s32.totalorder %v3819, %v3848
      %vm3893 = vcmp.eq.s32.totalorder %v3820, %v3847
      %vm3894 = vcmp.eq.s32.totalorder %v3820, %v3848
      %vm3895 = vcmp.eq.s32.totalorder %v3821, %v3847
      %vm3896 = vcmp.eq.s32.totalorder %v3821, %v3848
      %vm3897 = vcmp.eq.s32.totalorder %v3822, %v3847
      %vm3898 = vcmp.eq.s32.totalorder %v3822, %v3848
      %vm3899 = vcmp.eq.s32.totalorder %v3823, %v3847
      %vm3900 = vcmp.eq.s32.totalorder %v3823, %v3848
      %vm3901 = vcmp.eq.s32.totalorder %v3824, %v3847
      %vm3902 = vcmp.eq.s32.totalorder %v3824, %v3848
      %vm3903 = vcmp.eq.s32.totalorder %v3825, %v3847
      %vm3904 = vcmp.eq.s32.totalorder %v3825, %v3848
      %vm3905 = vcmp.eq.s32.totalorder %v3826, %v3847
      %vm3906 = vcmp.eq.s32.totalorder %v3826, %v3848
      %vm3907 = vcmp.eq.s32.totalorder %v3827, %v3847
      %vm3908 = vcmp.eq.s32.totalorder %v3827, %v3848
      %vm3909 = vcmp.eq.s32.totalorder %v3828, %v3847
      %vm3910 = vcmp.eq.s32.totalorder %v3828, %v3848
      %vm3911 = vcmp.eq.s32.totalorder %v3829, %v3847
      %vm3912 = vcmp.eq.s32.totalorder %v3829, %v3848
      %vm3913 = vcmp.eq.s32.totalorder %v3830, %v3847
      %vm3914 = vcmp.eq.s32.totalorder %v3830, %v3848
      %vm3915 = vcmp.eq.s32.totalorder %v3831, %v3847
      %vm3916 = vcmp.eq.s32.totalorder %v3831, %v3848
      %vm3917 = vcmp.eq.s32.totalorder %v3832, %v3847
      %vm3918 = vcmp.eq.s32.totalorder %v3832, %v3848
      %vm3919 = vcmp.eq.s32.totalorder %v3833, %v3847
      %vm3920 = vcmp.eq.s32.totalorder %v3833, %v3848
      %vm3921 = vcmp.eq.s32.totalorder %v3834, %v3847
      %vm3922 = vcmp.eq.s32.totalorder %v3834, %v3848
      %vm3923 = vcmp.eq.s32.totalorder %v3835, %v3847
      %vm3924 = vcmp.eq.s32.totalorder %v3835, %v3848
      %vm3925 = vcmp.eq.s32.totalorder %v3836, %v3847
      %vm3926 = vcmp.eq.s32.totalorder %v3836, %v3848
      %vm3927 = vcmp.eq.s32.totalorder %v3837, %v3847
      %vm3928 = vcmp.eq.s32.totalorder %v3837, %v3848
      %vm3929 = vcmp.eq.s32.totalorder %v3838, %v3847
      %vm3930 = vcmp.eq.s32.totalorder %v3838, %v3848
      %vm3931 = vcmp.eq.s32.totalorder %v3839, %v3847
      %vm3932 = vcmp.eq.s32.totalorder %v3839, %v3848
      %vm3933 = vcmp.eq.s32.totalorder %v3840, %v3847
      %vm3934 = vcmp.eq.s32.totalorder %v3840, %v3848
      %vm3935 = vcmp.eq.s32.totalorder %v3841, %v3847
      %vm3936 = vcmp.eq.s32.totalorder %v3841, %v3848
      %vm3937 = vcmp.eq.s32.totalorder %v3842, %v3847
      %vm3938 = vcmp.eq.s32.totalorder %v3842, %v3848
      %vm3939 = vcmp.eq.s32.totalorder %v3843, %v3847
      %vm3940 = vcmp.eq.s32.totalorder %v3843, %v3848
      %vm3941 = vcmp.eq.s32.totalorder %v3844, %v3847
      %vm3942 = vcmp.eq.s32.totalorder %v3844, %v3848
      %vm3943 = vcmp.eq.s32.totalorder %v3845, %v3847
      %vm3944 = vcmp.eq.s32.totalorder %v3845, %v3848
      %v3945 = vsel %vm3849, 1.0, 0.0
      %v3946 = vsel %vm3850, 1.0, 0.0
      %v3947 = vsel %vm3851, 1.0, 0.0
      %v3948 = vsel %vm3852, 1.0, 0.0
      %v3949 = vsel %vm3853, 1.0, 0.0
      %v3950 = vsel %vm3854, 1.0, 0.0
      %v3951 = vsel %vm3855, 1.0, 0.0
      %v3952 = vsel %vm3856, 1.0, 0.0
      %v3953 = vsel %vm3857, 1.0, 0.0
      %v3954 = vsel %vm3858, 1.0, 0.0
      %v3955 = vsel %vm3859, 1.0, 0.0
      %v3956 = vsel %vm3860, 1.0, 0.0
      %v3957 = vsel %vm3861, 1.0, 0.0
      %v3958 = vsel %vm3862, 1.0, 0.0
      %v3959 = vsel %vm3863, 1.0, 0.0
      %v3960 = vsel %vm3864, 1.0, 0.0
      %v3961 = vsel %vm3865, 1.0, 0.0
      %v3962 = vsel %vm3866, 1.0, 0.0
      %v3963 = vsel %vm3867, 1.0, 0.0
      %v3964 = vsel %vm3868, 1.0, 0.0
      %v3965 = vsel %vm3869, 1.0, 0.0
      %v3966 = vsel %vm3870, 1.0, 0.0
      %v3967 = vsel %vm3871, 1.0, 0.0
      %v3968 = vsel %vm3872, 1.0, 0.0
      %v3969 = vsel %vm3873, 1.0, 0.0
      %v3970 = vsel %vm3874, 1.0, 0.0
      %v3971 = vsel %vm3875, 1.0, 0.0
      %v3972 = vsel %vm3876, 1.0, 0.0
      %v3973 = vsel %vm3877, 1.0, 0.0
      %v3974 = vsel %vm3878, 1.0, 0.0
      %v3975 = vsel %vm3879, 1.0, 0.0
      %v3976 = vsel %vm3880, 1.0, 0.0
      %v3977 = vsel %vm3881, 1.0, 0.0
      %v3978 = vsel %vm3882, 1.0, 0.0
      %v3979 = vsel %vm3883, 1.0, 0.0
      %v3980 = vsel %vm3884, 1.0, 0.0
      %v3981 = vsel %vm3885, 1.0, 0.0
      %v3982 = vsel %vm3886, 1.0, 0.0
      %v3983 = vsel %vm3887, 1.0, 0.0
      %v3984 = vsel %vm3888, 1.0, 0.0
      %v3985 = vsel %vm3889, 1.0, 0.0
      %v3986 = vsel %vm3890, 1.0, 0.0
      %v3987 = vsel %vm3891, 1.0, 0.0
      %v3988 = vsel %vm3892, 1.0, 0.0
      %v3989 = vsel %vm3893, 1.0, 0.0
      %v3990 = vsel %vm3894, 1.0, 0.0
      %v3991 = vsel %vm3895, 1.0, 0.0
      %v3992 = vsel %vm3896, 1.0, 0.0
      %v3993 = vsel %vm3897, 1.0, 0.0
      %v3994 = vsel %vm3898, 1.0, 0.0
      %v3995 = vsel %vm3899, 1.0, 0.0
      %v3996 = vsel %vm3900, 1.0, 0.0
      %v3997 = vsel %vm3901, 1.0, 0.0
      %v3998 = vsel %vm3902, 1.0, 0.0
      %v3999 = vsel %vm3903, 1.0, 0.0
      %v4000 = vsel %vm3904, 1.0, 0.0
      %v4001 = vsel %vm3905, 1.0, 0.0
      %v4002 = vsel %vm3906, 1.0, 0.0
      %v4003 = vsel %vm3907, 1.0, 0.0
      %v4004 = vsel %vm3908, 1.0, 0.0
      %v4005 = vsel %vm3909, 1.0, 0.0
      %v4006 = vsel %vm3910, 1.0, 0.0
      %v4007 = vsel %vm3911, 1.0, 0.0
      %v4008 = vsel %vm3912, 1.0, 0.0
      %v4009 = vsel %vm3913, 1.0, 0.0
      %v4010 = vsel %vm3914, 1.0, 0.0
      %v4011 = vsel %vm3915, 1.0, 0.0
      %v4012 = vsel %vm3916, 1.0, 0.0
      %v4013 = vsel %vm3917, 1.0, 0.0
      %v4014 = vsel %vm3918, 1.0, 0.0
      %v4015 = vsel %vm3919, 1.0, 0.0
      %v4016 = vsel %vm3920, 1.0, 0.0
      %v4017 = vsel %vm3921, 1.0, 0.0
      %v4018 = vsel %vm3922, 1.0, 0.0
      %v4019 = vsel %vm3923, 1.0, 0.0
      %v4020 = vsel %vm3924, 1.0, 0.0
      %v4021 = vsel %vm3925, 1.0, 0.0
      %v4022 = vsel %vm3926, 1.0, 0.0
      %v4023 = vsel %vm3927, 1.0, 0.0
      %v4024 = vsel %vm3928, 1.0, 0.0
      %v4025 = vsel %vm3929, 1.0, 0.0
      %v4026 = vsel %vm3930, 1.0, 0.0
      %v4027 = vsel %vm3931, 1.0, 0.0
      %v4028 = vsel %vm3932, 1.0, 0.0
      %v4029 = vsel %vm3933, 1.0, 0.0
      %v4030 = vsel %vm3934, 1.0, 0.0
      %v4031 = vsel %vm3935, 1.0, 0.0
      %v4032 = vsel %vm3936, 1.0, 0.0
      %v4033 = vsel %vm3937, 1.0, 0.0
      %v4034 = vsel %vm3938, 1.0, 0.0
      %v4035 = vsel %vm3939, 1.0, 0.0
      %v4036 = vsel %vm3940, 1.0, 0.0
      %v4037 = vsel %vm3941, 1.0, 0.0
      %v4038 = vsel %vm3942, 1.0, 0.0
      %v4039 = vsel %vm3943, 1.0, 0.0
      %v4040 = vsel %vm3944, 1.0, 0.0
      %v4041 = vpack.c.bf16 %v3947, %v3945
      %v4042 = vpack.c.bf16 %v3948, %v3946
      %v4043 = vpack.c.bf16 %v3951, %v3949
      %v4044 = vpack.c.bf16 %v3952, %v3950
      %v4045 = vpack.c.bf16 %v3955, %v3953
      %v4046 = vpack.c.bf16 %v3956, %v3954
      %v4047 = vpack.c.bf16 %v3959, %v3957
      %v4048 = vpack.c.bf16 %v3960, %v3958
      %v4049 = vpack.c.bf16 %v3963, %v3961
      %v4050 = vpack.c.bf16 %v3964, %v3962
      %v4051 = vpack.c.bf16 %v3967, %v3965
      %v4052 = vpack.c.bf16 %v3968, %v3966
      %v4053 = vpack.c.bf16 %v3971, %v3969
      %v4054 = vpack.c.bf16 %v3972, %v3970
      %v4055 = vpack.c.bf16 %v3975, %v3973
      %v4056 = vpack.c.bf16 %v3976, %v3974
      %v4057 = vpack.c.bf16 %v3979, %v3977
      %v4058 = vpack.c.bf16 %v3980, %v3978
      %v4059 = vpack.c.bf16 %v3983, %v3981
      %v4060 = vpack.c.bf16 %v3984, %v3982
      %v4061 = vpack.c.bf16 %v3987, %v3985
      %v4062 = vpack.c.bf16 %v3988, %v3986
      %v4063 = vpack.c.bf16 %v3991, %v3989
      %v4064 = vpack.c.bf16 %v3992, %v3990
      %v4065 = vpack.c.bf16 %v3995, %v3993
      %v4066 = vpack.c.bf16 %v3996, %v3994
      %v4067 = vpack.c.bf16 %v3999, %v3997
      %v4068 = vpack.c.bf16 %v4000, %v3998
      %v4069 = vpack.c.bf16 %v4003, %v4001
      %v4070 = vpack.c.bf16 %v4004, %v4002
      %v4071 = vpack.c.bf16 %v4007, %v4005
      %v4072 = vpack.c.bf16 %v4008, %v4006
      %v4073 = vpack.c.bf16 %v4011, %v4009
      %v4074 = vpack.c.bf16 %v4012, %v4010
      %v4075 = vpack.c.bf16 %v4015, %v4013
      %v4076 = vpack.c.bf16 %v4016, %v4014
      %v4077 = vpack.c.bf16 %v4019, %v4017
      %v4078 = vpack.c.bf16 %v4020, %v4018
      %v4079 = vpack.c.bf16 %v4023, %v4021
      %v4080 = vpack.c.bf16 %v4024, %v4022
      %v4081 = vpack.c.bf16 %v4027, %v4025
      %v4082 = vpack.c.bf16 %v4028, %v4026
      %v4083 = vpack.c.bf16 %v4031, %v4029
      %v4084 = vpack.c.bf16 %v4032, %v4030
      %v4085 = vpack.c.bf16 %v4035, %v4033
      %v4086 = vpack.c.bf16 %v4036, %v4034
      %v4087 = vpack.c.bf16 %v4039, %v4037
      %v4088 = vpack.c.bf16 %v4040, %v4038
      %v4089 = vld [vmem:[#allocation2] sm:$0xff]
      %v4090 = vld [vmem:[#allocation2 + $0x8] sm:$0xff]
      %v4091 = vld [vmem:[#allocation2 + $0x10] sm:$0xff]
      %v4092 = vld [vmem:[#allocation2 + $0x18] sm:$0xff]
      %v4093 = vld [vmem:[#allocation2 + $0x20] sm:$0xff]
      %v4094 = vld [vmem:[#allocation2 + $0x28] sm:$0xff]
      %v4095 = vld [vmem:[#allocation2 + $0x30] sm:$0xff]
      %v4096 = vld [vmem:[#allocation2 + $0x38] sm:$0xff]
      %v4097 = vld [vmem:[#allocation2 + $0x40] sm:$0xff]
      %v4098 = vld [vmem:[#allocation2 + $0x48] sm:$0xff]
      %v4099 = vld [vmem:[#allocation2 + $0x50] sm:$0xff]
      %v4100 = vld [vmem:[#allocation2 + $0x58] sm:$0xff]
      %v4101 = vld [vmem:[#allocation2 + $0x60] sm:$0xff]
      %v4102 = vld [vmem:[#allocation2 + $0x68] sm:$0xff]
      %v4103 = vld [vmem:[#allocation2 + $0x70] sm:$0xff]
      %v4104 = vld [vmem:[#allocation2 + $0x78] sm:$0xff]
      %v4105 = vld [vmem:[#allocation2 + $0x80] sm:$0xff]
      %v4106 = vld [vmem:[#allocation2 + $0x88] sm:$0xff]
      %v4107 = vld [vmem:[#allocation2 + $0x90] sm:$0xff]
      %v4108 = vld [vmem:[#allocation2 + $0x98] sm:$0xff]
      %v4109 = vld [vmem:[#allocation2 + $0xa0] sm:$0xff]
      %v4110 = vld [vmem:[#allocation2 + $0xa8] sm:$0xff]
      %v4111 = vld [vmem:[#allocation2 + $0xb0] sm:$0xff]
      %v4112 = vld [vmem:[#allocation2 + $0xb8] sm:$0xff]
      %v4113 = vld [vmem:[#allocation2 + $0xc0] sm:$0xff]
      %v4114 = vld [vmem:[#allocation2 + $0xc8] sm:$0xff]
      %v4115 = vld [vmem:[#allocation2 + $0xd0] sm:$0xff]
      %v4116 = vld [vmem:[#allocation2 + $0xd8] sm:$0xff]
      %v4117 = vld [vmem:[#allocation2 + $0xe0] sm:$0xff]
      %v4118 = vld [vmem:[#allocation2 + $0xe8] sm:$0xff]
      %v4119 = vld [vmem:[#allocation2 + $0xf0] sm:$0xff]
      %v4120 = vld [vmem:[#allocation2 + $0xf8] sm:$0xff]
      %v4121 = vld [vmem:[#allocation2 + $0x100] sm:$0xff]
      %v4122 = vld [vmem:[#allocation2 + $0x108] sm:$0xff]
      %v4123 = vld [vmem:[#allocation2 + $0x110] sm:$0xff]
      %v4124 = vld [vmem:[#allocation2 + $0x118] sm:$0xff]
      %v4125 = vld [vmem:[#allocation2 + $0x120] sm:$0xff]
      %v4126 = vld [vmem:[#allocation2 + $0x128] sm:$0xff]
      %v4127 = vld [vmem:[#allocation2 + $0x130] sm:$0xff]
      %v4128 = vld [vmem:[#allocation2 + $0x138] sm:$0xff]
      %v4129 = vld [vmem:[#allocation2 + $0x140] sm:$0xff]
      %v4130 = vld [vmem:[#allocation2 + $0x148] sm:$0xff]
      %v4131 = vld [vmem:[#allocation2 + $0x150] sm:$0xff]
      %v4132 = vld [vmem:[#allocation2 + $0x158] sm:$0xff]
      %v4133 = vld [vmem:[#allocation2 + $0x160] sm:$0xff]
      %v4134 = vld [vmem:[#allocation2 + $0x168] sm:$0xff]
      %v4135 = vld [vmem:[#allocation2 + $0x170] sm:$0xff]
      %v4136 = vld [vmem:[#allocation2 + $0x178] sm:$0xff]
      %v4137 = vpack.c.bf16 %v3734, %v3733
      %v4138 = vpack.c.bf16 %v3736, %v3735
      %v4139 = vpack.c.bf16 %v3738, %v3737
      %v4140 = vpack.c.bf16 %v3740, %v3739
      %v4141 = vpack.c.bf16 %v3742, %v3741
      %v4142 = vpack.c.bf16 %v3744, %v3743
      %v4143 = vpack.c.bf16 %v3746, %v3745
      %v4144 = vpack.c.bf16 %v3748, %v3747
      %v4145 = vpack.c.bf16 %v3750, %v3749
      %v4146 = vpack.c.bf16 %v3752, %v3751
      %v4147 = vpack.c.bf16 %v3754, %v3753
      %v4148 = vpack.c.bf16 %v3756, %v3755
      %v4149 = vpack.c.bf16 %v3758, %v3757
      %v4150 = vpack.c.bf16 %v3760, %v3759
      %v4151 = vpack.c.bf16 %v3762, %v3761
      %v4152 = vpack.c.bf16 %v3764, %v3763
      %4153 = vmatpush.bf16.msra.mxu0 %v4144
      %4154 = vmatpush.bf16.msra.mxu0 %v4143
      %4155 = vmatpush.bf16.msra.mxu0 %v4142
      %4156 = vmatpush.bf16.msra.mxu0 %v4141
      %4157 = vmatpush.bf16.msra.mxu0 %v4140
      %4158 = vmatpush.bf16.msra.mxu0 %v4139
      %4159 = vmatpush.bf16.msra.mxu0 %v4138
      %4160 = vmatpush.bf16.msra.mxu0 %v4137
      %4161 = vmatmul.bf16.gmra.mxu0 %v4041
      %v4162 = vpop.f32.mrf.mxu0
      %v4163 = vadd.f32 0.0, %v4162
      %v4164 = vpop.f32.mrf.mxu0
      %v4165 = vadd.f32 0.0, %v4164
      %4166 = vmatmul.bf16.gmra.mxu0 %v4043
      %v4167 = vpop.f32.mrf.mxu0
      %v4168 = vadd.f32 0.0, %v4167
      %v4169 = vpop.f32.mrf.mxu0
      %v4170 = vadd.f32 0.0, %v4169
      %4171 = vmatmul.bf16.gmra.mxu0 %v4045
      %v4172 = vpop.f32.mrf.mxu0
      %v4173 = vadd.f32 0.0, %v4172
      %v4174 = vpop.f32.mrf.mxu0
      %v4175 = vadd.f32 0.0, %v4174
      %4176 = vmatmul.bf16.gmra.mxu0 %v4047
      %v4177 = vpop.f32.mrf.mxu0
      %v4178 = vadd.f32 0.0, %v4177
      %v4179 = vpop.f32.mrf.mxu0
      %v4180 = vadd.f32 0.0, %v4179
      %4181 = vmatmul.bf16.gmra.mxu0 %v4049
      %v4182 = vpop.f32.mrf.mxu0
      %v4183 = vadd.f32 0.0, %v4182
      %v4184 = vpop.f32.mrf.mxu0
      %v4185 = vadd.f32 0.0, %v4184
      %4186 = vmatmul.bf16.gmra.mxu0 %v4051
      %v4187 = vpop.f32.mrf.mxu0
      %v4188 = vadd.f32 0.0, %v4187
      %v4189 = vpop.f32.mrf.mxu0
      %v4190 = vadd.f32 0.0, %v4189
      %4191 = vmatmul.bf16.gmra.mxu0 %v4053
      %v4192 = vpop.f32.mrf.mxu0
      %v4193 = vadd.f32 0.0, %v4192
      %v4194 = vpop.f32.mrf.mxu0
      %v4195 = vadd.f32 0.0, %v4194
      %4196 = vmatmul.bf16.gmra.mxu0 %v4055
      %v4197 = vpop.f32.mrf.mxu0
      %v4198 = vadd.f32 0.0, %v4197
      %v4199 = vpop.f32.mrf.mxu0
      %v4200 = vadd.f32 0.0, %v4199
      %4201 = vmatmul.bf16.gmra.mxu0 %v4057
      %v4202 = vpop.f32.mrf.mxu0
      %v4203 = vadd.f32 0.0, %v4202
      %v4204 = vpop.f32.mrf.mxu0
      %v4205 = vadd.f32 0.0, %v4204
      %4206 = vmatmul.bf16.gmra.mxu0 %v4059
      %v4207 = vpop.f32.mrf.mxu0
      %v4208 = vadd.f32 0.0, %v4207
      %v4209 = vpop.f32.mrf.mxu0
      %v4210 = vadd.f32 0.0, %v4209
      %4211 = vmatmul.bf16.gmra.mxu0 %v4061
      %v4212 = vpop.f32.mrf.mxu0
      %v4213 = vadd.f32 0.0, %v4212
      %v4214 = vpop.f32.mrf.mxu0
      %v4215 = vadd.f32 0.0, %v4214
      %4216 = vmatmul.bf16.gmra.mxu0 %v4063
      %v4217 = vpop.f32.mrf.mxu0
      %v4218 = vadd.f32 0.0, %v4217
      %v4219 = vpop.f32.mrf.mxu0
      %v4220 = vadd.f32 0.0, %v4219
      %4221 = vmatmul.bf16.gmra.mxu0 %v4065
      %v4222 = vpop.f32.mrf.mxu0
      %v4223 = vadd.f32 0.0, %v4222
      %v4224 = vpop.f32.mrf.mxu0
      %v4225 = vadd.f32 0.0, %v4224
      %4226 = vmatmul.bf16.gmra.mxu0 %v4067
      %v4227 = vpop.f32.mrf.mxu0
      %v4228 = vadd.f32 0.0, %v4227
      %v4229 = vpop.f32.mrf.mxu0
      %v4230 = vadd.f32 0.0, %v4229
      %4231 = vmatmul.bf16.gmra.mxu0 %v4069
      %v4232 = vpop.f32.mrf.mxu0
      %v4233 = vadd.f32 0.0, %v4232
      %v4234 = vpop.f32.mrf.mxu0
      %v4235 = vadd.f32 0.0, %v4234
      %4236 = vmatmul.bf16.gmra.mxu0 %v4071
      %v4237 = vpop.f32.mrf.mxu0
      %v4238 = vadd.f32 0.0, %v4237
      %v4239 = vpop.f32.mrf.mxu0
      %v4240 = vadd.f32 0.0, %v4239
      %4241 = vmatmul.bf16.gmra.mxu0 %v4073
      %v4242 = vpop.f32.mrf.mxu0
      %v4243 = vadd.f32 0.0, %v4242
      %v4244 = vpop.f32.mrf.mxu0
      %v4245 = vadd.f32 0.0, %v4244
      %4246 = vmatmul.bf16.gmra.mxu0 %v4075
      %v4247 = vpop.f32.mrf.mxu0
      %v4248 = vadd.f32 0.0, %v4247
      %v4249 = vpop.f32.mrf.mxu0
      %v4250 = vadd.f32 0.0, %v4249
      %4251 = vmatmul.bf16.gmra.mxu0 %v4077
      %v4252 = vpop.f32.mrf.mxu0
      %v4253 = vadd.f32 0.0, %v4252
      %v4254 = vpop.f32.mrf.mxu0
      %v4255 = vadd.f32 0.0, %v4254
      %4256 = vmatmul.bf16.gmra.mxu0 %v4079
      %v4257 = vpop.f32.mrf.mxu0
      %v4258 = vadd.f32 0.0, %v4257
      %v4259 = vpop.f32.mrf.mxu0
      %v4260 = vadd.f32 0.0, %v4259
      %4261 = vmatmul.bf16.gmra.mxu0 %v4081
      %v4262 = vpop.f32.mrf.mxu0
      %v4263 = vadd.f32 0.0, %v4262
      %v4264 = vpop.f32.mrf.mxu0
      %v4265 = vadd.f32 0.0, %v4264
      %4266 = vmatmul.bf16.gmra.mxu0 %v4083
      %v4267 = vpop.f32.mrf.mxu0
      %v4268 = vadd.f32 0.0, %v4267
      %v4269 = vpop.f32.mrf.mxu0
      %v4270 = vadd.f32 0.0, %v4269
      %4271 = vmatmul.bf16.gmra.mxu0 %v4085
      %v4272 = vpop.f32.mrf.mxu0
      %v4273 = vadd.f32 0.0, %v4272
      %v4274 = vpop.f32.mrf.mxu0
      %v4275 = vadd.f32 0.0, %v4274
      %4276 = vmatmul.bf16.gmra.mxu0 %v4087
      %v4277 = vpop.f32.mrf.mxu0
      %v4278 = vadd.f32 0.0, %v4277
      %v4279 = vpop.f32.mrf.mxu0
      %v4280 = vadd.f32 0.0, %v4279
      %4281 = vdwg.mxu0
      %4282 = vmatpush.bf16.msra.mxu0 %v4152
      %4283 = vmatpush.bf16.msra.mxu0 %v4151
      %4284 = vmatpush.bf16.msra.mxu0 %v4150
      %4285 = vmatpush.bf16.msra.mxu0 %v4149
      %4286 = vmatpush.bf16.msra.mxu0 %v4148
      %4287 = vmatpush.bf16.msra.mxu0 %v4147
      %4288 = vmatpush.bf16.msra.mxu0 %v4146
      %4289 = vmatpush.bf16.msra.mxu0 %v4145
      %4290 = vmatmul.bf16.gmra.mxu0 %v4042
      %v4291 = vpop.f32.mrf.mxu0
      %v4292 = vadd.f32 %v4163, %v4291
      %v4293 = vpop.f32.mrf.mxu0
      %v4294 = vadd.f32 %v4165, %v4293
      %4295 = vmatmul.bf16.gmra.mxu0 %v4044
      %v4296 = vpop.f32.mrf.mxu0
      %v4297 = vadd.f32 %v4168, %v4296
      %v4298 = vpop.f32.mrf.mxu0
      %v4299 = vadd.f32 %v4170, %v4298
      %4300 = vmatmul.bf16.gmra.mxu0 %v4046
      %v4301 = vpop.f32.mrf.mxu0
      %v4302 = vadd.f32 %v4173, %v4301
      %v4303 = vpop.f32.mrf.mxu0
      %v4304 = vadd.f32 %v4175, %v4303
      %4305 = vmatmul.bf16.gmra.mxu0 %v4048
      %v4306 = vpop.f32.mrf.mxu0
      %v4307 = vadd.f32 %v4178, %v4306
      %v4308 = vpop.f32.mrf.mxu0
      %v4309 = vadd.f32 %v4180, %v4308
      %4310 = vmatmul.bf16.gmra.mxu0 %v4050
      %v4311 = vpop.f32.mrf.mxu0
      %v4312 = vadd.f32 %v4183, %v4311
      %v4313 = vpop.f32.mrf.mxu0
      %v4314 = vadd.f32 %v4185, %v4313
      %4315 = vmatmul.bf16.gmra.mxu0 %v4052
      %v4316 = vpop.f32.mrf.mxu0
      %v4317 = vadd.f32 %v4188, %v4316
      %v4318 = vpop.f32.mrf.mxu0
      %v4319 = vadd.f32 %v4190, %v4318
      %4320 = vmatmul.bf16.gmra.mxu0 %v4054
      %v4321 = vpop.f32.mrf.mxu0
      %v4322 = vadd.f32 %v4193, %v4321
      %v4323 = vpop.f32.mrf.mxu0
      %v4324 = vadd.f32 %v4195, %v4323
      %4325 = vmatmul.bf16.gmra.mxu0 %v4056
      %v4326 = vpop.f32.mrf.mxu0
      %v4327 = vadd.f32 %v4198, %v4326
      %v4328 = vpop.f32.mrf.mxu0
      %v4329 = vadd.f32 %v4200, %v4328
      %4330 = vmatmul.bf16.gmra.mxu0 %v4058
      %v4331 = vpop.f32.mrf.mxu0
      %v4332 = vadd.f32 %v4203, %v4331
      %v4333 = vpop.f32.mrf.mxu0
      %v4334 = vadd.f32 %v4205, %v4333
      %4335 = vmatmul.bf16.gmra.mxu0 %v4060
      %v4336 = vpop.f32.mrf.mxu0
      %v4337 = vadd.f32 %v4208, %v4336
      %v4338 = vpop.f32.mrf.mxu0
      %v4339 = vadd.f32 %v4210, %v4338
      %4340 = vmatmul.bf16.gmra.mxu0 %v4062
      %v4341 = vpop.f32.mrf.mxu0
      %v4342 = vadd.f32 %v4213, %v4341
      %v4343 = vpop.f32.mrf.mxu0
      %v4344 = vadd.f32 %v4215, %v4343
      %4345 = vmatmul.bf16.gmra.mxu0 %v4064
      %v4346 = vpop.f32.mrf.mxu0
      %v4347 = vadd.f32 %v4218, %v4346
      %v4348 = vpop.f32.mrf.mxu0
      %v4349 = vadd.f32 %v4220, %v4348
      %4350 = vmatmul.bf16.gmra.mxu0 %v4066
      %v4351 = vpop.f32.mrf.mxu0
      %v4352 = vadd.f32 %v4223, %v4351
      %v4353 = vpop.f32.mrf.mxu0
      %v4354 = vadd.f32 %v4225, %v4353
      %4355 = vmatmul.bf16.gmra.mxu0 %v4068
      %v4356 = vpop.f32.mrf.mxu0
      %v4357 = vadd.f32 %v4228, %v4356
      %v4358 = vpop.f32.mrf.mxu0
      %v4359 = vadd.f32 %v4230, %v4358
      %4360 = vmatmul.bf16.gmra.mxu0 %v4070
      %v4361 = vpop.f32.mrf.mxu0
      %v4362 = vadd.f32 %v4233, %v4361
      %v4363 = vpop.f32.mrf.mxu0
      %v4364 = vadd.f32 %v4235, %v4363
      %4365 = vmatmul.bf16.gmra.mxu0 %v4072
      %v4366 = vpop.f32.mrf.mxu0
      %v4367 = vadd.f32 %v4238, %v4366
      %v4368 = vpop.f32.mrf.mxu0
      %v4369 = vadd.f32 %v4240, %v4368
      %4370 = vmatmul.bf16.gmra.mxu0 %v4074
      %v4371 = vpop.f32.mrf.mxu0
      %v4372 = vadd.f32 %v4243, %v4371
      %v4373 = vpop.f32.mrf.mxu0
      %v4374 = vadd.f32 %v4245, %v4373
      %4375 = vmatmul.bf16.gmra.mxu0 %v4076
      %v4376 = vpop.f32.mrf.mxu0
      %v4377 = vadd.f32 %v4248, %v4376
      %v4378 = vpop.f32.mrf.mxu0
      %v4379 = vadd.f32 %v4250, %v4378
      %4380 = vmatmul.bf16.gmra.mxu0 %v4078
      %v4381 = vpop.f32.mrf.mxu0
      %v4382 = vadd.f32 %v4253, %v4381
      %v4383 = vpop.f32.mrf.mxu0
      %v4384 = vadd.f32 %v4255, %v4383
      %4385 = vmatmul.bf16.gmra.mxu0 %v4080
      %v4386 = vpop.f32.mrf.mxu0
      %v4387 = vadd.f32 %v4258, %v4386
      %v4388 = vpop.f32.mrf.mxu0
      %v4389 = vadd.f32 %v4260, %v4388
      %4390 = vmatmul.bf16.gmra.mxu0 %v4082
      %v4391 = vpop.f32.mrf.mxu0
      %v4392 = vadd.f32 %v4263, %v4391
      %v4393 = vpop.f32.mrf.mxu0
      %v4394 = vadd.f32 %v4265, %v4393
      %4395 = vmatmul.bf16.gmra.mxu0 %v4084
      %v4396 = vpop.f32.mrf.mxu0
      %v4397 = vadd.f32 %v4268, %v4396
      %v4398 = vpop.f32.mrf.mxu0
      %v4399 = vadd.f32 %v4270, %v4398
      %4400 = vmatmul.bf16.gmra.mxu0 %v4086
      %v4401 = vpop.f32.mrf.mxu0
      %v4402 = vadd.f32 %v4273, %v4401
      %v4403 = vpop.f32.mrf.mxu0
      %v4404 = vadd.f32 %v4275, %v4403
      %4405 = vmatmul.bf16.gmra.mxu0 %v4088
      %v4406 = vpop.f32.mrf.mxu0
      %v4407 = vadd.f32 %v4278, %v4406
      %v4408 = vpop.f32.mrf.mxu0
      %v4409 = vadd.f32 %v4280, %v4408
      %4410 = vdwg.mxu0
      %v4411 = vadd.f32 %v4089, %v4292
      %v4412 = vadd.f32 %v4090, %v4294
      %v4413 = vadd.f32 %v4091, %v4297
      %v4414 = vadd.f32 %v4092, %v4299
      %v4415 = vadd.f32 %v4093, %v4302
      %v4416 = vadd.f32 %v4094, %v4304
      %v4417 = vadd.f32 %v4095, %v4307
      %v4418 = vadd.f32 %v4096, %v4309
      %v4419 = vadd.f32 %v4097, %v4312
      %v4420 = vadd.f32 %v4098, %v4314
      %v4421 = vadd.f32 %v4099, %v4317
      %v4422 = vadd.f32 %v4100, %v4319
      %v4423 = vadd.f32 %v4101, %v4322
      %v4424 = vadd.f32 %v4102, %v4324
      %v4425 = vadd.f32 %v4103, %v4327
      %v4426 = vadd.f32 %v4104, %v4329
      %v4427 = vadd.f32 %v4105, %v4332
      %v4428 = vadd.f32 %v4106, %v4334
      %v4429 = vadd.f32 %v4107, %v4337
      %v4430 = vadd.f32 %v4108, %v4339
      %v4431 = vadd.f32 %v4109, %v4342
      %v4432 = vadd.f32 %v4110, %v4344
      %v4433 = vadd.f32 %v4111, %v4347
      %v4434 = vadd.f32 %v4112, %v4349
      %v4435 = vadd.f32 %v4113, %v4352
      %v4436 = vadd.f32 %v4114, %v4354
      %v4437 = vadd.f32 %v4115, %v4357
      %v4438 = vadd.f32 %v4116, %v4359
      %v4439 = vadd.f32 %v4117, %v4362
      %v4440 = vadd.f32 %v4118, %v4364
      %v4441 = vadd.f32 %v4119, %v4367
      %v4442 = vadd.f32 %v4120, %v4369
      %v4443 = vadd.f32 %v4121, %v4372
      %v4444 = vadd.f32 %v4122, %v4374
      %v4445 = vadd.f32 %v4123, %v4377
      %v4446 = vadd.f32 %v4124, %v4379
      %v4447 = vadd.f32 %v4125, %v4382
      %v4448 = vadd.f32 %v4126, %v4384
      %v4449 = vadd.f32 %v4127, %v4387
      %v4450 = vadd.f32 %v4128, %v4389
      %v4451 = vadd.f32 %v4129, %v4392
      %v4452 = vadd.f32 %v4130, %v4394
      %v4453 = vadd.f32 %v4131, %v4397
      %v4454 = vadd.f32 %v4132, %v4399
      %v4455 = vadd.f32 %v4133, %v4402
      %v4456 = vadd.f32 %v4134, %v4404
      %v4457 = vadd.f32 %v4135, %v4407
      %v4458 = vadd.f32 %v4136, %v4409
      %4459 = vst [vmem:[#allocation2] sm:$0xff] %v4411
      %4460 = vst [vmem:[#allocation2 + $0x8] sm:$0xff] %v4412
      %4461 = vst [vmem:[#allocation2 + $0x10] sm:$0xff] %v4413
      %4462 = vst [vmem:[#allocation2 + $0x18] sm:$0xff] %v4414
      %4463 = vst [vmem:[#allocation2 + $0x20] sm:$0xff] %v4415
      %4464 = vst [vmem:[#allocation2 + $0x28] sm:$0xff] %v4416
      %4465 = vst [vmem:[#allocation2 + $0x30] sm:$0xff] %v4417
      %4466 = vst [vmem:[#allocation2 + $0x38] sm:$0xff] %v4418
      %4467 = vst [vmem:[#allocation2 + $0x40] sm:$0xff] %v4419
      %4468 = vst [vmem:[#allocation2 + $0x48] sm:$0xff] %v4420
      %4469 = vst [vmem:[#allocation2 + $0x50] sm:$0xff] %v4421
      %4470 = vst [vmem:[#allocation2 + $0x58] sm:$0xff] %v4422
      %4471 = vst [vmem:[#allocation2 + $0x60] sm:$0xff] %v4423
      %4472 = vst [vmem:[#allocation2 + $0x68] sm:$0xff] %v4424
      %4473 = vst [vmem:[#allocation2 + $0x70] sm:$0xff] %v4425
      %4474 = vst [vmem:[#allocation2 + $0x78] sm:$0xff] %v4426
      %4475 = vst [vmem:[#allocation2 + $0x80] sm:$0xff] %v4427
      %4476 = vst [vmem:[#allocation2 + $0x88] sm:$0xff] %v4428
      %4477 = vst [vmem:[#allocation2 + $0x90] sm:$0xff] %v4429
      %4478 = vst [vmem:[#allocation2 + $0x98] sm:$0xff] %v4430
      %4479 = vst [vmem:[#allocation2 + $0xa0] sm:$0xff] %v4431
      %4480 = vst [vmem:[#allocation2 + $0xa8] sm:$0xff] %v4432
      %4481 = vst [vmem:[#allocation2 + $0xb0] sm:$0xff] %v4433
      %4482 = vst [vmem:[#allocation2 + $0xb8] sm:$0xff] %v4434
      %4483 = vst [vmem:[#allocation2 + $0xc0] sm:$0xff] %v4435
      %4484 = vst [vmem:[#allocation2 + $0xc8] sm:$0xff] %v4436
      %4485 = vst [vmem:[#allocation2 + $0xd0] sm:$0xff] %v4437
      %4486 = vst [vmem:[#allocation2 + $0xd8] sm:$0xff] %v4438
      %4487 = vst [vmem:[#allocation2 + $0xe0] sm:$0xff] %v4439
      %4488 = vst [vmem:[#allocation2 + $0xe8] sm:$0xff] %v4440
      %4489 = vst [vmem:[#allocation2 + $0xf0] sm:$0xff] %v4441
      %4490 = vst [vmem:[#allocation2 + $0xf8] sm:$0xff] %v4442
      %4491 = vst [vmem:[#allocation2 + $0x100] sm:$0xff] %v4443
      %4492 = vst [vmem:[#allocation2 + $0x108] sm:$0xff] %v4444
      %4493 = vst [vmem:[#allocation2 + $0x110] sm:$0xff] %v4445
      %4494 = vst [vmem:[#allocation2 + $0x118] sm:$0xff] %v4446
      %4495 = vst [vmem:[#allocation2 + $0x120] sm:$0xff] %v4447
      %4496 = vst [vmem:[#allocation2 + $0x128] sm:$0xff] %v4448
      %4497 = vst [vmem:[#allocation2 + $0x130] sm:$0xff] %v4449
      %4498 = vst [vmem:[#allocation2 + $0x138] sm:$0xff] %v4450
      %4499 = vst [vmem:[#allocation2 + $0x140] sm:$0xff] %v4451
      %4500 = vst [vmem:[#allocation2 + $0x148] sm:$0xff] %v4452
      %4501 = vst [vmem:[#allocation2 + $0x150] sm:$0xff] %v4453
      %4502 = vst [vmem:[#allocation2 + $0x158] sm:$0xff] %v4454
      %4503 = vst [vmem:[#allocation2 + $0x160] sm:$0xff] %v4455
      %4504 = vst [vmem:[#allocation2 + $0x168] sm:$0xff] %v4456
      %4505 = vst [vmem:[#allocation2 + $0x170] sm:$0xff] %v4457
      %4506 = vst [vmem:[#allocation2 + $0x178] sm:$0xff] %v4458
      %p4507 = scmp.eq.s32.totalorder %s35, 3
      // Predicated region
      $region113: #{processor_forward.2} parent=107 // pred_check
        %p4508 = pneg %p4507
      $region114: #{processor_forward.2} parent=107 // pred_check_branch
        %4510 = sbr.rel (%p4508) target = $region116
      $region115: #{processor_forward.2} parent=107 // pred_region
        %v4511 = vld [vmem:[%s3] sm:$0xff]
        %v4512 = vld [vmem:[%s3 + $0x8] sm:$0xff]
        %v4513 = vld [vmem:[%s3 + $0x10] sm:$0xff]
        %v4514 = vld [vmem:[%s3 + $0x18] sm:$0xff]
        %v4515 = vld [vmem:[%s3 + $0x20] sm:$0xff]
        %v4516 = vld [vmem:[%s3 + $0x28] sm:$0xff]
        %v4517 = vld [vmem:[%s3 + $0x30] sm:$0xff]
        %v4518 = vld [vmem:[%s3 + $0x38] sm:$0xff]
        %v4519 = vld [vmem:[%s3 + $0x40] sm:$0xff]
        %v4520 = vld [vmem:[%s3 + $0x48] sm:$0xff]
        %v4521 = vld [vmem:[%s3 + $0x50] sm:$0xff]
        %v4522 = vld [vmem:[%s3 + $0x58] sm:$0xff]
        %v4523 = vld [vmem:[%s3 + $0x60] sm:$0xff]
        %v4524 = vld [vmem:[%s3 + $0x68] sm:$0xff]
        %v4525 = vld [vmem:[%s3 + $0x70] sm:$0xff]
        %v4526 = vld [vmem:[%s3 + $0x78] sm:$0xff]
        %v4527 = vld [vmem:[%s3 + $0x80] sm:$0xff]
        %v4528 = vld [vmem:[%s3 + $0x88] sm:$0xff]
        %v4529 = vld [vmem:[%s3 + $0x90] sm:$0xff]
        %v4530 = vld [vmem:[%s3 + $0x98] sm:$0xff]
        %v4531 = vld [vmem:[%s3 + $0xa0] sm:$0xff]
        %v4532 = vld [vmem:[%s3 + $0xa8] sm:$0xff]
        %v4533 = vld [vmem:[%s3 + $0xb0] sm:$0xff]
        %v4534 = vld [vmem:[%s3 + $0xb8] sm:$0xff]
        %v4535 = vld [vmem:[%s3 + $0xc0] sm:$0xff]
        %v4536 = vld [vmem:[%s3 + $0xc8] sm:$0xff]
        %v4537 = vld [vmem:[%s3 + $0xd0] sm:$0xff]
        %v4538 = vld [vmem:[%s3 + $0xd8] sm:$0xff]
        %v4539 = vld [vmem:[%s3 + $0xe0] sm:$0xff]
        %v4540 = vld [vmem:[%s3 + $0xe8] sm:$0xff]
        %v4541 = vld [vmem:[%s3 + $0xf0] sm:$0xff]
        %v4542 = vld [vmem:[%s3 + $0xf8] sm:$0xff]
        %v4543 = vld [vmem:[%s3 + $0x100] sm:$0xff]
        %v4544 = vld [vmem:[%s3 + $0x108] sm:$0xff]
        %v4545 = vld [vmem:[%s3 + $0x110] sm:$0xff]
        %v4546 = vld [vmem:[%s3 + $0x118] sm:$0xff]
        %v4547 = vld [vmem:[%s3 + $0x120] sm:$0xff]
        %v4548 = vld [vmem:[%s3 + $0x128] sm:$0xff]
        %v4549 = vld [vmem:[%s3 + $0x130] sm:$0xff]
        %v4550 = vld [vmem:[%s3 + $0x138] sm:$0xff]
        %v4551 = vld [vmem:[%s3 + $0x140] sm:$0xff]
        %v4552 = vld [vmem:[%s3 + $0x148] sm:$0xff]
        %v4553 = vld [vmem:[%s3 + $0x150] sm:$0xff]
        %v4554 = vld [vmem:[%s3 + $0x158] sm:$0xff]
        %v4555 = vld [vmem:[%s3 + $0x160] sm:$0xff]
        %v4556 = vld [vmem:[%s3 + $0x168] sm:$0xff]
        %v4557 = vld [vmem:[%s3 + $0x170] sm:$0xff]
        %v4558 = vld [vmem:[%s3 + $0x178] sm:$0xff]
        %v4559 = vld [vmem:[%s14] sm:$0xf]
        %v4560 = vld [vmem:[%s14 + $0x4] sm:$0xf]
        %v4561 = vld [vmem:[%s14 + $0x8] sm:$0xf]
        %v4562 = vld [vmem:[%s14 + $0xc] sm:$0xf]
        %v4563 = vld [vmem:[%s14 + $0x10] sm:$0xf]
        %v4564 = vld [vmem:[%s14 + $0x14] sm:$0xf]
        %v4565 = vld [vmem:[%s14 + $0x18] sm:$0xf]
        %v4566 = vld [vmem:[%s14 + $0x1c] sm:$0xf]
        %v4567 = vld [vmem:[%s14 + $0x20] sm:$0xf]
        %v4568 = vld [vmem:[%s14 + $0x24] sm:$0xf]
        %v4569 = vld [vmem:[%s14 + $0x28] sm:$0xf]
        %v4570 = vld [vmem:[%s14 + $0x2c] sm:$0xf]
        %v4571 = vld [vmem:[%s14 + $0x30] sm:$0xf]
        %v4572 = vld [vmem:[%s14 + $0x34] sm:$0xf]
        %v4573 = vld [vmem:[%s14 + $0x38] sm:$0xf]
        %v4574 = vld [vmem:[%s14 + $0x3c] sm:$0xf]
        %v4575 = vld [vmem:[#allocation2] sm:$0xff]
        %v4576 = vld [vmem:[#allocation2 + $0x8] sm:$0xff]
        %v4577 = vld [vmem:[#allocation2 + $0x10] sm:$0xff]
        %v4578 = vld [vmem:[#allocation2 + $0x18] sm:$0xff]
        %v4579 = vld [vmem:[#allocation2 + $0x20] sm:$0xff]
        %v4580 = vld [vmem:[#allocation2 + $0x28] sm:$0xff]
        %v4581 = vld [vmem:[#allocation2 + $0x30] sm:$0xff]
        %v4582 = vld [vmem:[#allocation2 + $0x38] sm:$0xff]
        %v4583 = vld [vmem:[#allocation2 + $0x40] sm:$0xff]
        %v4584 = vld [vmem:[#allocation2 + $0x48] sm:$0xff]
        %v4585 = vld [vmem:[#allocation2 + $0x50] sm:$0xff]
        %v4586 = vld [vmem:[#allocation2 + $0x58] sm:$0xff]
        %v4587 = vld [vmem:[#allocation2 + $0x60] sm:$0xff]
        %v4588 = vld [vmem:[#allocation2 + $0x68] sm:$0xff]
        %v4589 = vld [vmem:[#allocation2 + $0x70] sm:$0xff]
        %v4590 = vld [vmem:[#allocation2 + $0x78] sm:$0xff]
        %v4591 = vld [vmem:[#allocation2 + $0x80] sm:$0xff]
        %v4592 = vld [vmem:[#allocation2 + $0x88] sm:$0xff]
        %v4593 = vld [vmem:[#allocation2 + $0x90] sm:$0xff]
        %v4594 = vld [vmem:[#allocation2 + $0x98] sm:$0xff]
        %v4595 = vld [vmem:[#allocation2 + $0xa0] sm:$0xff]
        %v4596 = vld [vmem:[#allocation2 + $0xa8] sm:$0xff]
        %v4597 = vld [vmem:[#allocation2 + $0xb0] sm:$0xff]
        %v4598 = vld [vmem:[#allocation2 + $0xb8] sm:$0xff]
        %v4599 = vld [vmem:[#allocation2 + $0xc0] sm:$0xff]
        %v4600 = vld [vmem:[#allocation2 + $0xc8] sm:$0xff]
        %v4601 = vld [vmem:[#allocation2 + $0xd0] sm:$0xff]
        %v4602 = vld [vmem:[#allocation2 + $0xd8] sm:$0xff]
        %v4603 = vld [vmem:[#allocation2 + $0xe0] sm:$0xff]
        %v4604 = vld [vmem:[#allocation2 + $0xe8] sm:$0xff]
        %v4605 = vld [vmem:[#allocation2 + $0xf0] sm:$0xff]
        %v4606 = vld [vmem:[#allocation2 + $0xf8] sm:$0xff]
        %v4607 = vld [vmem:[#allocation2 + $0x100] sm:$0xff]
        %v4608 = vld [vmem:[#allocation2 + $0x108] sm:$0xff]
        %v4609 = vld [vmem:[#allocation2 + $0x110] sm:$0xff]
        %v4610 = vld [vmem:[#allocation2 + $0x118] sm:$0xff]
        %v4611 = vld [vmem:[#allocation2 + $0x120] sm:$0xff]
        %v4612 = vld [vmem:[#allocation2 + $0x128] sm:$0xff]
        %v4613 = vld [vmem:[#allocation2 + $0x130] sm:$0xff]
        %v4614 = vld [vmem:[#allocation2 + $0x138] sm:$0xff]
        %v4615 = vld [vmem:[#allocation2 + $0x140] sm:$0xff]
        %v4616 = vld [vmem:[#allocation2 + $0x148] sm:$0xff]
        %v4617 = vld [vmem:[#allocation2 + $0x150] sm:$0xff]
        %v4618 = vld [vmem:[#allocation2 + $0x158] sm:$0xff]
        %v4619 = vld [vmem:[#allocation2 + $0x160] sm:$0xff]
        %v4620 = vld [vmem:[#allocation2 + $0x168] sm:$0xff]
        %v4621 = vld [vmem:[#allocation2 + $0x170] sm:$0xff]
        %v4622 = vld [vmem:[#allocation2 + $0x178] sm:$0xff]
        %v4623 = vpack.c.bf16 %v4576, %v4575
        %v4624 = vpack.c.bf16 %v4578, %v4577
        %v4625 = vpack.c.bf16 %v4580, %v4579
        %v4626 = vpack.c.bf16 %v4582, %v4581
        %v4627 = vpack.c.bf16 %v4584, %v4583
        %v4628 = vpack.c.bf16 %v4586, %v4585
        %v4629 = vpack.c.bf16 %v4588, %v4587
        %v4630 = vpack.c.bf16 %v4590, %v4589
        %v4631 = vpack.c.bf16 %v4592, %v4591
        %v4632 = vpack.c.bf16 %v4594, %v4593
        %v4633 = vpack.c.bf16 %v4596, %v4595
        %v4634 = vpack.c.bf16 %v4598, %v4597
        %v4635 = vpack.c.bf16 %v4600, %v4599
        %v4636 = vpack.c.bf16 %v4602, %v4601
        %v4637 = vpack.c.bf16 %v4604, %v4603
        %v4638 = vpack.c.bf16 %v4606, %v4605
        %v4639 = vpack.c.bf16 %v4608, %v4607
        %v4640 = vpack.c.bf16 %v4610, %v4609
        %v4641 = vpack.c.bf16 %v4612, %v4611
        %v4642 = vpack.c.bf16 %v4614, %v4613
        %v4643 = vpack.c.bf16 %v4616, %v4615
        %v4644 = vpack.c.bf16 %v4618, %v4617
        %v4645 = vpack.c.bf16 %v4620, %v4619
        %v4646 = vpack.c.bf16 %v4622, %v4621
        %v4647 = vld [vmem:[%s15] sm:$0xf]
        %v4648 = vld [vmem:[%s15 + $0x4] sm:$0xf]
        %v4649 = vld [vmem:[%s15 + $0x8] sm:$0xf]
        %v4650 = vld [vmem:[%s15 + $0xc] sm:$0xf]
        %v4651 = vld [vmem:[%s15 + $0x10] sm:$0xf]
        %v4652 = vld [vmem:[%s15 + $0x14] sm:$0xf]
        %v4653 = vld [vmem:[%s15 + $0x18] sm:$0xf]
        %v4654 = vld [vmem:[%s15 + $0x1c] sm:$0xf]
        %v4655 = vld [vmem:[%s15 + $0x20] sm:$0xf]
        %v4656 = vld [vmem:[%s15 + $0x24] sm:$0xf]
        %v4657 = vld [vmem:[%s15 + $0x28] sm:$0xf]
        %v4658 = vld [vmem:[%s15 + $0x2c] sm:$0xf]
        %v4659 = vld [vmem:[%s15 + $0x30] sm:$0xf]
        %v4660 = vld [vmem:[%s15 + $0x34] sm:$0xf]
        %v4661 = vld [vmem:[%s15 + $0x38] sm:$0xf]
        %v4662 = vld [vmem:[%s15 + $0x3c] sm:$0xf]
        %v4679 = vunpack.c.l.b16 %v4647
        %v4680 = vunpack.c.l.b16 %v4648
        %v4681 = vunpack.c.l.b16 %v4649
        %v4682 = vunpack.c.l.b16 %v4650
        %v4683 = vunpack.c.l.b16 %v4651
        %v4684 = vunpack.c.l.b16 %v4652
        %v4685 = vunpack.c.l.b16 %v4653
        %v4686 = vunpack.c.l.b16 %v4654
        %v4687 = vunpack.c.l.b16 %v4655
        %v4688 = vunpack.c.l.b16 %v4656
        %v4689 = vunpack.c.l.b16 %v4657
        %v4690 = vunpack.c.l.b16 %v4658
        %v4691 = vunpack.c.l.b16 %v4659
        %v4692 = vunpack.c.l.b16 %v4660
        %v4693 = vunpack.c.l.b16 %v4661
        %v4694 = vunpack.c.l.b16 %v4662
        %v4695 = vpack.c.b16 %v4680, %v4679
        %v4696 = vpack.c.b16 %v4682, %v4681
        %v4697 = vpack.c.b16 %v4684, %v4683
        %v4698 = vpack.c.b16 %v4686, %v4685
        %v4699 = vpack.c.b16 %v4688, %v4687
        %v4700 = vpack.c.b16 %v4690, %v4689
        %v4701 = vpack.c.b16 %v4692, %v4691
        %v4702 = vpack.c.b16 %v4694, %v4693
        %4711 = vmatpush.bf16.msra.mxu0 %v4702
        %4712 = vmatpush.bf16.msra.mxu0 %v4701
        %4713 = vmatpush.bf16.msra.mxu0 %v4700
        %4714 = vmatpush.bf16.msra.mxu0 %v4699
        %4715 = vmatpush.bf16.msra.mxu0 %v4698
        %4716 = vmatpush.bf16.msra.mxu0 %v4697
        %4717 = vmatpush.bf16.msra.mxu0 %v4696
        %4718 = vmatpush.bf16.msra.mxu0 %v4695
        %4719 = vmatmul.bf16.gmra.mxu0 %v4623
        %v4720 = vpop.f32.mrf.mxu0
        %v4721 = vadd.f32 0.0, %v4720
        %v4722 = vpop.f32.mrf.mxu0
        %v4723 = vadd.f32 0.0, %v4722
        %4724 = vmatmul.bf16.gmra.mxu0 %v4624
        %v4725 = vpop.f32.mrf.mxu0
        %v4726 = vadd.f32 0.0, %v4725
        %v4727 = vpop.f32.mrf.mxu0
        %v4728 = vadd.f32 0.0, %v4727
        %4729 = vmatmul.bf16.gmra.mxu0 %v4625
        %v4730 = vpop.f32.mrf.mxu0
        %v4731 = vadd.f32 0.0, %v4730
        %v4732 = vpop.f32.mrf.mxu0
        %v4733 = vadd.f32 0.0, %v4732
        %4734 = vmatmul.bf16.gmra.mxu0 %v4626
        %v4735 = vpop.f32.mrf.mxu0
        %v4736 = vadd.f32 0.0, %v4735
        %v4737 = vpop.f32.mrf.mxu0
        %v4738 = vadd.f32 0.0, %v4737
        %4739 = vmatmul.bf16.gmra.mxu0 %v4627
        %v4740 = vpop.f32.mrf.mxu0
        %v4741 = vadd.f32 0.0, %v4740
        %v4742 = vpop.f32.mrf.mxu0
        %v4743 = vadd.f32 0.0, %v4742
        %4744 = vmatmul.bf16.gmra.mxu0 %v4628
        %v4745 = vpop.f32.mrf.mxu0
        %v4746 = vadd.f32 0.0, %v4745
        %v4747 = vpop.f32.mrf.mxu0
        %v4748 = vadd.f32 0.0, %v4747
        %4749 = vmatmul.bf16.gmra.mxu0 %v4629
        %v4750 = vpop.f32.mrf.mxu0
        %v4751 = vadd.f32 0.0, %v4750
        %v4752 = vpop.f32.mrf.mxu0
        %v4753 = vadd.f32 0.0, %v4752
        %4754 = vmatmul.bf16.gmra.mxu0 %v4630
        %v4755 = vpop.f32.mrf.mxu0
        %v4756 = vadd.f32 0.0, %v4755
        %v4757 = vpop.f32.mrf.mxu0
        %v4758 = vadd.f32 0.0, %v4757
        %4759 = vmatmul.bf16.gmra.mxu0 %v4631
        %v4760 = vpop.f32.mrf.mxu0
        %v4761 = vadd.f32 0.0, %v4760
        %v4762 = vpop.f32.mrf.mxu0
        %v4763 = vadd.f32 0.0, %v4762
        %4764 = vmatmul.bf16.gmra.mxu0 %v4632
        %v4765 = vpop.f32.mrf.mxu0
        %v4766 = vadd.f32 0.0, %v4765
        %v4767 = vpop.f32.mrf.mxu0
        %v4768 = vadd.f32 0.0, %v4767
        %4769 = vmatmul.bf16.gmra.mxu0 %v4633
        %v4770 = vpop.f32.mrf.mxu0
        %v4771 = vadd.f32 0.0, %v4770
        %v4772 = vpop.f32.mrf.mxu0
        %v4773 = vadd.f32 0.0, %v4772
        %4774 = vmatmul.bf16.gmra.mxu0 %v4634
        %v4775 = vpop.f32.mrf.mxu0
        %v4776 = vadd.f32 0.0, %v4775
        %v4777 = vpop.f32.mrf.mxu0
        %v4778 = vadd.f32 0.0, %v4777
        %4779 = vmatmul.bf16.gmra.mxu0 %v4635
        %v4780 = vpop.f32.mrf.mxu0
        %v4781 = vadd.f32 0.0, %v4780
        %v4782 = vpop.f32.mrf.mxu0
        %v4783 = vadd.f32 0.0, %v4782
        %4784 = vmatmul.bf16.gmra.mxu0 %v4636
        %v4785 = vpop.f32.mrf.mxu0
        %v4786 = vadd.f32 0.0, %v4785
        %v4787 = vpop.f32.mrf.mxu0
        %v4788 = vadd.f32 0.0, %v4787
        %4789 = vmatmul.bf16.gmra.mxu0 %v4637
        %v4790 = vpop.f32.mrf.mxu0
        %v4791 = vadd.f32 0.0, %v4790
        %v4792 = vpop.f32.mrf.mxu0
        %v4793 = vadd.f32 0.0, %v4792
        %4794 = vmatmul.bf16.gmra.mxu0 %v4638
        %v4795 = vpop.f32.mrf.mxu0
        %v4796 = vadd.f32 0.0, %v4795
        %v4797 = vpop.f32.mrf.mxu0
        %v4798 = vadd.f32 0.0, %v4797
        %4799 = vmatmul.bf16.gmra.mxu0 %v4639
        %v4800 = vpop.f32.mrf.mxu0
        %v4801 = vadd.f32 0.0, %v4800
        %v4802 = vpop.f32.mrf.mxu0
        %v4803 = vadd.f32 0.0, %v4802
        %4804 = vmatmul.bf16.gmra.mxu0 %v4640
        %v4805 = vpop.f32.mrf.mxu0
        %v4806 = vadd.f32 0.0, %v4805
        %v4807 = vpop.f32.mrf.mxu0
        %v4808 = vadd.f32 0.0, %v4807
        %4809 = vmatmul.bf16.gmra.mxu0 %v4641
        %v4810 = vpop.f32.mrf.mxu0
        %v4811 = vadd.f32 0.0, %v4810
        %v4812 = vpop.f32.mrf.mxu0
        %v4813 = vadd.f32 0.0, %v4812
        %4814 = vmatmul.bf16.gmra.mxu0 %v4642
        %v4815 = vpop.f32.mrf.mxu0
        %v4816 = vadd.f32 0.0, %v4815
        %v4817 = vpop.f32.mrf.mxu0
        %v4818 = vadd.f32 0.0, %v4817
        %4819 = vmatmul.bf16.gmra.mxu0 %v4643
        %v4820 = vpop.f32.mrf.mxu0
        %v4821 = vadd.f32 0.0, %v4820
        %v4822 = vpop.f32.mrf.mxu0
        %v4823 = vadd.f32 0.0, %v4822
        %4824 = vmatmul.bf16.gmra.mxu0 %v4644
        %v4825 = vpop.f32.mrf.mxu0
        %v4826 = vadd.f32 0.0, %v4825
        %v4827 = vpop.f32.mrf.mxu0
        %v4828 = vadd.f32 0.0, %v4827
        %4829 = vmatmul.bf16.gmra.mxu0 %v4645
        %v4830 = vpop.f32.mrf.mxu0
        %v4831 = vadd.f32 0.0, %v4830
        %v4832 = vpop.f32.mrf.mxu0
        %v4833 = vadd.f32 0.0, %v4832
        %4834 = vmatmul.bf16.gmra.mxu0 %v4646
        %v4835 = vpop.f32.mrf.mxu0
        %v4836 = vadd.f32 0.0, %v4835
        %v4837 = vpop.f32.mrf.mxu0
        %v4838 = vadd.f32 0.0, %v4837
        %4839 = vdwg.mxu0
        %v4856 = vunpack.c.l.b16 %v4559
        %v4857 = vunpack.c.l.b16 %v4560
        %v4858 = vunpack.c.l.b16 %v4561
        %v4859 = vunpack.c.l.b16 %v4562
        %v4860 = vunpack.c.l.b16 %v4563
        %v4861 = vunpack.c.l.b16 %v4564
        %v4862 = vunpack.c.l.b16 %v4565
        %v4863 = vunpack.c.l.b16 %v4566
        %v4864 = vunpack.c.l.b16 %v4567
        %v4865 = vunpack.c.l.b16 %v4568
        %v4866 = vunpack.c.l.b16 %v4569
        %v4867 = vunpack.c.l.b16 %v4570
        %v4868 = vunpack.c.l.b16 %v4571
        %v4869 = vunpack.c.l.b16 %v4572
        %v4870 = vunpack.c.l.b16 %v4573
        %v4871 = vunpack.c.l.b16 %v4574
        %v4872 = vpack.c.b16 %v4857, %v4856
        %v4873 = vpack.c.b16 %v4859, %v4858
        %v4874 = vpack.c.b16 %v4861, %v4860
        %v4875 = vpack.c.b16 %v4863, %v4862
        %v4876 = vpack.c.b16 %v4865, %v4864
        %v4877 = vpack.c.b16 %v4867, %v4866
        %v4878 = vpack.c.b16 %v4869, %v4868
        %v4879 = vpack.c.b16 %v4871, %v4870
        %4888 = vmatpush.bf16.msra.mxu0 %v4879
        %4889 = vmatpush.bf16.msra.mxu0 %v4878
        %4890 = vmatpush.bf16.msra.mxu0 %v4877
        %4891 = vmatpush.bf16.msra.mxu0 %v4876
        %4892 = vmatpush.bf16.msra.mxu0 %v4875
        %4893 = vmatpush.bf16.msra.mxu0 %v4874
        %4894 = vmatpush.bf16.msra.mxu0 %v4873
        %4895 = vmatpush.bf16.msra.mxu0 %v4872
        %4896 = vmatmul.bf16.gmra.mxu0 %v875
        %v4897 = vpop.f32.mrf.mxu0
        %v4898 = vadd.f32 %v4721, %v4897
        %v4899 = vpop.f32.mrf.mxu0
        %v4900 = vadd.f32 %v4723, %v4899
        %4901 = vmatmul.bf16.gmra.mxu0 %v876
        %v4902 = vpop.f32.mrf.mxu0
        %v4903 = vadd.f32 %v4726, %v4902
        %v4904 = vpop.f32.mrf.mxu0
        %v4905 = vadd.f32 %v4728, %v4904
        %4906 = vmatmul.bf16.gmra.mxu0 %v877
        %v4907 = vpop.f32.mrf.mxu0
        %v4908 = vadd.f32 %v4731, %v4907
        %v4909 = vpop.f32.mrf.mxu0
        %v4910 = vadd.f32 %v4733, %v4909
        %4911 = vmatmul.bf16.gmra.mxu0 %v878
        %v4912 = vpop.f32.mrf.mxu0
        %v4913 = vadd.f32 %v4736, %v4912
        %v4914 = vpop.f32.mrf.mxu0
        %v4915 = vadd.f32 %v4738, %v4914
        %4916 = vmatmul.bf16.gmra.mxu0 %v879
        %v4917 = vpop.f32.mrf.mxu0
        %v4918 = vadd.f32 %v4741, %v4917
        %v4919 = vpop.f32.mrf.mxu0
        %v4920 = vadd.f32 %v4743, %v4919
        %4921 = vmatmul.bf16.gmra.mxu0 %v880
        %v4922 = vpop.f32.mrf.mxu0
        %v4923 = vadd.f32 %v4746, %v4922
        %v4924 = vpop.f32.mrf.mxu0
        %v4925 = vadd.f32 %v4748, %v4924
        %4926 = vmatmul.bf16.gmra.mxu0 %v881
        %v4927 = vpop.f32.mrf.mxu0
        %v4928 = vadd.f32 %v4751, %v4927
        %v4929 = vpop.f32.mrf.mxu0
        %v4930 = vadd.f32 %v4753, %v4929
        %4931 = vmatmul.bf16.gmra.mxu0 %v882
        %v4932 = vpop.f32.mrf.mxu0
        %v4933 = vadd.f32 %v4756, %v4932
        %v4934 = vpop.f32.mrf.mxu0
        %v4935 = vadd.f32 %v4758, %v4934
        %4936 = vmatmul.bf16.gmra.mxu0 %v883
        %v4937 = vpop.f32.mrf.mxu0
        %v4938 = vadd.f32 %v4761, %v4937
        %v4939 = vpop.f32.mrf.mxu0
        %v4940 = vadd.f32 %v4763, %v4939
        %4941 = vmatmul.bf16.gmra.mxu0 %v884
        %v4942 = vpop.f32.mrf.mxu0
        %v4943 = vadd.f32 %v4766, %v4942
        %v4944 = vpop.f32.mrf.mxu0
        %v4945 = vadd.f32 %v4768, %v4944
        %4946 = vmatmul.bf16.gmra.mxu0 %v885
        %v4947 = vpop.f32.mrf.mxu0
        %v4948 = vadd.f32 %v4771, %v4947
        %v4949 = vpop.f32.mrf.mxu0
        %v4950 = vadd.f32 %v4773, %v4949
        %4951 = vmatmul.bf16.gmra.mxu0 %v886
        %v4952 = vpop.f32.mrf.mxu0
        %v4953 = vadd.f32 %v4776, %v4952
        %v4954 = vpop.f32.mrf.mxu0
        %v4955 = vadd.f32 %v4778, %v4954
        %4956 = vmatmul.bf16.gmra.mxu0 %v887
        %v4957 = vpop.f32.mrf.mxu0
        %v4958 = vadd.f32 %v4781, %v4957
        %v4959 = vpop.f32.mrf.mxu0
        %v4960 = vadd.f32 %v4783, %v4959
        %4961 = vmatmul.bf16.gmra.mxu0 %v888
        %v4962 = vpop.f32.mrf.mxu0
        %v4963 = vadd.f32 %v4786, %v4962
        %v4964 = vpop.f32.mrf.mxu0
        %v4965 = vadd.f32 %v4788, %v4964
        %4966 = vmatmul.bf16.gmra.mxu0 %v889
        %v4967 = vpop.f32.mrf.mxu0
        %v4968 = vadd.f32 %v4791, %v4967
        %v4969 = vpop.f32.mrf.mxu0
        %v4970 = vadd.f32 %v4793, %v4969
        %4971 = vmatmul.bf16.gmra.mxu0 %v890
        %v4972 = vpop.f32.mrf.mxu0
        %v4973 = vadd.f32 %v4796, %v4972
        %v4974 = vpop.f32.mrf.mxu0
        %v4975 = vadd.f32 %v4798, %v4974
        %4976 = vmatmul.bf16.gmra.mxu0 %v891
        %v4977 = vpop.f32.mrf.mxu0
        %v4978 = vadd.f32 %v4801, %v4977
        %v4979 = vpop.f32.mrf.mxu0
        %v4980 = vadd.f32 %v4803, %v4979
        %4981 = vmatmul.bf16.gmra.mxu0 %v892
        %v4982 = vpop.f32.mrf.mxu0
        %v4983 = vadd.f32 %v4806, %v4982
        %v4984 = vpop.f32.mrf.mxu0
        %v4985 = vadd.f32 %v4808, %v4984
        %4986 = vmatmul.bf16.gmra.mxu0 %v893
        %v4987 = vpop.f32.mrf.mxu0
        %v4988 = vadd.f32 %v4811, %v4987
        %v4989 = vpop.f32.mrf.mxu0
        %v4990 = vadd.f32 %v4813, %v4989
        %4991 = vmatmul.bf16.gmra.mxu0 %v894
        %v4992 = vpop.f32.mrf.mxu0
        %v4993 = vadd.f32 %v4816, %v4992
        %v4994 = vpop.f32.mrf.mxu0
        %v4995 = vadd.f32 %v4818, %v4994
        %4996 = vmatmul.bf16.gmra.mxu0 %v895
        %v4997 = vpop.f32.mrf.mxu0
        %v4998 = vadd.f32 %v4821, %v4997
        %v4999 = vpop.f32.mrf.mxu0
        %v5000 = vadd.f32 %v4823, %v4999
        %5001 = vmatmul.bf16.gmra.mxu0 %v896
        %v5002 = vpop.f32.mrf.mxu0
        %v5003 = vadd.f32 %v4826, %v5002
        %v5004 = vpop.f32.mrf.mxu0
        %v5005 = vadd.f32 %v4828, %v5004
        %5006 = vmatmul.bf16.gmra.mxu0 %v897
        %v5007 = vpop.f32.mrf.mxu0
        %v5008 = vadd.f32 %v4831, %v5007
        %v5009 = vpop.f32.mrf.mxu0
        %v5010 = vadd.f32 %v4833, %v5009
        %5011 = vmatmul.bf16.gmra.mxu0 %v898
        %v5012 = vpop.f32.mrf.mxu0
        %v5013 = vadd.f32 %v4836, %v5012
        %v5014 = vpop.f32.mrf.mxu0
        %v5015 = vadd.f32 %v4838, %v5014
        %5016 = vdwg.mxu0
        %v5017 = vld [vmem:[%s16] sm:$0x1]
        %v5019 = vperm.slane %v5017, 0
        %v5021 = vadd.f32 %v4898, %v5019
        %v5022 = vadd.f32 %v4900, %v5019
        %v5023 = vadd.f32 %v4903, %v5019
        %v5024 = vadd.f32 %v4905, %v5019
        %v5025 = vadd.f32 %v4908, %v5019
        %v5026 = vadd.f32 %v4910, %v5019
        %v5027 = vadd.f32 %v4913, %v5019
        %v5028 = vadd.f32 %v4915, %v5019
        %v5029 = vadd.f32 %v4918, %v5019
        %v5030 = vadd.f32 %v4920, %v5019
        %v5031 = vadd.f32 %v4923, %v5019
        %v5032 = vadd.f32 %v4925, %v5019
        %v5033 = vadd.f32 %v4928, %v5019
        %v5034 = vadd.f32 %v4930, %v5019
        %v5035 = vadd.f32 %v4933, %v5019
        %v5036 = vadd.f32 %v4935, %v5019
        %v5037 = vadd.f32 %v4938, %v5019
        %v5038 = vadd.f32 %v4940, %v5019
        %v5039 = vadd.f32 %v4943, %v5019
        %v5040 = vadd.f32 %v4945, %v5019
        %v5041 = vadd.f32 %v4948, %v5019
        %v5042 = vadd.f32 %v4950, %v5019
        %v5043 = vadd.f32 %v4953, %v5019
        %v5044 = vadd.f32 %v4955, %v5019
        %v5045 = vadd.f32 %v4958, %v5019
        %v5046 = vadd.f32 %v4960, %v5019
        %v5047 = vadd.f32 %v4963, %v5019
        %v5048 = vadd.f32 %v4965, %v5019
        %v5049 = vadd.f32 %v4968, %v5019
        %v5050 = vadd.f32 %v4970, %v5019
        %v5051 = vadd.f32 %v4973, %v5019
        %v5052 = vadd.f32 %v4975, %v5019
        %v5053 = vadd.f32 %v4978, %v5019
        %v5054 = vadd.f32 %v4980, %v5019
        %v5055 = vadd.f32 %v4983, %v5019
        %v5056 = vadd.f32 %v4985, %v5019
        %v5057 = vadd.f32 %v4988, %v5019
        %v5058 = vadd.f32 %v4990, %v5019
        %v5059 = vadd.f32 %v4993, %v5019
        %v5060 = vadd.f32 %v4995, %v5019
        %v5061 = vadd.f32 %v4998, %v5019
        %v5062 = vadd.f32 %v5000, %v5019
        %v5063 = vadd.f32 %v5003, %v5019
        %v5064 = vadd.f32 %v5005, %v5019
        %v5065 = vadd.f32 %v5008, %v5019
        %v5066 = vadd.f32 %v5010, %v5019
        %v5067 = vadd.f32 %v5013, %v5019
        %v5068 = vadd.f32 %v5015, %v5019
        %v5069 = vmax.f32 %v5021, 0.0
        %v5070 = vmax.f32 %v5022, 0.0
        %v5071 = vmax.f32 %v5023, 0.0
        %v5072 = vmax.f32 %v5024, 0.0
        %v5073 = vmax.f32 %v5025, 0.0
        %v5074 = vmax.f32 %v5026, 0.0
        %v5075 = vmax.f32 %v5027, 0.0
        %v5076 = vmax.f32 %v5028, 0.0
        %v5077 = vmax.f32 %v5029, 0.0
        %v5078 = vmax.f32 %v5030, 0.0
        %v5079 = vmax.f32 %v5031, 0.0
        %v5080 = vmax.f32 %v5032, 0.0
        %v5081 = vmax.f32 %v5033, 0.0
        %v5082 = vmax.f32 %v5034, 0.0
        %v5083 = vmax.f32 %v5035, 0.0
        %v5084 = vmax.f32 %v5036, 0.0
        %v5085 = vmax.f32 %v5037, 0.0
        %v5086 = vmax.f32 %v5038, 0.0
        %v5087 = vmax.f32 %v5039, 0.0
        %v5088 = vmax.f32 %v5040, 0.0
        %v5089 = vmax.f32 %v5041, 0.0
        %v5090 = vmax.f32 %v5042, 0.0
        %v5091 = vmax.f32 %v5043, 0.0
        %v5092 = vmax.f32 %v5044, 0.0
        %v5093 = vmax.f32 %v5045, 0.0
        %v5094 = vmax.f32 %v5046, 0.0
        %v5095 = vmax.f32 %v5047, 0.0
        %v5096 = vmax.f32 %v5048, 0.0
        %v5097 = vmax.f32 %v5049, 0.0
        %v5098 = vmax.f32 %v5050, 0.0
        %v5099 = vmax.f32 %v5051, 0.0
        %v5100 = vmax.f32 %v5052, 0.0
        %v5101 = vmax.f32 %v5053, 0.0
        %v5102 = vmax.f32 %v5054, 0.0
        %v5103 = vmax.f32 %v5055, 0.0
        %v5104 = vmax.f32 %v5056, 0.0
        %v5105 = vmax.f32 %v5057, 0.0
        %v5106 = vmax.f32 %v5058, 0.0
        %v5107 = vmax.f32 %v5059, 0.0
        %v5108 = vmax.f32 %v5060, 0.0
        %v5109 = vmax.f32 %v5061, 0.0
        %v5110 = vmax.f32 %v5062, 0.0
        %v5111 = vmax.f32 %v5063, 0.0
        %v5112 = vmax.f32 %v5064, 0.0
        %v5113 = vmax.f32 %v5065, 0.0
        %v5114 = vmax.f32 %v5066, 0.0
        %v5115 = vmax.f32 %v5067, 0.0
        %v5116 = vmax.f32 %v5068, 0.0
        %v5117 = vpack.c.bf16 %v5070, %v5069
        %v5118 = vpack.c.bf16 %v5072, %v5071
        %v5119 = vpack.c.bf16 %v5074, %v5073
        %v5120 = vpack.c.bf16 %v5076, %v5075
        %v5121 = vpack.c.bf16 %v5078, %v5077
        %v5122 = vpack.c.bf16 %v5080, %v5079
        %v5123 = vpack.c.bf16 %v5082, %v5081
        %v5124 = vpack.c.bf16 %v5084, %v5083
        %v5125 = vpack.c.bf16 %v5086, %v5085
        %v5126 = vpack.c.bf16 %v5088, %v5087
        %v5127 = vpack.c.bf16 %v5090, %v5089
        %v5128 = vpack.c.bf16 %v5092, %v5091
        %v5129 = vpack.c.bf16 %v5094, %v5093
        %v5130 = vpack.c.bf16 %v5096, %v5095
        %v5131 = vpack.c.bf16 %v5098, %v5097
        %v5132 = vpack.c.bf16 %v5100, %v5099
        %v5133 = vpack.c.bf16 %v5102, %v5101
        %v5134 = vpack.c.bf16 %v5104, %v5103
        %v5135 = vpack.c.bf16 %v5106, %v5105
        %v5136 = vpack.c.bf16 %v5108, %v5107
        %v5137 = vpack.c.bf16 %v5110, %v5109
        %v5138 = vpack.c.bf16 %v5112, %v5111
        %v5139 = vpack.c.bf16 %v5114, %v5113
        %v5140 = vpack.c.bf16 %v5116, %v5115
        %v5141 = vld [vmem:[%s17] sm:$0xf]
        %v5142 = vld [vmem:[%s17 + $0x4] sm:$0xf]
        %v5143 = vld [vmem:[%s17 + $0x8] sm:$0xf]
        %v5144 = vld [vmem:[%s17 + $0xc] sm:$0xf]
        %v5145 = vld [vmem:[%s17 + $0x10] sm:$0xf]
        %v5146 = vld [vmem:[%s17 + $0x14] sm:$0xf]
        %v5147 = vld [vmem:[%s17 + $0x18] sm:$0xf]
        %v5148 = vld [vmem:[%s17 + $0x1c] sm:$0xf]
        %v5149 = vld [vmem:[%s17 + $0x20] sm:$0xf]
        %v5150 = vld [vmem:[%s17 + $0x24] sm:$0xf]
        %v5151 = vld [vmem:[%s17 + $0x28] sm:$0xf]
        %v5152 = vld [vmem:[%s17 + $0x2c] sm:$0xf]
        %v5153 = vld [vmem:[%s17 + $0x30] sm:$0xf]
        %v5154 = vld [vmem:[%s17 + $0x34] sm:$0xf]
        %v5155 = vld [vmem:[%s17 + $0x38] sm:$0xf]
        %v5156 = vld [vmem:[%s17 + $0x3c] sm:$0xf]
        %v5157 = vld [vmem:[%s18] sm:$0x1]
        %v5159 = vperm.slane %v5157, 0
        %v5177 = vunpack.c.l.b16 %v5141
        %v5178 = vunpack.c.l.b16 %v5142
        %v5179 = vunpack.c.l.b16 %v5143
        %v5180 = vunpack.c.l.b16 %v5144
        %v5181 = vunpack.c.l.b16 %v5145
        %v5182 = vunpack.c.l.b16 %v5146
        %v5183 = vunpack.c.l.b16 %v5147
        %v5184 = vunpack.c.l.b16 %v5148
        %v5185 = vunpack.c.l.b16 %v5149
        %v5186 = vunpack.c.l.b16 %v5150
        %v5187 = vunpack.c.l.b16 %v5151
        %v5188 = vunpack.c.l.b16 %v5152
        %v5189 = vunpack.c.l.b16 %v5153
        %v5190 = vunpack.c.l.b16 %v5154
        %v5191 = vunpack.c.l.b16 %v5155
        %v5192 = vunpack.c.l.b16 %v5156
        %v5193 = vpack.c.b16 %v5178, %v5177
        %v5194 = vpack.c.b16 %v5180, %v5179
        %v5195 = vpack.c.b16 %v5182, %v5181
        %v5196 = vpack.c.b16 %v5184, %v5183
        %v5197 = vpack.c.b16 %v5186, %v5185
        %v5198 = vpack.c.b16 %v5188, %v5187
        %v5199 = vpack.c.b16 %v5190, %v5189
        %v5200 = vpack.c.b16 %v5192, %v5191
        %5209 = vmatpush.bf16.msra.mxu0 %v5200
        %5210 = vmatpush.bf16.msra.mxu0 %v5199
        %5211 = vmatpush.bf16.msra.mxu0 %v5198
        %5212 = vmatpush.bf16.msra.mxu0 %v5197
        %5213 = vmatpush.bf16.msra.mxu0 %v5196
        %5214 = vmatpush.bf16.msra.mxu0 %v5195
        %5215 = vmatpush.bf16.msra.mxu0 %v5194
        %5216 = vmatpush.bf16.msra.mxu0 %v5193
        %5217 = vmatmul.bf16.gmra.mxu0 %v5117
        %v5218 = vpop.f32.mrf.mxu0
        %v5219 = vadd.f32 %v5159, %v5218
        %v5220 = vpop.f32.mrf.mxu0
        %v5221 = vadd.f32 %v5159, %v5220
        %5222 = vmatmul.bf16.gmra.mxu0 %v5118
        %v5223 = vpop.f32.mrf.mxu0
        %v5224 = vadd.f32 %v5159, %v5223
        %v5225 = vpop.f32.mrf.mxu0
        %v5226 = vadd.f32 %v5159, %v5225
        %5227 = vmatmul.bf16.gmra.mxu0 %v5119
        %v5228 = vpop.f32.mrf.mxu0
        %v5229 = vadd.f32 %v5159, %v5228
        %v5230 = vpop.f32.mrf.mxu0
        %v5231 = vadd.f32 %v5159, %v5230
        %5232 = vmatmul.bf16.gmra.mxu0 %v5120
        %v5233 = vpop.f32.mrf.mxu0
        %v5234 = vadd.f32 %v5159, %v5233
        %v5235 = vpop.f32.mrf.mxu0
        %v5236 = vadd.f32 %v5159, %v5235
        %5237 = vmatmul.bf16.gmra.mxu0 %v5121
        %v5238 = vpop.f32.mrf.mxu0
        %v5239 = vadd.f32 %v5159, %v5238
        %v5240 = vpop.f32.mrf.mxu0
        %v5241 = vadd.f32 %v5159, %v5240
        %5242 = vmatmul.bf16.gmra.mxu0 %v5122
        %v5243 = vpop.f32.mrf.mxu0
        %v5244 = vadd.f32 %v5159, %v5243
        %v5245 = vpop.f32.mrf.mxu0
        %v5246 = vadd.f32 %v5159, %v5245
        %5247 = vmatmul.bf16.gmra.mxu0 %v5123
        %v5248 = vpop.f32.mrf.mxu0
        %v5249 = vadd.f32 %v5159, %v5248
        %v5250 = vpop.f32.mrf.mxu0
        %v5251 = vadd.f32 %v5159, %v5250
        %5252 = vmatmul.bf16.gmra.mxu0 %v5124
        %v5253 = vpop.f32.mrf.mxu0
        %v5254 = vadd.f32 %v5159, %v5253
        %v5255 = vpop.f32.mrf.mxu0
        %v5256 = vadd.f32 %v5159, %v5255
        %5257 = vmatmul.bf16.gmra.mxu0 %v5125
        %v5258 = vpop.f32.mrf.mxu0
        %v5259 = vadd.f32 %v5159, %v5258
        %v5260 = vpop.f32.mrf.mxu0
        %v5261 = vadd.f32 %v5159, %v5260
        %5262 = vmatmul.bf16.gmra.mxu0 %v5126
        %v5263 = vpop.f32.mrf.mxu0
        %v5264 = vadd.f32 %v5159, %v5263
        %v5265 = vpop.f32.mrf.mxu0
        %v5266 = vadd.f32 %v5159, %v5265
        %5267 = vmatmul.bf16.gmra.mxu0 %v5127
        %v5268 = vpop.f32.mrf.mxu0
        %v5269 = vadd.f32 %v5159, %v5268
        %v5270 = vpop.f32.mrf.mxu0
        %v5271 = vadd.f32 %v5159, %v5270
        %5272 = vmatmul.bf16.gmra.mxu0 %v5128
        %v5273 = vpop.f32.mrf.mxu0
        %v5274 = vadd.f32 %v5159, %v5273
        %v5275 = vpop.f32.mrf.mxu0
        %v5276 = vadd.f32 %v5159, %v5275
        %5277 = vmatmul.bf16.gmra.mxu0 %v5129
        %v5278 = vpop.f32.mrf.mxu0
        %v5279 = vadd.f32 %v5159, %v5278
        %v5280 = vpop.f32.mrf.mxu0
        %v5281 = vadd.f32 %v5159, %v5280
        %5282 = vmatmul.bf16.gmra.mxu0 %v5130
        %v5283 = vpop.f32.mrf.mxu0
        %v5284 = vadd.f32 %v5159, %v5283
        %v5285 = vpop.f32.mrf.mxu0
        %v5286 = vadd.f32 %v5159, %v5285
        %5287 = vmatmul.bf16.gmra.mxu0 %v5131
        %v5288 = vpop.f32.mrf.mxu0
        %v5289 = vadd.f32 %v5159, %v5288
        %v5290 = vpop.f32.mrf.mxu0
        %v5291 = vadd.f32 %v5159, %v5290
        %5292 = vmatmul.bf16.gmra.mxu0 %v5132
        %v5293 = vpop.f32.mrf.mxu0
        %v5294 = vadd.f32 %v5159, %v5293
        %v5295 = vpop.f32.mrf.mxu0
        %v5296 = vadd.f32 %v5159, %v5295
        %5297 = vmatmul.bf16.gmra.mxu0 %v5133
        %v5298 = vpop.f32.mrf.mxu0
        %v5299 = vadd.f32 %v5159, %v5298
        %v5300 = vpop.f32.mrf.mxu0
        %v5301 = vadd.f32 %v5159, %v5300
        %5302 = vmatmul.bf16.gmra.mxu0 %v5134
        %v5303 = vpop.f32.mrf.mxu0
        %v5304 = vadd.f32 %v5159, %v5303
        %v5305 = vpop.f32.mrf.mxu0
        %v5306 = vadd.f32 %v5159, %v5305
        %5307 = vmatmul.bf16.gmra.mxu0 %v5135
        %v5308 = vpop.f32.mrf.mxu0
        %v5309 = vadd.f32 %v5159, %v5308
        %v5310 = vpop.f32.mrf.mxu0
        %v5311 = vadd.f32 %v5159, %v5310
        %5312 = vmatmul.bf16.gmra.mxu0 %v5136
        %v5313 = vpop.f32.mrf.mxu0
        %v5314 = vadd.f32 %v5159, %v5313
        %v5315 = vpop.f32.mrf.mxu0
        %v5316 = vadd.f32 %v5159, %v5315
        %5317 = vmatmul.bf16.gmra.mxu0 %v5137
        %v5318 = vpop.f32.mrf.mxu0
        %v5319 = vadd.f32 %v5159, %v5318
        %v5320 = vpop.f32.mrf.mxu0
        %v5321 = vadd.f32 %v5159, %v5320
        %5322 = vmatmul.bf16.gmra.mxu0 %v5138
        %v5323 = vpop.f32.mrf.mxu0
        %v5324 = vadd.f32 %v5159, %v5323
        %v5325 = vpop.f32.mrf.mxu0
        %v5326 = vadd.f32 %v5159, %v5325
        %5327 = vmatmul.bf16.gmra.mxu0 %v5139
        %v5328 = vpop.f32.mrf.mxu0
        %v5329 = vadd.f32 %v5159, %v5328
        %v5330 = vpop.f32.mrf.mxu0
        %v5331 = vadd.f32 %v5159, %v5330
        %5332 = vmatmul.bf16.gmra.mxu0 %v5140
        %v5333 = vpop.f32.mrf.mxu0
        %v5334 = vadd.f32 %v5159, %v5333
        %v5335 = vpop.f32.mrf.mxu0
        %v5336 = vadd.f32 %v5159, %v5335
        %5337 = vdwg.mxu0
        %v5338 = vld [vmem:[%s21] sm:$0x1]
        %v5339 = vld [vmem:[%s19] sm:$0x1]
        %v5340 = vld [vmem:[%s20] sm:$0x1]
        %5341 = vadd.xlane.f32.xlu0 %v5219
        %v5342 = vpop.xlane.xlu0 %5341
        %5343 = vadd.xlane.f32.xlu0 %v5221
        %v5344 = vpop.xlane.xlu0 %5343
        %5345 = vadd.xlane.f32.xlu0 %v5224
        %v5346 = vpop.xlane.xlu0 %5345
        %5347 = vadd.xlane.f32.xlu0 %v5226
        %v5348 = vpop.xlane.xlu0 %5347
        %5349 = vadd.xlane.f32.xlu0 %v5229
        %v5350 = vpop.xlane.xlu0 %5349
        %5351 = vadd.xlane.f32.xlu0 %v5231
        %v5352 = vpop.xlane.xlu0 %5351
        %5353 = vadd.xlane.f32.xlu0 %v5234
        %v5354 = vpop.xlane.xlu0 %5353
        %5355 = vadd.xlane.f32.xlu0 %v5236
        %v5356 = vpop.xlane.xlu0 %5355
        %5357 = vadd.xlane.f32.xlu0 %v5239
        %v5358 = vpop.xlane.xlu0 %5357
        %5359 = vadd.xlane.f32.xlu0 %v5241
        %v5360 = vpop.xlane.xlu0 %5359
        %5361 = vadd.xlane.f32.xlu0 %v5244
        %v5362 = vpop.xlane.xlu0 %5361
        %5363 = vadd.xlane.f32.xlu0 %v5246
        %v5364 = vpop.xlane.xlu0 %5363
        %5365 = vadd.xlane.f32.xlu0 %v5249
        %v5366 = vpop.xlane.xlu0 %5365
        %5367 = vadd.xlane.f32.xlu0 %v5251
        %v5368 = vpop.xlane.xlu0 %5367
        %5369 = vadd.xlane.f32.xlu0 %v5254
        %v5370 = vpop.xlane.xlu0 %5369
        %5371 = vadd.xlane.f32.xlu0 %v5256
        %v5372 = vpop.xlane.xlu0 %5371
        %5373 = vadd.xlane.f32.xlu0 %v5259
        %v5374 = vpop.xlane.xlu0 %5373
        %5375 = vadd.xlane.f32.xlu0 %v5261
        %v5376 = vpop.xlane.xlu0 %5375
        %5377 = vadd.xlane.f32.xlu0 %v5264
        %v5378 = vpop.xlane.xlu0 %5377
        %5379 = vadd.xlane.f32.xlu0 %v5266
        %v5380 = vpop.xlane.xlu0 %5379
        %5381 = vadd.xlane.f32.xlu0 %v5269
        %v5382 = vpop.xlane.xlu0 %5381
        %5383 = vadd.xlane.f32.xlu0 %v5271
        %v5384 = vpop.xlane.xlu0 %5383
        %5385 = vadd.xlane.f32.xlu0 %v5274
        %v5386 = vpop.xlane.xlu0 %5385
        %5387 = vadd.xlane.f32.xlu0 %v5276
        %v5388 = vpop.xlane.xlu0 %5387
        %5389 = vadd.xlane.f32.xlu0 %v5279
        %v5390 = vpop.xlane.xlu0 %5389
        %5391 = vadd.xlane.f32.xlu0 %v5281
        %v5392 = vpop.xlane.xlu0 %5391
        %5393 = vadd.xlane.f32.xlu0 %v5284
        %v5394 = vpop.xlane.xlu0 %5393
        %5395 = vadd.xlane.f32.xlu0 %v5286
        %v5396 = vpop.xlane.xlu0 %5395
        %5397 = vadd.xlane.f32.xlu0 %v5289
        %v5398 = vpop.xlane.xlu0 %5397
        %5399 = vadd.xlane.f32.xlu0 %v5291
        %v5400 = vpop.xlane.xlu0 %5399
        %5401 = vadd.xlane.f32.xlu0 %v5294
        %v5402 = vpop.xlane.xlu0 %5401
        %5403 = vadd.xlane.f32.xlu0 %v5296
        %v5404 = vpop.xlane.xlu0 %5403
        %5405 = vadd.xlane.f32.xlu0 %v5299
        %v5406 = vpop.xlane.xlu0 %5405
        %5407 = vadd.xlane.f32.xlu0 %v5301
        %v5408 = vpop.xlane.xlu0 %5407
        %5409 = vadd.xlane.f32.xlu0 %v5304
        %v5410 = vpop.xlane.xlu0 %5409
        %5411 = vadd.xlane.f32.xlu0 %v5306
        %v5412 = vpop.xlane.xlu0 %5411
        %5413 = vadd.xlane.f32.xlu0 %v5309
        %v5414 = vpop.xlane.xlu0 %5413
        %5415 = vadd.xlane.f32.xlu0 %v5311
        %v5416 = vpop.xlane.xlu0 %5415
        %5417 = vadd.xlane.f32.xlu0 %v5314
        %v5418 = vpop.xlane.xlu0 %5417
        %5419 = vadd.xlane.f32.xlu0 %v5316
        %v5420 = vpop.xlane.xlu0 %5419
        %5421 = vadd.xlane.f32.xlu0 %v5319
        %v5422 = vpop.xlane.xlu0 %5421
        %5423 = vadd.xlane.f32.xlu0 %v5321
        %v5424 = vpop.xlane.xlu0 %5423
        %5425 = vadd.xlane.f32.xlu0 %v5324
        %v5426 = vpop.xlane.xlu0 %5425
        %5427 = vadd.xlane.f32.xlu0 %v5326
        %v5428 = vpop.xlane.xlu0 %5427
        %5429 = vadd.xlane.f32.xlu0 %v5329
        %v5430 = vpop.xlane.xlu0 %5429
        %5431 = vadd.xlane.f32.xlu0 %v5331
        %v5432 = vpop.xlane.xlu0 %5431
        %5433 = vadd.xlane.f32.xlu0 %v5334
        %v5434 = vpop.xlane.xlu0 %5433
        %5435 = vadd.xlane.f32.xlu0 %v5336
        %v5436 = vpop.xlane.xlu0 %5435
        %v5437 = vmul.f32 %v5342, 0.03125
        %v5438 = vmul.f32 %v5344, 0.03125
        %v5439 = vmul.f32 %v5346, 0.03125
        %v5440 = vmul.f32 %v5348, 0.03125
        %v5441 = vmul.f32 %v5350, 0.03125
        %v5442 = vmul.f32 %v5352, 0.03125
        %v5443 = vmul.f32 %v5354, 0.03125
        %v5444 = vmul.f32 %v5356, 0.03125
        %v5445 = vmul.f32 %v5358, 0.03125
        %v5446 = vmul.f32 %v5360, 0.03125
        %v5447 = vmul.f32 %v5362, 0.03125
        %v5448 = vmul.f32 %v5364, 0.03125
        %v5449 = vmul.f32 %v5366, 0.03125
        %v5450 = vmul.f32 %v5368, 0.03125
        %v5451 = vmul.f32 %v5370, 0.03125
        %v5452 = vmul.f32 %v5372, 0.03125
        %v5453 = vmul.f32 %v5374, 0.03125
        %v5454 = vmul.f32 %v5376, 0.03125
        %v5455 = vmul.f32 %v5378, 0.03125
        %v5456 = vmul.f32 %v5380, 0.03125
        %v5457 = vmul.f32 %v5382, 0.03125
        %v5458 = vmul.f32 %v5384, 0.03125
        %v5459 = vmul.f32 %v5386, 0.03125
        %v5460 = vmul.f32 %v5388, 0.03125
        %v5461 = vmul.f32 %v5390, 0.03125
        %v5462 = vmul.f32 %v5392, 0.03125
        %v5463 = vmul.f32 %v5394, 0.03125
        %v5464 = vmul.f32 %v5396, 0.03125
        %v5465 = vmul.f32 %v5398, 0.03125
        %v5466 = vmul.f32 %v5400, 0.03125
        %v5467 = vmul.f32 %v5402, 0.03125
        %v5468 = vmul.f32 %v5404, 0.03125
        %v5469 = vmul.f32 %v5406, 0.03125
        %v5470 = vmul.f32 %v5408, 0.03125
        %v5471 = vmul.f32 %v5410, 0.03125
        %v5472 = vmul.f32 %v5412, 0.03125
        %v5473 = vmul.f32 %v5414, 0.03125
        %v5474 = vmul.f32 %v5416, 0.03125
        %v5475 = vmul.f32 %v5418, 0.03125
        %v5476 = vmul.f32 %v5420, 0.03125
        %v5477 = vmul.f32 %v5422, 0.03125
        %v5478 = vmul.f32 %v5424, 0.03125
        %v5479 = vmul.f32 %v5426, 0.03125
        %v5480 = vmul.f32 %v5428, 0.03125
        %v5481 = vmul.f32 %v5430, 0.03125
        %v5482 = vmul.f32 %v5432, 0.03125
        %v5483 = vmul.f32 %v5434, 0.03125
        %v5484 = vmul.f32 %v5436, 0.03125
        %v5485 = vsub.f32 %v5219, %v5437
        %v5486 = vsub.f32 %v5221, %v5438
        %v5487 = vsub.f32 %v5224, %v5439
        %v5488 = vsub.f32 %v5226, %v5440
        %v5489 = vsub.f32 %v5229, %v5441
        %v5490 = vsub.f32 %v5231, %v5442
        %v5491 = vsub.f32 %v5234, %v5443
        %v5492 = vsub.f32 %v5236, %v5444
        %v5493 = vsub.f32 %v5239, %v5445
        %v5494 = vsub.f32 %v5241, %v5446
        %v5495 = vsub.f32 %v5244, %v5447
        %v5496 = vsub.f32 %v5246, %v5448
        %v5497 = vsub.f32 %v5249, %v5449
        %v5498 = vsub.f32 %v5251, %v5450
        %v5499 = vsub.f32 %v5254, %v5451
        %v5500 = vsub.f32 %v5256, %v5452
        %v5501 = vsub.f32 %v5259, %v5453
        %v5502 = vsub.f32 %v5261, %v5454
        %v5503 = vsub.f32 %v5264, %v5455
        %v5504 = vsub.f32 %v5266, %v5456
        %v5505 = vsub.f32 %v5269, %v5457
        %v5506 = vsub.f32 %v5271, %v5458
        %v5507 = vsub.f32 %v5274, %v5459
        %v5508 = vsub.f32 %v5276, %v5460
        %v5509 = vsub.f32 %v5279, %v5461
        %v5510 = vsub.f32 %v5281, %v5462
        %v5511 = vsub.f32 %v5284, %v5463
        %v5512 = vsub.f32 %v5286, %v5464
        %v5513 = vsub.f32 %v5289, %v5465
        %v5514 = vsub.f32 %v5291, %v5466
        %v5515 = vsub.f32 %v5294, %v5467
        %v5516 = vsub.f32 %v5296, %v5468
        %v5517 = vsub.f32 %v5299, %v5469
        %v5518 = vsub.f32 %v5301, %v5470
        %v5519 = vsub.f32 %v5304, %v5471
        %v5520 = vsub.f32 %v5306, %v5472
        %v5521 = vsub.f32 %v5309, %v5473
        %v5522 = vsub.f32 %v5311, %v5474
        %v5523 = vsub.f32 %v5314, %v5475
        %v5524 = vsub.f32 %v5316, %v5476
        %v5525 = vsub.f32 %v5319, %v5477
        %v5526 = vsub.f32 %v5321, %v5478
        %v5527 = vsub.f32 %v5324, %v5479
        %v5528 = vsub.f32 %v5326, %v5480
        %v5529 = vsub.f32 %v5329, %v5481
        %v5530 = vsub.f32 %v5331, %v5482
        %v5531 = vsub.f32 %v5334, %v5483
        %v5532 = vsub.f32 %v5336, %v5484
        %v5534 = vperm.slane %v5338, 0
        %v5536 = vmul.f32 %v5485, %v5534
        %v5537 = vmul.f32 %v5486, %v5534
        %v5538 = vmul.f32 %v5487, %v5534
        %v5539 = vmul.f32 %v5488, %v5534
        %v5540 = vmul.f32 %v5489, %v5534
        %v5541 = vmul.f32 %v5490, %v5534
        %v5542 = vmul.f32 %v5491, %v5534
        %v5543 = vmul.f32 %v5492, %v5534
        %v5544 = vmul.f32 %v5493, %v5534
        %v5545 = vmul.f32 %v5494, %v5534
        %v5546 = vmul.f32 %v5495, %v5534
        %v5547 = vmul.f32 %v5496, %v5534
        %v5548 = vmul.f32 %v5497, %v5534
        %v5549 = vmul.f32 %v5498, %v5534
        %v5550 = vmul.f32 %v5499, %v5534
        %v5551 = vmul.f32 %v5500, %v5534
        %v5552 = vmul.f32 %v5501, %v5534
        %v5553 = vmul.f32 %v5502, %v5534
        %v5554 = vmul.f32 %v5503, %v5534
        %v5555 = vmul.f32 %v5504, %v5534
        %v5556 = vmul.f32 %v5505, %v5534
        %v5557 = vmul.f32 %v5506, %v5534
        %v5558 = vmul.f32 %v5507, %v5534
        %v5559 = vmul.f32 %v5508, %v5534
        %v5560 = vmul.f32 %v5509, %v5534
        %v5561 = vmul.f32 %v5510, %v5534
        %v5562 = vmul.f32 %v5511, %v5534
        %v5563 = vmul.f32 %v5512, %v5534
        %v5564 = vmul.f32 %v5513, %v5534
        %v5565 = vmul.f32 %v5514, %v5534
        %v5566 = vmul.f32 %v5515, %v5534
        %v5567 = vmul.f32 %v5516, %v5534
        %v5568 = vmul.f32 %v5517, %v5534
        %v5569 = vmul.f32 %v5518, %v5534
        %v5570 = vmul.f32 %v5519, %v5534
        %v5571 = vmul.f32 %v5520, %v5534
        %v5572 = vmul.f32 %v5521, %v5534
        %v5573 = vmul.f32 %v5522, %v5534
        %v5574 = vmul.f32 %v5523, %v5534
        %v5575 = vmul.f32 %v5524, %v5534
        %v5576 = vmul.f32 %v5525, %v5534
        %v5577 = vmul.f32 %v5526, %v5534
        %v5578 = vmul.f32 %v5527, %v5534
        %v5579 = vmul.f32 %v5528, %v5534
        %v5580 = vmul.f32 %v5529, %v5534
        %v5581 = vmul.f32 %v5530, %v5534
        %v5582 = vmul.f32 %v5531, %v5534
        %v5583 = vmul.f32 %v5532, %v5534
        %v5584 = vmul.f32 %v5536, %v5536
        %v5585 = vmul.f32 %v5537, %v5537
        %v5586 = vmul.f32 %v5538, %v5538
        %v5587 = vmul.f32 %v5539, %v5539
        %v5588 = vmul.f32 %v5540, %v5540
        %v5589 = vmul.f32 %v5541, %v5541
        %v5590 = vmul.f32 %v5542, %v5542
        %v5591 = vmul.f32 %v5543, %v5543
        %v5592 = vmul.f32 %v5544, %v5544
        %v5593 = vmul.f32 %v5545, %v5545
        %v5594 = vmul.f32 %v5546, %v5546
        %v5595 = vmul.f32 %v5547, %v5547
        %v5596 = vmul.f32 %v5548, %v5548
        %v5597 = vmul.f32 %v5549, %v5549
        %v5598 = vmul.f32 %v5550, %v5550
        %v5599 = vmul.f32 %v5551, %v5551
        %v5600 = vmul.f32 %v5552, %v5552
        %v5601 = vmul.f32 %v5553, %v5553
        %v5602 = vmul.f32 %v5554, %v5554
        %v5603 = vmul.f32 %v5555, %v5555
        %v5604 = vmul.f32 %v5556, %v5556
        %v5605 = vmul.f32 %v5557, %v5557
        %v5606 = vmul.f32 %v5558, %v5558
        %v5607 = vmul.f32 %v5559, %v5559
        %v5608 = vmul.f32 %v5560, %v5560
        %v5609 = vmul.f32 %v5561, %v5561
        %v5610 = vmul.f32 %v5562, %v5562
        %v5611 = vmul.f32 %v5563, %v5563
        %v5612 = vmul.f32 %v5564, %v5564
        %v5613 = vmul.f32 %v5565, %v5565
        %v5614 = vmul.f32 %v5566, %v5566
        %v5615 = vmul.f32 %v5567, %v5567
        %v5616 = vmul.f32 %v5568, %v5568
        %v5617 = vmul.f32 %v5569, %v5569
        %v5618 = vmul.f32 %v5570, %v5570
        %v5619 = vmul.f32 %v5571, %v5571
        %v5620 = vmul.f32 %v5572, %v5572
        %v5621 = vmul.f32 %v5573, %v5573
        %v5622 = vmul.f32 %v5574, %v5574
        %v5623 = vmul.f32 %v5575, %v5575
        %v5624 = vmul.f32 %v5576, %v5576
        %v5625 = vmul.f32 %v5577, %v5577
        %v5626 = vmul.f32 %v5578, %v5578
        %v5627 = vmul.f32 %v5579, %v5579
        %v5628 = vmul.f32 %v5580, %v5580
        %v5629 = vmul.f32 %v5581, %v5581
        %v5630 = vmul.f32 %v5582, %v5582
        %v5631 = vmul.f32 %v5583, %v5583
        %5632 = vadd.xlane.f32.xlu0 %v5584
        %v5633 = vpop.xlane.xlu0 %5632
        %5634 = vadd.xlane.f32.xlu0 %v5585
        %v5635 = vpop.xlane.xlu0 %5634
        %5636 = vadd.xlane.f32.xlu0 %v5586
        %v5637 = vpop.xlane.xlu0 %5636
        %5638 = vadd.xlane.f32.xlu0 %v5587
        %v5639 = vpop.xlane.xlu0 %5638
        %5640 = vadd.xlane.f32.xlu0 %v5588
        %v5641 = vpop.xlane.xlu0 %5640
        %5642 = vadd.xlane.f32.xlu0 %v5589
        %v5643 = vpop.xlane.xlu0 %5642
        %5644 = vadd.xlane.f32.xlu0 %v5590
        %v5645 = vpop.xlane.xlu0 %5644
        %5646 = vadd.xlane.f32.xlu0 %v5591
        %v5647 = vpop.xlane.xlu0 %5646
        %5648 = vadd.xlane.f32.xlu0 %v5592
        %v5649 = vpop.xlane.xlu0 %5648
        %5650 = vadd.xlane.f32.xlu0 %v5593
        %v5651 = vpop.xlane.xlu0 %5650
        %5652 = vadd.xlane.f32.xlu0 %v5594
        %v5653 = vpop.xlane.xlu0 %5652
        %5654 = vadd.xlane.f32.xlu0 %v5595
        %v5655 = vpop.xlane.xlu0 %5654
        %5656 = vadd.xlane.f32.xlu0 %v5596
        %v5657 = vpop.xlane.xlu0 %5656
        %5658 = vadd.xlane.f32.xlu0 %v5597
        %v5659 = vpop.xlane.xlu0 %5658
        %5660 = vadd.xlane.f32.xlu0 %v5598
        %v5661 = vpop.xlane.xlu0 %5660
        %5662 = vadd.xlane.f32.xlu0 %v5599
        %v5663 = vpop.xlane.xlu0 %5662
        %5664 = vadd.xlane.f32.xlu0 %v5600
        %v5665 = vpop.xlane.xlu0 %5664
        %5666 = vadd.xlane.f32.xlu0 %v5601
        %v5667 = vpop.xlane.xlu0 %5666
        %5668 = vadd.xlane.f32.xlu0 %v5602
        %v5669 = vpop.xlane.xlu0 %5668
        %5670 = vadd.xlane.f32.xlu0 %v5603
        %v5671 = vpop.xlane.xlu0 %5670
        %5672 = vadd.xlane.f32.xlu0 %v5604
        %v5673 = vpop.xlane.xlu0 %5672
        %5674 = vadd.xlane.f32.xlu0 %v5605
        %v5675 = vpop.xlane.xlu0 %5674
        %5676 = vadd.xlane.f32.xlu0 %v5606
        %v5677 = vpop.xlane.xlu0 %5676
        %5678 = vadd.xlane.f32.xlu0 %v5607
        %v5679 = vpop.xlane.xlu0 %5678
        %5680 = vadd.xlane.f32.xlu0 %v5608
        %v5681 = vpop.xlane.xlu0 %5680
        %5682 = vadd.xlane.f32.xlu0 %v5609
        %v5683 = vpop.xlane.xlu0 %5682
        %5684 = vadd.xlane.f32.xlu0 %v5610
        %v5685 = vpop.xlane.xlu0 %5684
        %5686 = vadd.xlane.f32.xlu0 %v5611
        %v5687 = vpop.xlane.xlu0 %5686
        %5688 = vadd.xlane.f32.xlu0 %v5612
        %v5689 = vpop.xlane.xlu0 %5688
        %5690 = vadd.xlane.f32.xlu0 %v5613
        %v5691 = vpop.xlane.xlu0 %5690
        %5692 = vadd.xlane.f32.xlu0 %v5614
        %v5693 = vpop.xlane.xlu0 %5692
        %5694 = vadd.xlane.f32.xlu0 %v5615
        %v5695 = vpop.xlane.xlu0 %5694
        %5696 = vadd.xlane.f32.xlu0 %v5616
        %v5697 = vpop.xlane.xlu0 %5696
        %5698 = vadd.xlane.f32.xlu0 %v5617
        %v5699 = vpop.xlane.xlu0 %5698
        %5700 = vadd.xlane.f32.xlu0 %v5618
        %v5701 = vpop.xlane.xlu0 %5700
        %5702 = vadd.xlane.f32.xlu0 %v5619
        %v5703 = vpop.xlane.xlu0 %5702
        %5704 = vadd.xlane.f32.xlu0 %v5620
        %v5705 = vpop.xlane.xlu0 %5704
        %5706 = vadd.xlane.f32.xlu0 %v5621
        %v5707 = vpop.xlane.xlu0 %5706
        %5708 = vadd.xlane.f32.xlu0 %v5622
        %v5709 = vpop.xlane.xlu0 %5708
        %5710 = vadd.xlane.f32.xlu0 %v5623
        %v5711 = vpop.xlane.xlu0 %5710
        %5712 = vadd.xlane.f32.xlu0 %v5624
        %v5713 = vpop.xlane.xlu0 %5712
        %5714 = vadd.xlane.f32.xlu0 %v5625
        %v5715 = vpop.xlane.xlu0 %5714
        %5716 = vadd.xlane.f32.xlu0 %v5626
        %v5717 = vpop.xlane.xlu0 %5716
        %5718 = vadd.xlane.f32.xlu0 %v5627
        %v5719 = vpop.xlane.xlu0 %5718
        %5720 = vadd.xlane.f32.xlu0 %v5628
        %v5721 = vpop.xlane.xlu0 %5720
        %5722 = vadd.xlane.f32.xlu0 %v5629
        %v5723 = vpop.xlane.xlu0 %5722
        %5724 = vadd.xlane.f32.xlu0 %v5630
        %v5725 = vpop.xlane.xlu0 %5724
        %5726 = vadd.xlane.f32.xlu0 %v5631
        %v5727 = vpop.xlane.xlu0 %5726
        %v5728 = vmul.f32 %v5633, 0.03125
        %v5729 = vmul.f32 %v5635, 0.03125
        %v5730 = vmul.f32 %v5637, 0.03125
        %v5731 = vmul.f32 %v5639, 0.03125
        %v5732 = vmul.f32 %v5641, 0.03125
        %v5733 = vmul.f32 %v5643, 0.03125
        %v5734 = vmul.f32 %v5645, 0.03125
        %v5735 = vmul.f32 %v5647, 0.03125
        %v5736 = vmul.f32 %v5649, 0.03125
        %v5737 = vmul.f32 %v5651, 0.03125
        %v5738 = vmul.f32 %v5653, 0.03125
        %v5739 = vmul.f32 %v5655, 0.03125
        %v5740 = vmul.f32 %v5657, 0.03125
        %v5741 = vmul.f32 %v5659, 0.03125
        %v5742 = vmul.f32 %v5661, 0.03125
        %v5743 = vmul.f32 %v5663, 0.03125
        %v5744 = vmul.f32 %v5665, 0.03125
        %v5745 = vmul.f32 %v5667, 0.03125
        %v5746 = vmul.f32 %v5669, 0.03125
        %v5747 = vmul.f32 %v5671, 0.03125
        %v5748 = vmul.f32 %v5673, 0.03125
        %v5749 = vmul.f32 %v5675, 0.03125
        %v5750 = vmul.f32 %v5677, 0.03125
        %v5751 = vmul.f32 %v5679, 0.03125
        %v5752 = vmul.f32 %v5681, 0.03125
        %v5753 = vmul.f32 %v5683, 0.03125
        %v5754 = vmul.f32 %v5685, 0.03125
        %v5755 = vmul.f32 %v5687, 0.03125
        %v5756 = vmul.f32 %v5689, 0.03125
        %v5757 = vmul.f32 %v5691, 0.03125
        %v5758 = vmul.f32 %v5693, 0.03125
        %v5759 = vmul.f32 %v5695, 0.03125
        %v5760 = vmul.f32 %v5697, 0.03125
        %v5761 = vmul.f32 %v5699, 0.03125
        %v5762 = vmul.f32 %v5701, 0.03125
        %v5763 = vmul.f32 %v5703, 0.03125
        %v5764 = vmul.f32 %v5705, 0.03125
        %v5765 = vmul.f32 %v5707, 0.03125
        %v5766 = vmul.f32 %v5709, 0.03125
        %v5767 = vmul.f32 %v5711, 0.03125
        %v5768 = vmul.f32 %v5713, 0.03125
        %v5769 = vmul.f32 %v5715, 0.03125
        %v5770 = vmul.f32 %v5717, 0.03125
        %v5771 = vmul.f32 %v5719, 0.03125
        %v5772 = vmul.f32 %v5721, 0.03125
        %v5773 = vmul.f32 %v5723, 0.03125
        %v5774 = vmul.f32 %v5725, 0.03125
        %v5775 = vmul.f32 %v5727, 0.03125
        %v5776 = vadd.f32 %v5728, 1e-05
        %v5777 = vadd.f32 %v5729, 1e-05
        %v5778 = vadd.f32 %v5730, 1e-05
        %v5779 = vadd.f32 %v5731, 1e-05
        %v5780 = vadd.f32 %v5732, 1e-05
        %v5781 = vadd.f32 %v5733, 1e-05
        %v5782 = vadd.f32 %v5734, 1e-05
        %v5783 = vadd.f32 %v5735, 1e-05
        %v5784 = vadd.f32 %v5736, 1e-05
        %v5785 = vadd.f32 %v5737, 1e-05
        %v5786 = vadd.f32 %v5738, 1e-05
        %v5787 = vadd.f32 %v5739, 1e-05
        %v5788 = vadd.f32 %v5740, 1e-05
        %v5789 = vadd.f32 %v5741, 1e-05
        %v5790 = vadd.f32 %v5742, 1e-05
        %v5791 = vadd.f32 %v5743, 1e-05
        %v5792 = vadd.f32 %v5744, 1e-05
        %v5793 = vadd.f32 %v5745, 1e-05
        %v5794 = vadd.f32 %v5746, 1e-05
        %v5795 = vadd.f32 %v5747, 1e-05
        %v5796 = vadd.f32 %v5748, 1e-05
        %v5797 = vadd.f32 %v5749, 1e-05
        %v5798 = vadd.f32 %v5750, 1e-05
        %v5799 = vadd.f32 %v5751, 1e-05
        %v5800 = vadd.f32 %v5752, 1e-05
        %v5801 = vadd.f32 %v5753, 1e-05
        %v5802 = vadd.f32 %v5754, 1e-05
        %v5803 = vadd.f32 %v5755, 1e-05
        %v5804 = vadd.f32 %v5756, 1e-05
        %v5805 = vadd.f32 %v5757, 1e-05
        %v5806 = vadd.f32 %v5758, 1e-05
        %v5807 = vadd.f32 %v5759, 1e-05
        %v5808 = vadd.f32 %v5760, 1e-05
        %v5809 = vadd.f32 %v5761, 1e-05
        %v5810 = vadd.f32 %v5762, 1e-05
        %v5811 = vadd.f32 %v5763, 1e-05
        %v5812 = vadd.f32 %v5764, 1e-05
        %v5813 = vadd.f32 %v5765, 1e-05
        %v5814 = vadd.f32 %v5766, 1e-05
        %v5815 = vadd.f32 %v5767, 1e-05
        %v5816 = vadd.f32 %v5768, 1e-05
        %v5817 = vadd.f32 %v5769, 1e-05
        %v5818 = vadd.f32 %v5770, 1e-05
        %v5819 = vadd.f32 %v5771, 1e-05
        %v5820 = vadd.f32 %v5772, 1e-05
        %v5821 = vadd.f32 %v5773, 1e-05
        %v5822 = vadd.f32 %v5774, 1e-05
        %v5823 = vadd.f32 %v5775, 1e-05
        %v5824 = vrsqrt.pop %v5776
        %v5825 = vmul.f32 %v5824, %v5776
        %v5826 = vmul.f32 %v5825, %v5824
        %v5827 = vmul.f32 0.5, %v5826
        %v5828 = vsub.f32 1.5, %v5827
        %v5829 = vmul.f32 %v5824, %v5828
        %vm5830 = vweird.f32 %v5776
        %vm5831 = vweird.f32 %v5824
        %vm5832 = vmor %vm5830, %vm5831
        %v5833 = vsel %vm5832, %v5824, %v5829
        %v5834 = vrsqrt.pop %v5777
        %v5835 = vmul.f32 %v5834, %v5777
        %v5836 = vmul.f32 %v5835, %v5834
        %v5837 = vmul.f32 0.5, %v5836
        %v5838 = vsub.f32 1.5, %v5837
        %v5839 = vmul.f32 %v5834, %v5838
        %vm5840 = vweird.f32 %v5777
        %vm5841 = vweird.f32 %v5834
        %vm5842 = vmor %vm5840, %vm5841
        %v5843 = vsel %vm5842, %v5834, %v5839
        %v5844 = vrsqrt.pop %v5778
        %v5845 = vmul.f32 %v5844, %v5778
        %v5846 = vmul.f32 %v5845, %v5844
        %v5847 = vmul.f32 0.5, %v5846
        %v5848 = vsub.f32 1.5, %v5847
        %v5849 = vmul.f32 %v5844, %v5848
        %vm5850 = vweird.f32 %v5778
        %vm5851 = vweird.f32 %v5844
        %vm5852 = vmor %vm5850, %vm5851
        %v5853 = vsel %vm5852, %v5844, %v5849
        %v5854 = vrsqrt.pop %v5779
        %v5855 = vmul.f32 %v5854, %v5779
        %v5856 = vmul.f32 %v5855, %v5854
        %v5857 = vmul.f32 0.5, %v5856
        %v5858 = vsub.f32 1.5, %v5857
        %v5859 = vmul.f32 %v5854, %v5858
        %vm5860 = vweird.f32 %v5779
        %vm5861 = vweird.f32 %v5854
        %vm5862 = vmor %vm5860, %vm5861
        %v5863 = vsel %vm5862, %v5854, %v5859
        %v5864 = vrsqrt.pop %v5780
        %v5865 = vmul.f32 %v5864, %v5780
        %v5866 = vmul.f32 %v5865, %v5864
        %v5867 = vmul.f32 0.5, %v5866
        %v5868 = vsub.f32 1.5, %v5867
        %v5869 = vmul.f32 %v5864, %v5868
        %vm5870 = vweird.f32 %v5780
        %vm5871 = vweird.f32 %v5864
        %vm5872 = vmor %vm5870, %vm5871
        %v5873 = vsel %vm5872, %v5864, %v5869
        %v5874 = vrsqrt.pop %v5781
        %v5875 = vmul.f32 %v5874, %v5781
        %v5876 = vmul.f32 %v5875, %v5874
        %v5877 = vmul.f32 0.5, %v5876
        %v5878 = vsub.f32 1.5, %v5877
        %v5879 = vmul.f32 %v5874, %v5878
        %vm5880 = vweird.f32 %v5781
        %vm5881 = vweird.f32 %v5874
        %vm5882 = vmor %vm5880, %vm5881
        %v5883 = vsel %vm5882, %v5874, %v5879
        %v5884 = vrsqrt.pop %v5782
        %v5885 = vmul.f32 %v5884, %v5782
        %v5886 = vmul.f32 %v5885, %v5884
        %v5887 = vmul.f32 0.5, %v5886
        %v5888 = vsub.f32 1.5, %v5887
        %v5889 = vmul.f32 %v5884, %v5888
        %vm5890 = vweird.f32 %v5782
        %vm5891 = vweird.f32 %v5884
        %vm5892 = vmor %vm5890, %vm5891
        %v5893 = vsel %vm5892, %v5884, %v5889
        %v5894 = vrsqrt.pop %v5783
        %v5895 = vmul.f32 %v5894, %v5783
        %v5896 = vmul.f32 %v5895, %v5894
        %v5897 = vmul.f32 0.5, %v5896
        %v5898 = vsub.f32 1.5, %v5897
        %v5899 = vmul.f32 %v5894, %v5898
        %vm5900 = vweird.f32 %v5783
        %vm5901 = vweird.f32 %v5894
        %vm5902 = vmor %vm5900, %vm5901
        %v5903 = vsel %vm5902, %v5894, %v5899
        %v5904 = vrsqrt.pop %v5784
        %v5905 = vmul.f32 %v5904, %v5784
        %v5906 = vmul.f32 %v5905, %v5904
        %v5907 = vmul.f32 0.5, %v5906
        %v5908 = vsub.f32 1.5, %v5907
        %v5909 = vmul.f32 %v5904, %v5908
        %vm5910 = vweird.f32 %v5784
        %vm5911 = vweird.f32 %v5904
        %vm5912 = vmor %vm5910, %vm5911
        %v5913 = vsel %vm5912, %v5904, %v5909
        %v5914 = vrsqrt.pop %v5785
        %v5915 = vmul.f32 %v5914, %v5785
        %v5916 = vmul.f32 %v5915, %v5914
        %v5917 = vmul.f32 0.5, %v5916
        %v5918 = vsub.f32 1.5, %v5917
        %v5919 = vmul.f32 %v5914, %v5918
        %vm5920 = vweird.f32 %v5785
        %vm5921 = vweird.f32 %v5914
        %vm5922 = vmor %vm5920, %vm5921
        %v5923 = vsel %vm5922, %v5914, %v5919
        %v5924 = vrsqrt.pop %v5786
        %v5925 = vmul.f32 %v5924, %v5786
        %v5926 = vmul.f32 %v5925, %v5924
        %v5927 = vmul.f32 0.5, %v5926
        %v5928 = vsub.f32 1.5, %v5927
        %v5929 = vmul.f32 %v5924, %v5928
        %vm5930 = vweird.f32 %v5786
        %vm5931 = vweird.f32 %v5924
        %vm5932 = vmor %vm5930, %vm5931
        %v5933 = vsel %vm5932, %v5924, %v5929
        %v5934 = vrsqrt.pop %v5787
        %v5935 = vmul.f32 %v5934, %v5787
        %v5936 = vmul.f32 %v5935, %v5934
        %v5937 = vmul.f32 0.5, %v5936
        %v5938 = vsub.f32 1.5, %v5937
        %v5939 = vmul.f32 %v5934, %v5938
        %vm5940 = vweird.f32 %v5787
        %vm5941 = vweird.f32 %v5934
        %vm5942 = vmor %vm5940, %vm5941
        %v5943 = vsel %vm5942, %v5934, %v5939
        %v5944 = vrsqrt.pop %v5788
        %v5945 = vmul.f32 %v5944, %v5788
        %v5946 = vmul.f32 %v5945, %v5944
        %v5947 = vmul.f32 0.5, %v5946
        %v5948 = vsub.f32 1.5, %v5947
        %v5949 = vmul.f32 %v5944, %v5948
        %vm5950 = vweird.f32 %v5788
        %vm5951 = vweird.f32 %v5944
        %vm5952 = vmor %vm5950, %vm5951
        %v5953 = vsel %vm5952, %v5944, %v5949
        %v5954 = vrsqrt.pop %v5789
        %v5955 = vmul.f32 %v5954, %v5789
        %v5956 = vmul.f32 %v5955, %v5954
        %v5957 = vmul.f32 0.5, %v5956
        %v5958 = vsub.f32 1.5, %v5957
        %v5959 = vmul.f32 %v5954, %v5958
        %vm5960 = vweird.f32 %v5789
        %vm5961 = vweird.f32 %v5954
        %vm5962 = vmor %vm5960, %vm5961
        %v5963 = vsel %vm5962, %v5954, %v5959
        %v5964 = vrsqrt.pop %v5790
        %v5965 = vmul.f32 %v5964, %v5790
        %v5966 = vmul.f32 %v5965, %v5964
        %v5967 = vmul.f32 0.5, %v5966
        %v5968 = vsub.f32 1.5, %v5967
        %v5969 = vmul.f32 %v5964, %v5968
        %vm5970 = vweird.f32 %v5790
        %vm5971 = vweird.f32 %v5964
        %vm5972 = vmor %vm5970, %vm5971
        %v5973 = vsel %vm5972, %v5964, %v5969
        %v5974 = vrsqrt.pop %v5791
        %v5975 = vmul.f32 %v5974, %v5791
        %v5976 = vmul.f32 %v5975, %v5974
        %v5977 = vmul.f32 0.5, %v5976
        %v5978 = vsub.f32 1.5, %v5977
        %v5979 = vmul.f32 %v5974, %v5978
        %vm5980 = vweird.f32 %v5791
        %vm5981 = vweird.f32 %v5974
        %vm5982 = vmor %vm5980, %vm5981
        %v5983 = vsel %vm5982, %v5974, %v5979
        %v5984 = vrsqrt.pop %v5792
        %v5985 = vmul.f32 %v5984, %v5792
        %v5986 = vmul.f32 %v5985, %v5984
        %v5987 = vmul.f32 0.5, %v5986
        %v5988 = vsub.f32 1.5, %v5987
        %v5989 = vmul.f32 %v5984, %v5988
        %vm5990 = vweird.f32 %v5792
        %vm5991 = vweird.f32 %v5984
        %vm5992 = vmor %vm5990, %vm5991
        %v5993 = vsel %vm5992, %v5984, %v5989
        %v5994 = vrsqrt.pop %v5793
        %v5995 = vmul.f32 %v5994, %v5793
        %v5996 = vmul.f32 %v5995, %v5994
        %v5997 = vmul.f32 0.5, %v5996
        %v5998 = vsub.f32 1.5, %v5997
        %v5999 = vmul.f32 %v5994, %v5998
        %vm6000 = vweird.f32 %v5793
        %vm6001 = vweird.f32 %v5994
        %vm6002 = vmor %vm6000, %vm6001
        %v6003 = vsel %vm6002, %v5994, %v5999
        %v6004 = vrsqrt.pop %v5794
        %v6005 = vmul.f32 %v6004, %v5794
        %v6006 = vmul.f32 %v6005, %v6004
        %v6007 = vmul.f32 0.5, %v6006
        %v6008 = vsub.f32 1.5, %v6007
        %v6009 = vmul.f32 %v6004, %v6008
        %vm6010 = vweird.f32 %v5794
        %vm6011 = vweird.f32 %v6004
        %vm6012 = vmor %vm6010, %vm6011
        %v6013 = vsel %vm6012, %v6004, %v6009
        %v6014 = vrsqrt.pop %v5795
        %v6015 = vmul.f32 %v6014, %v5795
        %v6016 = vmul.f32 %v6015, %v6014
        %v6017 = vmul.f32 0.5, %v6016
        %v6018 = vsub.f32 1.5, %v6017
        %v6019 = vmul.f32 %v6014, %v6018
        %vm6020 = vweird.f32 %v5795
        %vm6021 = vweird.f32 %v6014
        %vm6022 = vmor %vm6020, %vm6021
        %v6023 = vsel %vm6022, %v6014, %v6019
        %v6024 = vrsqrt.pop %v5796
        %v6025 = vmul.f32 %v6024, %v5796
        %v6026 = vmul.f32 %v6025, %v6024
        %v6027 = vmul.f32 0.5, %v6026
        %v6028 = vsub.f32 1.5, %v6027
        %v6029 = vmul.f32 %v6024, %v6028
        %vm6030 = vweird.f32 %v5796
        %vm6031 = vweird.f32 %v6024
        %vm6032 = vmor %vm6030, %vm6031
        %v6033 = vsel %vm6032, %v6024, %v6029
        %v6034 = vrsqrt.pop %v5797
        %v6035 = vmul.f32 %v6034, %v5797
        %v6036 = vmul.f32 %v6035, %v6034
        %v6037 = vmul.f32 0.5, %v6036
        %v6038 = vsub.f32 1.5, %v6037
        %v6039 = vmul.f32 %v6034, %v6038
        %vm6040 = vweird.f32 %v5797
        %vm6041 = vweird.f32 %v6034
        %vm6042 = vmor %vm6040, %vm6041
        %v6043 = vsel %vm6042, %v6034, %v6039
        %v6044 = vrsqrt.pop %v5798
        %v6045 = vmul.f32 %v6044, %v5798
        %v6046 = vmul.f32 %v6045, %v6044
        %v6047 = vmul.f32 0.5, %v6046
        %v6048 = vsub.f32 1.5, %v6047
        %v6049 = vmul.f32 %v6044, %v6048
        %vm6050 = vweird.f32 %v5798
        %vm6051 = vweird.f32 %v6044
        %vm6052 = vmor %vm6050, %vm6051
        %v6053 = vsel %vm6052, %v6044, %v6049
        %v6054 = vrsqrt.pop %v5799
        %v6055 = vmul.f32 %v6054, %v5799
        %v6056 = vmul.f32 %v6055, %v6054
        %v6057 = vmul.f32 0.5, %v6056
        %v6058 = vsub.f32 1.5, %v6057
        %v6059 = vmul.f32 %v6054, %v6058
        %vm6060 = vweird.f32 %v5799
        %vm6061 = vweird.f32 %v6054
        %vm6062 = vmor %vm6060, %vm6061
        %v6063 = vsel %vm6062, %v6054, %v6059
        %v6064 = vrsqrt.pop %v5800
        %v6065 = vmul.f32 %v6064, %v5800
        %v6066 = vmul.f32 %v6065, %v6064
        %v6067 = vmul.f32 0.5, %v6066
        %v6068 = vsub.f32 1.5, %v6067
        %v6069 = vmul.f32 %v6064, %v6068
        %vm6070 = vweird.f32 %v5800
        %vm6071 = vweird.f32 %v6064
        %vm6072 = vmor %vm6070, %vm6071
        %v6073 = vsel %vm6072, %v6064, %v6069
        %v6074 = vrsqrt.pop %v5801
        %v6075 = vmul.f32 %v6074, %v5801
        %v6076 = vmul.f32 %v6075, %v6074
        %v6077 = vmul.f32 0.5, %v6076
        %v6078 = vsub.f32 1.5, %v6077
        %v6079 = vmul.f32 %v6074, %v6078
        %vm6080 = vweird.f32 %v5801
        %vm6081 = vweird.f32 %v6074
        %vm6082 = vmor %vm6080, %vm6081
        %v6083 = vsel %vm6082, %v6074, %v6079
        %v6084 = vrsqrt.pop %v5802
        %v6085 = vmul.f32 %v6084, %v5802
        %v6086 = vmul.f32 %v6085, %v6084
        %v6087 = vmul.f32 0.5, %v6086
        %v6088 = vsub.f32 1.5, %v6087
        %v6089 = vmul.f32 %v6084, %v6088
        %vm6090 = vweird.f32 %v5802
        %vm6091 = vweird.f32 %v6084
        %vm6092 = vmor %vm6090, %vm6091
        %v6093 = vsel %vm6092, %v6084, %v6089
        %v6094 = vrsqrt.pop %v5803
        %v6095 = vmul.f32 %v6094, %v5803
        %v6096 = vmul.f32 %v6095, %v6094
        %v6097 = vmul.f32 0.5, %v6096
        %v6098 = vsub.f32 1.5, %v6097
        %v6099 = vmul.f32 %v6094, %v6098
        %vm6100 = vweird.f32 %v5803
        %vm6101 = vweird.f32 %v6094
        %vm6102 = vmor %vm6100, %vm6101
        %v6103 = vsel %vm6102, %v6094, %v6099
        %v6104 = vrsqrt.pop %v5804
        %v6105 = vmul.f32 %v6104, %v5804
        %v6106 = vmul.f32 %v6105, %v6104
        %v6107 = vmul.f32 0.5, %v6106
        %v6108 = vsub.f32 1.5, %v6107
        %v6109 = vmul.f32 %v6104, %v6108
        %vm6110 = vweird.f32 %v5804
        %vm6111 = vweird.f32 %v6104
        %vm6112 = vmor %vm6110, %vm6111
        %v6113 = vsel %vm6112, %v6104, %v6109
        %v6114 = vrsqrt.pop %v5805
        %v6115 = vmul.f32 %v6114, %v5805
        %v6116 = vmul.f32 %v6115, %v6114
        %v6117 = vmul.f32 0.5, %v6116
        %v6118 = vsub.f32 1.5, %v6117
        %v6119 = vmul.f32 %v6114, %v6118
        %vm6120 = vweird.f32 %v5805
        %vm6121 = vweird.f32 %v6114
        %vm6122 = vmor %vm6120, %vm6121
        %v6123 = vsel %vm6122, %v6114, %v6119
        %v6124 = vrsqrt.pop %v5806
        %v6125 = vmul.f32 %v6124, %v5806
        %v6126 = vmul.f32 %v6125, %v6124
        %v6127 = vmul.f32 0.5, %v6126
        %v6128 = vsub.f32 1.5, %v6127
        %v6129 = vmul.f32 %v6124, %v6128
        %vm6130 = vweird.f32 %v5806
        %vm6131 = vweird.f32 %v6124
        %vm6132 = vmor %vm6130, %vm6131
        %v6133 = vsel %vm6132, %v6124, %v6129
        %v6134 = vrsqrt.pop %v5807
        %v6135 = vmul.f32 %v6134, %v5807
        %v6136 = vmul.f32 %v6135, %v6134
        %v6137 = vmul.f32 0.5, %v6136
        %v6138 = vsub.f32 1.5, %v6137
        %v6139 = vmul.f32 %v6134, %v6138
        %vm6140 = vweird.f32 %v5807
        %vm6141 = vweird.f32 %v6134
        %vm6142 = vmor %vm6140, %vm6141
        %v6143 = vsel %vm6142, %v6134, %v6139
        %v6144 = vrsqrt.pop %v5808
        %v6145 = vmul.f32 %v6144, %v5808
        %v6146 = vmul.f32 %v6145, %v6144
        %v6147 = vmul.f32 0.5, %v6146
        %v6148 = vsub.f32 1.5, %v6147
        %v6149 = vmul.f32 %v6144, %v6148
        %vm6150 = vweird.f32 %v5808
        %vm6151 = vweird.f32 %v6144
        %vm6152 = vmor %vm6150, %vm6151
        %v6153 = vsel %vm6152, %v6144, %v6149
        %v6154 = vrsqrt.pop %v5809
        %v6155 = vmul.f32 %v6154, %v5809
        %v6156 = vmul.f32 %v6155, %v6154
        %v6157 = vmul.f32 0.5, %v6156
        %v6158 = vsub.f32 1.5, %v6157
        %v6159 = vmul.f32 %v6154, %v6158
        %vm6160 = vweird.f32 %v5809
        %vm6161 = vweird.f32 %v6154
        %vm6162 = vmor %vm6160, %vm6161
        %v6163 = vsel %vm6162, %v6154, %v6159
        %v6164 = vrsqrt.pop %v5810
        %v6165 = vmul.f32 %v6164, %v5810
        %v6166 = vmul.f32 %v6165, %v6164
        %v6167 = vmul.f32 0.5, %v6166
        %v6168 = vsub.f32 1.5, %v6167
        %v6169 = vmul.f32 %v6164, %v6168
        %vm6170 = vweird.f32 %v5810
        %vm6171 = vweird.f32 %v6164
        %vm6172 = vmor %vm6170, %vm6171
        %v6173 = vsel %vm6172, %v6164, %v6169
        %v6174 = vrsqrt.pop %v5811
        %v6175 = vmul.f32 %v6174, %v5811
        %v6176 = vmul.f32 %v6175, %v6174
        %v6177 = vmul.f32 0.5, %v6176
        %v6178 = vsub.f32 1.5, %v6177
        %v6179 = vmul.f32 %v6174, %v6178
        %vm6180 = vweird.f32 %v5811
        %vm6181 = vweird.f32 %v6174
        %vm6182 = vmor %vm6180, %vm6181
        %v6183 = vsel %vm6182, %v6174, %v6179
        %v6184 = vrsqrt.pop %v5812
        %v6185 = vmul.f32 %v6184, %v5812
        %v6186 = vmul.f32 %v6185, %v6184
        %v6187 = vmul.f32 0.5, %v6186
        %v6188 = vsub.f32 1.5, %v6187
        %v6189 = vmul.f32 %v6184, %v6188
        %vm6190 = vweird.f32 %v5812
        %vm6191 = vweird.f32 %v6184
        %vm6192 = vmor %vm6190, %vm6191
        %v6193 = vsel %vm6192, %v6184, %v6189
        %v6194 = vrsqrt.pop %v5813
        %v6195 = vmul.f32 %v6194, %v5813
        %v6196 = vmul.f32 %v6195, %v6194
        %v6197 = vmul.f32 0.5, %v6196
        %v6198 = vsub.f32 1.5, %v6197
        %v6199 = vmul.f32 %v6194, %v6198
        %vm6200 = vweird.f32 %v5813
        %vm6201 = vweird.f32 %v6194
        %vm6202 = vmor %vm6200, %vm6201
        %v6203 = vsel %vm6202, %v6194, %v6199
        %v6204 = vrsqrt.pop %v5814
        %v6205 = vmul.f32 %v6204, %v5814
        %v6206 = vmul.f32 %v6205, %v6204
        %v6207 = vmul.f32 0.5, %v6206
        %v6208 = vsub.f32 1.5, %v6207
        %v6209 = vmul.f32 %v6204, %v6208
        %vm6210 = vweird.f32 %v5814
        %vm6211 = vweird.f32 %v6204
        %vm6212 = vmor %vm6210, %vm6211
        %v6213 = vsel %vm6212, %v6204, %v6209
        %v6214 = vrsqrt.pop %v5815
        %v6215 = vmul.f32 %v6214, %v5815
        %v6216 = vmul.f32 %v6215, %v6214
        %v6217 = vmul.f32 0.5, %v6216
        %v6218 = vsub.f32 1.5, %v6217
        %v6219 = vmul.f32 %v6214, %v6218
        %vm6220 = vweird.f32 %v5815
        %vm6221 = vweird.f32 %v6214
        %vm6222 = vmor %vm6220, %vm6221
        %v6223 = vsel %vm6222, %v6214, %v6219
        %v6224 = vrsqrt.pop %v5816
        %v6225 = vmul.f32 %v6224, %v5816
        %v6226 = vmul.f32 %v6225, %v6224
        %v6227 = vmul.f32 0.5, %v6226
        %v6228 = vsub.f32 1.5, %v6227
        %v6229 = vmul.f32 %v6224, %v6228
        %vm6230 = vweird.f32 %v5816
        %vm6231 = vweird.f32 %v6224
        %vm6232 = vmor %vm6230, %vm6231
        %v6233 = vsel %vm6232, %v6224, %v6229
        %v6234 = vrsqrt.pop %v5817
        %v6235 = vmul.f32 %v6234, %v5817
        %v6236 = vmul.f32 %v6235, %v6234
        %v6237 = vmul.f32 0.5, %v6236
        %v6238 = vsub.f32 1.5, %v6237
        %v6239 = vmul.f32 %v6234, %v6238
        %vm6240 = vweird.f32 %v5817
        %vm6241 = vweird.f32 %v6234
        %vm6242 = vmor %vm6240, %vm6241
        %v6243 = vsel %vm6242, %v6234, %v6239
        %v6244 = vrsqrt.pop %v5818
        %v6245 = vmul.f32 %v6244, %v5818
        %v6246 = vmul.f32 %v6245, %v6244
        %v6247 = vmul.f32 0.5, %v6246
        %v6248 = vsub.f32 1.5, %v6247
        %v6249 = vmul.f32 %v6244, %v6248
        %vm6250 = vweird.f32 %v5818
        %vm6251 = vweird.f32 %v6244
        %vm6252 = vmor %vm6250, %vm6251
        %v6253 = vsel %vm6252, %v6244, %v6249
        %v6254 = vrsqrt.pop %v5819
        %v6255 = vmul.f32 %v6254, %v5819
        %v6256 = vmul.f32 %v6255, %v6254
        %v6257 = vmul.f32 0.5, %v6256
        %v6258 = vsub.f32 1.5, %v6257
        %v6259 = vmul.f32 %v6254, %v6258
        %vm6260 = vweird.f32 %v5819
        %vm6261 = vweird.f32 %v6254
        %vm6262 = vmor %vm6260, %vm6261
        %v6263 = vsel %vm6262, %v6254, %v6259
        %v6264 = vrsqrt.pop %v5820
        %v6265 = vmul.f32 %v6264, %v5820
        %v6266 = vmul.f32 %v6265, %v6264
        %v6267 = vmul.f32 0.5, %v6266
        %v6268 = vsub.f32 1.5, %v6267
        %v6269 = vmul.f32 %v6264, %v6268
        %vm6270 = vweird.f32 %v5820
        %vm6271 = vweird.f32 %v6264
        %vm6272 = vmor %vm6270, %vm6271
        %v6273 = vsel %vm6272, %v6264, %v6269
        %v6274 = vrsqrt.pop %v5821
        %v6275 = vmul.f32 %v6274, %v5821
        %v6276 = vmul.f32 %v6275, %v6274
        %v6277 = vmul.f32 0.5, %v6276
        %v6278 = vsub.f32 1.5, %v6277
        %v6279 = vmul.f32 %v6274, %v6278
        %vm6280 = vweird.f32 %v5821
        %vm6281 = vweird.f32 %v6274
        %vm6282 = vmor %vm6280, %vm6281
        %v6283 = vsel %vm6282, %v6274, %v6279
        %v6284 = vrsqrt.pop %v5822
        %v6285 = vmul.f32 %v6284, %v5822
        %v6286 = vmul.f32 %v6285, %v6284
        %v6287 = vmul.f32 0.5, %v6286
        %v6288 = vsub.f32 1.5, %v6287
        %v6289 = vmul.f32 %v6284, %v6288
        %vm6290 = vweird.f32 %v5822
        %vm6291 = vweird.f32 %v6284
        %vm6292 = vmor %vm6290, %vm6291
        %v6293 = vsel %vm6292, %v6284, %v6289
        %v6294 = vrsqrt.pop %v5823
        %v6295 = vmul.f32 %v6294, %v5823
        %v6296 = vmul.f32 %v6295, %v6294
        %v6297 = vmul.f32 0.5, %v6296
        %v6298 = vsub.f32 1.5, %v6297
        %v6299 = vmul.f32 %v6294, %v6298
        %vm6300 = vweird.f32 %v5823
        %vm6301 = vweird.f32 %v6294
        %vm6302 = vmor %vm6300, %vm6301
        %v6303 = vsel %vm6302, %v6294, %v6299
        %v6304 = vmul.f32 %v5536, %v5833
        %v6305 = vmul.f32 %v5537, %v5843
        %v6306 = vmul.f32 %v5538, %v5853
        %v6307 = vmul.f32 %v5539, %v5863
        %v6308 = vmul.f32 %v5540, %v5873
        %v6309 = vmul.f32 %v5541, %v5883
        %v6310 = vmul.f32 %v5542, %v5893
        %v6311 = vmul.f32 %v5543, %v5903
        %v6312 = vmul.f32 %v5544, %v5913
        %v6313 = vmul.f32 %v5545, %v5923
        %v6314 = vmul.f32 %v5546, %v5933
        %v6315 = vmul.f32 %v5547, %v5943
        %v6316 = vmul.f32 %v5548, %v5953
        %v6317 = vmul.f32 %v5549, %v5963
        %v6318 = vmul.f32 %v5550, %v5973
        %v6319 = vmul.f32 %v5551, %v5983
        %v6320 = vmul.f32 %v5552, %v5993
        %v6321 = vmul.f32 %v5553, %v6003
        %v6322 = vmul.f32 %v5554, %v6013
        %v6323 = vmul.f32 %v5555, %v6023
        %v6324 = vmul.f32 %v5556, %v6033
        %v6325 = vmul.f32 %v5557, %v6043
        %v6326 = vmul.f32 %v5558, %v6053
        %v6327 = vmul.f32 %v5559, %v6063
        %v6328 = vmul.f32 %v5560, %v6073
        %v6329 = vmul.f32 %v5561, %v6083
        %v6330 = vmul.f32 %v5562, %v6093
        %v6331 = vmul.f32 %v5563, %v6103
        %v6332 = vmul.f32 %v5564, %v6113
        %v6333 = vmul.f32 %v5565, %v6123
        %v6334 = vmul.f32 %v5566, %v6133
        %v6335 = vmul.f32 %v5567, %v6143
        %v6336 = vmul.f32 %v5568, %v6153
        %v6337 = vmul.f32 %v5569, %v6163
        %v6338 = vmul.f32 %v5570, %v6173
        %v6339 = vmul.f32 %v5571, %v6183
        %v6340 = vmul.f32 %v5572, %v6193
        %v6341 = vmul.f32 %v5573, %v6203
        %v6342 = vmul.f32 %v5574, %v6213
        %v6343 = vmul.f32 %v5575, %v6223
        %v6344 = vmul.f32 %v5576, %v6233
        %v6345 = vmul.f32 %v5577, %v6243
        %v6346 = vmul.f32 %v5578, %v6253
        %v6347 = vmul.f32 %v5579, %v6263
        %v6348 = vmul.f32 %v5580, %v6273
        %v6349 = vmul.f32 %v5581, %v6283
        %v6350 = vmul.f32 %v5582, %v6293
        %v6351 = vmul.f32 %v5583, %v6303
        %v6353 = vperm.slane %v5339, 0
        %v6355 = vmul.f32 %v6304, %v6353
        %v6356 = vmul.f32 %v6305, %v6353
        %v6357 = vmul.f32 %v6306, %v6353
        %v6358 = vmul.f32 %v6307, %v6353
        %v6359 = vmul.f32 %v6308, %v6353
        %v6360 = vmul.f32 %v6309, %v6353
        %v6361 = vmul.f32 %v6310, %v6353
        %v6362 = vmul.f32 %v6311, %v6353
        %v6363 = vmul.f32 %v6312, %v6353
        %v6364 = vmul.f32 %v6313, %v6353
        %v6365 = vmul.f32 %v6314, %v6353
        %v6366 = vmul.f32 %v6315, %v6353
        %v6367 = vmul.f32 %v6316, %v6353
        %v6368 = vmul.f32 %v6317, %v6353
        %v6369 = vmul.f32 %v6318, %v6353
        %v6370 = vmul.f32 %v6319, %v6353
        %v6371 = vmul.f32 %v6320, %v6353
        %v6372 = vmul.f32 %v6321, %v6353
        %v6373 = vmul.f32 %v6322, %v6353
        %v6374 = vmul.f32 %v6323, %v6353
        %v6375 = vmul.f32 %v6324, %v6353
        %v6376 = vmul.f32 %v6325, %v6353
        %v6377 = vmul.f32 %v6326, %v6353
        %v6378 = vmul.f32 %v6327, %v6353
        %v6379 = vmul.f32 %v6328, %v6353
        %v6380 = vmul.f32 %v6329, %v6353
        %v6381 = vmul.f32 %v6330, %v6353
        %v6382 = vmul.f32 %v6331, %v6353
        %v6383 = vmul.f32 %v6332, %v6353
        %v6384 = vmul.f32 %v6333, %v6353
        %v6385 = vmul.f32 %v6334, %v6353
        %v6386 = vmul.f32 %v6335, %v6353
        %v6387 = vmul.f32 %v6336, %v6353
        %v6388 = vmul.f32 %v6337, %v6353
        %v6389 = vmul.f32 %v6338, %v6353
        %v6390 = vmul.f32 %v6339, %v6353
        %v6391 = vmul.f32 %v6340, %v6353
        %v6392 = vmul.f32 %v6341, %v6353
        %v6393 = vmul.f32 %v6342, %v6353
        %v6394 = vmul.f32 %v6343, %v6353
        %v6395 = vmul.f32 %v6344, %v6353
        %v6396 = vmul.f32 %v6345, %v6353
        %v6397 = vmul.f32 %v6346, %v6353
        %v6398 = vmul.f32 %v6347, %v6353
        %v6399 = vmul.f32 %v6348, %v6353
        %v6400 = vmul.f32 %v6349, %v6353
        %v6401 = vmul.f32 %v6350, %v6353
        %v6402 = vmul.f32 %v6351, %v6353
        %v6404 = vperm.slane %v5340, 0
        %v6406 = vadd.f32 %v6355, %v6404
        %v6407 = vadd.f32 %v6356, %v6404
        %v6408 = vadd.f32 %v6357, %v6404
        %v6409 = vadd.f32 %v6358, %v6404
        %v6410 = vadd.f32 %v6359, %v6404
        %v6411 = vadd.f32 %v6360, %v6404
        %v6412 = vadd.f32 %v6361, %v6404
        %v6413 = vadd.f32 %v6362, %v6404
        %v6414 = vadd.f32 %v6363, %v6404
        %v6415 = vadd.f32 %v6364, %v6404
        %v6416 = vadd.f32 %v6365, %v6404
        %v6417 = vadd.f32 %v6366, %v6404
        %v6418 = vadd.f32 %v6367, %v6404
        %v6419 = vadd.f32 %v6368, %v6404
        %v6420 = vadd.f32 %v6369, %v6404
        %v6421 = vadd.f32 %v6370, %v6404
        %v6422 = vadd.f32 %v6371, %v6404
        %v6423 = vadd.f32 %v6372, %v6404
        %v6424 = vadd.f32 %v6373, %v6404
        %v6425 = vadd.f32 %v6374, %v6404
        %v6426 = vadd.f32 %v6375, %v6404
        %v6427 = vadd.f32 %v6376, %v6404
        %v6428 = vadd.f32 %v6377, %v6404
        %v6429 = vadd.f32 %v6378, %v6404
        %v6430 = vadd.f32 %v6379, %v6404
        %v6431 = vadd.f32 %v6380, %v6404
        %v6432 = vadd.f32 %v6381, %v6404
        %v6433 = vadd.f32 %v6382, %v6404
        %v6434 = vadd.f32 %v6383, %v6404
        %v6435 = vadd.f32 %v6384, %v6404
        %v6436 = vadd.f32 %v6385, %v6404
        %v6437 = vadd.f32 %v6386, %v6404
        %v6438 = vadd.f32 %v6387, %v6404
        %v6439 = vadd.f32 %v6388, %v6404
        %v6440 = vadd.f32 %v6389, %v6404
        %v6441 = vadd.f32 %v6390, %v6404
        %v6442 = vadd.f32 %v6391, %v6404
        %v6443 = vadd.f32 %v6392, %v6404
        %v6444 = vadd.f32 %v6393, %v6404
        %v6445 = vadd.f32 %v6394, %v6404
        %v6446 = vadd.f32 %v6395, %v6404
        %v6447 = vadd.f32 %v6396, %v6404
        %v6448 = vadd.f32 %v6397, %v6404
        %v6449 = vadd.f32 %v6398, %v6404
        %v6450 = vadd.f32 %v6399, %v6404
        %v6451 = vadd.f32 %v6400, %v6404
        %v6452 = vadd.f32 %v6401, %v6404
        %v6453 = vadd.f32 %v6402, %v6404
        %v6454 = vadd.f32 %v4511, %v6406
        %v6455 = vadd.f32 %v4512, %v6407
        %v6456 = vadd.f32 %v4513, %v6408
        %v6457 = vadd.f32 %v4514, %v6409
        %v6458 = vadd.f32 %v4515, %v6410
        %v6459 = vadd.f32 %v4516, %v6411
        %v6460 = vadd.f32 %v4517, %v6412
        %v6461 = vadd.f32 %v4518, %v6413
        %v6462 = vadd.f32 %v4519, %v6414
        %v6463 = vadd.f32 %v4520, %v6415
        %v6464 = vadd.f32 %v4521, %v6416
        %v6465 = vadd.f32 %v4522, %v6417
        %v6466 = vadd.f32 %v4523, %v6418
        %v6467 = vadd.f32 %v4524, %v6419
        %v6468 = vadd.f32 %v4525, %v6420
        %v6469 = vadd.f32 %v4526, %v6421
        %v6470 = vadd.f32 %v4527, %v6422
        %v6471 = vadd.f32 %v4528, %v6423
        %v6472 = vadd.f32 %v4529, %v6424
        %v6473 = vadd.f32 %v4530, %v6425
        %v6474 = vadd.f32 %v4531, %v6426
        %v6475 = vadd.f32 %v4532, %v6427
        %v6476 = vadd.f32 %v4533, %v6428
        %v6477 = vadd.f32 %v4534, %v6429
        %v6478 = vadd.f32 %v4535, %v6430
        %v6479 = vadd.f32 %v4536, %v6431
        %v6480 = vadd.f32 %v4537, %v6432
        %v6481 = vadd.f32 %v4538, %v6433
        %v6482 = vadd.f32 %v4539, %v6434
        %v6483 = vadd.f32 %v4540, %v6435
        %v6484 = vadd.f32 %v4541, %v6436
        %v6485 = vadd.f32 %v4542, %v6437
        %v6486 = vadd.f32 %v4543, %v6438
        %v6487 = vadd.f32 %v4544, %v6439
        %v6488 = vadd.f32 %v4545, %v6440
        %v6489 = vadd.f32 %v4546, %v6441
        %v6490 = vadd.f32 %v4547, %v6442
        %v6491 = vadd.f32 %v4548, %v6443
        %v6492 = vadd.f32 %v4549, %v6444
        %v6493 = vadd.f32 %v4550, %v6445
        %v6494 = vadd.f32 %v4551, %v6446
        %v6495 = vadd.f32 %v4552, %v6447
        %v6496 = vadd.f32 %v4553, %v6448
        %v6497 = vadd.f32 %v4554, %v6449
        %v6498 = vadd.f32 %v4555, %v6450
        %v6499 = vadd.f32 %v4556, %v6451
        %v6500 = vadd.f32 %v4557, %v6452
        %v6501 = vadd.f32 %v4558, %v6453
        %6502 = vst [vmem:[%s23] sm:$0xff] %v6454
        %6503 = vst [vmem:[%s23 + $0x8] sm:$0xff] %v6455
        %6504 = vst [vmem:[%s23 + $0x10] sm:$0xff] %v6456
        %6505 = vst [vmem:[%s23 + $0x18] sm:$0xff] %v6457
        %6506 = vst [vmem:[%s23 + $0x20] sm:$0xff] %v6458
        %6507 = vst [vmem:[%s23 + $0x28] sm:$0xff] %v6459
        %6508 = vst [vmem:[%s23 + $0x30] sm:$0xff] %v6460
        %6509 = vst [vmem:[%s23 + $0x38] sm:$0xff] %v6461
        %6510 = vst [vmem:[%s23 + $0x40] sm:$0xff] %v6462
        %6511 = vst [vmem:[%s23 + $0x48] sm:$0xff] %v6463
        %6512 = vst [vmem:[%s23 + $0x50] sm:$0xff] %v6464
        %6513 = vst [vmem:[%s23 + $0x58] sm:$0xff] %v6465
        %6514 = vst [vmem:[%s23 + $0x60] sm:$0xff] %v6466
        %6515 = vst [vmem:[%s23 + $0x68] sm:$0xff] %v6467
        %6516 = vst [vmem:[%s23 + $0x70] sm:$0xff] %v6468
        %6517 = vst [vmem:[%s23 + $0x78] sm:$0xff] %v6469
        %6518 = vst [vmem:[%s23 + $0x80] sm:$0xff] %v6470
        %6519 = vst [vmem:[%s23 + $0x88] sm:$0xff] %v6471
        %6520 = vst [vmem:[%s23 + $0x90] sm:$0xff] %v6472
        %6521 = vst [vmem:[%s23 + $0x98] sm:$0xff] %v6473
        %6522 = vst [vmem:[%s23 + $0xa0] sm:$0xff] %v6474
        %6523 = vst [vmem:[%s23 + $0xa8] sm:$0xff] %v6475
        %6524 = vst [vmem:[%s23 + $0xb0] sm:$0xff] %v6476
        %6525 = vst [vmem:[%s23 + $0xb8] sm:$0xff] %v6477
        %6526 = vst [vmem:[%s23 + $0xc0] sm:$0xff] %v6478
        %6527 = vst [vmem:[%s23 + $0xc8] sm:$0xff] %v6479
        %6528 = vst [vmem:[%s23 + $0xd0] sm:$0xff] %v6480
        %6529 = vst [vmem:[%s23 + $0xd8] sm:$0xff] %v6481
        %6530 = vst [vmem:[%s23 + $0xe0] sm:$0xff] %v6482
        %6531 = vst [vmem:[%s23 + $0xe8] sm:$0xff] %v6483
        %6532 = vst [vmem:[%s23 + $0xf0] sm:$0xff] %v6484
        %6533 = vst [vmem:[%s23 + $0xf8] sm:$0xff] %v6485
        %6534 = vst [vmem:[%s23 + $0x100] sm:$0xff] %v6486
        %6535 = vst [vmem:[%s23 + $0x108] sm:$0xff] %v6487
        %6536 = vst [vmem:[%s23 + $0x110] sm:$0xff] %v6488
        %6537 = vst [vmem:[%s23 + $0x118] sm:$0xff] %v6489
        %6538 = vst [vmem:[%s23 + $0x120] sm:$0xff] %v6490
        %6539 = vst [vmem:[%s23 + $0x128] sm:$0xff] %v6491
        %6540 = vst [vmem:[%s23 + $0x130] sm:$0xff] %v6492
        %6541 = vst [vmem:[%s23 + $0x138] sm:$0xff] %v6493
        %6542 = vst [vmem:[%s23 + $0x140] sm:$0xff] %v6494
        %6543 = vst [vmem:[%s23 + $0x148] sm:$0xff] %v6495
        %6544 = vst [vmem:[%s23 + $0x150] sm:$0xff] %v6496
        %6545 = vst [vmem:[%s23 + $0x158] sm:$0xff] %v6497
        %6546 = vst [vmem:[%s23 + $0x160] sm:$0xff] %v6498
        %6547 = vst [vmem:[%s23 + $0x168] sm:$0xff] %v6499
        %6548 = vst [vmem:[%s23 + $0x170] sm:$0xff] %v6500
        %6549 = vst [vmem:[%s23 + $0x178] sm:$0xff] %v6501
      $region116: #{processor_forward.2} parent=107 // pred_fallthru
        _
      %s6550 = smul.u32 32, %s35
      %p6551 = scmp.lt.s32.totalorder %s6550, 127
      %s6552 = scalar_select %p6551, %s6550, 127
      %s6553 = smul.addr %s6552, 8
      %s6554 = scalar_lea.vmem %s22, %s6553
      // Predicated region
      $region117: #{processor_forward.2} parent=107 // pred_check
        %p6555 = pneg %p535
      $region118: #{processor_forward.2} parent=107 // pred_check_branch
        %6557 = sbr.rel (%p6555) target = $region120
      $region119: #{processor_forward.2} parent=107 // pred_region
        %s6558 = smul.u32 32, %s35
      $region120: #{processor_forward.2} parent=107 // pred_fallthru
        _
      // Predicated region
      $region121: #{processor_forward.2} parent=107 // pred_check
        %p6559 = pneg %p556
      $region122: #{processor_forward.2} parent=107 // pred_check_branch
        %6561 = sbr.rel (%p6559) target = $region124
      $region123: #{processor_forward.2} parent=107 // pred_region
        _
      $region124: #{processor_forward.2} parent=107 // pred_fallthru
        _
      // Predicated region
      $region125: #{processor_forward.2} parent=107 // pred_check
        %p6562 = pneg %p556
      $region126: #{processor_forward.2} parent=107 // pred_check_branch
        %6564 = sbr.rel (%p6562) target = $region128
      $region127: #{processor_forward.2} parent=107 // pred_region
        _
      $region128: #{processor_forward.2} parent=107 // pred_fallthru
        _
    $region108: #{processor_forward.2} parent=5 // pred_fallthru
      _
    %p6565 = scmp.le.s32.totalorder 2, %s30
    // Predicated region
    $region129: #{processor_forward.2} parent=5 // pred_check
      %p6566 = pneg %p6565
    $region130: #{processor_forward.2} parent=5 // pred_check_branch
      %6568 = sbr.rel (%p6566) target = $region132
    $region131: #{processor_forward.2} parent=5 // pred_region
      %s6569 = ssub.s32 %s30, 2
      // Predicated region
      $region133: #{processor_forward.2} parent=131 // pred_check
        %p6570 = pneg %p541
      $region134: #{processor_forward.2} parent=131 // pred_check_branch
        %6572 = sbr.rel (%p6570) target = $region136
      $region135: #{processor_forward.2} parent=131 // pred_region
        %s6573 = smul.u32 32, %s36
        %p6574 = scmp.lt.s32.totalorder %s6573, 127
        %s6575 = scalar_select %p6574, %s6573, 127
        %s6576 = smul.addr %s6575, 8
        %s6577 = scalar_lea.vmem %s22, %s6576
      $region136: #{processor_forward.2} parent=131 // pred_fallthru
        _
    $region132: #{processor_forward.2} parent=5 // pred_fallthru
      _
  $region6: #{processor_forward.2} parent=0 // loop_footer
    %s34 = sadd.s32 1, %s30
  $region7: #{processor_forward.2} parent=0 // loop_footer_branch
    %29 = sbr.rel target = $region3
  $region8: #{processor_forward.2} parent=0 // loop_exit
    _

</llo_original>
